<compile_context>
chip_gen: v6e
topology: v6e:2x2x1
jax: 0.10.0
libtpu: 0.0.40
codegen_flags: <defaults>
</compile_context>

<pallas_src>
import functools

import jax
import jax.numpy as jnp
import numpy as np
from jax import lax
from jax.experimental import pallas as pl
from jax.experimental.pallas import tpu as pltpu

ALPHA = 0.1       # LeakyReLU slope used by ConvInsBlock
IN_EPS = 1e-5     # InstanceNorm3d default eps
_VMEM_LIMIT_BYTES = 48 * 1024 * 1024   # headroom below v7x's 64 MiB VMEM


# -----------------------------------------------------------------------------
# Wrapper-side layout helpers (pure layout plumbing, no heavy compute).
# -----------------------------------------------------------------------------
def _interp_matrix_2x(n_in):
    """(2*n_in, n_in) 1-D linear-interp matrix, scale=2, align_corners=True."""
    n_out = 2 * n_in
    src = np.arange(n_out, dtype=np.float64) * (n_in - 1) / (n_out - 1)
    lo = np.clip(np.floor(src).astype(np.int64), 0, n_in - 1)
    hi = np.minimum(lo + 1, n_in - 1)
    frac = src - lo
    m = np.zeros((n_out, n_in), dtype=np.float64)
    m[np.arange(n_out), lo] += 1.0 - frac
    m[np.arange(n_out), hi] += frac
    return jnp.asarray(m, dtype=jnp.float32)


def trilinear_upsample_2x(x):
    """x: (N, C, D, H, W) -> (N, C, 2D, 2H, 2W); matches
    nn.Upsample(scale_factor=2, mode='trilinear', align_corners=True)."""
    _, _, d, h, w = x.shape
    md, mh, mw = _interp_matrix_2x(d), _interp_matrix_2x(h), _interp_matrix_2x(w)
    x = jnp.einsum('pd,ncdhw->ncphw', md, x)
    x = jnp.einsum('qh,ncdhw->ncdqw', mh, x)
    x = jnp.einsum('rw,ncdhw->ncdhr', mw, x)
    return x


def _to_padded_planes(x, spp, act_dtype):
    """(N, C, D, H, W) -> (N, D, C, Spp) padded-plane layout with zero ring."""
    n, c, d, h, w = x.shape
    xp = jnp.transpose(x, (0, 2, 1, 3, 4))                        # (N, D, C, H, W)
    xp = jnp.pad(xp, ((0, 0), (0, 0), (0, 0), (1, 1), (1, 1)))    # plane zero ring
    xp = xp.reshape(n, d, c, (h + 2) * (w + 2))
    xp = jnp.pad(xp, ((0, 0), (0, 0), (0, 0), (0, spp - (h + 2) * (w + 2))))
    return xp.astype(act_dtype)


def _interior_mask(h, w, spp):
    """(1, Spp) f32 mask: 1.0 at interior plane positions, 0.0 on ring/pad."""
    hp, wp = h + 2, w + 2
    m = np.zeros((hp, wp), np.float32)
    m[1:1 + h, 1:1 + w] = 1.0
    m = m.reshape(1, hp * wp)
    m = np.pad(m, ((0, 0), (0, spp - hp * wp)))
    return jnp.asarray(m)


def _conv_weight_taps(w5d, dtype):
    """(C_out, C_in, 3, 3, 3) -> (3, 9, C_out, C_in); tap index t = kh*3 + kw."""
    c_out, c_in = w5d.shape[:2]
    return jnp.transpose(w5d, (2, 3, 4, 0, 1)).reshape(3, 9, c_out, c_in).astype(dtype)


# -----------------------------------------------------------------------------
# In-kernel 3x3x3 conv for one output depth plane (halo gather via lane rolls).
# -----------------------------------------------------------------------------
def _conv3x3x3_plane(xm1, x0, xp1, w_ref, scale_lo, scale_hi, *, wp, spp):
    """xm1/x0/xp1: (C, Spp) activations at input depths d-1, d, d+1 (padded-plane
    coords).  w_ref: (3, 9, C_out, C) weight ref.  scale_lo/scale_hi zero the
    d-1 / d+1 taps at the depth boundaries.  Returns (C_out, Spp) float32."""
    acc = None
    taps = ((xm1, 0, scale_lo), (x0, 1, None), (xp1, 2, scale_hi))
    for x, kd, s in taps:
        w_kd = w_ref[kd]                                   # (9, C_out, C)
        if s is not None:
            w_kd = w_kd * s.astype(w_kd.dtype)
        for kh in range(3):
            for kw in range(3):
                delta = (kh - 1) * wp + (kw - 1)           # in-plane flat shift
                xs = x if delta == 0 else pltpu.roll(x, shift=(-delta) % spp, axis=1)
                c = jnp.dot(w_kd[kh * 3 + kw], xs, preferred_element_type=jnp.float32)
                acc = c if acc is None else acc + c
    return acc


# -----------------------------------------------------------------------------
# Kernel 1: fused ConvInsBlock = 3x3x3 conv + InstanceNorm3d + LeakyReLU
# -----------------------------------------------------------------------------
def _conv_ins_lrelu_kernel(xm1_ref, x0_ref, xp1_ref, w_ref, mask_ref,
                           o_ref, sum_ref, sq_ref,
                           *, wp, spp, n_valid, alpha, eps):
    d = pl.program_id(1)
    nd = pl.num_programs(1)

    @pl.when(d == 0)
    def _():
        sum_ref[...] = jnp.zeros_like(sum_ref)
        sq_ref[...] = jnp.zeros_like(sq_ref)

    y = _conv3x3x3_plane(
        xm1_ref[0, 0], x0_ref[0, 0], xp1_ref[0, 0], w_ref,
        jnp.where(d > 0, 1.0, 0.0), jnp.where(d < nd - 1, 1.0, 0.0),
        wp=wp, spp=spp)                                    # (C_out, Spp) f32

    # One-pass InstanceNorm stats over valid interior positions only.
    mask = mask_ref[...]                                   # (1, Spp) f32
    ym = y * mask
    sum_ref[...] += jnp.sum(ym, axis=1, keepdims=True)
    sq_ref[...] += jnp.sum(ym * y, axis=1, keepdims=True)

    # Stash the raw conv result in the resident (D, C_out, Spp) output block;
    # it is normalized in place on the last depth step.
    o_ref[0, pl.ds(d, 1)] = y.astype(o_ref.dtype)[None]

    @pl.when(d == nd - 1)
    def _():
        inv_n = 1.0 / n_valid
        mean = sum_ref[...] * inv_n                        # (C_out, 1)
        var = sq_ref[...] * inv_n - mean * mean            # biased, as InstanceNorm3d
        scale = lax.rsqrt(var + eps)
        shift = -mean * scale
        c_out = scale.shape[0]
        scale3 = scale.reshape(1, c_out, 1)
        shift3 = shift.reshape(1, c_out, 1)
        z = o_ref[0].astype(jnp.float32) * scale3 + shift3
        z = jnp.where(z >= 0, z, alpha * z)
        z = z * mask.reshape(1, 1, spp)                    # zero ring/pad positions
        o_ref[0] = z.astype(o_ref.dtype)


def conv_ins_block(x_act, w5d, *, hu, wu, alpha=ALPHA, eps=IN_EPS):
    """x_act: (N, D, C_in, Spp) padded planes; w5d: (C_out, C_in, 3, 3, 3).
    Returns (N, D, C_out, Spp) in x_act.dtype (bias omitted: cancelled by IN)."""
    n, d, c_in, spp = x_act.shape
    c_out = w5d.shape[0]
    wp = wu + 2
    w_r = _conv_weight_taps(w5d, x_act.dtype)
    mask = _interior_mask(hu, wu, spp)

    kern = functools.partial(_conv_ins_lrelu_kernel, wp=wp, spp=spp,
                             n_valid=float(d * hu * wu), alpha=alpha, eps=eps)
    idx_prev = lambda i, j: (i, jnp.maximum(j - 1, 0), 0, 0)
    idx_cur = lambda i, j: (i, j, 0, 0)
    idx_next = lambda i, j, _d=d: (i, jnp.minimum(j + 1, _d - 1), 0, 0)

    return pl.pallas_call(
        kern,
        out_shape=jax.ShapeDtypeStruct((n, d, c_out, spp), x_act.dtype),
        grid=(n, d),
        in_specs=[
            pl.BlockSpec((1, 1, c_in, spp), idx_prev),
            pl.BlockSpec((1, 1, c_in, spp), idx_cur),
            pl.BlockSpec((1, 1, c_in, spp), idx_next),
            pl.BlockSpec((3, 9, c_out, c_in), lambda i, j: (0, 0, 0, 0)),
            pl.BlockSpec((1, spp), lambda i, j: (0, 0)),
        ],
        # Resident across the depth axis (index map ignores j) -> acts as the
        # in-VMEM accumulator that InstanceNorm finalises on the last step.
        out_specs=pl.BlockSpec((1, d, c_out, spp), lambda i, j: (i, 0, 0, 0)),
        scratch_shapes=[pltpu.VMEM((c_out, 1), jnp.float32),
                        pltpu.VMEM((c_out, 1), jnp.float32)],
        compiler_params=pltpu.CompilerParams(
            dimension_semantics=("parallel", "arbitrary"),
            vmem_limit_bytes=_VMEM_LIMIT_BYTES),
    )(x_act, x_act, x_act, w_r, mask)


# -----------------------------------------------------------------------------
# Kernel 2: fused final conv + softmax over fields + weighted field fusion (*2)
# -----------------------------------------------------------------------------
def _field_fusion_kernel(xm1_ref, x0_ref, xp1_ref, w_ref, b_ref, xup_ref, o_ref,
                         *, wp, spp):
    d = pl.program_id(1)
    nd = pl.num_programs(1)

    logits = _conv3x3x3_plane(
        xm1_ref[0, 0], x0_ref[0, 0], xp1_ref[0, 0], w_ref,
        jnp.where(d > 0, 1.0, 0.0), jnp.where(d < nd - 1, 1.0, 0.0),
        wp=wp, spp=spp)                                    # (nf, Spp) f32
    logits = logits + b_ref[...]

    m = jnp.max(logits, axis=0, keepdims=True)
    e = jnp.exp(logits - m)
    wsoft = e * pl.reciprocal(jnp.sum(e, axis=0, keepdims=True), approx=True)

    xu = xup_ref[0, 0].astype(jnp.float32)                 # (nf, 3, Spp) field-major
    fused = jnp.sum(xu * wsoft[:, None, :], axis=0)        # (3, Spp)
    o_ref[0, 0] = (2.0 * fused).astype(o_ref.dtype)


def field_fusion(h_act, w5d, bias, x_fields, *, hu, wu):
    """h_act: (N, D, C, Spp); w5d: (nf, C, 3,3,3); bias: (nf,);
    x_fields: (N, D, nf, 3, Spp).  Returns (N, D, 3, Spp) float32."""
    n, d, c, spp = h_act.shape
    nf = w5d.shape[0]
    wp = wu + 2
    w_r = _conv_weight_taps(w5d, h_act.dtype)
    b_r = bias.reshape(nf, 1).astype(jnp.float32)

    kern = functools.partial(_field_fusion_kernel, wp=wp, spp=spp)
    idx_prev = lambda i, j: (i, jnp.maximum(j - 1, 0), 0, 0)
    idx_cur = lambda i, j: (i, j, 0, 0)
    idx_next = lambda i, j, _d=d: (i, jnp.minimum(j + 1, _d - 1), 0, 0)

    return pl.pallas_call(
        kern,
        out_shape=jax.ShapeDtypeStruct((n, d, 3, spp), jnp.float32),
        grid=(n, d),
        in_specs=[
            pl.BlockSpec((1, 1, c, spp), idx_prev),
            pl.BlockSpec((1, 1, c, spp), idx_cur),
            pl.BlockSpec((1, 1, c, spp), idx_next),
            pl.BlockSpec((3, 9, nf, c), lambda i, j: (0, 0, 0, 0)),
            pl.BlockSpec((nf, 1), lambda i, j: (0, 0)),
            pl.BlockSpec((1, 1, nf, 3, spp), lambda i, j: (i, j, 0, 0, 0)),
        ],
        out_specs=pl.BlockSpec((1, 1, 3, spp), lambda i, j: (i, j, 0, 0)),
        compiler_params=pltpu.CompilerParams(
            dimension_semantics=("parallel", "parallel"),   # 2 parallel axes (megacore)
            vmem_limit_bytes=_VMEM_LIMIT_BYTES),
    )(h_act, h_act, h_act, w_r, b_r, x_fields)


# -----------------------------------------------------------------------------
# Full HFFM forward (Pallas) and plain-JAX reference
# -----------------------------------------------------------------------------
def hffm_forward(x, params, *, act_dtype=jnp.bfloat16):
    """x: (N, 3*num_fields, D, H, W) float32 -> (N, 3, 2D, 2H, 2W) float32."""
    n, c_in, d0, h0, w0 = x.shape
    nf = c_in // 3
    du, hu, wu = 2 * d0, 2 * h0, 2 * w0
    hp, wp = hu + 2, wu + 2
    sp = hp * wp
    spp = ((sp + 127) // 128) * 128

    # TODO(synk): fuse the trilinear 2x upsample into the first conv kernel.
    x_up = trilinear_upsample_2x(x.astype(jnp.float32))    # (N, C_in, Du, Hu, Wu)
    x_pad = _to_padded_planes(x_up, spp, act_dtype)        # (N, Du, C_in, Spp)

    # ConvInsBlock x2 (b1/b2 intentionally unused: InstanceNorm cancels them).
    h1 = conv_ins_block(x_pad, params['w1'], hu=hu, wu=wu)
    h2 = conv_ins_block(h1, params['w2'], hu=hu, wu=wu)

    # Final conv + softmax(dim=1) + weighted field fusion (* 2).
    x_fields = x_pad.reshape(n, du, nf, 3, spp)            # field-major view
    out_pad = field_fusion(h2, params['w3'], params['b3'], x_fields, hu=hu, wu=wu)

    out = out_pad[..., :sp].reshape(n, du, 3, hp, wp)[:, :, :, 1:1 + hu, 1:1 + wu]
    return jnp.transpose(out, (0, 2, 1, 3, 4))             # (N, 3, Du, Hu, Wu)


def hffm_reference(x, params, *, alpha=ALPHA, eps=IN_EPS):
    """Plain-JAX restatement of the PyTorch HFFM forward (for validation)."""
    def conv3d(v, wt, b):
        y = lax.conv_general_dilated(
            v, wt, window_strides=(1, 1, 1), padding=[(1, 1)] * 3,
            dimension_numbers=('NCDHW', 'OIDHW', 'NCDHW'),
            precision=lax.Precision.HIGHEST)
        return y + b.reshape(1, -1, 1, 1, 1)

    def ins_lrelu(y):
        mean = jnp.mean(y, axis=(2, 3, 4), keepdims=True)
        var = jnp.mean((y - mean) ** 2, axis=(2, 3, 4), keepdims=True)
        z = (y - mean) / jnp.sqrt(var + eps)
        return jnp.where(z >= 0, z, alpha * z)

    x_up = trilinear_upsample_2x(x.astype(jnp.float32))
    h1 = ins_lrelu(conv3d(x_up, params['w1'], params['b1']))
    h2 = ins_lrelu(conv3d(h1, params['w2'], params['b2']))
    logits = conv3d(h2, params['w3'], params['b3'])
    wsoft = jax.nn.softmax(logits, axis=1)
    nf = logits.shape[1]
    out = 0.0
    for i in range(nf):
        out = out + x_up[:, 3 * i:3 * (i + 1)] * wsoft[:, i:i + 1]
    return 2.0 * out


if __name__ == "__main__":
    key = jax.random.PRNGKey(0)
    keys = jax.random.split(key, 7)

    # Small shapes consistent with HFFM: in_channels=6 (num_fields=2),
    # channels=8, 4^3 input volume (upsampled to 8^3 inside the forward).
    N, C_IN, C_MID, D, H, W = 2, 6, 8, 4, 4, 4
    NF = C_IN // 3

    x = jax.random.normal(keys[0], (N, C_IN, D, H, W), dtype=jnp.float32)
    params = {
        'w1': 0.1 * jax.random.normal(keys[1], (C_MID, C_IN, 3, 3, 3), jnp.float32),
        'b1': 0.1 * jax.random.normal(keys[2], (C_MID,), jnp.float32),
        'w2': 0.1 * jax.random.normal(keys[3], (C_MID, C_MID, 3, 3, 3), jnp.float32),
        'b2': 0.1 * jax.random.normal(keys[4], (C_MID,), jnp.float32),
        'w3': 0.1 * jax.random.normal(keys[5], (NF, C_MID, 3, 3, 3), jnp.float32),
        'b3': 0.1 * jax.random.normal(keys[6], (NF,), jnp.float32),
    }

    ref = np.asarray(hffm_reference(x, params))

    # 1) Exact-math check: f32 activation storage end to end (tolerance headroom
    #    only for the EUP approx-reciprocal in the softmax).
    fwd_f32 = jax.jit(functools.partial(hffm_forward, act_dtype=jnp.float32))
    out_f32 = jax.block_until_ready(fwd_f32(x, params))
    np.testing.assert_allclose(np.asarray(out_f32), ref, rtol=5e-3, atol=5e-3)

    # 2) Performance path: bf16 activation storage in HBM (per perf feedback);
    #    tolerance bounded by bf16 quantisation of the intermediates.
    fwd_bf16 = jax.jit(functools.partial(hffm_forward, act_dtype=jnp.bfloat16))
    out_bf16 = jax.block_until_ready(fwd_bf16(x, params))
    np.testing.assert_allclose(np.asarray(out_bf16), ref, rtol=5e-2, atol=5e-2)

    print("KERNEL_OK")
</pallas_src>

<mosaic_0001>
module attributes {stable_mosaic.version = 11 : i64} {
  func.func @_conv_ins_lrelu_kernel(%arg0: i32, %arg1: i32, %arg2: memref<1x1x6x128xf32, #tpu.memory_space<vmem>>, %arg3: memref<1x1x6x128xf32, #tpu.memory_space<vmem>>, %arg4: memref<1x1x6x128xf32, #tpu.memory_space<vmem>>, %arg5: memref<3x9x8x6xf32, #tpu.memory_space<vmem>>, %arg6: memref<1x128xf32, #tpu.memory_space<vmem>>, %arg7: memref<1x8x8x128xf32, #tpu.memory_space<vmem>>, %arg8: memref<8x1xf32, #tpu.memory_space<vmem>>, %arg9: memref<8x1xf32, #tpu.memory_space<vmem>>) attributes {dimension_semantics = [#tpu.dimension_semantics<parallel>, #tpu.dimension_semantics<arbitrary>], iteration_bounds = array<i64: 2, 8>, scalar_prefetch = 0 : i64, scratch_operands = 2 : i64, tpu.core_type = #tpu.core_type<tc>, window_params = [{transform_indices = @transform_0, window_bounds = array<i64: 1, 1, 6, 128>}, {transform_indices = @transform_1, window_bounds = array<i64: 1, 1, 6, 128>}, {transform_indices = @transform_2, window_bounds = array<i64: 1, 1, 6, 128>}, {pipeline_mode = #tpu.pipeline_mode<synchronous>, transform_indices = @transform_3, window_bounds = array<i64: 3, 9, 8, 6>}, {pipeline_mode = #tpu.pipeline_mode<synchronous>, transform_indices = @transform_4, window_bounds = array<i64: 1, 128>}, {transform_indices = @transform_5, window_bounds = array<i64: 1, 8, 8, 128>}]} {
    %c0_i32 = arith.constant 0 : i32
    %0 = arith.cmpi eq, %arg1, %c0_i32 : i32
    %1 = arith.extui %0 : i1 to i32
    %c0_i32_0 = arith.constant 0 : i32
    %2 = arith.cmpi ne, %1, %c0_i32_0 : i32
    scf.if %2 {
      %cst_86 = arith.constant 0.000000e+00 : f32
      %176 = vector.broadcast %cst_86 : f32 to vector<8x1xf32>
      %c0_87 = arith.constant 0 : index
      %c0_88 = arith.constant 0 : index
      %177 = vector.load %arg8[%c0_87, %c0_88] : memref<8x1xf32, #tpu.memory_space<vmem>>, vector<8x1xf32>
      tpu.vector_store %arg8[%c0_87, %c0_88], %176 {strides = array<i32>} : memref<8x1xf32, #tpu.memory_space<vmem>>, vector<8x1xf32>,
      %cst_89 = arith.constant 0.000000e+00 : f32
      %178 = vector.broadcast %cst_89 : f32 to vector<8x1xf32>
      %c0_90 = arith.constant 0 : index
      %c0_91 = arith.constant 0 : index
      %179 = vector.load %arg9[%c0_90, %c0_91] : memref<8x1xf32, #tpu.memory_space<vmem>>, vector<8x1xf32>
      tpu.vector_store %arg9[%c0_90, %c0_91], %178 {strides = array<i32>} : memref<8x1xf32, #tpu.memory_space<vmem>>, vector<8x1xf32>,
    } else {
    }
    %c0 = arith.constant 0 : index
    %c0_1 = arith.constant 0 : index
    %c0_2 = arith.constant 0 : index
    %c0_3 = arith.constant 0 : index
    %3 = vector.load %arg2[%c0, %c0_1, %c0_2, %c0_3] : memref<1x1x6x128xf32, #tpu.memory_space<vmem>>, vector<1x1x6x128xf32>
    %4 = vector.shape_cast %3 : vector<1x1x6x128xf32> to vector<6x128xf32>
    %c0_4 = arith.constant 0 : index
    %c0_5 = arith.constant 0 : index
    %c0_6 = arith.constant 0 : index
    %c0_7 = arith.constant 0 : index
    %5 = vector.load %arg3[%c0_4, %c0_5, %c0_6, %c0_7] : memref<1x1x6x128xf32, #tpu.memory_space<vmem>>, vector<1x1x6x128xf32>
    %6 = vector.shape_cast %5 : vector<1x1x6x128xf32> to vector<6x128xf32>
    %c0_8 = arith.constant 0 : index
    %c0_9 = arith.constant 0 : index
    %c0_10 = arith.constant 0 : index
    %c0_11 = arith.constant 0 : index
    %7 = vector.load %arg4[%c0_8, %c0_9, %c0_10, %c0_11] : memref<1x1x6x128xf32, #tpu.memory_space<vmem>>, vector<1x1x6x128xf32>
    %8 = vector.shape_cast %7 : vector<1x1x6x128xf32> to vector<6x128xf32>
    %c0_i32_12 = arith.constant 0 : i32
    %9 = arith.cmpi sgt, %arg1, %c0_i32_12 : i32
    %cst = arith.constant 1.000000e+00 : f32
    %cst_13 = arith.constant 0.000000e+00 : f32
    %10 = arith.select %9, %cst, %cst_13 : f32
    %c7_i32 = arith.constant 7 : i32
    %11 = arith.cmpi slt, %arg1, %c7_i32 : i32
    %cst_14 = arith.constant 1.000000e+00 : f32
    %cst_15 = arith.constant 0.000000e+00 : f32
    %12 = arith.select %11, %cst_14, %cst_15 : f32
    %c0_16 = arith.constant 0 : index
    %c0_17 = arith.constant 0 : index
    %c0_18 = arith.constant 0 : index
    %c0_19 = arith.constant 0 : index
    %13 = vector.load %arg5[%c0_16, %c0_17, %c0_18, %c0_19] : memref<3x9x8x6xf32, #tpu.memory_space<vmem>>, vector<1x9x8x6xf32>
    %14 = vector.shape_cast %13 : vector<1x9x8x6xf32> to vector<9x8x6xf32>
    %15 = vector.broadcast %10 : f32 to vector<9x8x6xf32>
    %16 = arith.mulf %14, %15 : vector<9x8x6xf32>
    %c11_i32 = arith.constant 11 : i32
    %17 = tpu.dynamic_rotate %4 by %c11_i32 dim 1 : vector<6x128xf32>, i32 -> vector<6x128xf32>
    %18 = vector.extract_strided_slice %16 {offsets = [0, 0, 0], sizes = [1, 8, 6], strides = [1, 1, 1]} : vector<9x8x6xf32> to vector<1x8x6xf32>
    %19 = vector.shape_cast %18 : vector<1x8x6xf32> to vector<8x6xf32>
    %cst_20 = arith.constant dense<0.000000e+00> : vector<8x128xf32>
    %20 = tpu.matmul %19, %17, %cst_20 {dimension_numbers = #tpu.dot_dimension_numbers<[1], [0], [0], [1], [0, 0, 1, 1], [], []>} : vector<8x6xf32>, vector<6x128xf32>, vector<8x128xf32> -> vector<8x128xf32>
    %c10_i32 = arith.constant 10 : i32
    %21 = tpu.dynamic_rotate %4 by %c10_i32 dim 1 : vector<6x128xf32>, i32 -> vector<6x128xf32>
    %22 = vector.extract_strided_slice %16 {offsets = [1, 0, 0], sizes = [1, 8, 6], strides = [1, 1, 1]} : vector<9x8x6xf32> to vector<1x8x6xf32>
    %23 = vector.shape_cast %22 : vector<1x8x6xf32> to vector<8x6xf32>
    %cst_21 = arith.constant dense<0.000000e+00> : vector<8x128xf32>
    %24 = tpu.matmul %23, %21, %cst_21 {dimension_numbers = #tpu.dot_dimension_numbers<[1], [0], [0], [1], [0, 0, 1, 1], [], []>} : vector<8x6xf32>, vector<6x128xf32>, vector<8x128xf32> -> vector<8x128xf32>
    %25 = arith.addf %20, %24 : vector<8x128xf32>
    %c9_i32 = arith.constant 9 : i32
    %26 = tpu.dynamic_rotate %4 by %c9_i32 dim 1 : vector<6x128xf32>, i32 -> vector<6x128xf32>
    %27 = vector.extract_strided_slice %16 {offsets = [2, 0, 0], sizes = [1, 8, 6], strides = [1, 1, 1]} : vector<9x8x6xf32> to vector<1x8x6xf32>
    %28 = vector.shape_cast %27 : vector<1x8x6xf32> to vector<8x6xf32>
    %cst_22 = arith.constant dense<0.000000e+00> : vector<8x128xf32>
    %29 = tpu.matmul %28, %26, %cst_22 {dimension_numbers = #tpu.dot_dimension_numbers<[1], [0], [0], [1], [0, 0, 1, 1], [], []>} : vector<8x6xf32>, vector<6x128xf32>, vector<8x128xf32> -> vector<8x128xf32>
    %30 = arith.addf %25, %29 : vector<8x128xf32>
    %c1_i32 = arith.constant 1 : i32
    %31 = tpu.dynamic_rotate %4 by %c1_i32 dim 1 : vector<6x128xf32>, i32 -> vector<6x128xf32>
    %32 = vector.extract_strided_slice %16 {offsets = [3, 0, 0], sizes = [1, 8, 6], strides = [1, 1, 1]} : vector<9x8x6xf32> to vector<1x8x6xf32>
    %33 = vector.shape_cast %32 : vector<1x8x6xf32> to vector<8x6xf32>
    %cst_23 = arith.constant dense<0.000000e+00> : vector<8x128xf32>
    %34 = tpu.matmul %33, %31, %cst_23 {dimension_numbers = #tpu.dot_dimension_numbers<[1], [0], [0], [1], [0, 0, 1, 1], [], []>} : vector<8x6xf32>, vector<6x128xf32>, vector<8x128xf32> -> vector<8x128xf32>
    %35 = arith.addf %30, %34 : vector<8x128xf32>
    %36 = vector.extract_strided_slice %16 {offsets = [4, 0, 0], sizes = [1, 8, 6], strides = [1, 1, 1]} : vector<9x8x6xf32> to vector<1x8x6xf32>
    %37 = vector.shape_cast %36 : vector<1x8x6xf32> to vector<8x6xf32>
    %cst_24 = arith.constant dense<0.000000e+00> : vector<8x128xf32>
    %38 = tpu.matmul %37, %4, %cst_24 {dimension_numbers = #tpu.dot_dimension_numbers<[1], [0], [0], [1], [0, 0, 1, 1], [], []>} : vector<8x6xf32>, vector<6x128xf32>, vector<8x128xf32> -> vector<8x128xf32>
    %39 = arith.addf %35, %38 : vector<8x128xf32>
    %c127_i32 = arith.constant 127 : i32
    %40 = tpu.dynamic_rotate %4 by %c127_i32 dim 1 : vector<6x128xf32>, i32 -> vector<6x128xf32>
    %41 = vector.extract_strided_slice %16 {offsets = [5, 0, 0], sizes = [1, 8, 6], strides = [1, 1, 1]} : vector<9x8x6xf32> to vector<1x8x6xf32>
    %42 = vector.shape_cast %41 : vector<1x8x6xf32> to vector<8x6xf32>
    %cst_25 = arith.constant dense<0.000000e+00> : vector<8x128xf32>
    %43 = tpu.matmul %42, %40, %cst_25 {dimension_numbers = #tpu.dot_dimension_numbers<[1], [0], [0], [1], [0, 0, 1, 1], [], []>} : vector<8x6xf32>, vector<6x128xf32>, vector<8x128xf32> -> vector<8x128xf32>
    %44 = arith.addf %39, %43 : vector<8x128xf32>
    %c119_i32 = arith.constant 119 : i32
    %45 = tpu.dynamic_rotate %4 by %c119_i32 dim 1 : vector<6x128xf32>, i32 -> vector<6x128xf32>
    %46 = vector.extract_strided_slice %16 {offsets = [6, 0, 0], sizes = [1, 8, 6], strides = [1, 1, 1]} : vector<9x8x6xf32> to vector<1x8x6xf32>
    %47 = vector.shape_cast %46 : vector<1x8x6xf32> to vector<8x6xf32>
    %cst_26 = arith.constant dense<0.000000e+00> : vector<8x128xf32>
    %48 = tpu.matmul %47, %45, %cst_26 {dimension_numbers = #tpu.dot_dimension_numbers<[1], [0], [0], [1], [0, 0, 1, 1], [], []>} : vector<8x6xf32>, vector<6x128xf32>, vector<8x128xf32> -> vector<8x128xf32>
    %49 = arith.addf %44, %48 : vector<8x128xf32>
    %c118_i32 = arith.constant 118 : i32
    %50 = tpu.dynamic_rotate %4 by %c118_i32 dim 1 : vector<6x128xf32>, i32 -> vector<6x128xf32>
    %51 = vector.extract_strided_slice %16 {offsets = [7, 0, 0], sizes = [1, 8, 6], strides = [1, 1, 1]} : vector<9x8x6xf32> to vector<1x8x6xf32>
    %52 = vector.shape_cast %51 : vector<1x8x6xf32> to vector<8x6xf32>
    %cst_27 = arith.constant dense<0.000000e+00> : vector<8x128xf32>
    %53 = tpu.matmul %52, %50, %cst_27 {dimension_numbers = #tpu.dot_dimension_numbers<[1], [0], [0], [1], [0, 0, 1, 1], [], []>} : vector<8x6xf32>, vector<6x128xf32>, vector<8x128xf32> -> vector<8x128xf32>
    %54 = arith.addf %49, %53 : vector<8x128xf32>
    %c117_i32 = arith.constant 117 : i32
    %55 = tpu.dynamic_rotate %4 by %c117_i32 dim 1 : vector<6x128xf32>, i32 -> vector<6x128xf32>
    %56 = vector.extract_strided_slice %16 {offsets = [8, 0, 0], sizes = [1, 8, 6], strides = [1, 1, 1]} : vector<9x8x6xf32> to vector<1x8x6xf32>
    %57 = vector.shape_cast %56 : vector<1x8x6xf32> to vector<8x6xf32>
    %cst_28 = arith.constant dense<0.000000e+00> : vector<8x128xf32>
    %58 = tpu.matmul %57, %55, %cst_28 {dimension_numbers = #tpu.dot_dimension_numbers<[1], [0], [0], [1], [0, 0, 1, 1], [], []>} : vector<8x6xf32>, vector<6x128xf32>, vector<8x128xf32> -> vector<8x128xf32>
    %59 = arith.addf %54, %58 : vector<8x128xf32>
    %c1 = arith.constant 1 : index
    %c0_29 = arith.constant 0 : index
    %c0_30 = arith.constant 0 : index
    %c0_31 = arith.constant 0 : index
    %60 = vector.load %arg5[%c1, %c0_29, %c0_30, %c0_31] : memref<3x9x8x6xf32, #tpu.memory_space<vmem>>, vector<1x9x8x6xf32>
    %61 = vector.shape_cast %60 : vector<1x9x8x6xf32> to vector<9x8x6xf32>
    %c11_i32_32 = arith.constant 11 : i32
    %62 = tpu.dynamic_rotate %6 by %c11_i32_32 dim 1 : vector<6x128xf32>, i32 -> vector<6x128xf32>
    %63 = vector.extract_strided_slice %61 {offsets = [0, 0, 0], sizes = [1, 8, 6], strides = [1, 1, 1]} : vector<9x8x6xf32> to vector<1x8x6xf32>
    %64 = vector.shape_cast %63 : vector<1x8x6xf32> to vector<8x6xf32>
    %cst_33 = arith.constant dense<0.000000e+00> : vector<8x128xf32>
    %65 = tpu.matmul %64, %62, %cst_33 {dimension_numbers = #tpu.dot_dimension_numbers<[1], [0], [0], [1], [0, 0, 1, 1], [], []>} : vector<8x6xf32>, vector<6x128xf32>, vector<8x128xf32> -> vector<8x128xf32>
    %66 = arith.addf %59, %65 : vector<8x128xf32>
    %c10_i32_34 = arith.constant 10 : i32
    %67 = tpu.dynamic_rotate %6 by %c10_i32_34 dim 1 : vector<6x128xf32>, i32 -> vector<6x128xf32>
    %68 = vector.extract_strided_slice %61 {offsets = [1, 0, 0], sizes = [1, 8, 6], strides = [1, 1, 1]} : vector<9x8x6xf32> to vector<1x8x6xf32>
    %69 = vector.shape_cast %68 : vector<1x8x6xf32> to vector<8x6xf32>
    %cst_35 = arith.constant dense<0.000000e+00> : vector<8x128xf32>
    %70 = tpu.matmul %69, %67, %cst_35 {dimension_numbers = #tpu.dot_dimension_numbers<[1], [0], [0], [1], [0, 0, 1, 1], [], []>} : vector<8x6xf32>, vector<6x128xf32>, vector<8x128xf32> -> vector<8x128xf32>
    %71 = arith.addf %66, %70 : vector<8x128xf32>
    %c9_i32_36 = arith.constant 9 : i32
    %72 = tpu.dynamic_rotate %6 by %c9_i32_36 dim 1 : vector<6x128xf32>, i32 -> vector<6x128xf32>
    %73 = vector.extract_strided_slice %61 {offsets = [2, 0, 0], sizes = [1, 8, 6], strides = [1, 1, 1]} : vector<9x8x6xf32> to vector<1x8x6xf32>
    %74 = vector.shape_cast %73 : vector<1x8x6xf32> to vector<8x6xf32>
    %cst_37 = arith.constant dense<0.000000e+00> : vector<8x128xf32>
    %75 = tpu.matmul %74, %72, %cst_37 {dimension_numbers = #tpu.dot_dimension_numbers<[1], [0], [0], [1], [0, 0, 1, 1], [], []>} : vector<8x6xf32>, vector<6x128xf32>, vector<8x128xf32> -> vector<8x128xf32>
    %76 = arith.addf %71, %75 : vector<8x128xf32>
    %c1_i32_38 = arith.constant 1 : i32
    %77 = tpu.dynamic_rotate %6 by %c1_i32_38 dim 1 : vector<6x128xf32>, i32 -> vector<6x128xf32>
    %78 = vector.extract_strided_slice %61 {offsets = [3, 0, 0], sizes = [1, 8, 6], strides = [1, 1, 1]} : vector<9x8x6xf32> to vector<1x8x6xf32>
    %79 = vector.shape_cast %78 : vector<1x8x6xf32> to vector<8x6xf32>
    %cst_39 = arith.constant dense<0.000000e+00> : vector<8x128xf32>
    %80 = tpu.matmul %79, %77, %cst_39 {dimension_numbers = #tpu.dot_dimension_numbers<[1], [0], [0], [1], [0, 0, 1, 1], [], []>} : vector<8x6xf32>, vector<6x128xf32>, vector<8x128xf32> -> vector<8x128xf32>
    %81 = arith.addf %76, %80 : vector<8x128xf32>
    %82 = vector.extract_strided_slice %61 {offsets = [4, 0, 0], sizes = [1, 8, 6], strides = [1, 1, 1]} : vector<9x8x6xf32> to vector<1x8x6xf32>
    %83 = vector.shape_cast %82 : vector<1x8x6xf32> to vector<8x6xf32>
    %cst_40 = arith.constant dense<0.000000e+00> : vector<8x128xf32>
    %84 = tpu.matmul %83, %6, %cst_40 {dimension_numbers = #tpu.dot_dimension_numbers<[1], [0], [0], [1], [0, 0, 1, 1], [], []>} : vector<8x6xf32>, vector<6x128xf32>, vector<8x128xf32> -> vector<8x128xf32>
    %85 = arith.addf %81, %84 : vector<8x128xf32>
    %c127_i32_41 = arith.constant 127 : i32
    %86 = tpu.dynamic_rotate %6 by %c127_i32_41 dim 1 : vector<6x128xf32>, i32 -> vector<6x128xf32>
    %87 = vector.extract_strided_slice %61 {offsets = [5, 0, 0], sizes = [1, 8, 6], strides = [1, 1, 1]} : vector<9x8x6xf32> to vector<1x8x6xf32>
    %88 = vector.shape_cast %87 : vector<1x8x6xf32> to vector<8x6xf32>
    %cst_42 = arith.constant dense<0.000000e+00> : vector<8x128xf32>
    %89 = tpu.matmul %88, %86, %cst_42 {dimension_numbers = #tpu.dot_dimension_numbers<[1], [0], [0], [1], [0, 0, 1, 1], [], []>} : vector<8x6xf32>, vector<6x128xf32>, vector<8x128xf32> -> vector<8x128xf32>
    %90 = arith.addf %85, %89 : vector<8x128xf32>
    %c119_i32_43 = arith.constant 119 : i32
    %91 = tpu.dynamic_rotate %6 by %c119_i32_43 dim 1 : vector<6x128xf32>, i32 -> vector<6x128xf32>
    %92 = vector.extract_strided_slice %61 {offsets = [6, 0, 0], sizes = [1, 8, 6], strides = [1, 1, 1]} : vector<9x8x6xf32> to vector<1x8x6xf32>
    %93 = vector.shape_cast %92 : vector<1x8x6xf32> to vector<8x6xf32>
    %cst_44 = arith.constant dense<0.000000e+00> : vector<8x128xf32>
    %94 = tpu.matmul %93, %91, %cst_44 {dimension_numbers = #tpu.dot_dimension_numbers<[1], [0], [0], [1], [0, 0, 1, 1], [], []>} : vector<8x6xf32>, vector<6x128xf32>, vector<8x128xf32> -> vector<8x128xf32>
    %95 = arith.addf %90, %94 : vector<8x128xf32>
    %c118_i32_45 = arith.constant 118 : i32
    %96 = tpu.dynamic_rotate %6 by %c118_i32_45 dim 1 : vector<6x128xf32>, i32 -> vector<6x128xf32>
    %97 = vector.extract_strided_slice %61 {offsets = [7, 0, 0], sizes = [1, 8, 6], strides = [1, 1, 1]} : vector<9x8x6xf32> to vector<1x8x6xf32>
    %98 = vector.shape_cast %97 : vector<1x8x6xf32> to vector<8x6xf32>
    %cst_46 = arith.constant dense<0.000000e+00> : vector<8x128xf32>
    %99 = tpu.matmul %98, %96, %cst_46 {dimension_numbers = #tpu.dot_dimension_numbers<[1], [0], [0], [1], [0, 0, 1, 1], [], []>} : vector<8x6xf32>, vector<6x128xf32>, vector<8x128xf32> -> vector<8x128xf32>
    %100 = arith.addf %95, %99 : vector<8x128xf32>
    %c117_i32_47 = arith.constant 117 : i32
    %101 = tpu.dynamic_rotate %6 by %c117_i32_47 dim 1 : vector<6x128xf32>, i32 -> vector<6x128xf32>
    %102 = vector.extract_strided_slice %61 {offsets = [8, 0, 0], sizes = [1, 8, 6], strides = [1, 1, 1]} : vector<9x8x6xf32> to vector<1x8x6xf32>
    %103 = vector.shape_cast %102 : vector<1x8x6xf32> to vector<8x6xf32>
    %cst_48 = arith.constant dense<0.000000e+00> : vector<8x128xf32>
    %104 = tpu.matmul %103, %101, %cst_48 {dimension_numbers = #tpu.dot_dimension_numbers<[1], [0], [0], [1], [0, 0, 1, 1], [], []>} : vector<8x6xf32>, vector<6x128xf32>, vector<8x128xf32> -> vector<8x128xf32>
    %105 = arith.addf %100, %104 : vector<8x128xf32>
    %c2 = arith.constant 2 : index
    %c0_49 = arith.constant 0 : index
    %c0_50 = arith.constant 0 : index
    %c0_51 = arith.constant 0 : index
    %106 = vector.load %arg5[%c2, %c0_49, %c0_50, %c0_51] : memref<3x9x8x6xf32, #tpu.memory_space<vmem>>, vector<1x9x8x6xf32>
    %107 = vector.shape_cast %106 : vector<1x9x8x6xf32> to vector<9x8x6xf32>
    %108 = vector.broadcast %12 : f32 to vector<9x8x6xf32>
    %109 = arith.mulf %107, %108 : vector<9x8x6xf32>
    %c11_i32_52 = arith.constant 11 : i32
    %110 = tpu.dynamic_rotate %8 by %c11_i32_52 dim 1 : vector<6x128xf32>, i32 -> vector<6x128xf32>
    %111 = vector.extract_strided_slice %109 {offsets = [0, 0, 0], sizes = [1, 8, 6], strides = [1, 1, 1]} : vector<9x8x6xf32> to vector<1x8x6xf32>
    %112 = vector.shape_cast %111 : vector<1x8x6xf32> to vector<8x6xf32>
    %cst_53 = arith.constant dense<0.000000e+00> : vector<8x128xf32>
    %113 = tpu.matmul %112, %110, %cst_53 {dimension_numbers = #tpu.dot_dimension_numbers<[1], [0], [0], [1], [0, 0, 1, 1], [], []>} : vector<8x6xf32>, vector<6x128xf32>, vector<8x128xf32> -> vector<8x128xf32>
    %114 = arith.addf %105, %113 : vector<8x128xf32>
    %c10_i32_54 = arith.constant 10 : i32
    %115 = tpu.dynamic_rotate %8 by %c10_i32_54 dim 1 : vector<6x128xf32>, i32 -> vector<6x128xf32>
    %116 = vector.extract_strided_slice %109 {offsets = [1, 0, 0], sizes = [1, 8, 6], strides = [1, 1, 1]} : vector<9x8x6xf32> to vector<1x8x6xf32>
    %117 = vector.shape_cast %116 : vector<1x8x6xf32> to vector<8x6xf32>
    %cst_55 = arith.constant dense<0.000000e+00> : vector<8x128xf32>
    %118 = tpu.matmul %117, %115, %cst_55 {dimension_numbers = #tpu.dot_dimension_numbers<[1], [0], [0], [1], [0, 0, 1, 1], [], []>} : vector<8x6xf32>, vector<6x128xf32>, vector<8x128xf32> -> vector<8x128xf32>
    %119 = arith.addf %114, %118 : vector<8x128xf32>
    %c9_i32_56 = arith.constant 9 : i32
    %120 = tpu.dynamic_rotate %8 by %c9_i32_56 dim 1 : vector<6x128xf32>, i32 -> vector<6x128xf32>
    %121 = vector.extract_strided_slice %109 {offsets = [2, 0, 0], sizes = [1, 8, 6], strides = [1, 1, 1]} : vector<9x8x6xf32> to vector<1x8x6xf32>
    %122 = vector.shape_cast %121 : vector<1x8x6xf32> to vector<8x6xf32>
    %cst_57 = arith.constant dense<0.000000e+00> : vector<8x128xf32>
    %123 = tpu.matmul %122, %120, %cst_57 {dimension_numbers = #tpu.dot_dimension_numbers<[1], [0], [0], [1], [0, 0, 1, 1], [], []>} : vector<8x6xf32>, vector<6x128xf32>, vector<8x128xf32> -> vector<8x128xf32>
    %124 = arith.addf %119, %123 : vector<8x128xf32>
    %c1_i32_58 = arith.constant 1 : i32
    %125 = tpu.dynamic_rotate %8 by %c1_i32_58 dim 1 : vector<6x128xf32>, i32 -> vector<6x128xf32>
    %126 = vector.extract_strided_slice %109 {offsets = [3, 0, 0], sizes = [1, 8, 6], strides = [1, 1, 1]} : vector<9x8x6xf32> to vector<1x8x6xf32>
    %127 = vector.shape_cast %126 : vector<1x8x6xf32> to vector<8x6xf32>
    %cst_59 = arith.constant dense<0.000000e+00> : vector<8x128xf32>
    %128 = tpu.matmul %127, %125, %cst_59 {dimension_numbers = #tpu.dot_dimension_numbers<[1], [0], [0], [1], [0, 0, 1, 1], [], []>} : vector<8x6xf32>, vector<6x128xf32>, vector<8x128xf32> -> vector<8x128xf32>
    %129 = arith.addf %124, %128 : vector<8x128xf32>
    %130 = vector.extract_strided_slice %109 {offsets = [4, 0, 0], sizes = [1, 8, 6], strides = [1, 1, 1]} : vector<9x8x6xf32> to vector<1x8x6xf32>
    %131 = vector.shape_cast %130 : vector<1x8x6xf32> to vector<8x6xf32>
    %cst_60 = arith.constant dense<0.000000e+00> : vector<8x128xf32>
    %132 = tpu.matmul %131, %8, %cst_60 {dimension_numbers = #tpu.dot_dimension_numbers<[1], [0], [0], [1], [0, 0, 1, 1], [], []>} : vector<8x6xf32>, vector<6x128xf32>, vector<8x128xf32> -> vector<8x128xf32>
    %133 = arith.addf %129, %132 : vector<8x128xf32>
    %c127_i32_61 = arith.constant 127 : i32
    %134 = tpu.dynamic_rotate %8 by %c127_i32_61 dim 1 : vector<6x128xf32>, i32 -> vector<6x128xf32>
    %135 = vector.extract_strided_slice %109 {offsets = [5, 0, 0], sizes = [1, 8, 6], strides = [1, 1, 1]} : vector<9x8x6xf32> to vector<1x8x6xf32>
    %136 = vector.shape_cast %135 : vector<1x8x6xf32> to vector<8x6xf32>
    %cst_62 = arith.constant dense<0.000000e+00> : vector<8x128xf32>
    %137 = tpu.matmul %136, %134, %cst_62 {dimension_numbers = #tpu.dot_dimension_numbers<[1], [0], [0], [1], [0, 0, 1, 1], [], []>} : vector<8x6xf32>, vector<6x128xf32>, vector<8x128xf32> -> vector<8x128xf32>
    %138 = arith.addf %133, %137 : vector<8x128xf32>
    %c119_i32_63 = arith.constant 119 : i32
    %139 = tpu.dynamic_rotate %8 by %c119_i32_63 dim 1 : vector<6x128xf32>, i32 -> vector<6x128xf32>
    %140 = vector.extract_strided_slice %109 {offsets = [6, 0, 0], sizes = [1, 8, 6], strides = [1, 1, 1]} : vector<9x8x6xf32> to vector<1x8x6xf32>
    %141 = vector.shape_cast %140 : vector<1x8x6xf32> to vector<8x6xf32>
    %cst_64 = arith.constant dense<0.000000e+00> : vector<8x128xf32>
    %142 = tpu.matmul %141, %139, %cst_64 {dimension_numbers = #tpu.dot_dimension_numbers<[1], [0], [0], [1], [0, 0, 1, 1], [], []>} : vector<8x6xf32>, vector<6x128xf32>, vector<8x128xf32> -> vector<8x128xf32>
    %143 = arith.addf %138, %142 : vector<8x128xf32>
    %c118_i32_65 = arith.constant 118 : i32
    %144 = tpu.dynamic_rotate %8 by %c118_i32_65 dim 1 : vector<6x128xf32>, i32 -> vector<6x128xf32>
    %145 = vector.extract_strided_slice %109 {offsets = [7, 0, 0], sizes = [1, 8, 6], strides = [1, 1, 1]} : vector<9x8x6xf32> to vector<1x8x6xf32>
    %146 = vector.shape_cast %145 : vector<1x8x6xf32> to vector<8x6xf32>
    %cst_66 = arith.constant dense<0.000000e+00> : vector<8x128xf32>
    %147 = tpu.matmul %146, %144, %cst_66 {dimension_numbers = #tpu.dot_dimension_numbers<[1], [0], [0], [1], [0, 0, 1, 1], [], []>} : vector<8x6xf32>, vector<6x128xf32>, vector<8x128xf32> -> vector<8x128xf32>
    %148 = arith.addf %143, %147 : vector<8x128xf32>
    %c117_i32_67 = arith.constant 117 : i32
    %149 = tpu.dynamic_rotate %8 by %c117_i32_67 dim 1 : vector<6x128xf32>, i32 -> vector<6x128xf32>
    %150 = vector.extract_strided_slice %109 {offsets = [8, 0, 0], sizes = [1, 8, 6], strides = [1, 1, 1]} : vector<9x8x6xf32> to vector<1x8x6xf32>
    %151 = vector.shape_cast %150 : vector<1x8x6xf32> to vector<8x6xf32>
    %cst_68 = arith.constant dense<0.000000e+00> : vector<8x128xf32>
    %152 = tpu.matmul %151, %149, %cst_68 {dimension_numbers = #tpu.dot_dimension_numbers<[1], [0], [0], [1], [0, 0, 1, 1], [], []>} : vector<8x6xf32>, vector<6x128xf32>, vector<8x128xf32> -> vector<8x128xf32>
    %153 = arith.addf %148, %152 : vector<8x128xf32>
    %c0_69 = arith.constant 0 : index
    %c0_70 = arith.constant 0 : index
    %154 = vector.load %arg6[%c0_69, %c0_70] : memref<1x128xf32, #tpu.memory_space<vmem>>, vector<1x128xf32>
    %155 = vector.broadcast %154 : vector<1x128xf32> to vector<8x128xf32>
    %156 = arith.mulf %153, %155 : vector<8x128xf32>
    %c0_71 = arith.constant 0 : index
    %c0_72 = arith.constant 0 : index
    %157 = vector.load %arg8[%c0_71, %c0_72] : memref<8x1xf32, #tpu.memory_space<vmem>>, vector<8x1xf32>
    %cst_73 = arith.constant dense<0.000000e+00> : vector<8xf32>
    %158 = vector.multi_reduction <add>, %156, %cst_73 [1] : vector<8x128xf32> to vector<8xf32>
    %159 = vector.shape_cast %158 : vector<8xf32> to vector<8x1xf32>
    %160 = arith.addf %157, %159 : vector<8x1xf32>
    %c0_74 = arith.constant 0 : index
    %c0_75 = arith.constant 0 : index
    %161 = vector.load %arg8[%c0_74, %c0_75] : memref<8x1xf32, #tpu.memory_space<vmem>>, vector<8x1xf32>
    tpu.vector_store %arg8[%c0_74, %c0_75], %160 {strides = array<i32>} : memref<8x1xf32, #tpu.memory_space<vmem>>, vector<8x1xf32>,
    %c0_76 = arith.constant 0 : index
    %c0_77 = arith.constant 0 : index
    %162 = vector.load %arg9[%c0_76, %c0_77] : memref<8x1xf32, #tpu.memory_space<vmem>>, vector<8x1xf32>
    %163 = arith.mulf %156, %153 : vector<8x128xf32>
    %cst_78 = arith.constant dense<0.000000e+00> : vector<8xf32>
    %164 = vector.multi_reduction <add>, %163, %cst_78 [1] : vector<8x128xf32> to vector<8xf32>
    %165 = vector.shape_cast %164 : vector<8xf32> to vector<8x1xf32>
    %166 = arith.addf %162, %165 : vector<8x1xf32>
    %c0_79 = arith.constant 0 : index
    %c0_80 = arith.constant 0 : index
    %167 = vector.load %arg9[%c0_79, %c0_80] : memref<8x1xf32, #tpu.memory_space<vmem>>, vector<8x1xf32>
    tpu.vector_store %arg9[%c0_79, %c0_80], %166 {strides = array<i32>} : memref<8x1xf32, #tpu.memory_space<vmem>>, vector<8x1xf32>,
    %168 = vector.shape_cast %153 : vector<8x128xf32> to vector<1x8x128xf32>
    %c0_81 = arith.constant 0 : index
    %169 = arith.index_cast %arg1 : i32 to index
    %c0_82 = arith.constant 0 : index
    %c0_83 = arith.constant 0 : index
    %170 = vector.load %arg7[%c0_81, %169, %c0_82, %c0_83] : memref<1x8x8x128xf32, #tpu.memory_space<vmem>>, vector<1x1x8x128xf32>
    %171 = vector.shape_cast %170 : vector<1x1x8x128xf32> to vector<1x8x128xf32>
    %172 = vector.shape_cast %168 : vector<1x8x128xf32> to vector<1x1x8x128xf32>
    tpu.vector_store %arg7[%c0_81, %169, %c0_82, %c0_83], %172 {strides = array<i32>} : memref<1x8x8x128xf32, #tpu.memory_space<vmem>>, vector<1x1x8x128xf32>,
    %c7_i32_84 = arith.constant 7 : i32
    %173 = arith.cmpi eq, %arg1, %c7_i32_84 : i32
    %174 = arith.extui %173 : i1 to i32
    %c0_i32_85 = arith.constant 0 : i32
    %175 = arith.cmpi ne, %174, %c0_i32_85 : i32
    scf.if %175 {
      %c0_86 = arith.constant 0 : index
      %c0_87 = arith.constant 0 : index
      %176 = vector.load %arg8[%c0_86, %c0_87] : memref<8x1xf32, #tpu.memory_space<vmem>>, vector<8x1xf32>
      %cst_88 = arith.constant 0.001953125 : f32
      %177 = vector.broadcast %cst_88 : f32 to vector<8x1xf32>
      %178 = arith.mulf %176, %177 : vector<8x1xf32>
      %c0_89 = arith.constant 0 : index
      %c0_90 = arith.constant 0 : index
      %179 = vector.load %arg9[%c0_89, %c0_90] : memref<8x1xf32, #tpu.memory_space<vmem>>, vector<8x1xf32>
      %cst_91 = arith.constant 0.001953125 : f32
      %180 = vector.broadcast %cst_91 : f32 to vector<8x1xf32>
      %181 = arith.mulf %179, %180 : vector<8x1xf32>
      %182 = arith.mulf %178, %178 : vector<8x1xf32>
      %183 = arith.subf %181, %182 : vector<8x1xf32>
      %cst_92 = arith.constant 9.99999974E-6 : f32
      %184 = vector.broadcast %cst_92 : f32 to vector<8x1xf32>
      %185 = arith.addf %183, %184 : vector<8x1xf32>
      %186 = math.rsqrt %185 : vector<8x1xf32>
      %cst_93 = arith.constant 0.000000e+00 : f32
      %187 = vector.broadcast %cst_93 : f32 to vector<8x1xf32>
      %188 = arith.subf %187, %178 : vector<8x1xf32>
      %189 = arith.mulf %188, %186 : vector<8x1xf32>
      %190 = vector.shape_cast %186 : vector<8x1xf32> to vector<1x8x1xf32>
      %191 = vector.shape_cast %189 : vector<8x1xf32> to vector<1x8x1xf32>
      %c0_94 = arith.constant 0 : index
      %c0_95 = arith.constant 0 : index
      %c0_96 = arith.constant 0 : index
      %c0_97 = arith.constant 0 : index
      %192 = vector.load %arg7[%c0_94, %c0_95, %c0_96, %c0_97] : memref<1x8x8x128xf32, #tpu.memory_space<vmem>>, vector<1x8x8x128xf32>
      %193 = vector.shape_cast %192 : vector<1x8x8x128xf32> to vector<8x8x128xf32>
      %194 = vector.broadcast %190 : vector<1x8x1xf32> to vector<8x8x128xf32>
      %195 = arith.mulf %193, %194 : vector<8x8x128xf32>
      %196 = vector.broadcast %191 : vector<1x8x1xf32> to vector<8x8x128xf32>
      %197 = arith.addf %195, %196 : vector<8x8x128xf32>
      %cst_98 = arith.constant 0.000000e+00 : f32
      %198 = vector.broadcast %cst_98 : f32 to vector<8x8x128xf32>
      %199 = arith.cmpf oge, %197, %198 : vector<8x8x128xf32>
      %cst_99 = arith.constant 1.000000e-01 : f32
      %200 = vector.broadcast %cst_99 : f32 to vector<8x8x128xf32>
      %201 = arith.mulf %200, %197 : vector<8x8x128xf32>
      %202 = arith.select %199, %197, %201 : vector<8x8x128xi1>, vector<8x8x128xf32>
      %203 = vector.shape_cast %154 : vector<1x128xf32> to vector<1x1x128xf32>
      %204 = vector.broadcast %203 : vector<1x1x128xf32> to vector<8x8x128xf32>
      %205 = arith.mulf %202, %204 : vector<8x8x128xf32>
      %c0_100 = arith.constant 0 : index
      %c0_101 = arith.constant 0 : index
      %c0_102 = arith.constant 0 : index
      %c0_103 = arith.constant 0 : index
      %206 = vector.load %arg7[%c0_100, %c0_101, %c0_102, %c0_103] : memref<1x8x8x128xf32, #tpu.memory_space<vmem>>, vector<1x8x8x128xf32>
      %207 = vector.shape_cast %206 : vector<1x8x8x128xf32> to vector<8x8x128xf32>
      %208 = vector.shape_cast %205 : vector<8x8x128xf32> to vector<1x8x8x128xf32>
      tpu.vector_store %arg7[%c0_100, %c0_101, %c0_102, %c0_103], %208 {strides = array<i32>} : memref<1x8x8x128xf32, #tpu.memory_space<vmem>>, vector<1x8x8x128xf32>,
    } else {
    }
    return
  }
  func.func @transform_0(%arg0: i32, %arg1: i32) -> (i32, i32, i32, i32) {
    %c1_i32 = arith.constant 1 : i32
    %0 = arith.subi %arg1, %c1_i32 : i32
    %c0_i32 = arith.constant 0 : i32
    %1 = arith.maxsi %0, %c0_i32 : i32
    %c0_i32_0 = arith.constant 0 : i32
    %c0_i32_1 = arith.constant 0 : i32
    %c0_i32_2 = arith.constant 0 : i32
    return %arg0, %1, %c0_i32_0, %c0_i32_1 : i32, i32, i32, i32
  }
  func.func @transform_1(%arg0: i32, %arg1: i32) -> (i32, i32, i32, i32) {
    %c0_i32 = arith.constant 0 : i32
    %c0_i32_0 = arith.constant 0 : i32
    %c0_i32_1 = arith.constant 0 : i32
    return %arg0, %arg1, %c0_i32, %c0_i32_0 : i32, i32, i32, i32
  }
  func.func @transform_2(%arg0: i32, %arg1: i32) -> (i32, i32, i32, i32) {
    %c1_i32 = arith.constant 1 : i32
    %0 = arith.addi %arg1, %c1_i32 : i32
    %c7_i32 = arith.constant 7 : i32
    %1 = arith.minsi %0, %c7_i32 : i32
    %c0_i32 = arith.constant 0 : i32
    %c0_i32_0 = arith.constant 0 : i32
    %c0_i32_1 = arith.constant 0 : i32
    return %arg0, %1, %c0_i32, %c0_i32_0 : i32, i32, i32, i32
  }
  func.func @transform_3(%arg0: i32, %arg1: i32) -> (i32, i32, i32, i32) {
    %c0_i32 = arith.constant 0 : i32
    %c0_i32_0 = arith.constant 0 : i32
    %c0_i32_1 = arith.constant 0 : i32
    %c0_i32_2 = arith.constant 0 : i32
    %c0_i32_3 = arith.constant 0 : i32
    return %c0_i32, %c0_i32_0, %c0_i32_1, %c0_i32_2 : i32, i32, i32, i32
  }
  func.func @transform_4(%arg0: i32, %arg1: i32) -> (i32, i32) {
    %c0_i32 = arith.constant 0 : i32
    %c0_i32_0 = arith.constant 0 : i32
    %c0_i32_1 = arith.constant 0 : i32
    return %c0_i32, %c0_i32_0 : i32, i32
  }
  func.func @transform_5(%arg0: i32, %arg1: i32) -> (i32, i32, i32, i32) {
    %c0_i32 = arith.constant 0 : i32
    %c0_i32_0 = arith.constant 0 : i32
    %c0_i32_1 = arith.constant 0 : i32
    %c0_i32_2 = arith.constant 0 : i32
    return %arg0, %c0_i32, %c0_i32_0, %c0_i32_1 : i32, i32, i32, i32
  }
}

module attributes {stable_mosaic.version = 11 : i64} {
  func.func @_conv_ins_lrelu_kernel(%arg0: i32, %arg1: i32, %arg2: memref<1x1x8x128xf32, #tpu.memory_space<vmem>>, %arg3: memref<1x1x8x128xf32, #tpu.memory_space<vmem>>, %arg4: memref<1x1x8x128xf32, #tpu.memory_space<vmem>>, %arg5: memref<3x9x8x8xf32, #tpu.memory_space<vmem>>, %arg6: memref<1x128xf32, #tpu.memory_space<vmem>>, %arg7: memref<1x8x8x128xf32, #tpu.memory_space<vmem>>, %arg8: memref<8x1xf32, #tpu.memory_space<vmem>>, %arg9: memref<8x1xf32, #tpu.memory_space<vmem>>) attributes {dimension_semantics = [#tpu.dimension_semantics<parallel>, #tpu.dimension_semantics<arbitrary>], iteration_bounds = array<i64: 2, 8>, scalar_prefetch = 0 : i64, scratch_operands = 2 : i64, tpu.core_type = #tpu.core_type<tc>, window_params = [{transform_indices = @transform_0, window_bounds = array<i64: 1, 1, 8, 128>}, {transform_indices = @transform_1, window_bounds = array<i64: 1, 1, 8, 128>}, {transform_indices = @transform_2, window_bounds = array<i64: 1, 1, 8, 128>}, {pipeline_mode = #tpu.pipeline_mode<synchronous>, transform_indices = @transform_3, window_bounds = array<i64: 3, 9, 8, 8>}, {pipeline_mode = #tpu.pipeline_mode<synchronous>, transform_indices = @transform_4, window_bounds = array<i64: 1, 128>}, {transform_indices = @transform_5, window_bounds = array<i64: 1, 8, 8, 128>}]} {
    %c0_i32 = arith.constant 0 : i32
    %0 = arith.cmpi eq, %arg1, %c0_i32 : i32
    %1 = arith.extui %0 : i1 to i32
    %c0_i32_0 = arith.constant 0 : i32
    %2 = arith.cmpi ne, %1, %c0_i32_0 : i32
    scf.if %2 {
      %cst_86 = arith.constant 0.000000e+00 : f32
      %176 = vector.broadcast %cst_86 : f32 to vector<8x1xf32>
      %c0_87 = arith.constant 0 : index
      %c0_88 = arith.constant 0 : index
      %177 = vector.load %arg8[%c0_87, %c0_88] : memref<8x1xf32, #tpu.memory_space<vmem>>, vector<8x1xf32>
      tpu.vector_store %arg8[%c0_87, %c0_88], %176 {strides = array<i32>} : memref<8x1xf32, #tpu.memory_space<vmem>>, vector<8x1xf32>,
      %cst_89 = arith.constant 0.000000e+00 : f32
      %178 = vector.broadcast %cst_89 : f32 to vector<8x1xf32>
      %c0_90 = arith.constant 0 : index
      %c0_91 = arith.constant 0 : index
      %179 = vector.load %arg9[%c0_90, %c0_91] : memref<8x1xf32, #tpu.memory_space<vmem>>, vector<8x1xf32>
      tpu.vector_store %arg9[%c0_90, %c0_91], %178 {strides = array<i32>} : memref<8x1xf32, #tpu.memory_space<vmem>>, vector<8x1xf32>,
    } else {
    }
    %c0 = arith.constant 0 : index
    %c0_1 = arith.constant 0 : index
    %c0_2 = arith.constant 0 : index
    %c0_3 = arith.constant 0 : index
    %3 = vector.load %arg2[%c0, %c0_1, %c0_2, %c0_3] : memref<1x1x8x128xf32, #tpu.memory_space<vmem>>, vector<1x1x8x128xf32>
    %4 = vector.shape_cast %3 : vector<1x1x8x128xf32> to vector<8x128xf32>
    %c0_4 = arith.constant 0 : index
    %c0_5 = arith.constant 0 : index
    %c0_6 = arith.constant 0 : index
    %c0_7 = arith.constant 0 : index
    %5 = vector.load %arg3[%c0_4, %c0_5, %c0_6, %c0_7] : memref<1x1x8x128xf32, #tpu.memory_space<vmem>>, vector<1x1x8x128xf32>
    %6 = vector.shape_cast %5 : vector<1x1x8x128xf32> to vector<8x128xf32>
    %c0_8 = arith.constant 0 : index
    %c0_9 = arith.constant 0 : index
    %c0_10 = arith.constant 0 : index
    %c0_11 = arith.constant 0 : index
    %7 = vector.load %arg4[%c0_8, %c0_9, %c0_10, %c0_11] : memref<1x1x8x128xf32, #tpu.memory_space<vmem>>, vector<1x1x8x128xf32>
    %8 = vector.shape_cast %7 : vector<1x1x8x128xf32> to vector<8x128xf32>
    %c0_i32_12 = arith.constant 0 : i32
    %9 = arith.cmpi sgt, %arg1, %c0_i32_12 : i32
    %cst = arith.constant 1.000000e+00 : f32
    %cst_13 = arith.constant 0.000000e+00 : f32
    %10 = arith.select %9, %cst, %cst_13 : f32
    %c7_i32 = arith.constant 7 : i32
    %11 = arith.cmpi slt, %arg1, %c7_i32 : i32
    %cst_14 = arith.constant 1.000000e+00 : f32
    %cst_15 = arith.constant 0.000000e+00 : f32
    %12 = arith.select %11, %cst_14, %cst_15 : f32
    %c0_16 = arith.constant 0 : index
    %c0_17 = arith.constant 0 : index
    %c0_18 = arith.constant 0 : index
    %c0_19 = arith.constant 0 : index
    %13 = vector.load %arg5[%c0_16, %c0_17, %c0_18, %c0_19] : memref<3x9x8x8xf32, #tpu.memory_space<vmem>>, vector<1x9x8x8xf32>
    %14 = vector.shape_cast %13 : vector<1x9x8x8xf32> to vector<9x8x8xf32>
    %15 = vector.broadcast %10 : f32 to vector<9x8x8xf32>
    %16 = arith.mulf %14, %15 : vector<9x8x8xf32>
    %c11_i32 = arith.constant 11 : i32
    %17 = tpu.dynamic_rotate %4 by %c11_i32 dim 1 : vector<8x128xf32>, i32 -> vector<8x128xf32>
    %18 = vector.extract_strided_slice %16 {offsets = [0, 0, 0], sizes = [1, 8, 8], strides = [1, 1, 1]} : vector<9x8x8xf32> to vector<1x8x8xf32>
    %19 = vector.shape_cast %18 : vector<1x8x8xf32> to vector<8x8xf32>
    %cst_20 = arith.constant dense<0.000000e+00> : vector<8x128xf32>
    %20 = tpu.matmul %19, %17, %cst_20 {dimension_numbers = #tpu.dot_dimension_numbers<[1], [0], [0], [1], [0, 0, 1, 1], [], []>} : vector<8x8xf32>, vector<8x128xf32>, vector<8x128xf32> -> vector<8x128xf32>
    %c10_i32 = arith.constant 10 : i32
    %21 = tpu.dynamic_rotate %4 by %c10_i32 dim 1 : vector<8x128xf32>, i32 -> vector<8x128xf32>
    %22 = vector.extract_strided_slice %16 {offsets = [1, 0, 0], sizes = [1, 8, 8], strides = [1, 1, 1]} : vector<9x8x8xf32> to vector<1x8x8xf32>
    %23 = vector.shape_cast %22 : vector<1x8x8xf32> to vector<8x8xf32>
    %cst_21 = arith.constant dense<0.000000e+00> : vector<8x128xf32>
    %24 = tpu.matmul %23, %21, %cst_21 {dimension_numbers = #tpu.dot_dimension_numbers<[1], [0], [0], [1], [0, 0, 1, 1], [], []>} : vector<8x8xf32>, vector<8x128xf32>, vector<8x128xf32> -> vector<8x128xf32>
    %25 = arith.addf %20, %24 : vector<8x128xf32>
    %c9_i32 = arith.constant 9 : i32
    %26 = tpu.dynamic_rotate %4 by %c9_i32 dim 1 : vector<8x128xf32>, i32 -> vector<8x128xf32>
    %27 = vector.extract_strided_slice %16 {offsets = [2, 0, 0], sizes = [1, 8, 8], strides = [1, 1, 1]} : vector<9x8x8xf32> to vector<1x8x8xf32>
    %28 = vector.shape_cast %27 : vector<1x8x8xf32> to vector<8x8xf32>
    %cst_22 = arith.constant dense<0.000000e+00> : vector<8x128xf32>
    %29 = tpu.matmul %28, %26, %cst_22 {dimension_numbers = #tpu.dot_dimension_numbers<[1], [0], [0], [1], [0, 0, 1, 1], [], []>} : vector<8x8xf32>, vector<8x128xf32>, vector<8x128xf32> -> vector<8x128xf32>
    %30 = arith.addf %25, %29 : vector<8x128xf32>
    %c1_i32 = arith.constant 1 : i32
    %31 = tpu.dynamic_rotate %4 by %c1_i32 dim 1 : vector<8x128xf32>, i32 -> vector<8x128xf32>
    %32 = vector.extract_strided_slice %16 {offsets = [3, 0, 0], sizes = [1, 8, 8], strides = [1, 1, 1]} : vector<9x8x8xf32> to vector<1x8x8xf32>
    %33 = vector.shape_cast %32 : vector<1x8x8xf32> to vector<8x8xf32>
    %cst_23 = arith.constant dense<0.000000e+00> : vector<8x128xf32>
    %34 = tpu.matmul %33, %31, %cst_23 {dimension_numbers = #tpu.dot_dimension_numbers<[1], [0], [0], [1], [0, 0, 1, 1], [], []>} : vector<8x8xf32>, vector<8x128xf32>, vector<8x128xf32> -> vector<8x128xf32>
    %35 = arith.addf %30, %34 : vector<8x128xf32>
    %36 = vector.extract_strided_slice %16 {offsets = [4, 0, 0], sizes = [1, 8, 8], strides = [1, 1, 1]} : vector<9x8x8xf32> to vector<1x8x8xf32>
    %37 = vector.shape_cast %36 : vector<1x8x8xf32> to vector<8x8xf32>
    %cst_24 = arith.constant dense<0.000000e+00> : vector<8x128xf32>
    %38 = tpu.matmul %37, %4, %cst_24 {dimension_numbers = #tpu.dot_dimension_numbers<[1], [0], [0], [1], [0, 0, 1, 1], [], []>} : vector<8x8xf32>, vector<8x128xf32>, vector<8x128xf32> -> vector<8x128xf32>
    %39 = arith.addf %35, %38 : vector<8x128xf32>
    %c127_i32 = arith.constant 127 : i32
    %40 = tpu.dynamic_rotate %4 by %c127_i32 dim 1 : vector<8x128xf32>, i32 -> vector<8x128xf32>
    %41 = vector.extract_strided_slice %16 {offsets = [5, 0, 0], sizes = [1, 8, 8], strides = [1, 1, 1]} : vector<9x8x8xf32> to vector<1x8x8xf32>
    %42 = vector.shape_cast %41 : vector<1x8x8xf32> to vector<8x8xf32>
    %cst_25 = arith.constant dense<0.000000e+00> : vector<8x128xf32>
    %43 = tpu.matmul %42, %40, %cst_25 {dimension_numbers = #tpu.dot_dimension_numbers<[1], [0], [0], [1], [0, 0, 1, 1], [], []>} : vector<8x8xf32>, vector<8x128xf32>, vector<8x128xf32> -> vector<8x128xf32>
    %44 = arith.addf %39, %43 : vector<8x128xf32>
    %c119_i32 = arith.constant 119 : i32
    %45 = tpu.dynamic_rotate %4 by %c119_i32 dim 1 : vector<8x128xf32>, i32 -> vector<8x128xf32>
    %46 = vector.extract_strided_slice %16 {offsets = [6, 0, 0], sizes = [1, 8, 8], strides = [1, 1, 1]} : vector<9x8x8xf32> to vector<1x8x8xf32>
    %47 = vector.shape_cast %46 : vector<1x8x8xf32> to vector<8x8xf32>
    %cst_26 = arith.constant dense<0.000000e+00> : vector<8x128xf32>
    %48 = tpu.matmul %47, %45, %cst_26 {dimension_numbers = #tpu.dot_dimension_numbers<[1], [0], [0], [1], [0, 0, 1, 1], [], []>} : vector<8x8xf32>, vector<8x128xf32>, vector<8x128xf32> -> vector<8x128xf32>
    %49 = arith.addf %44, %48 : vector<8x128xf32>
    %c118_i32 = arith.constant 118 : i32
    %50 = tpu.dynamic_rotate %4 by %c118_i32 dim 1 : vector<8x128xf32>, i32 -> vector<8x128xf32>
    %51 = vector.extract_strided_slice %16 {offsets = [7, 0, 0], sizes = [1, 8, 8], strides = [1, 1, 1]} : vector<9x8x8xf32> to vector<1x8x8xf32>
    %52 = vector.shape_cast %51 : vector<1x8x8xf32> to vector<8x8xf32>
    %cst_27 = arith.constant dense<0.000000e+00> : vector<8x128xf32>
    %53 = tpu.matmul %52, %50, %cst_27 {dimension_numbers = #tpu.dot_dimension_numbers<[1], [0], [0], [1], [0, 0, 1, 1], [], []>} : vector<8x8xf32>, vector<8x128xf32>, vector<8x128xf32> -> vector<8x128xf32>
    %54 = arith.addf %49, %53 : vector<8x128xf32>
    %c117_i32 = arith.constant 117 : i32
    %55 = tpu.dynamic_rotate %4 by %c117_i32 dim 1 : vector<8x128xf32>, i32 -> vector<8x128xf32>
    %56 = vector.extract_strided_slice %16 {offsets = [8, 0, 0], sizes = [1, 8, 8], strides = [1, 1, 1]} : vector<9x8x8xf32> to vector<1x8x8xf32>
    %57 = vector.shape_cast %56 : vector<1x8x8xf32> to vector<8x8xf32>
    %cst_28 = arith.constant dense<0.000000e+00> : vector<8x128xf32>
    %58 = tpu.matmul %57, %55, %cst_28 {dimension_numbers = #tpu.dot_dimension_numbers<[1], [0], [0], [1], [0, 0, 1, 1], [], []>} : vector<8x8xf32>, vector<8x128xf32>, vector<8x128xf32> -> vector<8x128xf32>
    %59 = arith.addf %54, %58 : vector<8x128xf32>
    %c1 = arith.constant 1 : index
    %c0_29 = arith.constant 0 : index
    %c0_30 = arith.constant 0 : index
    %c0_31 = arith.constant 0 : index
    %60 = vector.load %arg5[%c1, %c0_29, %c0_30, %c0_31] : memref<3x9x8x8xf32, #tpu.memory_space<vmem>>, vector<1x9x8x8xf32>
    %61 = vector.shape_cast %60 : vector<1x9x8x8xf32> to vector<9x8x8xf32>
    %c11_i32_32 = arith.constant 11 : i32
    %62 = tpu.dynamic_rotate %6 by %c11_i32_32 dim 1 : vector<8x128xf32>, i32 -> vector<8x128xf32>
    %63 = vector.extract_strided_slice %61 {offsets = [0, 0, 0], sizes = [1, 8, 8], strides = [1, 1, 1]} : vector<9x8x8xf32> to vector<1x8x8xf32>
    %64 = vector.shape_cast %63 : vector<1x8x8xf32> to vector<8x8xf32>
    %cst_33 = arith.constant dense<0.000000e+00> : vector<8x128xf32>
    %65 = tpu.matmul %64, %62, %cst_33 {dimension_numbers = #tpu.dot_dimension_numbers<[1], [0], [0], [1], [0, 0, 1, 1], [], []>} : vector<8x8xf32>, vector<8x128xf32>, vector<8x128xf32> -> vector<8x128xf32>
    %66 = arith.addf %59, %65 : vector<8x128xf32>
    %c10_i32_34 = arith.constant 10 : i32
    %67 = tpu.dynamic_rotate %6 by %c10_i32_34 dim 1 : vector<8x128xf32>, i32 -> vector<8x128xf32>
    %68 = vector.extract_strided_slice %61 {offsets = [1, 0, 0], sizes = [1, 8, 8], strides = [1, 1, 1]} : vector<9x8x8xf32> to vector<1x8x8xf32>
    %69 = vector.shape_cast %68 : vector<1x8x8xf32> to vector<8x8xf32>
    %cst_35 = arith.constant dense<0.000000e+00> : vector<8x128xf32>
    %70 = tpu.matmul %69, %67, %cst_35 {dimension_numbers = #tpu.dot_dimension_numbers<[1], [0], [0], [1], [0, 0, 1, 1], [], []>} : vector<8x8xf32>, vector<8x128xf32>, vector<8x128xf32> -> vector<8x128xf32>
    %71 = arith.addf %66, %70 : vector<8x128xf32>
    %c9_i32_36 = arith.constant 9 : i32
    %72 = tpu.dynamic_rotate %6 by %c9_i32_36 dim 1 : vector<8x128xf32>, i32 -> vector<8x128xf32>
    %73 = vector.extract_strided_slice %61 {offsets = [2, 0, 0], sizes = [1, 8, 8], strides = [1, 1, 1]} : vector<9x8x8xf32> to vector<1x8x8xf32>
    %74 = vector.shape_cast %73 : vector<1x8x8xf32> to vector<8x8xf32>
    %cst_37 = arith.constant dense<0.000000e+00> : vector<8x128xf32>
    %75 = tpu.matmul %74, %72, %cst_37 {dimension_numbers = #tpu.dot_dimension_numbers<[1], [0], [0], [1], [0, 0, 1, 1], [], []>} : vector<8x8xf32>, vector<8x128xf32>, vector<8x128xf32> -> vector<8x128xf32>
    %76 = arith.addf %71, %75 : vector<8x128xf32>
    %c1_i32_38 = arith.constant 1 : i32
    %77 = tpu.dynamic_rotate %6 by %c1_i32_38 dim 1 : vector<8x128xf32>, i32 -> vector<8x128xf32>
    %78 = vector.extract_strided_slice %61 {offsets = [3, 0, 0], sizes = [1, 8, 8], strides = [1, 1, 1]} : vector<9x8x8xf32> to vector<1x8x8xf32>
    %79 = vector.shape_cast %78 : vector<1x8x8xf32> to vector<8x8xf32>
    %cst_39 = arith.constant dense<0.000000e+00> : vector<8x128xf32>
    %80 = tpu.matmul %79, %77, %cst_39 {dimension_numbers = #tpu.dot_dimension_numbers<[1], [0], [0], [1], [0, 0, 1, 1], [], []>} : vector<8x8xf32>, vector<8x128xf32>, vector<8x128xf32> -> vector<8x128xf32>
    %81 = arith.addf %76, %80 : vector<8x128xf32>
    %82 = vector.extract_strided_slice %61 {offsets = [4, 0, 0], sizes = [1, 8, 8], strides = [1, 1, 1]} : vector<9x8x8xf32> to vector<1x8x8xf32>
    %83 = vector.shape_cast %82 : vector<1x8x8xf32> to vector<8x8xf32>
    %cst_40 = arith.constant dense<0.000000e+00> : vector<8x128xf32>
    %84 = tpu.matmul %83, %6, %cst_40 {dimension_numbers = #tpu.dot_dimension_numbers<[1], [0], [0], [1], [0, 0, 1, 1], [], []>} : vector<8x8xf32>, vector<8x128xf32>, vector<8x128xf32> -> vector<8x128xf32>
    %85 = arith.addf %81, %84 : vector<8x128xf32>
    %c127_i32_41 = arith.constant 127 : i32
    %86 = tpu.dynamic_rotate %6 by %c127_i32_41 dim 1 : vector<8x128xf32>, i32 -> vector<8x128xf32>
    %87 = vector.extract_strided_slice %61 {offsets = [5, 0, 0], sizes = [1, 8, 8], strides = [1, 1, 1]} : vector<9x8x8xf32> to vector<1x8x8xf32>
    %88 = vector.shape_cast %87 : vector<1x8x8xf32> to vector<8x8xf32>
    %cst_42 = arith.constant dense<0.000000e+00> : vector<8x128xf32>
    %89 = tpu.matmul %88, %86, %cst_42 {dimension_numbers = #tpu.dot_dimension_numbers<[1], [0], [0], [1], [0, 0, 1, 1], [], []>} : vector<8x8xf32>, vector<8x128xf32>, vector<8x128xf32> -> vector<8x128xf32>
    %90 = arith.addf %85, %89 : vector<8x128xf32>
    %c119_i32_43 = arith.constant 119 : i32
    %91 = tpu.dynamic_rotate %6 by %c119_i32_43 dim 1 : vector<8x128xf32>, i32 -> vector<8x128xf32>
    %92 = vector.extract_strided_slice %61 {offsets = [6, 0, 0], sizes = [1, 8, 8], strides = [1, 1, 1]} : vector<9x8x8xf32> to vector<1x8x8xf32>
    %93 = vector.shape_cast %92 : vector<1x8x8xf32> to vector<8x8xf32>
    %cst_44 = arith.constant dense<0.000000e+00> : vector<8x128xf32>
    %94 = tpu.matmul %93, %91, %cst_44 {dimension_numbers = #tpu.dot_dimension_numbers<[1], [0], [0], [1], [0, 0, 1, 1], [], []>} : vector<8x8xf32>, vector<8x128xf32>, vector<8x128xf32> -> vector<8x128xf32>
    %95 = arith.addf %90, %94 : vector<8x128xf32>
    %c118_i32_45 = arith.constant 118 : i32
    %96 = tpu.dynamic_rotate %6 by %c118_i32_45 dim 1 : vector<8x128xf32>, i32 -> vector<8x128xf32>
    %97 = vector.extract_strided_slice %61 {offsets = [7, 0, 0], sizes = [1, 8, 8], strides = [1, 1, 1]} : vector<9x8x8xf32> to vector<1x8x8xf32>
    %98 = vector.shape_cast %97 : vector<1x8x8xf32> to vector<8x8xf32>
    %cst_46 = arith.constant dense<0.000000e+00> : vector<8x128xf32>
    %99 = tpu.matmul %98, %96, %cst_46 {dimension_numbers = #tpu.dot_dimension_numbers<[1], [0], [0], [1], [0, 0, 1, 1], [], []>} : vector<8x8xf32>, vector<8x128xf32>, vector<8x128xf32> -> vector<8x128xf32>
    %100 = arith.addf %95, %99 : vector<8x128xf32>
    %c117_i32_47 = arith.constant 117 : i32
    %101 = tpu.dynamic_rotate %6 by %c117_i32_47 dim 1 : vector<8x128xf32>, i32 -> vector<8x128xf32>
    %102 = vector.extract_strided_slice %61 {offsets = [8, 0, 0], sizes = [1, 8, 8], strides = [1, 1, 1]} : vector<9x8x8xf32> to vector<1x8x8xf32>
    %103 = vector.shape_cast %102 : vector<1x8x8xf32> to vector<8x8xf32>
    %cst_48 = arith.constant dense<0.000000e+00> : vector<8x128xf32>
    %104 = tpu.matmul %103, %101, %cst_48 {dimension_numbers = #tpu.dot_dimension_numbers<[1], [0], [0], [1], [0, 0, 1, 1], [], []>} : vector<8x8xf32>, vector<8x128xf32>, vector<8x128xf32> -> vector<8x128xf32>
    %105 = arith.addf %100, %104 : vector<8x128xf32>
    %c2 = arith.constant 2 : index
    %c0_49 = arith.constant 0 : index
    %c0_50 = arith.constant 0 : index
    %c0_51 = arith.constant 0 : index
    %106 = vector.load %arg5[%c2, %c0_49, %c0_50, %c0_51] : memref<3x9x8x8xf32, #tpu.memory_space<vmem>>, vector<1x9x8x8xf32>
    %107 = vector.shape_cast %106 : vector<1x9x8x8xf32> to vector<9x8x8xf32>
    %108 = vector.broadcast %12 : f32 to vector<9x8x8xf32>
    %109 = arith.mulf %107, %108 : vector<9x8x8xf32>
    %c11_i32_52 = arith.constant 11 : i32
    %110 = tpu.dynamic_rotate %8 by %c11_i32_52 dim 1 : vector<8x128xf32>, i32 -> vector<8x128xf32>
    %111 = vector.extract_strided_slice %109 {offsets = [0, 0, 0], sizes = [1, 8, 8], strides = [1, 1, 1]} : vector<9x8x8xf32> to vector<1x8x8xf32>
    %112 = vector.shape_cast %111 : vector<1x8x8xf32> to vector<8x8xf32>
    %cst_53 = arith.constant dense<0.000000e+00> : vector<8x128xf32>
    %113 = tpu.matmul %112, %110, %cst_53 {dimension_numbers = #tpu.dot_dimension_numbers<[1], [0], [0], [1], [0, 0, 1, 1], [], []>} : vector<8x8xf32>, vector<8x128xf32>, vector<8x128xf32> -> vector<8x128xf32>
    %114 = arith.addf %105, %113 : vector<8x128xf32>
    %c10_i32_54 = arith.constant 10 : i32
    %115 = tpu.dynamic_rotate %8 by %c10_i32_54 dim 1 : vector<8x128xf32>, i32 -> vector<8x128xf32>
    %116 = vector.extract_strided_slice %109 {offsets = [1, 0, 0], sizes = [1, 8, 8], strides = [1, 1, 1]} : vector<9x8x8xf32> to vector<1x8x8xf32>
    %117 = vector.shape_cast %116 : vector<1x8x8xf32> to vector<8x8xf32>
    %cst_55 = arith.constant dense<0.000000e+00> : vector<8x128xf32>
    %118 = tpu.matmul %117, %115, %cst_55 {dimension_numbers = #tpu.dot_dimension_numbers<[1], [0], [0], [1], [0, 0, 1, 1], [], []>} : vector<8x8xf32>, vector<8x128xf32>, vector<8x128xf32> -> vector<8x128xf32>
    %119 = arith.addf %114, %118 : vector<8x128xf32>
    %c9_i32_56 = arith.constant 9 : i32
    %120 = tpu.dynamic_rotate %8 by %c9_i32_56 dim 1 : vector<8x128xf32>, i32 -> vector<8x128xf32>
    %121 = vector.extract_strided_slice %109 {offsets = [2, 0, 0], sizes = [1, 8, 8], strides = [1, 1, 1]} : vector<9x8x8xf32> to vector<1x8x8xf32>
    %122 = vector.shape_cast %121 : vector<1x8x8xf32> to vector<8x8xf32>
    %cst_57 = arith.constant dense<0.000000e+00> : vector<8x128xf32>
    %123 = tpu.matmul %122, %120, %cst_57 {dimension_numbers = #tpu.dot_dimension_numbers<[1], [0], [0], [1], [0, 0, 1, 1], [], []>} : vector<8x8xf32>, vector<8x128xf32>, vector<8x128xf32> -> vector<8x128xf32>
    %124 = arith.addf %119, %123 : vector<8x128xf32>
    %c1_i32_58 = arith.constant 1 : i32
    %125 = tpu.dynamic_rotate %8 by %c1_i32_58 dim 1 : vector<8x128xf32>, i32 -> vector<8x128xf32>
    %126 = vector.extract_strided_slice %109 {offsets = [3, 0, 0], sizes = [1, 8, 8], strides = [1, 1, 1]} : vector<9x8x8xf32> to vector<1x8x8xf32>
    %127 = vector.shape_cast %126 : vector<1x8x8xf32> to vector<8x8xf32>
    %cst_59 = arith.constant dense<0.000000e+00> : vector<8x128xf32>
    %128 = tpu.matmul %127, %125, %cst_59 {dimension_numbers = #tpu.dot_dimension_numbers<[1], [0], [0], [1], [0, 0, 1, 1], [], []>} : vector<8x8xf32>, vector<8x128xf32>, vector<8x128xf32> -> vector<8x128xf32>
    %129 = arith.addf %124, %128 : vector<8x128xf32>
    %130 = vector.extract_strided_slice %109 {offsets = [4, 0, 0], sizes = [1, 8, 8], strides = [1, 1, 1]} : vector<9x8x8xf32> to vector<1x8x8xf32>
    %131 = vector.shape_cast %130 : vector<1x8x8xf32> to vector<8x8xf32>
    %cst_60 = arith.constant dense<0.000000e+00> : vector<8x128xf32>
    %132 = tpu.matmul %131, %8, %cst_60 {dimension_numbers = #tpu.dot_dimension_numbers<[1], [0], [0], [1], [0, 0, 1, 1], [], []>} : vector<8x8xf32>, vector<8x128xf32>, vector<8x128xf32> -> vector<8x128xf32>
    %133 = arith.addf %129, %132 : vector<8x128xf32>
    %c127_i32_61 = arith.constant 127 : i32
    %134 = tpu.dynamic_rotate %8 by %c127_i32_61 dim 1 : vector<8x128xf32>, i32 -> vector<8x128xf32>
    %135 = vector.extract_strided_slice %109 {offsets = [5, 0, 0], sizes = [1, 8, 8], strides = [1, 1, 1]} : vector<9x8x8xf32> to vector<1x8x8xf32>
    %136 = vector.shape_cast %135 : vector<1x8x8xf32> to vector<8x8xf32>
    %cst_62 = arith.constant dense<0.000000e+00> : vector<8x128xf32>
    %137 = tpu.matmul %136, %134, %cst_62 {dimension_numbers = #tpu.dot_dimension_numbers<[1], [0], [0], [1], [0, 0, 1, 1], [], []>} : vector<8x8xf32>, vector<8x128xf32>, vector<8x128xf32> -> vector<8x128xf32>
    %138 = arith.addf %133, %137 : vector<8x128xf32>
    %c119_i32_63 = arith.constant 119 : i32
    %139 = tpu.dynamic_rotate %8 by %c119_i32_63 dim 1 : vector<8x128xf32>, i32 -> vector<8x128xf32>
    %140 = vector.extract_strided_slice %109 {offsets = [6, 0, 0], sizes = [1, 8, 8], strides = [1, 1, 1]} : vector<9x8x8xf32> to vector<1x8x8xf32>
    %141 = vector.shape_cast %140 : vector<1x8x8xf32> to vector<8x8xf32>
    %cst_64 = arith.constant dense<0.000000e+00> : vector<8x128xf32>
    %142 = tpu.matmul %141, %139, %cst_64 {dimension_numbers = #tpu.dot_dimension_numbers<[1], [0], [0], [1], [0, 0, 1, 1], [], []>} : vector<8x8xf32>, vector<8x128xf32>, vector<8x128xf32> -> vector<8x128xf32>
    %143 = arith.addf %138, %142 : vector<8x128xf32>
    %c118_i32_65 = arith.constant 118 : i32
    %144 = tpu.dynamic_rotate %8 by %c118_i32_65 dim 1 : vector<8x128xf32>, i32 -> vector<8x128xf32>
    %145 = vector.extract_strided_slice %109 {offsets = [7, 0, 0], sizes = [1, 8, 8], strides = [1, 1, 1]} : vector<9x8x8xf32> to vector<1x8x8xf32>
    %146 = vector.shape_cast %145 : vector<1x8x8xf32> to vector<8x8xf32>
    %cst_66 = arith.constant dense<0.000000e+00> : vector<8x128xf32>
    %147 = tpu.matmul %146, %144, %cst_66 {dimension_numbers = #tpu.dot_dimension_numbers<[1], [0], [0], [1], [0, 0, 1, 1], [], []>} : vector<8x8xf32>, vector<8x128xf32>, vector<8x128xf32> -> vector<8x128xf32>
    %148 = arith.addf %143, %147 : vector<8x128xf32>
    %c117_i32_67 = arith.constant 117 : i32
    %149 = tpu.dynamic_rotate %8 by %c117_i32_67 dim 1 : vector<8x128xf32>, i32 -> vector<8x128xf32>
    %150 = vector.extract_strided_slice %109 {offsets = [8, 0, 0], sizes = [1, 8, 8], strides = [1, 1, 1]} : vector<9x8x8xf32> to vector<1x8x8xf32>
    %151 = vector.shape_cast %150 : vector<1x8x8xf32> to vector<8x8xf32>
    %cst_68 = arith.constant dense<0.000000e+00> : vector<8x128xf32>
    %152 = tpu.matmul %151, %149, %cst_68 {dimension_numbers = #tpu.dot_dimension_numbers<[1], [0], [0], [1], [0, 0, 1, 1], [], []>} : vector<8x8xf32>, vector<8x128xf32>, vector<8x128xf32> -> vector<8x128xf32>
    %153 = arith.addf %148, %152 : vector<8x128xf32>
    %c0_69 = arith.constant 0 : index
    %c0_70 = arith.constant 0 : index
    %154 = vector.load %arg6[%c0_69, %c0_70] : memref<1x128xf32, #tpu.memory_space<vmem>>, vector<1x128xf32>
    %155 = vector.broadcast %154 : vector<1x128xf32> to vector<8x128xf32>
    %156 = arith.mulf %153, %155 : vector<8x128xf32>
    %c0_71 = arith.constant 0 : index
    %c0_72 = arith.constant 0 : index
    %157 = vector.load %arg8[%c0_71, %c0_72] : memref<8x1xf32, #tpu.memory_space<vmem>>, vector<8x1xf32>
    %cst_73 = arith.constant dense<0.000000e+00> : vector<8xf32>
    %158 = vector.multi_reduction <add>, %156, %cst_73 [1] : vector<8x128xf32> to vector<8xf32>
    %159 = vector.shape_cast %158 : vector<8xf32> to vector<8x1xf32>
    %160 = arith.addf %157, %159 : vector<8x1xf32>
    %c0_74 = arith.constant 0 : index
    %c0_75 = arith.constant 0 : index
    %161 = vector.load %arg8[%c0_74, %c0_75] : memref<8x1xf32, #tpu.memory_space<vmem>>, vector<8x1xf32>
    tpu.vector_store %arg8[%c0_74, %c0_75], %160 {strides = array<i32>} : memref<8x1xf32, #tpu.memory_space<vmem>>, vector<8x1xf32>,
    %c0_76 = arith.constant 0 : index
    %c0_77 = arith.constant 0 : index
    %162 = vector.load %arg9[%c0_76, %c0_77] : memref<8x1xf32, #tpu.memory_space<vmem>>, vector<8x1xf32>
    %163 = arith.mulf %156, %153 : vector<8x128xf32>
    %cst_78 = arith.constant dense<0.000000e+00> : vector<8xf32>
    %164 = vector.multi_reduction <add>, %163, %cst_78 [1] : vector<8x128xf32> to vector<8xf32>
    %165 = vector.shape_cast %164 : vector<8xf32> to vector<8x1xf32>
    %166 = arith.addf %162, %165 : vector<8x1xf32>
    %c0_79 = arith.constant 0 : index
    %c0_80 = arith.constant 0 : index
    %167 = vector.load %arg9[%c0_79, %c0_80] : memref<8x1xf32, #tpu.memory_space<vmem>>, vector<8x1xf32>
    tpu.vector_store %arg9[%c0_79, %c0_80], %166 {strides = array<i32>} : memref<8x1xf32, #tpu.memory_space<vmem>>, vector<8x1xf32>,
    %168 = vector.shape_cast %153 : vector<8x128xf32> to vector<1x8x128xf32>
    %c0_81 = arith.constant 0 : index
    %169 = arith.index_cast %arg1 : i32 to index
    %c0_82 = arith.constant 0 : index
    %c0_83 = arith.constant 0 : index
    %170 = vector.load %arg7[%c0_81, %169, %c0_82, %c0_83] : memref<1x8x8x128xf32, #tpu.memory_space<vmem>>, vector<1x1x8x128xf32>
    %171 = vector.shape_cast %170 : vector<1x1x8x128xf32> to vector<1x8x128xf32>
    %172 = vector.shape_cast %168 : vector<1x8x128xf32> to vector<1x1x8x128xf32>
    tpu.vector_store %arg7[%c0_81, %169, %c0_82, %c0_83], %172 {strides = array<i32>} : memref<1x8x8x128xf32, #tpu.memory_space<vmem>>, vector<1x1x8x128xf32>,
    %c7_i32_84 = arith.constant 7 : i32
    %173 = arith.cmpi eq, %arg1, %c7_i32_84 : i32
    %174 = arith.extui %173 : i1 to i32
    %c0_i32_85 = arith.constant 0 : i32
    %175 = arith.cmpi ne, %174, %c0_i32_85 : i32
    scf.if %175 {
      %c0_86 = arith.constant 0 : index
      %c0_87 = arith.constant 0 : index
      %176 = vector.load %arg8[%c0_86, %c0_87] : memref<8x1xf32, #tpu.memory_space<vmem>>, vector<8x1xf32>
      %cst_88 = arith.constant 0.001953125 : f32
      %177 = vector.broadcast %cst_88 : f32 to vector<8x1xf32>
      %178 = arith.mulf %176, %177 : vector<8x1xf32>
      %c0_89 = arith.constant 0 : index
      %c0_90 = arith.constant 0 : index
      %179 = vector.load %arg9[%c0_89, %c0_90] : memref<8x1xf32, #tpu.memory_space<vmem>>, vector<8x1xf32>
      %cst_91 = arith.constant 0.001953125 : f32
      %180 = vector.broadcast %cst_91 : f32 to vector<8x1xf32>
      %181 = arith.mulf %179, %180 : vector<8x1xf32>
      %182 = arith.mulf %178, %178 : vector<8x1xf32>
      %183 = arith.subf %181, %182 : vector<8x1xf32>
      %cst_92 = arith.constant 9.99999974E-6 : f32
      %184 = vector.broadcast %cst_92 : f32 to vector<8x1xf32>
      %185 = arith.addf %183, %184 : vector<8x1xf32>
      %186 = math.rsqrt %185 : vector<8x1xf32>
      %cst_93 = arith.constant 0.000000e+00 : f32
      %187 = vector.broadcast %cst_93 : f32 to vector<8x1xf32>
      %188 = arith.subf %187, %178 : vector<8x1xf32>
      %189 = arith.mulf %188, %186 : vector<8x1xf32>
      %190 = vector.shape_cast %186 : vector<8x1xf32> to vector<1x8x1xf32>
      %191 = vector.shape_cast %189 : vector<8x1xf32> to vector<1x8x1xf32>
      %c0_94 = arith.constant 0 : index
      %c0_95 = arith.constant 0 : index
      %c0_96 = arith.constant 0 : index
      %c0_97 = arith.constant 0 : index
      %192 = vector.load %arg7[%c0_94, %c0_95, %c0_96, %c0_97] : memref<1x8x8x128xf32, #tpu.memory_space<vmem>>, vector<1x8x8x128xf32>
      %193 = vector.shape_cast %192 : vector<1x8x8x128xf32> to vector<8x8x128xf32>
      %194 = vector.broadcast %190 : vector<1x8x1xf32> to vector<8x8x128xf32>
      %195 = arith.mulf %193, %194 : vector<8x8x128xf32>
      %196 = vector.broadcast %191 : vector<1x8x1xf32> to vector<8x8x128xf32>
      %197 = arith.addf %195, %196 : vector<8x8x128xf32>
      %cst_98 = arith.constant 0.000000e+00 : f32
      %198 = vector.broadcast %cst_98 : f32 to vector<8x8x128xf32>
      %199 = arith.cmpf oge, %197, %198 : vector<8x8x128xf32>
      %cst_99 = arith.constant 1.000000e-01 : f32
      %200 = vector.broadcast %cst_99 : f32 to vector<8x8x128xf32>
      %201 = arith.mulf %200, %197 : vector<8x8x128xf32>
      %202 = arith.select %199, %197, %201 : vector<8x8x128xi1>, vector<8x8x128xf32>
      %203 = vector.shape_cast %154 : vector<1x128xf32> to vector<1x1x128xf32>
      %204 = vector.broadcast %203 : vector<1x1x128xf32> to vector<8x8x128xf32>
      %205 = arith.mulf %202, %204 : vector<8x8x128xf32>
      %c0_100 = arith.constant 0 : index
      %c0_101 = arith.constant 0 : index
      %c0_102 = arith.constant 0 : index
      %c0_103 = arith.constant 0 : index
      %206 = vector.load %arg7[%c0_100, %c0_101, %c0_102, %c0_103] : memref<1x8x8x128xf32, #tpu.memory_space<vmem>>, vector<1x8x8x128xf32>
      %207 = vector.shape_cast %206 : vector<1x8x8x128xf32> to vector<8x8x128xf32>
      %208 = vector.shape_cast %205 : vector<8x8x128xf32> to vector<1x8x8x128xf32>
      tpu.vector_store %arg7[%c0_100, %c0_101, %c0_102, %c0_103], %208 {strides = array<i32>} : memref<1x8x8x128xf32, #tpu.memory_space<vmem>>, vector<1x8x8x128xf32>,
    } else {
    }
    return
  }
  func.func @transform_0(%arg0: i32, %arg1: i32) -> (i32, i32, i32, i32) {
    %c1_i32 = arith.constant 1 : i32
    %0 = arith.subi %arg1, %c1_i32 : i32
    %c0_i32 = arith.constant 0 : i32
    %1 = arith.maxsi %0, %c0_i32 : i32
    %c0_i32_0 = arith.constant 0 : i32
    %c0_i32_1 = arith.constant 0 : i32
    %c0_i32_2 = arith.constant 0 : i32
    return %arg0, %1, %c0_i32_0, %c0_i32_1 : i32, i32, i32, i32
  }
  func.func @transform_1(%arg0: i32, %arg1: i32) -> (i32, i32, i32, i32) {
    %c0_i32 = arith.constant 0 : i32
    %c0_i32_0 = arith.constant 0 : i32
    %c0_i32_1 = arith.constant 0 : i32
    return %arg0, %arg1, %c0_i32, %c0_i32_0 : i32, i32, i32, i32
  }
  func.func @transform_2(%arg0: i32, %arg1: i32) -> (i32, i32, i32, i32) {
    %c1_i32 = arith.constant 1 : i32
    %0 = arith.addi %arg1, %c1_i32 : i32
    %c7_i32 = arith.constant 7 : i32
    %1 = arith.minsi %0, %c7_i32 : i32
    %c0_i32 = arith.constant 0 : i32
    %c0_i32_0 = arith.constant 0 : i32
    %c0_i32_1 = arith.constant 0 : i32
    return %arg0, %1, %c0_i32, %c0_i32_0 : i32, i32, i32, i32
  }
  func.func @transform_3(%arg0: i32, %arg1: i32) -> (i32, i32, i32, i32) {
    %c0_i32 = arith.constant 0 : i32
    %c0_i32_0 = arith.constant 0 : i32
    %c0_i32_1 = arith.constant 0 : i32
    %c0_i32_2 = arith.constant 0 : i32
    %c0_i32_3 = arith.constant 0 : i32
    return %c0_i32, %c0_i32_0, %c0_i32_1, %c0_i32_2 : i32, i32, i32, i32
  }
  func.func @transform_4(%arg0: i32, %arg1: i32) -> (i32, i32) {
    %c0_i32 = arith.constant 0 : i32
    %c0_i32_0 = arith.constant 0 : i32
    %c0_i32_1 = arith.constant 0 : i32
    return %c0_i32, %c0_i32_0 : i32, i32
  }
  func.func @transform_5(%arg0: i32, %arg1: i32) -> (i32, i32, i32, i32) {
    %c0_i32 = arith.constant 0 : i32
    %c0_i32_0 = arith.constant 0 : i32
    %c0_i32_1 = arith.constant 0 : i32
    %c0_i32_2 = arith.constant 0 : i32
    return %arg0, %c0_i32, %c0_i32_0, %c0_i32_1 : i32, i32, i32, i32
  }
}

module attributes {stable_mosaic.version = 11 : i64} {
  func.func @_field_fusion_kernel(%arg0: i32, %arg1: i32, %arg2: memref<1x1x8x128xf32, #tpu.memory_space<vmem>>, %arg3: memref<1x1x8x128xf32, #tpu.memory_space<vmem>>, %arg4: memref<1x1x8x128xf32, #tpu.memory_space<vmem>>, %arg5: memref<3x9x2x8xf32, #tpu.memory_space<vmem>>, %arg6: memref<2x1xf32, #tpu.memory_space<vmem>>, %arg7: memref<1x1x2x3x128xf32, #tpu.memory_space<vmem>>, %arg8: memref<1x1x3x128xf32, #tpu.memory_space<vmem>>) attributes {dimension_semantics = [#tpu.dimension_semantics<parallel>, #tpu.dimension_semantics<parallel>], iteration_bounds = array<i64: 2, 8>, scalar_prefetch = 0 : i64, scratch_operands = 0 : i64, tpu.core_type = #tpu.core_type<tc>, window_params = [{transform_indices = @transform_0, window_bounds = array<i64: 1, 1, 8, 128>}, {transform_indices = @transform_1, window_bounds = array<i64: 1, 1, 8, 128>}, {transform_indices = @transform_2, window_bounds = array<i64: 1, 1, 8, 128>}, {pipeline_mode = #tpu.pipeline_mode<synchronous>, transform_indices = @transform_3, window_bounds = array<i64: 3, 9, 2, 8>}, {pipeline_mode = #tpu.pipeline_mode<synchronous>, transform_indices = @transform_4, window_bounds = array<i64: 2, 1>}, {transform_indices = @transform_5, window_bounds = array<i64: 1, 1, 2, 3, 128>}, {transform_indices = @transform_6, window_bounds = array<i64: 1, 1, 3, 128>}]} {
    %c0 = arith.constant 0 : index
    %c0_0 = arith.constant 0 : index
    %c0_1 = arith.constant 0 : index
    %c0_2 = arith.constant 0 : index
    %0 = vector.load %arg2[%c0, %c0_0, %c0_1, %c0_2] : memref<1x1x8x128xf32, #tpu.memory_space<vmem>>, vector<1x1x8x128xf32>
    %1 = vector.shape_cast %0 : vector<1x1x8x128xf32> to vector<8x128xf32>
    %c0_3 = arith.constant 0 : index
    %c0_4 = arith.constant 0 : index
    %c0_5 = arith.constant 0 : index
    %c0_6 = arith.constant 0 : index
    %2 = vector.load %arg3[%c0_3, %c0_4, %c0_5, %c0_6] : memref<1x1x8x128xf32, #tpu.memory_space<vmem>>, vector<1x1x8x128xf32>
    %3 = vector.shape_cast %2 : vector<1x1x8x128xf32> to vector<8x128xf32>
    %c0_7 = arith.constant 0 : index
    %c0_8 = arith.constant 0 : index
    %c0_9 = arith.constant 0 : index
    %c0_10 = arith.constant 0 : index
    %4 = vector.load %arg4[%c0_7, %c0_8, %c0_9, %c0_10] : memref<1x1x8x128xf32, #tpu.memory_space<vmem>>, vector<1x1x8x128xf32>
    %5 = vector.shape_cast %4 : vector<1x1x8x128xf32> to vector<8x128xf32>
    %c0_i32 = arith.constant 0 : i32
    %6 = arith.cmpi sgt, %arg1, %c0_i32 : i32
    %cst = arith.constant 1.000000e+00 : f32
    %cst_11 = arith.constant 0.000000e+00 : f32
    %7 = arith.select %6, %cst, %cst_11 : f32
    %c7_i32 = arith.constant 7 : i32
    %8 = arith.cmpi slt, %arg1, %c7_i32 : i32
    %cst_12 = arith.constant 1.000000e+00 : f32
    %cst_13 = arith.constant 0.000000e+00 : f32
    %9 = arith.select %8, %cst_12, %cst_13 : f32
    %c0_14 = arith.constant 0 : index
    %c0_15 = arith.constant 0 : index
    %c0_16 = arith.constant 0 : index
    %c0_17 = arith.constant 0 : index
    %10 = vector.load %arg5[%c0_14, %c0_15, %c0_16, %c0_17] : memref<3x9x2x8xf32, #tpu.memory_space<vmem>>, vector<1x9x2x8xf32>
    %11 = vector.shape_cast %10 : vector<1x9x2x8xf32> to vector<9x2x8xf32>
    %12 = vector.broadcast %7 : f32 to vector<9x2x8xf32>
    %13 = arith.mulf %11, %12 : vector<9x2x8xf32>
    %c11_i32 = arith.constant 11 : i32
    %14 = tpu.dynamic_rotate %1 by %c11_i32 dim 1 : vector<8x128xf32>, i32 -> vector<8x128xf32>
    %15 = vector.extract_strided_slice %13 {offsets = [0, 0, 0], sizes = [1, 2, 8], strides = [1, 1, 1]} : vector<9x2x8xf32> to vector<1x2x8xf32>
    %16 = vector.shape_cast %15 : vector<1x2x8xf32> to vector<2x8xf32>
    %cst_18 = arith.constant dense<0.000000e+00> : vector<2x128xf32>
    %17 = tpu.matmul %16, %14, %cst_18 {dimension_numbers = #tpu.dot_dimension_numbers<[1], [0], [0], [1], [0, 0, 1, 1], [], []>} : vector<2x8xf32>, vector<8x128xf32>, vector<2x128xf32> -> vector<2x128xf32>
    %c10_i32 = arith.constant 10 : i32
    %18 = tpu.dynamic_rotate %1 by %c10_i32 dim 1 : vector<8x128xf32>, i32 -> vector<8x128xf32>
    %19 = vector.extract_strided_slice %13 {offsets = [1, 0, 0], sizes = [1, 2, 8], strides = [1, 1, 1]} : vector<9x2x8xf32> to vector<1x2x8xf32>
    %20 = vector.shape_cast %19 : vector<1x2x8xf32> to vector<2x8xf32>
    %cst_19 = arith.constant dense<0.000000e+00> : vector<2x128xf32>
    %21 = tpu.matmul %20, %18, %cst_19 {dimension_numbers = #tpu.dot_dimension_numbers<[1], [0], [0], [1], [0, 0, 1, 1], [], []>} : vector<2x8xf32>, vector<8x128xf32>, vector<2x128xf32> -> vector<2x128xf32>
    %22 = arith.addf %17, %21 : vector<2x128xf32>
    %c9_i32 = arith.constant 9 : i32
    %23 = tpu.dynamic_rotate %1 by %c9_i32 dim 1 : vector<8x128xf32>, i32 -> vector<8x128xf32>
    %24 = vector.extract_strided_slice %13 {offsets = [2, 0, 0], sizes = [1, 2, 8], strides = [1, 1, 1]} : vector<9x2x8xf32> to vector<1x2x8xf32>
    %25 = vector.shape_cast %24 : vector<1x2x8xf32> to vector<2x8xf32>
    %cst_20 = arith.constant dense<0.000000e+00> : vector<2x128xf32>
    %26 = tpu.matmul %25, %23, %cst_20 {dimension_numbers = #tpu.dot_dimension_numbers<[1], [0], [0], [1], [0, 0, 1, 1], [], []>} : vector<2x8xf32>, vector<8x128xf32>, vector<2x128xf32> -> vector<2x128xf32>
    %27 = arith.addf %22, %26 : vector<2x128xf32>
    %c1_i32 = arith.constant 1 : i32
    %28 = tpu.dynamic_rotate %1 by %c1_i32 dim 1 : vector<8x128xf32>, i32 -> vector<8x128xf32>
    %29 = vector.extract_strided_slice %13 {offsets = [3, 0, 0], sizes = [1, 2, 8], strides = [1, 1, 1]} : vector<9x2x8xf32> to vector<1x2x8xf32>
    %30 = vector.shape_cast %29 : vector<1x2x8xf32> to vector<2x8xf32>
    %cst_21 = arith.constant dense<0.000000e+00> : vector<2x128xf32>
    %31 = tpu.matmul %30, %28, %cst_21 {dimension_numbers = #tpu.dot_dimension_numbers<[1], [0], [0], [1], [0, 0, 1, 1], [], []>} : vector<2x8xf32>, vector<8x128xf32>, vector<2x128xf32> -> vector<2x128xf32>
    %32 = arith.addf %27, %31 : vector<2x128xf32>
    %33 = vector.extract_strided_slice %13 {offsets = [4, 0, 0], sizes = [1, 2, 8], strides = [1, 1, 1]} : vector<9x2x8xf32> to vector<1x2x8xf32>
    %34 = vector.shape_cast %33 : vector<1x2x8xf32> to vector<2x8xf32>
    %cst_22 = arith.constant dense<0.000000e+00> : vector<2x128xf32>
    %35 = tpu.matmul %34, %1, %cst_22 {dimension_numbers = #tpu.dot_dimension_numbers<[1], [0], [0], [1], [0, 0, 1, 1], [], []>} : vector<2x8xf32>, vector<8x128xf32>, vector<2x128xf32> -> vector<2x128xf32>
    %36 = arith.addf %32, %35 : vector<2x128xf32>
    %c127_i32 = arith.constant 127 : i32
    %37 = tpu.dynamic_rotate %1 by %c127_i32 dim 1 : vector<8x128xf32>, i32 -> vector<8x128xf32>
    %38 = vector.extract_strided_slice %13 {offsets = [5, 0, 0], sizes = [1, 2, 8], strides = [1, 1, 1]} : vector<9x2x8xf32> to vector<1x2x8xf32>
    %39 = vector.shape_cast %38 : vector<1x2x8xf32> to vector<2x8xf32>
    %cst_23 = arith.constant dense<0.000000e+00> : vector<2x128xf32>
    %40 = tpu.matmul %39, %37, %cst_23 {dimension_numbers = #tpu.dot_dimension_numbers<[1], [0], [0], [1], [0, 0, 1, 1], [], []>} : vector<2x8xf32>, vector<8x128xf32>, vector<2x128xf32> -> vector<2x128xf32>
    %41 = arith.addf %36, %40 : vector<2x128xf32>
    %c119_i32 = arith.constant 119 : i32
    %42 = tpu.dynamic_rotate %1 by %c119_i32 dim 1 : vector<8x128xf32>, i32 -> vector<8x128xf32>
    %43 = vector.extract_strided_slice %13 {offsets = [6, 0, 0], sizes = [1, 2, 8], strides = [1, 1, 1]} : vector<9x2x8xf32> to vector<1x2x8xf32>
    %44 = vector.shape_cast %43 : vector<1x2x8xf32> to vector<2x8xf32>
    %cst_24 = arith.constant dense<0.000000e+00> : vector<2x128xf32>
    %45 = tpu.matmul %44, %42, %cst_24 {dimension_numbers = #tpu.dot_dimension_numbers<[1], [0], [0], [1], [0, 0, 1, 1], [], []>} : vector<2x8xf32>, vector<8x128xf32>, vector<2x128xf32> -> vector<2x128xf32>
    %46 = arith.addf %41, %45 : vector<2x128xf32>
    %c118_i32 = arith.constant 118 : i32
    %47 = tpu.dynamic_rotate %1 by %c118_i32 dim 1 : vector<8x128xf32>, i32 -> vector<8x128xf32>
    %48 = vector.extract_strided_slice %13 {offsets = [7, 0, 0], sizes = [1, 2, 8], strides = [1, 1, 1]} : vector<9x2x8xf32> to vector<1x2x8xf32>
    %49 = vector.shape_cast %48 : vector<1x2x8xf32> to vector<2x8xf32>
    %cst_25 = arith.constant dense<0.000000e+00> : vector<2x128xf32>
    %50 = tpu.matmul %49, %47, %cst_25 {dimension_numbers = #tpu.dot_dimension_numbers<[1], [0], [0], [1], [0, 0, 1, 1], [], []>} : vector<2x8xf32>, vector<8x128xf32>, vector<2x128xf32> -> vector<2x128xf32>
    %51 = arith.addf %46, %50 : vector<2x128xf32>
    %c117_i32 = arith.constant 117 : i32
    %52 = tpu.dynamic_rotate %1 by %c117_i32 dim 1 : vector<8x128xf32>, i32 -> vector<8x128xf32>
    %53 = vector.extract_strided_slice %13 {offsets = [8, 0, 0], sizes = [1, 2, 8], strides = [1, 1, 1]} : vector<9x2x8xf32> to vector<1x2x8xf32>
    %54 = vector.shape_cast %53 : vector<1x2x8xf32> to vector<2x8xf32>
    %cst_26 = arith.constant dense<0.000000e+00> : vector<2x128xf32>
    %55 = tpu.matmul %54, %52, %cst_26 {dimension_numbers = #tpu.dot_dimension_numbers<[1], [0], [0], [1], [0, 0, 1, 1], [], []>} : vector<2x8xf32>, vector<8x128xf32>, vector<2x128xf32> -> vector<2x128xf32>
    %56 = arith.addf %51, %55 : vector<2x128xf32>
    %c1 = arith.constant 1 : index
    %c0_27 = arith.constant 0 : index
    %c0_28 = arith.constant 0 : index
    %c0_29 = arith.constant 0 : index
    %57 = vector.load %arg5[%c1, %c0_27, %c0_28, %c0_29] : memref<3x9x2x8xf32, #tpu.memory_space<vmem>>, vector<1x9x2x8xf32>
    %58 = vector.shape_cast %57 : vector<1x9x2x8xf32> to vector<9x2x8xf32>
    %c11_i32_30 = arith.constant 11 : i32
    %59 = tpu.dynamic_rotate %3 by %c11_i32_30 dim 1 : vector<8x128xf32>, i32 -> vector<8x128xf32>
    %60 = vector.extract_strided_slice %58 {offsets = [0, 0, 0], sizes = [1, 2, 8], strides = [1, 1, 1]} : vector<9x2x8xf32> to vector<1x2x8xf32>
    %61 = vector.shape_cast %60 : vector<1x2x8xf32> to vector<2x8xf32>
    %cst_31 = arith.constant dense<0.000000e+00> : vector<2x128xf32>
    %62 = tpu.matmul %61, %59, %cst_31 {dimension_numbers = #tpu.dot_dimension_numbers<[1], [0], [0], [1], [0, 0, 1, 1], [], []>} : vector<2x8xf32>, vector<8x128xf32>, vector<2x128xf32> -> vector<2x128xf32>
    %63 = arith.addf %56, %62 : vector<2x128xf32>
    %c10_i32_32 = arith.constant 10 : i32
    %64 = tpu.dynamic_rotate %3 by %c10_i32_32 dim 1 : vector<8x128xf32>, i32 -> vector<8x128xf32>
    %65 = vector.extract_strided_slice %58 {offsets = [1, 0, 0], sizes = [1, 2, 8], strides = [1, 1, 1]} : vector<9x2x8xf32> to vector<1x2x8xf32>
    %66 = vector.shape_cast %65 : vector<1x2x8xf32> to vector<2x8xf32>
    %cst_33 = arith.constant dense<0.000000e+00> : vector<2x128xf32>
    %67 = tpu.matmul %66, %64, %cst_33 {dimension_numbers = #tpu.dot_dimension_numbers<[1], [0], [0], [1], [0, 0, 1, 1], [], []>} : vector<2x8xf32>, vector<8x128xf32>, vector<2x128xf32> -> vector<2x128xf32>
    %68 = arith.addf %63, %67 : vector<2x128xf32>
    %c9_i32_34 = arith.constant 9 : i32
    %69 = tpu.dynamic_rotate %3 by %c9_i32_34 dim 1 : vector<8x128xf32>, i32 -> vector<8x128xf32>
    %70 = vector.extract_strided_slice %58 {offsets = [2, 0, 0], sizes = [1, 2, 8], strides = [1, 1, 1]} : vector<9x2x8xf32> to vector<1x2x8xf32>
    %71 = vector.shape_cast %70 : vector<1x2x8xf32> to vector<2x8xf32>
    %cst_35 = arith.constant dense<0.000000e+00> : vector<2x128xf32>
    %72 = tpu.matmul %71, %69, %cst_35 {dimension_numbers = #tpu.dot_dimension_numbers<[1], [0], [0], [1], [0, 0, 1, 1], [], []>} : vector<2x8xf32>, vector<8x128xf32>, vector<2x128xf32> -> vector<2x128xf32>
    %73 = arith.addf %68, %72 : vector<2x128xf32>
    %c1_i32_36 = arith.constant 1 : i32
    %74 = tpu.dynamic_rotate %3 by %c1_i32_36 dim 1 : vector<8x128xf32>, i32 -> vector<8x128xf32>
    %75 = vector.extract_strided_slice %58 {offsets = [3, 0, 0], sizes = [1, 2, 8], strides = [1, 1, 1]} : vector<9x2x8xf32> to vector<1x2x8xf32>
    %76 = vector.shape_cast %75 : vector<1x2x8xf32> to vector<2x8xf32>
    %cst_37 = arith.constant dense<0.000000e+00> : vector<2x128xf32>
    %77 = tpu.matmul %76, %74, %cst_37 {dimension_numbers = #tpu.dot_dimension_numbers<[1], [0], [0], [1], [0, 0, 1, 1], [], []>} : vector<2x8xf32>, vector<8x128xf32>, vector<2x128xf32> -> vector<2x128xf32>
    %78 = arith.addf %73, %77 : vector<2x128xf32>
    %79 = vector.extract_strided_slice %58 {offsets = [4, 0, 0], sizes = [1, 2, 8], strides = [1, 1, 1]} : vector<9x2x8xf32> to vector<1x2x8xf32>
    %80 = vector.shape_cast %79 : vector<1x2x8xf32> to vector<2x8xf32>
    %cst_38 = arith.constant dense<0.000000e+00> : vector<2x128xf32>
    %81 = tpu.matmul %80, %3, %cst_38 {dimension_numbers = #tpu.dot_dimension_numbers<[1], [0], [0], [1], [0, 0, 1, 1], [], []>} : vector<2x8xf32>, vector<8x128xf32>, vector<2x128xf32> -> vector<2x128xf32>
    %82 = arith.addf %78, %81 : vector<2x128xf32>
    %c127_i32_39 = arith.constant 127 : i32
    %83 = tpu.dynamic_rotate %3 by %c127_i32_39 dim 1 : vector<8x128xf32>, i32 -> vector<8x128xf32>
    %84 = vector.extract_strided_slice %58 {offsets = [5, 0, 0], sizes = [1, 2, 8], strides = [1, 1, 1]} : vector<9x2x8xf32> to vector<1x2x8xf32>
    %85 = vector.shape_cast %84 : vector<1x2x8xf32> to vector<2x8xf32>
    %cst_40 = arith.constant dense<0.000000e+00> : vector<2x128xf32>
    %86 = tpu.matmul %85, %83, %cst_40 {dimension_numbers = #tpu.dot_dimension_numbers<[1], [0], [0], [1], [0, 0, 1, 1], [], []>} : vector<2x8xf32>, vector<8x128xf32>, vector<2x128xf32> -> vector<2x128xf32>
    %87 = arith.addf %82, %86 : vector<2x128xf32>
    %c119_i32_41 = arith.constant 119 : i32
    %88 = tpu.dynamic_rotate %3 by %c119_i32_41 dim 1 : vector<8x128xf32>, i32 -> vector<8x128xf32>
    %89 = vector.extract_strided_slice %58 {offsets = [6, 0, 0], sizes = [1, 2, 8], strides = [1, 1, 1]} : vector<9x2x8xf32> to vector<1x2x8xf32>
    %90 = vector.shape_cast %89 : vector<1x2x8xf32> to vector<2x8xf32>
    %cst_42 = arith.constant dense<0.000000e+00> : vector<2x128xf32>
    %91 = tpu.matmul %90, %88, %cst_42 {dimension_numbers = #tpu.dot_dimension_numbers<[1], [0], [0], [1], [0, 0, 1, 1], [], []>} : vector<2x8xf32>, vector<8x128xf32>, vector<2x128xf32> -> vector<2x128xf32>
    %92 = arith.addf %87, %91 : vector<2x128xf32>
    %c118_i32_43 = arith.constant 118 : i32
    %93 = tpu.dynamic_rotate %3 by %c118_i32_43 dim 1 : vector<8x128xf32>, i32 -> vector<8x128xf32>
    %94 = vector.extract_strided_slice %58 {offsets = [7, 0, 0], sizes = [1, 2, 8], strides = [1, 1, 1]} : vector<9x2x8xf32> to vector<1x2x8xf32>
    %95 = vector.shape_cast %94 : vector<1x2x8xf32> to vector<2x8xf32>
    %cst_44 = arith.constant dense<0.000000e+00> : vector<2x128xf32>
    %96 = tpu.matmul %95, %93, %cst_44 {dimension_numbers = #tpu.dot_dimension_numbers<[1], [0], [0], [1], [0, 0, 1, 1], [], []>} : vector<2x8xf32>, vector<8x128xf32>, vector<2x128xf32> -> vector<2x128xf32>
    %97 = arith.addf %92, %96 : vector<2x128xf32>
    %c117_i32_45 = arith.constant 117 : i32
    %98 = tpu.dynamic_rotate %3 by %c117_i32_45 dim 1 : vector<8x128xf32>, i32 -> vector<8x128xf32>
    %99 = vector.extract_strided_slice %58 {offsets = [8, 0, 0], sizes = [1, 2, 8], strides = [1, 1, 1]} : vector<9x2x8xf32> to vector<1x2x8xf32>
    %100 = vector.shape_cast %99 : vector<1x2x8xf32> to vector<2x8xf32>
    %cst_46 = arith.constant dense<0.000000e+00> : vector<2x128xf32>
    %101 = tpu.matmul %100, %98, %cst_46 {dimension_numbers = #tpu.dot_dimension_numbers<[1], [0], [0], [1], [0, 0, 1, 1], [], []>} : vector<2x8xf32>, vector<8x128xf32>, vector<2x128xf32> -> vector<2x128xf32>
    %102 = arith.addf %97, %101 : vector<2x128xf32>
    %c2 = arith.constant 2 : index
    %c0_47 = arith.constant 0 : index
    %c0_48 = arith.constant 0 : index
    %c0_49 = arith.constant 0 : index
    %103 = vector.load %arg5[%c2, %c0_47, %c0_48, %c0_49] : memref<3x9x2x8xf32, #tpu.memory_space<vmem>>, vector<1x9x2x8xf32>
    %104 = vector.shape_cast %103 : vector<1x9x2x8xf32> to vector<9x2x8xf32>
    %105 = vector.broadcast %9 : f32 to vector<9x2x8xf32>
    %106 = arith.mulf %104, %105 : vector<9x2x8xf32>
    %c11_i32_50 = arith.constant 11 : i32
    %107 = tpu.dynamic_rotate %5 by %c11_i32_50 dim 1 : vector<8x128xf32>, i32 -> vector<8x128xf32>
    %108 = vector.extract_strided_slice %106 {offsets = [0, 0, 0], sizes = [1, 2, 8], strides = [1, 1, 1]} : vector<9x2x8xf32> to vector<1x2x8xf32>
    %109 = vector.shape_cast %108 : vector<1x2x8xf32> to vector<2x8xf32>
    %cst_51 = arith.constant dense<0.000000e+00> : vector<2x128xf32>
    %110 = tpu.matmul %109, %107, %cst_51 {dimension_numbers = #tpu.dot_dimension_numbers<[1], [0], [0], [1], [0, 0, 1, 1], [], []>} : vector<2x8xf32>, vector<8x128xf32>, vector<2x128xf32> -> vector<2x128xf32>
    %111 = arith.addf %102, %110 : vector<2x128xf32>
    %c10_i32_52 = arith.constant 10 : i32
    %112 = tpu.dynamic_rotate %5 by %c10_i32_52 dim 1 : vector<8x128xf32>, i32 -> vector<8x128xf32>
    %113 = vector.extract_strided_slice %106 {offsets = [1, 0, 0], sizes = [1, 2, 8], strides = [1, 1, 1]} : vector<9x2x8xf32> to vector<1x2x8xf32>
    %114 = vector.shape_cast %113 : vector<1x2x8xf32> to vector<2x8xf32>
    %cst_53 = arith.constant dense<0.000000e+00> : vector<2x128xf32>
    %115 = tpu.matmul %114, %112, %cst_53 {dimension_numbers = #tpu.dot_dimension_numbers<[1], [0], [0], [1], [0, 0, 1, 1], [], []>} : vector<2x8xf32>, vector<8x128xf32>, vector<2x128xf32> -> vector<2x128xf32>
    %116 = arith.addf %111, %115 : vector<2x128xf32>
    %c9_i32_54 = arith.constant 9 : i32
    %117 = tpu.dynamic_rotate %5 by %c9_i32_54 dim 1 : vector<8x128xf32>, i32 -> vector<8x128xf32>
    %118 = vector.extract_strided_slice %106 {offsets = [2, 0, 0], sizes = [1, 2, 8], strides = [1, 1, 1]} : vector<9x2x8xf32> to vector<1x2x8xf32>
    %119 = vector.shape_cast %118 : vector<1x2x8xf32> to vector<2x8xf32>
    %cst_55 = arith.constant dense<0.000000e+00> : vector<2x128xf32>
    %120 = tpu.matmul %119, %117, %cst_55 {dimension_numbers = #tpu.dot_dimension_numbers<[1], [0], [0], [1], [0, 0, 1, 1], [], []>} : vector<2x8xf32>, vector<8x128xf32>, vector<2x128xf32> -> vector<2x128xf32>
    %121 = arith.addf %116, %120 : vector<2x128xf32>
    %c1_i32_56 = arith.constant 1 : i32
    %122 = tpu.dynamic_rotate %5 by %c1_i32_56 dim 1 : vector<8x128xf32>, i32 -> vector<8x128xf32>
    %123 = vector.extract_strided_slice %106 {offsets = [3, 0, 0], sizes = [1, 2, 8], strides = [1, 1, 1]} : vector<9x2x8xf32> to vector<1x2x8xf32>
    %124 = vector.shape_cast %123 : vector<1x2x8xf32> to vector<2x8xf32>
    %cst_57 = arith.constant dense<0.000000e+00> : vector<2x128xf32>
    %125 = tpu.matmul %124, %122, %cst_57 {dimension_numbers = #tpu.dot_dimension_numbers<[1], [0], [0], [1], [0, 0, 1, 1], [], []>} : vector<2x8xf32>, vector<8x128xf32>, vector<2x128xf32> -> vector<2x128xf32>
    %126 = arith.addf %121, %125 : vector<2x128xf32>
    %127 = vector.extract_strided_slice %106 {offsets = [4, 0, 0], sizes = [1, 2, 8], strides = [1, 1, 1]} : vector<9x2x8xf32> to vector<1x2x8xf32>
    %128 = vector.shape_cast %127 : vector<1x2x8xf32> to vector<2x8xf32>
    %cst_58 = arith.constant dense<0.000000e+00> : vector<2x128xf32>
    %129 = tpu.matmul %128, %5, %cst_58 {dimension_numbers = #tpu.dot_dimension_numbers<[1], [0], [0], [1], [0, 0, 1, 1], [], []>} : vector<2x8xf32>, vector<8x128xf32>, vector<2x128xf32> -> vector<2x128xf32>
    %130 = arith.addf %126, %129 : vector<2x128xf32>
    %c127_i32_59 = arith.constant 127 : i32
    %131 = tpu.dynamic_rotate %5 by %c127_i32_59 dim 1 : vector<8x128xf32>, i32 -> vector<8x128xf32>
    %132 = vector.extract_strided_slice %106 {offsets = [5, 0, 0], sizes = [1, 2, 8], strides = [1, 1, 1]} : vector<9x2x8xf32> to vector<1x2x8xf32>
    %133 = vector.shape_cast %132 : vector<1x2x8xf32> to vector<2x8xf32>
    %cst_60 = arith.constant dense<0.000000e+00> : vector<2x128xf32>
    %134 = tpu.matmul %133, %131, %cst_60 {dimension_numbers = #tpu.dot_dimension_numbers<[1], [0], [0], [1], [0, 0, 1, 1], [], []>} : vector<2x8xf32>, vector<8x128xf32>, vector<2x128xf32> -> vector<2x128xf32>
    %135 = arith.addf %130, %134 : vector<2x128xf32>
    %c119_i32_61 = arith.constant 119 : i32
    %136 = tpu.dynamic_rotate %5 by %c119_i32_61 dim 1 : vector<8x128xf32>, i32 -> vector<8x128xf32>
    %137 = vector.extract_strided_slice %106 {offsets = [6, 0, 0], sizes = [1, 2, 8], strides = [1, 1, 1]} : vector<9x2x8xf32> to vector<1x2x8xf32>
    %138 = vector.shape_cast %137 : vector<1x2x8xf32> to vector<2x8xf32>
    %cst_62 = arith.constant dense<0.000000e+00> : vector<2x128xf32>
    %139 = tpu.matmul %138, %136, %cst_62 {dimension_numbers = #tpu.dot_dimension_numbers<[1], [0], [0], [1], [0, 0, 1, 1], [], []>} : vector<2x8xf32>, vector<8x128xf32>, vector<2x128xf32> -> vector<2x128xf32>
    %140 = arith.addf %135, %139 : vector<2x128xf32>
    %c118_i32_63 = arith.constant 118 : i32
    %141 = tpu.dynamic_rotate %5 by %c118_i32_63 dim 1 : vector<8x128xf32>, i32 -> vector<8x128xf32>
    %142 = vector.extract_strided_slice %106 {offsets = [7, 0, 0], sizes = [1, 2, 8], strides = [1, 1, 1]} : vector<9x2x8xf32> to vector<1x2x8xf32>
    %143 = vector.shape_cast %142 : vector<1x2x8xf32> to vector<2x8xf32>
    %cst_64 = arith.constant dense<0.000000e+00> : vector<2x128xf32>
    %144 = tpu.matmul %143, %141, %cst_64 {dimension_numbers = #tpu.dot_dimension_numbers<[1], [0], [0], [1], [0, 0, 1, 1], [], []>} : vector<2x8xf32>, vector<8x128xf32>, vector<2x128xf32> -> vector<2x128xf32>
    %145 = arith.addf %140, %144 : vector<2x128xf32>
    %c117_i32_65 = arith.constant 117 : i32
    %146 = tpu.dynamic_rotate %5 by %c117_i32_65 dim 1 : vector<8x128xf32>, i32 -> vector<8x128xf32>
    %147 = vector.extract_strided_slice %106 {offsets = [8, 0, 0], sizes = [1, 2, 8], strides = [1, 1, 1]} : vector<9x2x8xf32> to vector<1x2x8xf32>
    %148 = vector.shape_cast %147 : vector<1x2x8xf32> to vector<2x8xf32>
    %cst_66 = arith.constant dense<0.000000e+00> : vector<2x128xf32>
    %149 = tpu.matmul %148, %146, %cst_66 {dimension_numbers = #tpu.dot_dimension_numbers<[1], [0], [0], [1], [0, 0, 1, 1], [], []>} : vector<2x8xf32>, vector<8x128xf32>, vector<2x128xf32> -> vector<2x128xf32>
    %150 = arith.addf %145, %149 : vector<2x128xf32>
    %c0_67 = arith.constant 0 : index
    %c0_68 = arith.constant 0 : index
    %151 = vector.load %arg6[%c0_67, %c0_68] : memref<2x1xf32, #tpu.memory_space<vmem>>, vector<2x1xf32>
    %152 = vector.broadcast %151 : vector<2x1xf32> to vector<2x128xf32>
    %153 = arith.addf %150, %152 : vector<2x128xf32>
    %cst_69 = arith.constant dense<0xFF800000> : vector<128xf32>
    %154 = vector.multi_reduction <maximumf>, %153, %cst_69 [0] : vector<2x128xf32> to vector<128xf32>
    %155 = vector.shape_cast %154 : vector<128xf32> to vector<1x128xf32>
    %156 = vector.broadcast %155 : vector<1x128xf32> to vector<2x128xf32>
    %157 = arith.subf %153, %156 : vector<2x128xf32>
    %158 = math.exp %157 : vector<2x128xf32>
    %cst_70 = arith.constant dense<0.000000e+00> : vector<128xf32>
    %159 = vector.multi_reduction <add>, %158, %cst_70 [0] : vector<2x128xf32> to vector<128xf32>
    %160 = vector.shape_cast %159 : vector<128xf32> to vector<1x128xf32>
    %161 = tpu.reciprocal %160 {approx = true} : vector<1x128xf32> -> vector<1x128xf32>
    %162 = vector.broadcast %161 : vector<1x128xf32> to vector<2x128xf32>
    %163 = arith.mulf %158, %162 : vector<2x128xf32>
    %c0_71 = arith.constant 0 : index
    %c0_72 = arith.constant 0 : index
    %c0_73 = arith.constant 0 : index
    %c0_74 = arith.constant 0 : index
    %c0_75 = arith.constant 0 : index
    %164 = vector.load %arg7[%c0_71, %c0_72, %c0_73, %c0_74, %c0_75] : memref<1x1x2x3x128xf32, #tpu.memory_space<vmem>>, vector<1x1x2x3x128xf32>
    %165 = vector.shape_cast %164 : vector<1x1x2x3x128xf32> to vector<2x3x128xf32>
    %166 = vector.shape_cast %163 : vector<2x128xf32> to vector<2x1x128xf32>
    %167 = vector.broadcast %166 : vector<2x1x128xf32> to vector<2x3x128xf32>
    %168 = arith.mulf %165, %167 : vector<2x3x128xf32>
    %cst_76 = arith.constant dense<0.000000e+00> : vector<3x128xf32>
    %169 = vector.multi_reduction <add>, %168, %cst_76 [0] : vector<2x3x128xf32> to vector<3x128xf32>
    %cst_77 = arith.constant 2.000000e+00 : f32
    %170 = vector.broadcast %cst_77 : f32 to vector<3x128xf32>
    %171 = arith.mulf %170, %169 : vector<3x128xf32>
    %c0_78 = arith.constant 0 : index
    %c0_79 = arith.constant 0 : index
    %c0_80 = arith.constant 0 : index
    %c0_81 = arith.constant 0 : index
    %172 = vector.load %arg8[%c0_78, %c0_79, %c0_80, %c0_81] : memref<1x1x3x128xf32, #tpu.memory_space<vmem>>, vector<1x1x3x128xf32>
    %173 = vector.shape_cast %172 : vector<1x1x3x128xf32> to vector<3x128xf32>
    %174 = vector.shape_cast %171 : vector<3x128xf32> to vector<1x1x3x128xf32>
    tpu.vector_store %arg8[%c0_78, %c0_79, %c0_80, %c0_81], %174 {strides = array<i32>} : memref<1x1x3x128xf32, #tpu.memory_space<vmem>>, vector<1x1x3x128xf32>,
    return
  }
  func.func @transform_0(%arg0: i32, %arg1: i32) -> (i32, i32, i32, i32) {
    %c1_i32 = arith.constant 1 : i32
    %0 = arith.subi %arg1, %c1_i32 : i32
    %c0_i32 = arith.constant 0 : i32
    %1 = arith.maxsi %0, %c0_i32 : i32
    %c0_i32_0 = arith.constant 0 : i32
    %c0_i32_1 = arith.constant 0 : i32
    %c0_i32_2 = arith.constant 0 : i32
    return %arg0, %1, %c0_i32_0, %c0_i32_1 : i32, i32, i32, i32
  }
  func.func @transform_1(%arg0: i32, %arg1: i32) -> (i32, i32, i32, i32) {
    %c0_i32 = arith.constant 0 : i32
    %c0_i32_0 = arith.constant 0 : i32
    %c0_i32_1 = arith.constant 0 : i32
    return %arg0, %arg1, %c0_i32, %c0_i32_0 : i32, i32, i32, i32
  }
  func.func @transform_2(%arg0: i32, %arg1: i32) -> (i32, i32, i32, i32) {
    %c1_i32 = arith.constant 1 : i32
    %0 = arith.addi %arg1, %c1_i32 : i32
    %c7_i32 = arith.constant 7 : i32
    %1 = arith.minsi %0, %c7_i32 : i32
    %c0_i32 = arith.constant 0 : i32
    %c0_i32_0 = arith.constant 0 : i32
    %c0_i32_1 = arith.constant 0 : i32
    return %arg0, %1, %c0_i32, %c0_i32_0 : i32, i32, i32, i32
  }
  func.func @transform_3(%arg0: i32, %arg1: i32) -> (i32, i32, i32, i32) {
    %c0_i32 = arith.constant 0 : i32
    %c0_i32_0 = arith.constant 0 : i32
    %c0_i32_1 = arith.constant 0 : i32
    %c0_i32_2 = arith.constant 0 : i32
    %c0_i32_3 = arith.constant 0 : i32
    return %c0_i32, %c0_i32_0, %c0_i32_1, %c0_i32_2 : i32, i32, i32, i32
  }
  func.func @transform_4(%arg0: i32, %arg1: i32) -> (i32, i32) {
    %c0_i32 = arith.constant 0 : i32
    %c0_i32_0 = arith.constant 0 : i32
    %c0_i32_1 = arith.constant 0 : i32
    return %c0_i32, %c0_i32_0 : i32, i32
  }
  func.func @transform_5(%arg0: i32, %arg1: i32) -> (i32, i32, i32, i32, i32) {
    %c0_i32 = arith.constant 0 : i32
    %c0_i32_0 = arith.constant 0 : i32
    %c0_i32_1 = arith.constant 0 : i32
    %c0_i32_2 = arith.constant 0 : i32
    return %arg0, %arg1, %c0_i32, %c0_i32_0, %c0_i32_1 : i32, i32, i32, i32, i32
  }
  func.func @transform_6(%arg0: i32, %arg1: i32) -> (i32, i32, i32, i32) {
    %c0_i32 = arith.constant 0 : i32
    %c0_i32_0 = arith.constant 0 : i32
    %c0_i32_1 = arith.constant 0 : i32
    return %arg0, %arg1, %c0_i32, %c0_i32_0 : i32, i32, i32, i32
  }
}

</mosaic_0001>

<llo_original>
// kernel: hffm_forward.3
$region0: #{hffm_forward.3}
  #allocation0 [shape = 'u32[]', space=smem, size = 0x4, offset = 0x4, fixed_abs, tag = 'smem constant byte address 0x4 - core index']
  #allocation1 [shape = 'u32[144,128]{1,0:T(1,128)}', space=vmem, size = 0x12000, scoped, tag = 'internal scratch']
  #allocation2 [shape = 'f32[8,1]{1,0:T(8,128)}', space=vmem, size = 0x1000, scoped, tag = 'scratch operand']
  #allocation3 [shape = 'f32[8,1]{1,0:T(8,128)}', space=vmem, size = 0x1000, scoped, tag = 'scratch operand']
  %s0 = inlined_call_operand.vmem [shape: f32[2,8,6,128], index: 0, kind: input, shape index: {}, may-alias: {0,1,2}]
  %s1 = inlined_call_operand.vmem [shape: f32[2,8,6,128], index: 1, kind: input, shape index: {}, may-alias: {0,1,2}]
  %s2 = inlined_call_operand.vmem [shape: f32[2,8,6,128], index: 2, kind: input, shape index: {}, may-alias: {0,1,2}]
  %s3 = inlined_call_operand.vmem [shape: f32[3,9,8,6], index: 3, kind: input, shape index: {}]
  %s4 = inlined_call_operand.vmem [shape: f32[1,128], index: 4, kind: input, shape index: {}]
  %s5 = inlined_call_operand.vmem [shape: f32[2,8,8,128], index: 5, kind: output, shape index: {}]
  %s6 = sld [smem:[#allocation0]]
  $region61: #{hffm_forward.3} parent=0
    _
  %s8 = ssub.s32 1, %s6
  %s9 = scalar_select 0, %s8, %s6
  loop: start=0, step=1, limit=18
  $region2: #{hffm_forward.3} parent=0 // loop_pre_header
    _
  $region3: #{hffm_forward.3} parent=0 // loop_header
    %s11 = sphi 0, %s15
    %p12 = scmp.ge.s32.totalorder %s11, 18
    %s18 = sphi 0, %s30
    %s19 = sphi 0, %s26
    %s20 = sphi 0, %s18
    %s21 = sphi 0, %s19
    %s22 = sphi 0, %s20
    %s23 = sphi 0, %s21
    %s41 = sphi 0, %s43
    %s44 = sphi 0, %s41
    %s45 = sphi 0, %s44
    %s61 = sphi 0, %s45
    %s69 = sphi 0, %s71
    %s72 = sphi 0, %s69
    %s73 = sphi 0, %s72
    %s89 = sphi 0, %s73
    %s103 = sphi 0, %s105
    %s106 = sphi 0, %s103
    %s107 = sphi 0, %s106
    %s123 = sphi 0, %s107
    %s127 = sphi 0, %s127
    %s129 = sphi 0, %s127
    %s130 = sphi 0, %s129
    %s144 = sphi 0, %s130
    %s148 = sphi 0, %s148
    %s150 = sphi 0, %s148
    %s151 = sphi 0, %s150
    %s165 = sphi 0, %s151
    %s171 = sphi 0, %s173
    %s174 = sphi 0, %s171
    %s175 = sphi 0, %s174
    %s191 = sphi 0, %s175
  $region4: #{hffm_forward.3} parent=0 // loop_header_branch
    %14 = sbr.rel (%p12) target = $region8
  $region5: #{hffm_forward.3} parent=0 // loop_body
    %s16 = ssub.s32 %s11, 1
    %s17 = ssub.s32 %s11, 2
    %s24 = sadd.s32 1, %s19
    %p25 = scmp.ge.s32.totalorder %s24, 8
    %s26 = scalar_select %p25, 0, %s24
    %s27 = sadd.s32 1, %s18
    %s28 = scalar_select %p25, %s27, %s18
    %p29 = scmp.ge.s32.totalorder %s28, 2
    %s30 = scalar_select %p29, 0, %s28
    %s31 = ssub.s32 %s19, 1
    %p32 = scmp.gt.s32.totalorder %s31, 0
    %s33 = scalar_select %p32, %s31, 0
    %s34 = ssub.s32 %s26, 1
    %p35 = scmp.gt.s32.totalorder %s34, 0
    %s36 = scalar_select %p35, %s34, 0
    %s37 = ssub.s32 %s18, %s30
    %s38 = ssub.s32 %s33, %s36
    %s39 = sor.u32 %s37, %s38
    %p40 = scmp.eq.s32.totalorder %s39, 0
    %s42 = sadd.s32 %s41, 1
    %s43 = scalar_select %p40, %s41, %s42
    %p46 = pneg %p40
    %p47 = scmp.eq.s32.totalorder %s11, 15
    %p48 = por %p46, %p47
    %p49 = scmp.ne.s32.totalorder %s41, %s44
    %p50 = scmp.eq.s32.totalorder %s11, 0
    %p51 = por %p49, %p50
    %p52 = scmp.ne.s32.totalorder %s41, %s44
    %p53 = scmp.eq.s32.totalorder %s16, 15
    %p54 = por %p52, %p53
    %p55 = scmp.ne.s32.totalorder %s44, %s45
    %p56 = scmp.eq.s32.totalorder %s16, 0
    %p57 = por %p55, %p56
    %p58 = scmp.ne.s32.totalorder %s44, %s45
    %p59 = scmp.eq.s32.totalorder %s17, 15
    %p60 = por %p58, %p59
    %p62 = scmp.ne.s32.totalorder %s45, %s61
    %p63 = scmp.eq.s32.totalorder %s17, 0
    %p64 = por %p62, %p63
    %s65 = ssub.s32 %s18, %s30
    %s66 = ssub.s32 %s19, %s26
    %s67 = sor.u32 %s65, %s66
    %p68 = scmp.eq.s32.totalorder %s67, 0
    %s70 = sadd.s32 %s69, 1
    %s71 = scalar_select %p68, %s69, %s70
    %p74 = pneg %p68
    %p75 = scmp.eq.s32.totalorder %s11, 15
    %p76 = por %p74, %p75
    %p77 = scmp.ne.s32.totalorder %s69, %s72
    %p78 = scmp.eq.s32.totalorder %s11, 0
    %p79 = por %p77, %p78
    %p80 = scmp.ne.s32.totalorder %s69, %s72
    %p81 = scmp.eq.s32.totalorder %s16, 15
    %p82 = por %p80, %p81
    %p83 = scmp.ne.s32.totalorder %s72, %s73
    %p84 = scmp.eq.s32.totalorder %s16, 0
    %p85 = por %p83, %p84
    %p86 = scmp.ne.s32.totalorder %s72, %s73
    %p87 = scmp.eq.s32.totalorder %s17, 15
    %p88 = por %p86, %p87
    %p90 = scmp.ne.s32.totalorder %s73, %s89
    %p91 = scmp.eq.s32.totalorder %s17, 0
    %p92 = por %p90, %p91
    %s93 = sadd.s32 %s19, 1
    %p94 = scmp.lt.s32.totalorder %s93, 7
    %s95 = scalar_select %p94, %s93, 7
    %s96 = sadd.s32 %s26, 1
    %p97 = scmp.lt.s32.totalorder %s96, 7
    %s98 = scalar_select %p97, %s96, 7
    %s99 = ssub.s32 %s18, %s30
    %s100 = ssub.s32 %s95, %s98
    %s101 = sor.u32 %s99, %s100
    %p102 = scmp.eq.s32.totalorder %s101, 0
    %s104 = sadd.s32 %s103, 1
    %s105 = scalar_select %p102, %s103, %s104
    %p108 = pneg %p102
    %p109 = scmp.eq.s32.totalorder %s11, 15
    %p110 = por %p108, %p109
    %p111 = scmp.ne.s32.totalorder %s103, %s106
    %p112 = scmp.eq.s32.totalorder %s11, 0
    %p113 = por %p111, %p112
    %p114 = scmp.ne.s32.totalorder %s103, %s106
    %p115 = scmp.eq.s32.totalorder %s16, 15
    %p116 = por %p114, %p115
    %p117 = scmp.ne.s32.totalorder %s106, %s107
    %p118 = scmp.eq.s32.totalorder %s16, 0
    %p119 = por %p117, %p118
    %p120 = scmp.ne.s32.totalorder %s106, %s107
    %p121 = scmp.eq.s32.totalorder %s17, 15
    %p122 = por %p120, %p121
    %p124 = scmp.ne.s32.totalorder %s107, %s123
    %p125 = scmp.eq.s32.totalorder %s17, 0
    %p126 = por %p124, %p125
    %s128 = sadd.s32 %s127, 1
    %p131 = scmp.eq.s32.totalorder %s11, 15
    %p132 = scmp.ne.s32.totalorder %s127, %s129
    %p133 = scmp.eq.s32.totalorder %s11, 0
    %p134 = por %p132, %p133
    %p135 = scmp.ne.s32.totalorder %s127, %s129
    %p136 = scmp.eq.s32.totalorder %s16, 15
    %p137 = por %p135, %p136
    %p138 = scmp.ne.s32.totalorder %s129, %s130
    %p139 = scmp.eq.s32.totalorder %s16, 0
    %p140 = por %p138, %p139
    %p141 = scmp.ne.s32.totalorder %s129, %s130
    %p142 = scmp.eq.s32.totalorder %s17, 15
    %p143 = por %p141, %p142
    %p145 = scmp.ne.s32.totalorder %s130, %s144
    %p146 = scmp.eq.s32.totalorder %s17, 0
    %p147 = por %p145, %p146
    %s149 = sadd.s32 %s148, 1
    %p152 = scmp.eq.s32.totalorder %s11, 15
    %p153 = scmp.ne.s32.totalorder %s148, %s150
    %p154 = scmp.eq.s32.totalorder %s11, 0
    %p155 = por %p153, %p154
    %p156 = scmp.ne.s32.totalorder %s148, %s150
    %p157 = scmp.eq.s32.totalorder %s16, 15
    %p158 = por %p156, %p157
    %p159 = scmp.ne.s32.totalorder %s150, %s151
    %p160 = scmp.eq.s32.totalorder %s16, 0
    %p161 = por %p159, %p160
    %p162 = scmp.ne.s32.totalorder %s150, %s151
    %p163 = scmp.eq.s32.totalorder %s17, 15
    %p164 = por %p162, %p163
    %p166 = scmp.ne.s32.totalorder %s151, %s165
    %p167 = scmp.eq.s32.totalorder %s17, 0
    %p168 = por %p166, %p167
    %s169 = ssub.s32 %s18, %s30
    %p170 = scmp.eq.s32.totalorder %s169, 0
    %s172 = sadd.s32 %s171, 1
    %s173 = scalar_select %p170, %s171, %s172
    %p176 = pneg %p170
    %p177 = scmp.eq.s32.totalorder %s11, 15
    %p178 = por %p176, %p177
    %p179 = scmp.ne.s32.totalorder %s171, %s174
    %p180 = scmp.eq.s32.totalorder %s11, 0
    %p181 = por %p179, %p180
    %p182 = scmp.ne.s32.totalorder %s171, %s174
    %p183 = scmp.eq.s32.totalorder %s16, 15
    %p184 = por %p182, %p183
    %p185 = scmp.ne.s32.totalorder %s174, %s175
    %p186 = scmp.eq.s32.totalorder %s16, 0
    %p187 = por %p185, %p186
    %p188 = scmp.ne.s32.totalorder %s174, %s175
    %p189 = scmp.eq.s32.totalorder %s17, 15
    %p190 = por %p188, %p189
    %p192 = scmp.ne.s32.totalorder %s175, %s191
    %p193 = scmp.eq.s32.totalorder %s17, 0
    %p194 = por %p192, %p193
    %p195 = scmp.le.s32.totalorder 1, %s11
    %p196 = scmp.lt.s32.totalorder %s11, 17
    %p197 = pnand %p195, %p196
    %p198 = pneg %p197
    // Predicated region
    $region9: #{hffm_forward.3} parent=5 // pred_check
      _
    $region10: #{hffm_forward.3} parent=5 // pred_check_branch
      %200 = sbr.rel (%p197) target = $region12
    $region11: #{hffm_forward.3} parent=5 // pred_region
      %s201 = ssub.s32 %s11, 1
      // Predicated region
      $region13: #{hffm_forward.3} parent=11 // pred_check
        %p202 = pneg %p140
      $region14: #{hffm_forward.3} parent=11 // pred_check_branch
        %204 = sbr.rel (%p202) target = $region16
      $region15: #{hffm_forward.3} parent=11 // pred_region
        _
      $region16: #{hffm_forward.3} parent=11 // pred_fallthru
        _
      // Predicated region
      $region17: #{hffm_forward.3} parent=11 // pred_check
        %p205 = pneg %p161
      $region18: #{hffm_forward.3} parent=11 // pred_check_branch
        %207 = sbr.rel (%p205) target = $region20
      $region19: #{hffm_forward.3} parent=11 // pred_region
        _
      $region20: #{hffm_forward.3} parent=11 // pred_fallthru
        _
    $region12: #{hffm_forward.3} parent=5 // pred_fallthru
      _
    %p208 = scmp.lt.s32.totalorder %s11, 16
    // Predicated region
    $region21: #{hffm_forward.3} parent=5 // pred_check
      %p209 = pneg %p208
    $region22: #{hffm_forward.3} parent=5 // pred_check_branch
      %211 = sbr.rel (%p209) target = $region24
    $region23: #{hffm_forward.3} parent=5 // pred_region
      // Predicated region
      $region25: #{hffm_forward.3} parent=23 // pred_check
        %p212 = pneg %p51
      $region26: #{hffm_forward.3} parent=23 // pred_check_branch
        %214 = sbr.rel (%p212) target = $region28
      $region27: #{hffm_forward.3} parent=23 // pred_region
        %s215 = ssub.s32 %s19, 1
        %p216 = scmp.gt.s32.totalorder %s215, 0
        %s217 = scalar_select %p216, %s215, 0
        %p218 = scmp.lt.s32.totalorder %s18, 1
        %s219 = scalar_select %p218, %s18, 1
        %p220 = scmp.lt.s32.totalorder %s217, 7
        %s221 = scalar_select %p220, %s217, 7
        %s222 = smul.addr %s219, 8
        %s223 = sadd.s32 %s221, %s222
        %s224 = smul.addr %s223, 8
        %s225 = scalar_lea.vmem %s0, %s224
        %s226 = ssub.s32 %s19, 1
        %p227 = scmp.gt.s32.totalorder %s226, 0
        %s228 = scalar_select %p227, %s226, 0
      $region28: #{hffm_forward.3} parent=23 // pred_fallthru
        _
      // Predicated region
      $region29: #{hffm_forward.3} parent=23 // pred_check
        %p229 = pneg %p79
      $region30: #{hffm_forward.3} parent=23 // pred_check_branch
        %231 = sbr.rel (%p229) target = $region32
      $region31: #{hffm_forward.3} parent=23 // pred_region
        %p232 = scmp.lt.s32.totalorder %s18, 1
        %s233 = scalar_select %p232, %s18, 1
        %p234 = scmp.lt.s32.totalorder %s19, 7
        %s235 = scalar_select %p234, %s19, 7
        %s236 = smul.addr %s233, 8
        %s237 = sadd.s32 %s235, %s236
        %s238 = smul.addr %s237, 8
        %s239 = scalar_lea.vmem %s1, %s238
      $region32: #{hffm_forward.3} parent=23 // pred_fallthru
        _
      // Predicated region
      $region33: #{hffm_forward.3} parent=23 // pred_check
        %p240 = pneg %p113
      $region34: #{hffm_forward.3} parent=23 // pred_check_branch
        %242 = sbr.rel (%p240) target = $region36
      $region35: #{hffm_forward.3} parent=23 // pred_region
        %s243 = sadd.s32 %s19, 1
        %p244 = scmp.lt.s32.totalorder %s243, 7
        %s245 = scalar_select %p244, %s243, 7
        %p246 = scmp.lt.s32.totalorder %s18, 1
        %s247 = scalar_select %p246, %s18, 1
        %p248 = scmp.lt.s32.totalorder %s245, 7
        %s249 = scalar_select %p248, %s245, 7
        %s250 = smul.addr %s247, 8
        %s251 = sadd.s32 %s249, %s250
        %s252 = smul.addr %s251, 8
        %s253 = scalar_lea.vmem %s2, %s252
        %s254 = sadd.s32 %s19, 1
        %p255 = scmp.lt.s32.totalorder %s254, 7
        %s256 = scalar_select %p255, %s254, 7
      $region36: #{hffm_forward.3} parent=23 // pred_fallthru
        _
    $region24: #{hffm_forward.3} parent=5 // pred_fallthru
      _
    %p257 = scmp.le.s32.totalorder 1, %s11
    %p258 = scmp.lt.s32.totalorder %s11, 17
    %p259 = pnand %p257, %p258
    %p260 = pneg %p259
    // Predicated region
    $region37: #{hffm_forward.3} parent=5 // pred_check
      _
    $region38: #{hffm_forward.3} parent=5 // pred_check_branch
      %262 = sbr.rel (%p259) target = $region40
    $region39: #{hffm_forward.3} parent=5 // pred_region
      %s263 = ssub.s32 %s11, 1
      %s264 = ssub.s32 %s21, 1
      %p265 = scmp.gt.s32.totalorder %s264, 0
      %s266 = scalar_select %p265, %s264, 0
      %p267 = scmp.lt.s32.totalorder %s20, 1
      %s268 = scalar_select %p267, %s20, 1
      %p269 = scmp.lt.s32.totalorder %s266, 7
      %s270 = scalar_select %p269, %s266, 7
      %s271 = smul.addr %s268, 8
      %s272 = sadd.s32 %s270, %s271
      %s273 = smul.addr %s272, 8
      %s274 = scalar_lea.vmem %s0, %s273
      %p275 = pneg %p57
      %p276 = pneg %p54
      %p277 = scmp.lt.s32.totalorder %s20, 1
      %s278 = scalar_select %p277, %s20, 1
      %p279 = scmp.lt.s32.totalorder %s21, 7
      %s280 = scalar_select %p279, %s21, 7
      %s281 = smul.addr %s278, 8
      %s282 = sadd.s32 %s280, %s281
      %s283 = smul.addr %s282, 8
      %s284 = scalar_lea.vmem %s1, %s283
      %p285 = pneg %p85
      %p286 = pneg %p82
      %s287 = sadd.s32 %s21, 1
      %p288 = scmp.lt.s32.totalorder %s287, 7
      %s289 = scalar_select %p288, %s287, 7
      %p290 = scmp.lt.s32.totalorder %s20, 1
      %s291 = scalar_select %p290, %s20, 1
      %p292 = scmp.lt.s32.totalorder %s289, 7
      %s293 = scalar_select %p292, %s289, 7
      %s294 = smul.addr %s291, 8
      %s295 = sadd.s32 %s293, %s294
      %s296 = smul.addr %s295, 8
      %s297 = scalar_lea.vmem %s2, %s296
      %p298 = pneg %p119
      %p299 = pneg %p116
      %p300 = pneg %p140
      %p301 = pneg %p137
      %p302 = pneg %p161
      %p303 = pneg %p158
      %p304 = pneg %p187
      %p305 = pneg %p184
      %p306 = scmp.lt.s32.totalorder %s20, 1
      %s307 = scalar_select %p306, %s20, 1
      %s308 = smul.addr %s307, 8
      %s309 = smul.addr %s308, 8
      %s310 = scalar_lea.vmem %s5, %s309
      %s311 = ssub.s32 %s21, 1
      %p312 = scmp.gt.s32.totalorder %s311, 0
      %s313 = scalar_select %p312, %s311, 0
      %p314 = scmp.lt.s32.totalorder %s20, 1
      %s315 = scalar_select %p314, %s20, 1
      %p316 = scmp.lt.s32.totalorder %s313, 7
      %s317 = scalar_select %p316, %s313, 7
      %s318 = smul.addr %s315, 8
      %s319 = sadd.s32 %s317, %s318
      %s320 = smul.addr %s319, 8
      %s321 = scalar_lea.vmem %s0, %s320
      %s322 = ssub.s32 %s21, 1
      %p323 = scmp.gt.s32.totalorder %s322, 0
      %s324 = scalar_select %p323, %s322, 0
      %p325 = scmp.lt.s32.totalorder %s20, 1
      %s326 = scalar_select %p325, %s20, 1
      %p327 = scmp.lt.s32.totalorder %s21, 7
      %s328 = scalar_select %p327, %s21, 7
      %s329 = smul.addr %s326, 8
      %s330 = sadd.s32 %s328, %s329
      %s331 = smul.addr %s330, 8
      %s332 = scalar_lea.vmem %s1, %s331
      %s333 = sadd.s32 %s21, 1
      %p334 = scmp.lt.s32.totalorder %s333, 7
      %s335 = scalar_select %p334, %s333, 7
      %p336 = scmp.lt.s32.totalorder %s20, 1
      %s337 = scalar_select %p336, %s20, 1
      %p338 = scmp.lt.s32.totalorder %s335, 7
      %s339 = scalar_select %p338, %s335, 7
      %s340 = smul.addr %s337, 8
      %s341 = sadd.s32 %s339, %s340
      %s342 = smul.addr %s341, 8
      %s343 = scalar_lea.vmem %s2, %s342
      %s344 = sadd.s32 %s21, 1
      %p345 = scmp.lt.s32.totalorder %s344, 7
      %s346 = scalar_select %p345, %s344, 7
      %p347 = scmp.lt.s32.totalorder %s20, 1
      %s348 = scalar_select %p347, %s20, 1
      %s349 = smul.addr %s348, 8
      %s350 = smul.addr %s349, 8
      %s351 = scalar_lea.vmem %s5, %s350
      %p352 = scmp.eq.s32.totalorder %s21, 0
      // Predicated region
      $region41: #{hffm_forward.3} parent=39 // pred_check
        %p353 = pneg %p352
      $region42: #{hffm_forward.3} parent=39 // pred_check_branch
        %355 = sbr.rel (%p353) target = $region44
      $region43: #{hffm_forward.3} parent=39 // pred_region
        %vm356 = vcmask 7168
        %357 = vst.msk [vmem:[#allocation2] sm:$0xff] %vm356, 0.0
        %358 = vst.msk [vmem:[#allocation3] sm:$0xff] %vm356, 0.0
      $region44: #{hffm_forward.3} parent=39 // pred_fallthru
        _
      %v359 = vld [vmem:[%s321] sm:$0x3f]
      %v360 = vld [vmem:[%s332] sm:$0x3f]
      %v361 = vld [vmem:[%s343] sm:$0x3f]
      %p362 = scmp.gt.s32.totalorder %s21, 0
      %s363 = scalar_select %p362, 1.0, 0.0
      %p364 = scmp.lt.s32.totalorder %s21, 7
      %s365 = scalar_select %p364, 1.0, 0.0
      %v366 = vld [vmem:[%s3] sm:$0xff]
      %v367 = vld [vmem:[%s3 + $0x8] sm:$0xff]
      %v368 = vld [vmem:[%s3 + $0x10] sm:$0xff]
      %v369 = vld [vmem:[%s3 + $0x18] sm:$0xff]
      %v370 = vld [vmem:[%s3 + $0x20] sm:$0xff]
      %v371 = vld [vmem:[%s3 + $0x28] sm:$0xff]
      %v372 = vld [vmem:[%s3 + $0x30] sm:$0xff]
      %v373 = vld [vmem:[%s3 + $0x38] sm:$0xff]
      %v374 = vld [vmem:[%s3 + $0x40] sm:$0xff]
      %v375 = vstv %s363
      %v376 = vmul.f32 %v366, %v375
      %v377 = vmul.f32 %v367, %v375
      %v378 = vmul.f32 %v368, %v375
      %v379 = vmul.f32 %v369, %v375
      %v380 = vmul.f32 %v370, %v375
      %v381 = vmul.f32 %v371, %v375
      %v382 = vmul.f32 %v372, %v375
      %v383 = vmul.f32 %v373, %v375
      %v384 = vmul.f32 %v374, %v375
      %385 = vrot.lane.b32.xlu0 %v359, 11
      %v386 = vpop.permute.xlu0 %385
      %387 = vrot.lane.b32.xlu0 %v359, 10
      %v388 = vpop.permute.xlu0 %387
      %vm389 = vcmask 48128
      %v391 = vsel %vm389, %v377, 0
      %vm393 = vcmask 1045504
      %v395 = vsel %vm393, %v388, 0
      %397 = vmatprep.subr.mxu0 0.0
      %398 = vmatpush1.msra.mxu0 0.0
      %399 = vmatprep.subr.mxu0 0.0
      %400 = vmatpush1.msra.mxu0 0.0
      %401 = vmatprep.subr.mxu0 0.0
      %402 = vmatpush1.msra.mxu0 0.0
      %403 = vmatprep.subr.mxu0 0.0
      %404 = vmatpush1.msra.mxu0 0.0
      %405 = vmatprep.subr.mxu0 0.0
      %406 = vmatpush1.msra.mxu0 0.0
      %407 = vmatprep.subr.mxu0 0.0
      %408 = vmatpush1.msra.mxu0 0.0
      %409 = vmatprep.subr.mxu0 0.0
      %410 = vmatpush1.msra.mxu0 0.0
      %411 = vmatprep.subr.mxu0 0.0
      %412 = vmatpush1.msra.mxu0 0.0
      %413 = vmatprep.subr.mxu0 0.0
      %414 = vmatpush1.msra.mxu0 0.0
      %415 = vmatprep.subr.mxu0 0.0
      %416 = vmatpush1.msra.mxu0 0.0
      %417 = vmatprep.subr.mxu0 0.0
      %418 = vmatpush1.msra.mxu0 0.0
      %419 = vmatprep.subr.mxu0 0.0
      %420 = vmatpush1.msra.mxu0 0.0
      %421 = vmatprep.subr.mxu0 0.0
      %422 = vmatpush1.msra.mxu0 0.0
      %423 = vmatprep.subr.mxu0 0.0
      %424 = vmatpush1.msra.mxu0 0.0
      %425 = vmatprep.subr.mxu0 0.0
      %426 = vmatpush1.msra.mxu0 0.0
      %427 = vmatprep.subr.mxu0 0.0
      %428 = vmatpush1.msra.mxu0 %v395
      %429 = vmatprep.subr.mxu0 0.0
      %430 = vmatpush2.msra.mxu0 0.0
      %431 = vmatprep.subr.mxu0 0.0
      %432 = vmatpush2.msra.mxu0 0.0
      %433 = vmatprep.subr.mxu0 0.0
      %434 = vmatpush2.msra.mxu0 0.0
      %435 = vmatprep.subr.mxu0 0.0
      %436 = vmatpush2.msra.mxu0 0.0
      %437 = vmatprep.subr.mxu0 0.0
      %438 = vmatpush2.msra.mxu0 0.0
      %439 = vmatprep.subr.mxu0 0.0
      %440 = vmatpush2.msra.mxu0 0.0
      %441 = vmatprep.subr.mxu0 0.0
      %442 = vmatpush2.msra.mxu0 0.0
      %443 = vmatprep.subr.mxu0 0.0
      %444 = vmatpush2.msra.mxu0 0.0
      %445 = vmatprep.subr.mxu0 0.0
      %446 = vmatpush2.msra.mxu0 0.0
      %447 = vmatprep.subr.mxu0 0.0
      %448 = vmatpush2.msra.mxu0 0.0
      %449 = vmatprep.subr.mxu0 0.0
      %450 = vmatpush2.msra.mxu0 0.0
      %451 = vmatprep.subr.mxu0 0.0
      %452 = vmatpush2.msra.mxu0 0.0
      %453 = vmatprep.subr.mxu0 0.0
      %454 = vmatpush2.msra.mxu0 0.0
      %455 = vmatprep.subr.mxu0 0.0
      %456 = vmatpush2.msra.mxu0 0.0
      %457 = vmatprep.subr.mxu0 0.0
      %458 = vmatpush2.msra.mxu0 0.0
      %459 = vmatprep.subr.mxu0 0.0
      %460 = vmatpush2.msra.mxu0 0.0
      %461 = vmatprep.mubr.f32.mxu0 0.0
      %462 = vmatmul.mubr.f32.gmra.mxu0 %v391
      %v463 = vpop.f32.mrf.mxu0
      %v464 = vadd.f32 0.0, %v463
      %v465 = vpop.f32.mrf.mxu0
      %466 = vdwg.mxu0
      %v468 = vsel %vm389, %v376, 0
      %v471 = vsel %vm393, %v386, 0
      %473 = vmatprep.subr.mxu0 0.0
      %474 = vmatpush1.msra.mxu0 0.0
      %475 = vmatprep.subr.mxu0 0.0
      %476 = vmatpush1.msra.mxu0 0.0
      %477 = vmatprep.subr.mxu0 0.0
      %478 = vmatpush1.msra.mxu0 0.0
      %479 = vmatprep.subr.mxu0 0.0
      %480 = vmatpush1.msra.mxu0 0.0
      %481 = vmatprep.subr.mxu0 0.0
      %482 = vmatpush1.msra.mxu0 0.0
      %483 = vmatprep.subr.mxu0 0.0
      %484 = vmatpush1.msra.mxu0 0.0
      %485 = vmatprep.subr.mxu0 0.0
      %486 = vmatpush1.msra.mxu0 0.0
      %487 = vmatprep.subr.mxu0 0.0
      %488 = vmatpush1.msra.mxu0 0.0
      %489 = vmatprep.subr.mxu0 0.0
      %490 = vmatpush1.msra.mxu0 0.0
      %491 = vmatprep.subr.mxu0 0.0
      %492 = vmatpush1.msra.mxu0 0.0
      %493 = vmatprep.subr.mxu0 0.0
      %494 = vmatpush1.msra.mxu0 0.0
      %495 = vmatprep.subr.mxu0 0.0
      %496 = vmatpush1.msra.mxu0 0.0
      %497 = vmatprep.subr.mxu0 0.0
      %498 = vmatpush1.msra.mxu0 0.0
      %499 = vmatprep.subr.mxu0 0.0
      %500 = vmatpush1.msra.mxu0 0.0
      %501 = vmatprep.subr.mxu0 0.0
      %502 = vmatpush1.msra.mxu0 0.0
      %503 = vmatprep.subr.mxu0 0.0
      %504 = vmatpush1.msra.mxu0 %v471
      %505 = vmatprep.subr.mxu0 0.0
      %506 = vmatpush2.msra.mxu0 0.0
      %507 = vmatprep.subr.mxu0 0.0
      %508 = vmatpush2.msra.mxu0 0.0
      %509 = vmatprep.subr.mxu0 0.0
      %510 = vmatpush2.msra.mxu0 0.0
      %511 = vmatprep.subr.mxu0 0.0
      %512 = vmatpush2.msra.mxu0 0.0
      %513 = vmatprep.subr.mxu0 0.0
      %514 = vmatpush2.msra.mxu0 0.0
      %515 = vmatprep.subr.mxu0 0.0
      %516 = vmatpush2.msra.mxu0 0.0
      %517 = vmatprep.subr.mxu0 0.0
      %518 = vmatpush2.msra.mxu0 0.0
      %519 = vmatprep.subr.mxu0 0.0
      %520 = vmatpush2.msra.mxu0 0.0
      %521 = vmatprep.subr.mxu0 0.0
      %522 = vmatpush2.msra.mxu0 0.0
      %523 = vmatprep.subr.mxu0 0.0
      %524 = vmatpush2.msra.mxu0 0.0
      %525 = vmatprep.subr.mxu0 0.0
      %526 = vmatpush2.msra.mxu0 0.0
      %527 = vmatprep.subr.mxu0 0.0
      %528 = vmatpush2.msra.mxu0 0.0
      %529 = vmatprep.subr.mxu0 0.0
      %530 = vmatpush2.msra.mxu0 0.0
      %531 = vmatprep.subr.mxu0 0.0
      %532 = vmatpush2.msra.mxu0 0.0
      %533 = vmatprep.subr.mxu0 0.0
      %534 = vmatpush2.msra.mxu0 0.0
      %535 = vmatprep.subr.mxu0 0.0
      %536 = vmatpush2.msra.mxu0 0.0
      %537 = vmatprep.mubr.f32.mxu0 0.0
      %538 = vmatmul.mubr.f32.gmra.mxu0 %v468
      %v539 = vpop.f32.mrf.mxu0
      %v540 = vadd.f32 %v464, %v539
      %v541 = vpop.f32.mrf.mxu0
      %542 = vdwg.mxu0
      %543 = vrot.lane.b32.xlu0 %v359, 9
      %v544 = vpop.permute.xlu0 %543
      %v546 = vsel %vm389, %v378, 0
      %v549 = vsel %vm393, %v544, 0
      %551 = vmatprep.subr.mxu0 0.0
      %552 = vmatpush1.msra.mxu0 0.0
      %553 = vmatprep.subr.mxu0 0.0
      %554 = vmatpush1.msra.mxu0 0.0
      %555 = vmatprep.subr.mxu0 0.0
      %556 = vmatpush1.msra.mxu0 0.0
      %557 = vmatprep.subr.mxu0 0.0
      %558 = vmatpush1.msra.mxu0 0.0
      %559 = vmatprep.subr.mxu0 0.0
      %560 = vmatpush1.msra.mxu0 0.0
      %561 = vmatprep.subr.mxu0 0.0
      %562 = vmatpush1.msra.mxu0 0.0
      %563 = vmatprep.subr.mxu0 0.0
      %564 = vmatpush1.msra.mxu0 0.0
      %565 = vmatprep.subr.mxu0 0.0
      %566 = vmatpush1.msra.mxu0 0.0
      %567 = vmatprep.subr.mxu0 0.0
      %568 = vmatpush1.msra.mxu0 0.0
      %569 = vmatprep.subr.mxu0 0.0
      %570 = vmatpush1.msra.mxu0 0.0
      %571 = vmatprep.subr.mxu0 0.0
      %572 = vmatpush1.msra.mxu0 0.0
      %573 = vmatprep.subr.mxu0 0.0
      %574 = vmatpush1.msra.mxu0 0.0
      %575 = vmatprep.subr.mxu0 0.0
      %576 = vmatpush1.msra.mxu0 0.0
      %577 = vmatprep.subr.mxu0 0.0
      %578 = vmatpush1.msra.mxu0 0.0
      %579 = vmatprep.subr.mxu0 0.0
      %580 = vmatpush1.msra.mxu0 0.0
      %581 = vmatprep.subr.mxu0 0.0
      %582 = vmatpush1.msra.mxu0 %v549
      %583 = vmatprep.subr.mxu0 0.0
      %584 = vmatpush2.msra.mxu0 0.0
      %585 = vmatprep.subr.mxu0 0.0
      %586 = vmatpush2.msra.mxu0 0.0
      %587 = vmatprep.subr.mxu0 0.0
      %588 = vmatpush2.msra.mxu0 0.0
      %589 = vmatprep.subr.mxu0 0.0
      %590 = vmatpush2.msra.mxu0 0.0
      %591 = vmatprep.subr.mxu0 0.0
      %592 = vmatpush2.msra.mxu0 0.0
      %593 = vmatprep.subr.mxu0 0.0
      %594 = vmatpush2.msra.mxu0 0.0
      %595 = vmatprep.subr.mxu0 0.0
      %596 = vmatpush2.msra.mxu0 0.0
      %597 = vmatprep.subr.mxu0 0.0
      %598 = vmatpush2.msra.mxu0 0.0
      %599 = vmatprep.subr.mxu0 0.0
      %600 = vmatpush2.msra.mxu0 0.0
      %601 = vmatprep.subr.mxu0 0.0
      %602 = vmatpush2.msra.mxu0 0.0
      %603 = vmatprep.subr.mxu0 0.0
      %604 = vmatpush2.msra.mxu0 0.0
      %605 = vmatprep.subr.mxu0 0.0
      %606 = vmatpush2.msra.mxu0 0.0
      %607 = vmatprep.subr.mxu0 0.0
      %608 = vmatpush2.msra.mxu0 0.0
      %609 = vmatprep.subr.mxu0 0.0
      %610 = vmatpush2.msra.mxu0 0.0
      %611 = vmatprep.subr.mxu0 0.0
      %612 = vmatpush2.msra.mxu0 0.0
      %613 = vmatprep.subr.mxu0 0.0
      %614 = vmatpush2.msra.mxu0 0.0
      %615 = vmatprep.mubr.f32.mxu0 0.0
      %616 = vmatmul.mubr.f32.gmra.mxu0 %v546
      %v617 = vpop.f32.mrf.mxu0
      %v618 = vadd.f32 0.0, %v617
      %v619 = vpop.f32.mrf.mxu0
      %620 = vdwg.mxu0
      %v621 = vadd.f32 %v540, %v618
      %622 = vrot.lane.b32.xlu0 %v359, 1
      %v623 = vpop.permute.xlu0 %622
      %v625 = vsel %vm389, %v379, 0
      %v628 = vsel %vm393, %v623, 0
      %630 = vmatprep.subr.mxu0 0.0
      %631 = vmatpush1.msra.mxu0 0.0
      %632 = vmatprep.subr.mxu0 0.0
      %633 = vmatpush1.msra.mxu0 0.0
      %634 = vmatprep.subr.mxu0 0.0
      %635 = vmatpush1.msra.mxu0 0.0
      %636 = vmatprep.subr.mxu0 0.0
      %637 = vmatpush1.msra.mxu0 0.0
      %638 = vmatprep.subr.mxu0 0.0
      %639 = vmatpush1.msra.mxu0 0.0
      %640 = vmatprep.subr.mxu0 0.0
      %641 = vmatpush1.msra.mxu0 0.0
      %642 = vmatprep.subr.mxu0 0.0
      %643 = vmatpush1.msra.mxu0 0.0
      %644 = vmatprep.subr.mxu0 0.0
      %645 = vmatpush1.msra.mxu0 0.0
      %646 = vmatprep.subr.mxu0 0.0
      %647 = vmatpush1.msra.mxu0 0.0
      %648 = vmatprep.subr.mxu0 0.0
      %649 = vmatpush1.msra.mxu0 0.0
      %650 = vmatprep.subr.mxu0 0.0
      %651 = vmatpush1.msra.mxu0 0.0
      %652 = vmatprep.subr.mxu0 0.0
      %653 = vmatpush1.msra.mxu0 0.0
      %654 = vmatprep.subr.mxu0 0.0
      %655 = vmatpush1.msra.mxu0 0.0
      %656 = vmatprep.subr.mxu0 0.0
      %657 = vmatpush1.msra.mxu0 0.0
      %658 = vmatprep.subr.mxu0 0.0
      %659 = vmatpush1.msra.mxu0 0.0
      %660 = vmatprep.subr.mxu0 0.0
      %661 = vmatpush1.msra.mxu0 %v628
      %662 = vmatprep.subr.mxu0 0.0
      %663 = vmatpush2.msra.mxu0 0.0
      %664 = vmatprep.subr.mxu0 0.0
      %665 = vmatpush2.msra.mxu0 0.0
      %666 = vmatprep.subr.mxu0 0.0
      %667 = vmatpush2.msra.mxu0 0.0
      %668 = vmatprep.subr.mxu0 0.0
      %669 = vmatpush2.msra.mxu0 0.0
      %670 = vmatprep.subr.mxu0 0.0
      %671 = vmatpush2.msra.mxu0 0.0
      %672 = vmatprep.subr.mxu0 0.0
      %673 = vmatpush2.msra.mxu0 0.0
      %674 = vmatprep.subr.mxu0 0.0
      %675 = vmatpush2.msra.mxu0 0.0
      %676 = vmatprep.subr.mxu0 0.0
      %677 = vmatpush2.msra.mxu0 0.0
      %678 = vmatprep.subr.mxu0 0.0
      %679 = vmatpush2.msra.mxu0 0.0
      %680 = vmatprep.subr.mxu0 0.0
      %681 = vmatpush2.msra.mxu0 0.0
      %682 = vmatprep.subr.mxu0 0.0
      %683 = vmatpush2.msra.mxu0 0.0
      %684 = vmatprep.subr.mxu0 0.0
      %685 = vmatpush2.msra.mxu0 0.0
      %686 = vmatprep.subr.mxu0 0.0
      %687 = vmatpush2.msra.mxu0 0.0
      %688 = vmatprep.subr.mxu0 0.0
      %689 = vmatpush2.msra.mxu0 0.0
      %690 = vmatprep.subr.mxu0 0.0
      %691 = vmatpush2.msra.mxu0 0.0
      %692 = vmatprep.subr.mxu0 0.0
      %693 = vmatpush2.msra.mxu0 0.0
      %694 = vmatprep.mubr.f32.mxu0 0.0
      %695 = vmatmul.mubr.f32.gmra.mxu0 %v625
      %v696 = vpop.f32.mrf.mxu0
      %v697 = vadd.f32 0.0, %v696
      %v698 = vpop.f32.mrf.mxu0
      %699 = vdwg.mxu0
      %v700 = vadd.f32 %v621, %v697
      %v702 = vsel %vm389, %v380, 0
      %v705 = vsel %vm393, %v359, 0
      %707 = vmatprep.subr.mxu0 0.0
      %708 = vmatpush1.msra.mxu0 0.0
      %709 = vmatprep.subr.mxu0 0.0
      %710 = vmatpush1.msra.mxu0 0.0
      %711 = vmatprep.subr.mxu0 0.0
      %712 = vmatpush1.msra.mxu0 0.0
      %713 = vmatprep.subr.mxu0 0.0
      %714 = vmatpush1.msra.mxu0 0.0
      %715 = vmatprep.subr.mxu0 0.0
      %716 = vmatpush1.msra.mxu0 0.0
      %717 = vmatprep.subr.mxu0 0.0
      %718 = vmatpush1.msra.mxu0 0.0
      %719 = vmatprep.subr.mxu0 0.0
      %720 = vmatpush1.msra.mxu0 0.0
      %721 = vmatprep.subr.mxu0 0.0
      %722 = vmatpush1.msra.mxu0 0.0
      %723 = vmatprep.subr.mxu0 0.0
      %724 = vmatpush1.msra.mxu0 0.0
      %725 = vmatprep.subr.mxu0 0.0
      %726 = vmatpush1.msra.mxu0 0.0
      %727 = vmatprep.subr.mxu0 0.0
      %728 = vmatpush1.msra.mxu0 0.0
      %729 = vmatprep.subr.mxu0 0.0
      %730 = vmatpush1.msra.mxu0 0.0
      %731 = vmatprep.subr.mxu0 0.0
      %732 = vmatpush1.msra.mxu0 0.0
      %733 = vmatprep.subr.mxu0 0.0
      %734 = vmatpush1.msra.mxu0 0.0
      %735 = vmatprep.subr.mxu0 0.0
      %736 = vmatpush1.msra.mxu0 0.0
      %737 = vmatprep.subr.mxu0 0.0
      %738 = vmatpush1.msra.mxu0 %v705
      %739 = vmatprep.subr.mxu0 0.0
      %740 = vmatpush2.msra.mxu0 0.0
      %741 = vmatprep.subr.mxu0 0.0
      %742 = vmatpush2.msra.mxu0 0.0
      %743 = vmatprep.subr.mxu0 0.0
      %744 = vmatpush2.msra.mxu0 0.0
      %745 = vmatprep.subr.mxu0 0.0
      %746 = vmatpush2.msra.mxu0 0.0
      %747 = vmatprep.subr.mxu0 0.0
      %748 = vmatpush2.msra.mxu0 0.0
      %749 = vmatprep.subr.mxu0 0.0
      %750 = vmatpush2.msra.mxu0 0.0
      %751 = vmatprep.subr.mxu0 0.0
      %752 = vmatpush2.msra.mxu0 0.0
      %753 = vmatprep.subr.mxu0 0.0
      %754 = vmatpush2.msra.mxu0 0.0
      %755 = vmatprep.subr.mxu0 0.0
      %756 = vmatpush2.msra.mxu0 0.0
      %757 = vmatprep.subr.mxu0 0.0
      %758 = vmatpush2.msra.mxu0 0.0
      %759 = vmatprep.subr.mxu0 0.0
      %760 = vmatpush2.msra.mxu0 0.0
      %761 = vmatprep.subr.mxu0 0.0
      %762 = vmatpush2.msra.mxu0 0.0
      %763 = vmatprep.subr.mxu0 0.0
      %764 = vmatpush2.msra.mxu0 0.0
      %765 = vmatprep.subr.mxu0 0.0
      %766 = vmatpush2.msra.mxu0 0.0
      %767 = vmatprep.subr.mxu0 0.0
      %768 = vmatpush2.msra.mxu0 0.0
      %769 = vmatprep.subr.mxu0 0.0
      %770 = vmatpush2.msra.mxu0 0.0
      %771 = vmatprep.mubr.f32.mxu0 0.0
      %772 = vmatmul.mubr.f32.gmra.mxu0 %v702
      %v773 = vpop.f32.mrf.mxu0
      %v774 = vadd.f32 0.0, %v773
      %v775 = vpop.f32.mrf.mxu0
      %776 = vdwg.mxu0
      %v777 = vadd.f32 %v700, %v774
      %778 = vrot.lane.b32.xlu0 %v359, 127
      %v779 = vpop.permute.xlu0 %778
      %v781 = vsel %vm389, %v381, 0
      %v784 = vsel %vm393, %v779, 0
      %786 = vmatprep.subr.mxu0 0.0
      %787 = vmatpush1.msra.mxu0 0.0
      %788 = vmatprep.subr.mxu0 0.0
      %789 = vmatpush1.msra.mxu0 0.0
      %790 = vmatprep.subr.mxu0 0.0
      %791 = vmatpush1.msra.mxu0 0.0
      %792 = vmatprep.subr.mxu0 0.0
      %793 = vmatpush1.msra.mxu0 0.0
      %794 = vmatprep.subr.mxu0 0.0
      %795 = vmatpush1.msra.mxu0 0.0
      %796 = vmatprep.subr.mxu0 0.0
      %797 = vmatpush1.msra.mxu0 0.0
      %798 = vmatprep.subr.mxu0 0.0
      %799 = vmatpush1.msra.mxu0 0.0
      %800 = vmatprep.subr.mxu0 0.0
      %801 = vmatpush1.msra.mxu0 0.0
      %802 = vmatprep.subr.mxu0 0.0
      %803 = vmatpush1.msra.mxu0 0.0
      %804 = vmatprep.subr.mxu0 0.0
      %805 = vmatpush1.msra.mxu0 0.0
      %806 = vmatprep.subr.mxu0 0.0
      %807 = vmatpush1.msra.mxu0 0.0
      %808 = vmatprep.subr.mxu0 0.0
      %809 = vmatpush1.msra.mxu0 0.0
      %810 = vmatprep.subr.mxu0 0.0
      %811 = vmatpush1.msra.mxu0 0.0
      %812 = vmatprep.subr.mxu0 0.0
      %813 = vmatpush1.msra.mxu0 0.0
      %814 = vmatprep.subr.mxu0 0.0
      %815 = vmatpush1.msra.mxu0 0.0
      %816 = vmatprep.subr.mxu0 0.0
      %817 = vmatpush1.msra.mxu0 %v784
      %818 = vmatprep.subr.mxu0 0.0
      %819 = vmatpush2.msra.mxu0 0.0
      %820 = vmatprep.subr.mxu0 0.0
      %821 = vmatpush2.msra.mxu0 0.0
      %822 = vmatprep.subr.mxu0 0.0
      %823 = vmatpush2.msra.mxu0 0.0
      %824 = vmatprep.subr.mxu0 0.0
      %825 = vmatpush2.msra.mxu0 0.0
      %826 = vmatprep.subr.mxu0 0.0
      %827 = vmatpush2.msra.mxu0 0.0
      %828 = vmatprep.subr.mxu0 0.0
      %829 = vmatpush2.msra.mxu0 0.0
      %830 = vmatprep.subr.mxu0 0.0
      %831 = vmatpush2.msra.mxu0 0.0
      %832 = vmatprep.subr.mxu0 0.0
      %833 = vmatpush2.msra.mxu0 0.0
      %834 = vmatprep.subr.mxu0 0.0
      %835 = vmatpush2.msra.mxu0 0.0
      %836 = vmatprep.subr.mxu0 0.0
      %837 = vmatpush2.msra.mxu0 0.0
      %838 = vmatprep.subr.mxu0 0.0
      %839 = vmatpush2.msra.mxu0 0.0
      %840 = vmatprep.subr.mxu0 0.0
      %841 = vmatpush2.msra.mxu0 0.0
      %842 = vmatprep.subr.mxu0 0.0
      %843 = vmatpush2.msra.mxu0 0.0
      %844 = vmatprep.subr.mxu0 0.0
      %845 = vmatpush2.msra.mxu0 0.0
      %846 = vmatprep.subr.mxu0 0.0
      %847 = vmatpush2.msra.mxu0 0.0
      %848 = vmatprep.subr.mxu0 0.0
      %849 = vmatpush2.msra.mxu0 0.0
      %850 = vmatprep.mubr.f32.mxu0 0.0
      %851 = vmatmul.mubr.f32.gmra.mxu0 %v781
      %v852 = vpop.f32.mrf.mxu0
      %v853 = vadd.f32 0.0, %v852
      %v854 = vpop.f32.mrf.mxu0
      %855 = vdwg.mxu0
      %v856 = vadd.f32 %v777, %v853
      %857 = vrot.lane.b32.xlu0 %v359, 119
      %v858 = vpop.permute.xlu0 %857
      %v860 = vsel %vm389, %v382, 0
      %v863 = vsel %vm393, %v858, 0
      %865 = vmatprep.subr.mxu0 0.0
      %866 = vmatpush1.msra.mxu0 0.0
      %867 = vmatprep.subr.mxu0 0.0
      %868 = vmatpush1.msra.mxu0 0.0
      %869 = vmatprep.subr.mxu0 0.0
      %870 = vmatpush1.msra.mxu0 0.0
      %871 = vmatprep.subr.mxu0 0.0
      %872 = vmatpush1.msra.mxu0 0.0
      %873 = vmatprep.subr.mxu0 0.0
      %874 = vmatpush1.msra.mxu0 0.0
      %875 = vmatprep.subr.mxu0 0.0
      %876 = vmatpush1.msra.mxu0 0.0
      %877 = vmatprep.subr.mxu0 0.0
      %878 = vmatpush1.msra.mxu0 0.0
      %879 = vmatprep.subr.mxu0 0.0
      %880 = vmatpush1.msra.mxu0 0.0
      %881 = vmatprep.subr.mxu0 0.0
      %882 = vmatpush1.msra.mxu0 0.0
      %883 = vmatprep.subr.mxu0 0.0
      %884 = vmatpush1.msra.mxu0 0.0
      %885 = vmatprep.subr.mxu0 0.0
      %886 = vmatpush1.msra.mxu0 0.0
      %887 = vmatprep.subr.mxu0 0.0
      %888 = vmatpush1.msra.mxu0 0.0
      %889 = vmatprep.subr.mxu0 0.0
      %890 = vmatpush1.msra.mxu0 0.0
      %891 = vmatprep.subr.mxu0 0.0
      %892 = vmatpush1.msra.mxu0 0.0
      %893 = vmatprep.subr.mxu0 0.0
      %894 = vmatpush1.msra.mxu0 0.0
      %895 = vmatprep.subr.mxu0 0.0
      %896 = vmatpush1.msra.mxu0 %v863
      %897 = vmatprep.subr.mxu0 0.0
      %898 = vmatpush2.msra.mxu0 0.0
      %899 = vmatprep.subr.mxu0 0.0
      %900 = vmatpush2.msra.mxu0 0.0
      %901 = vmatprep.subr.mxu0 0.0
      %902 = vmatpush2.msra.mxu0 0.0
      %903 = vmatprep.subr.mxu0 0.0
      %904 = vmatpush2.msra.mxu0 0.0
      %905 = vmatprep.subr.mxu0 0.0
      %906 = vmatpush2.msra.mxu0 0.0
      %907 = vmatprep.subr.mxu0 0.0
      %908 = vmatpush2.msra.mxu0 0.0
      %909 = vmatprep.subr.mxu0 0.0
      %910 = vmatpush2.msra.mxu0 0.0
      %911 = vmatprep.subr.mxu0 0.0
      %912 = vmatpush2.msra.mxu0 0.0
      %913 = vmatprep.subr.mxu0 0.0
      %914 = vmatpush2.msra.mxu0 0.0
      %915 = vmatprep.subr.mxu0 0.0
      %916 = vmatpush2.msra.mxu0 0.0
      %917 = vmatprep.subr.mxu0 0.0
      %918 = vmatpush2.msra.mxu0 0.0
      %919 = vmatprep.subr.mxu0 0.0
      %920 = vmatpush2.msra.mxu0 0.0
      %921 = vmatprep.subr.mxu0 0.0
      %922 = vmatpush2.msra.mxu0 0.0
      %923 = vmatprep.subr.mxu0 0.0
      %924 = vmatpush2.msra.mxu0 0.0
      %925 = vmatprep.subr.mxu0 0.0
      %926 = vmatpush2.msra.mxu0 0.0
      %927 = vmatprep.subr.mxu0 0.0
      %928 = vmatpush2.msra.mxu0 0.0
      %929 = vmatprep.mubr.f32.mxu0 0.0
      %930 = vmatmul.mubr.f32.gmra.mxu0 %v860
      %v931 = vpop.f32.mrf.mxu0
      %v932 = vadd.f32 0.0, %v931
      %v933 = vpop.f32.mrf.mxu0
      %934 = vdwg.mxu0
      %v935 = vadd.f32 %v856, %v932
      %936 = vrot.lane.b32.xlu0 %v359, 118
      %v937 = vpop.permute.xlu0 %936
      %v939 = vsel %vm389, %v383, 0
      %v942 = vsel %vm393, %v937, 0
      %944 = vmatprep.subr.mxu0 0.0
      %945 = vmatpush1.msra.mxu0 0.0
      %946 = vmatprep.subr.mxu0 0.0
      %947 = vmatpush1.msra.mxu0 0.0
      %948 = vmatprep.subr.mxu0 0.0
      %949 = vmatpush1.msra.mxu0 0.0
      %950 = vmatprep.subr.mxu0 0.0
      %951 = vmatpush1.msra.mxu0 0.0
      %952 = vmatprep.subr.mxu0 0.0
      %953 = vmatpush1.msra.mxu0 0.0
      %954 = vmatprep.subr.mxu0 0.0
      %955 = vmatpush1.msra.mxu0 0.0
      %956 = vmatprep.subr.mxu0 0.0
      %957 = vmatpush1.msra.mxu0 0.0
      %958 = vmatprep.subr.mxu0 0.0
      %959 = vmatpush1.msra.mxu0 0.0
      %960 = vmatprep.subr.mxu0 0.0
      %961 = vmatpush1.msra.mxu0 0.0
      %962 = vmatprep.subr.mxu0 0.0
      %963 = vmatpush1.msra.mxu0 0.0
      %964 = vmatprep.subr.mxu0 0.0
      %965 = vmatpush1.msra.mxu0 0.0
      %966 = vmatprep.subr.mxu0 0.0
      %967 = vmatpush1.msra.mxu0 0.0
      %968 = vmatprep.subr.mxu0 0.0
      %969 = vmatpush1.msra.mxu0 0.0
      %970 = vmatprep.subr.mxu0 0.0
      %971 = vmatpush1.msra.mxu0 0.0
      %972 = vmatprep.subr.mxu0 0.0
      %973 = vmatpush1.msra.mxu0 0.0
      %974 = vmatprep.subr.mxu0 0.0
      %975 = vmatpush1.msra.mxu0 %v942
      %976 = vmatprep.subr.mxu0 0.0
      %977 = vmatpush2.msra.mxu0 0.0
      %978 = vmatprep.subr.mxu0 0.0
      %979 = vmatpush2.msra.mxu0 0.0
      %980 = vmatprep.subr.mxu0 0.0
      %981 = vmatpush2.msra.mxu0 0.0
      %982 = vmatprep.subr.mxu0 0.0
      %983 = vmatpush2.msra.mxu0 0.0
      %984 = vmatprep.subr.mxu0 0.0
      %985 = vmatpush2.msra.mxu0 0.0
      %986 = vmatprep.subr.mxu0 0.0
      %987 = vmatpush2.msra.mxu0 0.0
      %988 = vmatprep.subr.mxu0 0.0
      %989 = vmatpush2.msra.mxu0 0.0
      %990 = vmatprep.subr.mxu0 0.0
      %991 = vmatpush2.msra.mxu0 0.0
      %992 = vmatprep.subr.mxu0 0.0
      %993 = vmatpush2.msra.mxu0 0.0
      %994 = vmatprep.subr.mxu0 0.0
      %995 = vmatpush2.msra.mxu0 0.0
      %996 = vmatprep.subr.mxu0 0.0
      %997 = vmatpush2.msra.mxu0 0.0
      %998 = vmatprep.subr.mxu0 0.0
      %999 = vmatpush2.msra.mxu0 0.0
      %1000 = vmatprep.subr.mxu0 0.0
      %1001 = vmatpush2.msra.mxu0 0.0
      %1002 = vmatprep.subr.mxu0 0.0
      %1003 = vmatpush2.msra.mxu0 0.0
      %1004 = vmatprep.subr.mxu0 0.0
      %1005 = vmatpush2.msra.mxu0 0.0
      %1006 = vmatprep.subr.mxu0 0.0
      %1007 = vmatpush2.msra.mxu0 0.0
      %1008 = vmatprep.mubr.f32.mxu0 0.0
      %1009 = vmatmul.mubr.f32.gmra.mxu0 %v939
      %v1010 = vpop.f32.mrf.mxu0
      %v1011 = vadd.f32 0.0, %v1010
      %v1012 = vpop.f32.mrf.mxu0
      %1013 = vdwg.mxu0
      %v1014 = vadd.f32 %v935, %v1011
      %1015 = vrot.lane.b32.xlu0 %v359, 117
      %v1016 = vpop.permute.xlu0 %1015
      %v1018 = vsel %vm389, %v384, 0
      %v1021 = vsel %vm393, %v1016, 0
      %1023 = vmatprep.subr.mxu0 0.0
      %1024 = vmatpush1.msra.mxu0 0.0
      %1025 = vmatprep.subr.mxu0 0.0
      %1026 = vmatpush1.msra.mxu0 0.0
      %1027 = vmatprep.subr.mxu0 0.0
      %1028 = vmatpush1.msra.mxu0 0.0
      %1029 = vmatprep.subr.mxu0 0.0
      %1030 = vmatpush1.msra.mxu0 0.0
      %1031 = vmatprep.subr.mxu0 0.0
      %1032 = vmatpush1.msra.mxu0 0.0
      %1033 = vmatprep.subr.mxu0 0.0
      %1034 = vmatpush1.msra.mxu0 0.0
      %1035 = vmatprep.subr.mxu0 0.0
      %1036 = vmatpush1.msra.mxu0 0.0
      %1037 = vmatprep.subr.mxu0 0.0
      %1038 = vmatpush1.msra.mxu0 0.0
      %1039 = vmatprep.subr.mxu0 0.0
      %1040 = vmatpush1.msra.mxu0 0.0
      %1041 = vmatprep.subr.mxu0 0.0
      %1042 = vmatpush1.msra.mxu0 0.0
      %1043 = vmatprep.subr.mxu0 0.0
      %1044 = vmatpush1.msra.mxu0 0.0
      %1045 = vmatprep.subr.mxu0 0.0
      %1046 = vmatpush1.msra.mxu0 0.0
      %1047 = vmatprep.subr.mxu0 0.0
      %1048 = vmatpush1.msra.mxu0 0.0
      %1049 = vmatprep.subr.mxu0 0.0
      %1050 = vmatpush1.msra.mxu0 0.0
      %1051 = vmatprep.subr.mxu0 0.0
      %1052 = vmatpush1.msra.mxu0 0.0
      %1053 = vmatprep.subr.mxu0 0.0
      %1054 = vmatpush1.msra.mxu0 %v1021
      %1055 = vmatprep.subr.mxu0 0.0
      %1056 = vmatpush2.msra.mxu0 0.0
      %1057 = vmatprep.subr.mxu0 0.0
      %1058 = vmatpush2.msra.mxu0 0.0
      %1059 = vmatprep.subr.mxu0 0.0
      %1060 = vmatpush2.msra.mxu0 0.0
      %1061 = vmatprep.subr.mxu0 0.0
      %1062 = vmatpush2.msra.mxu0 0.0
      %1063 = vmatprep.subr.mxu0 0.0
      %1064 = vmatpush2.msra.mxu0 0.0
      %1065 = vmatprep.subr.mxu0 0.0
      %1066 = vmatpush2.msra.mxu0 0.0
      %1067 = vmatprep.subr.mxu0 0.0
      %1068 = vmatpush2.msra.mxu0 0.0
      %1069 = vmatprep.subr.mxu0 0.0
      %1070 = vmatpush2.msra.mxu0 0.0
      %1071 = vmatprep.subr.mxu0 0.0
      %1072 = vmatpush2.msra.mxu0 0.0
      %1073 = vmatprep.subr.mxu0 0.0
      %1074 = vmatpush2.msra.mxu0 0.0
      %1075 = vmatprep.subr.mxu0 0.0
      %1076 = vmatpush2.msra.mxu0 0.0
      %1077 = vmatprep.subr.mxu0 0.0
      %1078 = vmatpush2.msra.mxu0 0.0
      %1079 = vmatprep.subr.mxu0 0.0
      %1080 = vmatpush2.msra.mxu0 0.0
      %1081 = vmatprep.subr.mxu0 0.0
      %1082 = vmatpush2.msra.mxu0 0.0
      %1083 = vmatprep.subr.mxu0 0.0
      %1084 = vmatpush2.msra.mxu0 0.0
      %1085 = vmatprep.subr.mxu0 0.0
      %1086 = vmatpush2.msra.mxu0 0.0
      %1087 = vmatprep.mubr.f32.mxu0 0.0
      %1088 = vmatmul.mubr.f32.gmra.mxu0 %v1018
      %v1089 = vpop.f32.mrf.mxu0
      %v1090 = vadd.f32 0.0, %v1089
      %v1091 = vpop.f32.mrf.mxu0
      %1092 = vdwg.mxu0
      %v1093 = vadd.f32 %v1014, %v1090
      %s1094 = scalar_lea.vmem %s3, 72
      %v1095 = vld [vmem:[%s1094] sm:$0xff]
      %v1096 = vld [vmem:[%s1094 + $0x8] sm:$0xff]
      %v1097 = vld [vmem:[%s1094 + $0x10] sm:$0xff]
      %v1098 = vld [vmem:[%s1094 + $0x18] sm:$0xff]
      %v1099 = vld [vmem:[%s1094 + $0x20] sm:$0xff]
      %v1100 = vld [vmem:[%s1094 + $0x28] sm:$0xff]
      %v1101 = vld [vmem:[%s1094 + $0x30] sm:$0xff]
      %v1102 = vld [vmem:[%s1094 + $0x38] sm:$0xff]
      %v1103 = vld [vmem:[%s1094 + $0x40] sm:$0xff]
      %1104 = vrot.lane.b32.xlu0 %v360, 11
      %v1105 = vpop.permute.xlu0 %1104
      %v1107 = vsel %vm389, %v1095, 0
      %v1110 = vsel %vm393, %v1105, 0
      %1112 = vmatprep.subr.mxu0 0.0
      %1113 = vmatpush1.msra.mxu0 0.0
      %1114 = vmatprep.subr.mxu0 0.0
      %1115 = vmatpush1.msra.mxu0 0.0
      %1116 = vmatprep.subr.mxu0 0.0
      %1117 = vmatpush1.msra.mxu0 0.0
      %1118 = vmatprep.subr.mxu0 0.0
      %1119 = vmatpush1.msra.mxu0 0.0
      %1120 = vmatprep.subr.mxu0 0.0
      %1121 = vmatpush1.msra.mxu0 0.0
      %1122 = vmatprep.subr.mxu0 0.0
      %1123 = vmatpush1.msra.mxu0 0.0
      %1124 = vmatprep.subr.mxu0 0.0
      %1125 = vmatpush1.msra.mxu0 0.0
      %1126 = vmatprep.subr.mxu0 0.0
      %1127 = vmatpush1.msra.mxu0 0.0
      %1128 = vmatprep.subr.mxu0 0.0
      %1129 = vmatpush1.msra.mxu0 0.0
      %1130 = vmatprep.subr.mxu0 0.0
      %1131 = vmatpush1.msra.mxu0 0.0
      %1132 = vmatprep.subr.mxu0 0.0
      %1133 = vmatpush1.msra.mxu0 0.0
      %1134 = vmatprep.subr.mxu0 0.0
      %1135 = vmatpush1.msra.mxu0 0.0
      %1136 = vmatprep.subr.mxu0 0.0
      %1137 = vmatpush1.msra.mxu0 0.0
      %1138 = vmatprep.subr.mxu0 0.0
      %1139 = vmatpush1.msra.mxu0 0.0
      %1140 = vmatprep.subr.mxu0 0.0
      %1141 = vmatpush1.msra.mxu0 0.0
      %1142 = vmatprep.subr.mxu0 0.0
      %1143 = vmatpush1.msra.mxu0 %v1110
      %1144 = vmatprep.subr.mxu0 0.0
      %1145 = vmatpush2.msra.mxu0 0.0
      %1146 = vmatprep.subr.mxu0 0.0
      %1147 = vmatpush2.msra.mxu0 0.0
      %1148 = vmatprep.subr.mxu0 0.0
      %1149 = vmatpush2.msra.mxu0 0.0
      %1150 = vmatprep.subr.mxu0 0.0
      %1151 = vmatpush2.msra.mxu0 0.0
      %1152 = vmatprep.subr.mxu0 0.0
      %1153 = vmatpush2.msra.mxu0 0.0
      %1154 = vmatprep.subr.mxu0 0.0
      %1155 = vmatpush2.msra.mxu0 0.0
      %1156 = vmatprep.subr.mxu0 0.0
      %1157 = vmatpush2.msra.mxu0 0.0
      %1158 = vmatprep.subr.mxu0 0.0
      %1159 = vmatpush2.msra.mxu0 0.0
      %1160 = vmatprep.subr.mxu0 0.0
      %1161 = vmatpush2.msra.mxu0 0.0
      %1162 = vmatprep.subr.mxu0 0.0
      %1163 = vmatpush2.msra.mxu0 0.0
      %1164 = vmatprep.subr.mxu0 0.0
      %1165 = vmatpush2.msra.mxu0 0.0
      %1166 = vmatprep.subr.mxu0 0.0
      %1167 = vmatpush2.msra.mxu0 0.0
      %1168 = vmatprep.subr.mxu0 0.0
      %1169 = vmatpush2.msra.mxu0 0.0
      %1170 = vmatprep.subr.mxu0 0.0
      %1171 = vmatpush2.msra.mxu0 0.0
      %1172 = vmatprep.subr.mxu0 0.0
      %1173 = vmatpush2.msra.mxu0 0.0
      %1174 = vmatprep.subr.mxu0 0.0
      %1175 = vmatpush2.msra.mxu0 0.0
      %1176 = vmatprep.mubr.f32.mxu0 0.0
      %1177 = vmatmul.mubr.f32.gmra.mxu0 %v1107
      %v1178 = vpop.f32.mrf.mxu0
      %v1179 = vadd.f32 0.0, %v1178
      %v1180 = vpop.f32.mrf.mxu0
      %1181 = vdwg.mxu0
      %v1182 = vadd.f32 %v1093, %v1179
      %1183 = vrot.lane.b32.xlu0 %v360, 10
      %v1184 = vpop.permute.xlu0 %1183
      %v1186 = vsel %vm389, %v1096, 0
      %v1189 = vsel %vm393, %v1184, 0
      %1191 = vmatprep.subr.mxu0 0.0
      %1192 = vmatpush1.msra.mxu0 0.0
      %1193 = vmatprep.subr.mxu0 0.0
      %1194 = vmatpush1.msra.mxu0 0.0
      %1195 = vmatprep.subr.mxu0 0.0
      %1196 = vmatpush1.msra.mxu0 0.0
      %1197 = vmatprep.subr.mxu0 0.0
      %1198 = vmatpush1.msra.mxu0 0.0
      %1199 = vmatprep.subr.mxu0 0.0
      %1200 = vmatpush1.msra.mxu0 0.0
      %1201 = vmatprep.subr.mxu0 0.0
      %1202 = vmatpush1.msra.mxu0 0.0
      %1203 = vmatprep.subr.mxu0 0.0
      %1204 = vmatpush1.msra.mxu0 0.0
      %1205 = vmatprep.subr.mxu0 0.0
      %1206 = vmatpush1.msra.mxu0 0.0
      %1207 = vmatprep.subr.mxu0 0.0
      %1208 = vmatpush1.msra.mxu0 0.0
      %1209 = vmatprep.subr.mxu0 0.0
      %1210 = vmatpush1.msra.mxu0 0.0
      %1211 = vmatprep.subr.mxu0 0.0
      %1212 = vmatpush1.msra.mxu0 0.0
      %1213 = vmatprep.subr.mxu0 0.0
      %1214 = vmatpush1.msra.mxu0 0.0
      %1215 = vmatprep.subr.mxu0 0.0
      %1216 = vmatpush1.msra.mxu0 0.0
      %1217 = vmatprep.subr.mxu0 0.0
      %1218 = vmatpush1.msra.mxu0 0.0
      %1219 = vmatprep.subr.mxu0 0.0
      %1220 = vmatpush1.msra.mxu0 0.0
      %1221 = vmatprep.subr.mxu0 0.0
      %1222 = vmatpush1.msra.mxu0 %v1189
      %1223 = vmatprep.subr.mxu0 0.0
      %1224 = vmatpush2.msra.mxu0 0.0
      %1225 = vmatprep.subr.mxu0 0.0
      %1226 = vmatpush2.msra.mxu0 0.0
      %1227 = vmatprep.subr.mxu0 0.0
      %1228 = vmatpush2.msra.mxu0 0.0
      %1229 = vmatprep.subr.mxu0 0.0
      %1230 = vmatpush2.msra.mxu0 0.0
      %1231 = vmatprep.subr.mxu0 0.0
      %1232 = vmatpush2.msra.mxu0 0.0
      %1233 = vmatprep.subr.mxu0 0.0
      %1234 = vmatpush2.msra.mxu0 0.0
      %1235 = vmatprep.subr.mxu0 0.0
      %1236 = vmatpush2.msra.mxu0 0.0
      %1237 = vmatprep.subr.mxu0 0.0
      %1238 = vmatpush2.msra.mxu0 0.0
      %1239 = vmatprep.subr.mxu0 0.0
      %1240 = vmatpush2.msra.mxu0 0.0
      %1241 = vmatprep.subr.mxu0 0.0
      %1242 = vmatpush2.msra.mxu0 0.0
      %1243 = vmatprep.subr.mxu0 0.0
      %1244 = vmatpush2.msra.mxu0 0.0
      %1245 = vmatprep.subr.mxu0 0.0
      %1246 = vmatpush2.msra.mxu0 0.0
      %1247 = vmatprep.subr.mxu0 0.0
      %1248 = vmatpush2.msra.mxu0 0.0
      %1249 = vmatprep.subr.mxu0 0.0
      %1250 = vmatpush2.msra.mxu0 0.0
      %1251 = vmatprep.subr.mxu0 0.0
      %1252 = vmatpush2.msra.mxu0 0.0
      %1253 = vmatprep.subr.mxu0 0.0
      %1254 = vmatpush2.msra.mxu0 0.0
      %1255 = vmatprep.mubr.f32.mxu0 0.0
      %1256 = vmatmul.mubr.f32.gmra.mxu0 %v1186
      %v1257 = vpop.f32.mrf.mxu0
      %v1258 = vadd.f32 0.0, %v1257
      %v1259 = vpop.f32.mrf.mxu0
      %1260 = vdwg.mxu0
      %v1261 = vadd.f32 %v1182, %v1258
      %1262 = vrot.lane.b32.xlu0 %v360, 9
      %v1263 = vpop.permute.xlu0 %1262
      %v1265 = vsel %vm389, %v1097, 0
      %v1268 = vsel %vm393, %v1263, 0
      %1270 = vmatprep.subr.mxu0 0.0
      %1271 = vmatpush1.msra.mxu0 0.0
      %1272 = vmatprep.subr.mxu0 0.0
      %1273 = vmatpush1.msra.mxu0 0.0
      %1274 = vmatprep.subr.mxu0 0.0
      %1275 = vmatpush1.msra.mxu0 0.0
      %1276 = vmatprep.subr.mxu0 0.0
      %1277 = vmatpush1.msra.mxu0 0.0
      %1278 = vmatprep.subr.mxu0 0.0
      %1279 = vmatpush1.msra.mxu0 0.0
      %1280 = vmatprep.subr.mxu0 0.0
      %1281 = vmatpush1.msra.mxu0 0.0
      %1282 = vmatprep.subr.mxu0 0.0
      %1283 = vmatpush1.msra.mxu0 0.0
      %1284 = vmatprep.subr.mxu0 0.0
      %1285 = vmatpush1.msra.mxu0 0.0
      %1286 = vmatprep.subr.mxu0 0.0
      %1287 = vmatpush1.msra.mxu0 0.0
      %1288 = vmatprep.subr.mxu0 0.0
      %1289 = vmatpush1.msra.mxu0 0.0
      %1290 = vmatprep.subr.mxu0 0.0
      %1291 = vmatpush1.msra.mxu0 0.0
      %1292 = vmatprep.subr.mxu0 0.0
      %1293 = vmatpush1.msra.mxu0 0.0
      %1294 = vmatprep.subr.mxu0 0.0
      %1295 = vmatpush1.msra.mxu0 0.0
      %1296 = vmatprep.subr.mxu0 0.0
      %1297 = vmatpush1.msra.mxu0 0.0
      %1298 = vmatprep.subr.mxu0 0.0
      %1299 = vmatpush1.msra.mxu0 0.0
      %1300 = vmatprep.subr.mxu0 0.0
      %1301 = vmatpush1.msra.mxu0 %v1268
      %1302 = vmatprep.subr.mxu0 0.0
      %1303 = vmatpush2.msra.mxu0 0.0
      %1304 = vmatprep.subr.mxu0 0.0
      %1305 = vmatpush2.msra.mxu0 0.0
      %1306 = vmatprep.subr.mxu0 0.0
      %1307 = vmatpush2.msra.mxu0 0.0
      %1308 = vmatprep.subr.mxu0 0.0
      %1309 = vmatpush2.msra.mxu0 0.0
      %1310 = vmatprep.subr.mxu0 0.0
      %1311 = vmatpush2.msra.mxu0 0.0
      %1312 = vmatprep.subr.mxu0 0.0
      %1313 = vmatpush2.msra.mxu0 0.0
      %1314 = vmatprep.subr.mxu0 0.0
      %1315 = vmatpush2.msra.mxu0 0.0
      %1316 = vmatprep.subr.mxu0 0.0
      %1317 = vmatpush2.msra.mxu0 0.0
      %1318 = vmatprep.subr.mxu0 0.0
      %1319 = vmatpush2.msra.mxu0 0.0
      %1320 = vmatprep.subr.mxu0 0.0
      %1321 = vmatpush2.msra.mxu0 0.0
      %1322 = vmatprep.subr.mxu0 0.0
      %1323 = vmatpush2.msra.mxu0 0.0
      %1324 = vmatprep.subr.mxu0 0.0
      %1325 = vmatpush2.msra.mxu0 0.0
      %1326 = vmatprep.subr.mxu0 0.0
      %1327 = vmatpush2.msra.mxu0 0.0
      %1328 = vmatprep.subr.mxu0 0.0
      %1329 = vmatpush2.msra.mxu0 0.0
      %1330 = vmatprep.subr.mxu0 0.0
      %1331 = vmatpush2.msra.mxu0 0.0
      %1332 = vmatprep.subr.mxu0 0.0
      %1333 = vmatpush2.msra.mxu0 0.0
      %1334 = vmatprep.mubr.f32.mxu0 0.0
      %1335 = vmatmul.mubr.f32.gmra.mxu0 %v1265
      %v1336 = vpop.f32.mrf.mxu0
      %v1337 = vadd.f32 0.0, %v1336
      %v1338 = vpop.f32.mrf.mxu0
      %1339 = vdwg.mxu0
      %v1340 = vadd.f32 %v1261, %v1337
      %1341 = vrot.lane.b32.xlu0 %v360, 1
      %v1342 = vpop.permute.xlu0 %1341
      %v1344 = vsel %vm389, %v1098, 0
      %v1347 = vsel %vm393, %v1342, 0
      %1349 = vmatprep.subr.mxu0 0.0
      %1350 = vmatpush1.msra.mxu0 0.0
      %1351 = vmatprep.subr.mxu0 0.0
      %1352 = vmatpush1.msra.mxu0 0.0
      %1353 = vmatprep.subr.mxu0 0.0
      %1354 = vmatpush1.msra.mxu0 0.0
      %1355 = vmatprep.subr.mxu0 0.0
      %1356 = vmatpush1.msra.mxu0 0.0
      %1357 = vmatprep.subr.mxu0 0.0
      %1358 = vmatpush1.msra.mxu0 0.0
      %1359 = vmatprep.subr.mxu0 0.0
      %1360 = vmatpush1.msra.mxu0 0.0
      %1361 = vmatprep.subr.mxu0 0.0
      %1362 = vmatpush1.msra.mxu0 0.0
      %1363 = vmatprep.subr.mxu0 0.0
      %1364 = vmatpush1.msra.mxu0 0.0
      %1365 = vmatprep.subr.mxu0 0.0
      %1366 = vmatpush1.msra.mxu0 0.0
      %1367 = vmatprep.subr.mxu0 0.0
      %1368 = vmatpush1.msra.mxu0 0.0
      %1369 = vmatprep.subr.mxu0 0.0
      %1370 = vmatpush1.msra.mxu0 0.0
      %1371 = vmatprep.subr.mxu0 0.0
      %1372 = vmatpush1.msra.mxu0 0.0
      %1373 = vmatprep.subr.mxu0 0.0
      %1374 = vmatpush1.msra.mxu0 0.0
      %1375 = vmatprep.subr.mxu0 0.0
      %1376 = vmatpush1.msra.mxu0 0.0
      %1377 = vmatprep.subr.mxu0 0.0
      %1378 = vmatpush1.msra.mxu0 0.0
      %1379 = vmatprep.subr.mxu0 0.0
      %1380 = vmatpush1.msra.mxu0 %v1347
      %1381 = vmatprep.subr.mxu0 0.0
      %1382 = vmatpush2.msra.mxu0 0.0
      %1383 = vmatprep.subr.mxu0 0.0
      %1384 = vmatpush2.msra.mxu0 0.0
      %1385 = vmatprep.subr.mxu0 0.0
      %1386 = vmatpush2.msra.mxu0 0.0
      %1387 = vmatprep.subr.mxu0 0.0
      %1388 = vmatpush2.msra.mxu0 0.0
      %1389 = vmatprep.subr.mxu0 0.0
      %1390 = vmatpush2.msra.mxu0 0.0
      %1391 = vmatprep.subr.mxu0 0.0
      %1392 = vmatpush2.msra.mxu0 0.0
      %1393 = vmatprep.subr.mxu0 0.0
      %1394 = vmatpush2.msra.mxu0 0.0
      %1395 = vmatprep.subr.mxu0 0.0
      %1396 = vmatpush2.msra.mxu0 0.0
      %1397 = vmatprep.subr.mxu0 0.0
      %1398 = vmatpush2.msra.mxu0 0.0
      %1399 = vmatprep.subr.mxu0 0.0
      %1400 = vmatpush2.msra.mxu0 0.0
      %1401 = vmatprep.subr.mxu0 0.0
      %1402 = vmatpush2.msra.mxu0 0.0
      %1403 = vmatprep.subr.mxu0 0.0
      %1404 = vmatpush2.msra.mxu0 0.0
      %1405 = vmatprep.subr.mxu0 0.0
      %1406 = vmatpush2.msra.mxu0 0.0
      %1407 = vmatprep.subr.mxu0 0.0
      %1408 = vmatpush2.msra.mxu0 0.0
      %1409 = vmatprep.subr.mxu0 0.0
      %1410 = vmatpush2.msra.mxu0 0.0
      %1411 = vmatprep.subr.mxu0 0.0
      %1412 = vmatpush2.msra.mxu0 0.0
      %1413 = vmatprep.mubr.f32.mxu0 0.0
      %1414 = vmatmul.mubr.f32.gmra.mxu0 %v1344
      %v1415 = vpop.f32.mrf.mxu0
      %v1416 = vadd.f32 0.0, %v1415
      %v1417 = vpop.f32.mrf.mxu0
      %1418 = vdwg.mxu0
      %v1419 = vadd.f32 %v1340, %v1416
      %v1421 = vsel %vm389, %v1099, 0
      %v1424 = vsel %vm393, %v360, 0
      %1426 = vmatprep.subr.mxu0 0.0
      %1427 = vmatpush1.msra.mxu0 0.0
      %1428 = vmatprep.subr.mxu0 0.0
      %1429 = vmatpush1.msra.mxu0 0.0
      %1430 = vmatprep.subr.mxu0 0.0
      %1431 = vmatpush1.msra.mxu0 0.0
      %1432 = vmatprep.subr.mxu0 0.0
      %1433 = vmatpush1.msra.mxu0 0.0
      %1434 = vmatprep.subr.mxu0 0.0
      %1435 = vmatpush1.msra.mxu0 0.0
      %1436 = vmatprep.subr.mxu0 0.0
      %1437 = vmatpush1.msra.mxu0 0.0
      %1438 = vmatprep.subr.mxu0 0.0
      %1439 = vmatpush1.msra.mxu0 0.0
      %1440 = vmatprep.subr.mxu0 0.0
      %1441 = vmatpush1.msra.mxu0 0.0
      %1442 = vmatprep.subr.mxu0 0.0
      %1443 = vmatpush1.msra.mxu0 0.0
      %1444 = vmatprep.subr.mxu0 0.0
      %1445 = vmatpush1.msra.mxu0 0.0
      %1446 = vmatprep.subr.mxu0 0.0
      %1447 = vmatpush1.msra.mxu0 0.0
      %1448 = vmatprep.subr.mxu0 0.0
      %1449 = vmatpush1.msra.mxu0 0.0
      %1450 = vmatprep.subr.mxu0 0.0
      %1451 = vmatpush1.msra.mxu0 0.0
      %1452 = vmatprep.subr.mxu0 0.0
      %1453 = vmatpush1.msra.mxu0 0.0
      %1454 = vmatprep.subr.mxu0 0.0
      %1455 = vmatpush1.msra.mxu0 0.0
      %1456 = vmatprep.subr.mxu0 0.0
      %1457 = vmatpush1.msra.mxu0 %v1424
      %1458 = vmatprep.subr.mxu0 0.0
      %1459 = vmatpush2.msra.mxu0 0.0
      %1460 = vmatprep.subr.mxu0 0.0
      %1461 = vmatpush2.msra.mxu0 0.0
      %1462 = vmatprep.subr.mxu0 0.0
      %1463 = vmatpush2.msra.mxu0 0.0
      %1464 = vmatprep.subr.mxu0 0.0
      %1465 = vmatpush2.msra.mxu0 0.0
      %1466 = vmatprep.subr.mxu0 0.0
      %1467 = vmatpush2.msra.mxu0 0.0
      %1468 = vmatprep.subr.mxu0 0.0
      %1469 = vmatpush2.msra.mxu0 0.0
      %1470 = vmatprep.subr.mxu0 0.0
      %1471 = vmatpush2.msra.mxu0 0.0
      %1472 = vmatprep.subr.mxu0 0.0
      %1473 = vmatpush2.msra.mxu0 0.0
      %1474 = vmatprep.subr.mxu0 0.0
      %1475 = vmatpush2.msra.mxu0 0.0
      %1476 = vmatprep.subr.mxu0 0.0
      %1477 = vmatpush2.msra.mxu0 0.0
      %1478 = vmatprep.subr.mxu0 0.0
      %1479 = vmatpush2.msra.mxu0 0.0
      %1480 = vmatprep.subr.mxu0 0.0
      %1481 = vmatpush2.msra.mxu0 0.0
      %1482 = vmatprep.subr.mxu0 0.0
      %1483 = vmatpush2.msra.mxu0 0.0
      %1484 = vmatprep.subr.mxu0 0.0
      %1485 = vmatpush2.msra.mxu0 0.0
      %1486 = vmatprep.subr.mxu0 0.0
      %1487 = vmatpush2.msra.mxu0 0.0
      %1488 = vmatprep.subr.mxu0 0.0
      %1489 = vmatpush2.msra.mxu0 0.0
      %1490 = vmatprep.mubr.f32.mxu0 0.0
      %1491 = vmatmul.mubr.f32.gmra.mxu0 %v1421
      %v1492 = vpop.f32.mrf.mxu0
      %v1493 = vadd.f32 0.0, %v1492
      %v1494 = vpop.f32.mrf.mxu0
      %1495 = vdwg.mxu0
      %v1496 = vadd.f32 %v1419, %v1493
      %1497 = vrot.lane.b32.xlu0 %v360, 127
      %v1498 = vpop.permute.xlu0 %1497
      %v1500 = vsel %vm389, %v1100, 0
      %v1503 = vsel %vm393, %v1498, 0
      %1505 = vmatprep.subr.mxu0 0.0
      %1506 = vmatpush1.msra.mxu0 0.0
      %1507 = vmatprep.subr.mxu0 0.0
      %1508 = vmatpush1.msra.mxu0 0.0
      %1509 = vmatprep.subr.mxu0 0.0
      %1510 = vmatpush1.msra.mxu0 0.0
      %1511 = vmatprep.subr.mxu0 0.0
      %1512 = vmatpush1.msra.mxu0 0.0
      %1513 = vmatprep.subr.mxu0 0.0
      %1514 = vmatpush1.msra.mxu0 0.0
      %1515 = vmatprep.subr.mxu0 0.0
      %1516 = vmatpush1.msra.mxu0 0.0
      %1517 = vmatprep.subr.mxu0 0.0
      %1518 = vmatpush1.msra.mxu0 0.0
      %1519 = vmatprep.subr.mxu0 0.0
      %1520 = vmatpush1.msra.mxu0 0.0
      %1521 = vmatprep.subr.mxu0 0.0
      %1522 = vmatpush1.msra.mxu0 0.0
      %1523 = vmatprep.subr.mxu0 0.0
      %1524 = vmatpush1.msra.mxu0 0.0
      %1525 = vmatprep.subr.mxu0 0.0
      %1526 = vmatpush1.msra.mxu0 0.0
      %1527 = vmatprep.subr.mxu0 0.0
      %1528 = vmatpush1.msra.mxu0 0.0
      %1529 = vmatprep.subr.mxu0 0.0
      %1530 = vmatpush1.msra.mxu0 0.0
      %1531 = vmatprep.subr.mxu0 0.0
      %1532 = vmatpush1.msra.mxu0 0.0
      %1533 = vmatprep.subr.mxu0 0.0
      %1534 = vmatpush1.msra.mxu0 0.0
      %1535 = vmatprep.subr.mxu0 0.0
      %1536 = vmatpush1.msra.mxu0 %v1503
      %1537 = vmatprep.subr.mxu0 0.0
      %1538 = vmatpush2.msra.mxu0 0.0
      %1539 = vmatprep.subr.mxu0 0.0
      %1540 = vmatpush2.msra.mxu0 0.0
      %1541 = vmatprep.subr.mxu0 0.0
      %1542 = vmatpush2.msra.mxu0 0.0
      %1543 = vmatprep.subr.mxu0 0.0
      %1544 = vmatpush2.msra.mxu0 0.0
      %1545 = vmatprep.subr.mxu0 0.0
      %1546 = vmatpush2.msra.mxu0 0.0
      %1547 = vmatprep.subr.mxu0 0.0
      %1548 = vmatpush2.msra.mxu0 0.0
      %1549 = vmatprep.subr.mxu0 0.0
      %1550 = vmatpush2.msra.mxu0 0.0
      %1551 = vmatprep.subr.mxu0 0.0
      %1552 = vmatpush2.msra.mxu0 0.0
      %1553 = vmatprep.subr.mxu0 0.0
      %1554 = vmatpush2.msra.mxu0 0.0
      %1555 = vmatprep.subr.mxu0 0.0
      %1556 = vmatpush2.msra.mxu0 0.0
      %1557 = vmatprep.subr.mxu0 0.0
      %1558 = vmatpush2.msra.mxu0 0.0
      %1559 = vmatprep.subr.mxu0 0.0
      %1560 = vmatpush2.msra.mxu0 0.0
      %1561 = vmatprep.subr.mxu0 0.0
      %1562 = vmatpush2.msra.mxu0 0.0
      %1563 = vmatprep.subr.mxu0 0.0
      %1564 = vmatpush2.msra.mxu0 0.0
      %1565 = vmatprep.subr.mxu0 0.0
      %1566 = vmatpush2.msra.mxu0 0.0
      %1567 = vmatprep.subr.mxu0 0.0
      %1568 = vmatpush2.msra.mxu0 0.0
      %1569 = vmatprep.mubr.f32.mxu0 0.0
      %1570 = vmatmul.mubr.f32.gmra.mxu0 %v1500
      %v1571 = vpop.f32.mrf.mxu0
      %v1572 = vadd.f32 0.0, %v1571
      %v1573 = vpop.f32.mrf.mxu0
      %1574 = vdwg.mxu0
      %v1575 = vadd.f32 %v1496, %v1572
      %1576 = vrot.lane.b32.xlu0 %v360, 119
      %v1577 = vpop.permute.xlu0 %1576
      %v1579 = vsel %vm389, %v1101, 0
      %v1582 = vsel %vm393, %v1577, 0
      %1584 = vmatprep.subr.mxu0 0.0
      %1585 = vmatpush1.msra.mxu0 0.0
      %1586 = vmatprep.subr.mxu0 0.0
      %1587 = vmatpush1.msra.mxu0 0.0
      %1588 = vmatprep.subr.mxu0 0.0
      %1589 = vmatpush1.msra.mxu0 0.0
      %1590 = vmatprep.subr.mxu0 0.0
      %1591 = vmatpush1.msra.mxu0 0.0
      %1592 = vmatprep.subr.mxu0 0.0
      %1593 = vmatpush1.msra.mxu0 0.0
      %1594 = vmatprep.subr.mxu0 0.0
      %1595 = vmatpush1.msra.mxu0 0.0
      %1596 = vmatprep.subr.mxu0 0.0
      %1597 = vmatpush1.msra.mxu0 0.0
      %1598 = vmatprep.subr.mxu0 0.0
      %1599 = vmatpush1.msra.mxu0 0.0
      %1600 = vmatprep.subr.mxu0 0.0
      %1601 = vmatpush1.msra.mxu0 0.0
      %1602 = vmatprep.subr.mxu0 0.0
      %1603 = vmatpush1.msra.mxu0 0.0
      %1604 = vmatprep.subr.mxu0 0.0
      %1605 = vmatpush1.msra.mxu0 0.0
      %1606 = vmatprep.subr.mxu0 0.0
      %1607 = vmatpush1.msra.mxu0 0.0
      %1608 = vmatprep.subr.mxu0 0.0
      %1609 = vmatpush1.msra.mxu0 0.0
      %1610 = vmatprep.subr.mxu0 0.0
      %1611 = vmatpush1.msra.mxu0 0.0
      %1612 = vmatprep.subr.mxu0 0.0
      %1613 = vmatpush1.msra.mxu0 0.0
      %1614 = vmatprep.subr.mxu0 0.0
      %1615 = vmatpush1.msra.mxu0 %v1582
      %1616 = vmatprep.subr.mxu0 0.0
      %1617 = vmatpush2.msra.mxu0 0.0
      %1618 = vmatprep.subr.mxu0 0.0
      %1619 = vmatpush2.msra.mxu0 0.0
      %1620 = vmatprep.subr.mxu0 0.0
      %1621 = vmatpush2.msra.mxu0 0.0
      %1622 = vmatprep.subr.mxu0 0.0
      %1623 = vmatpush2.msra.mxu0 0.0
      %1624 = vmatprep.subr.mxu0 0.0
      %1625 = vmatpush2.msra.mxu0 0.0
      %1626 = vmatprep.subr.mxu0 0.0
      %1627 = vmatpush2.msra.mxu0 0.0
      %1628 = vmatprep.subr.mxu0 0.0
      %1629 = vmatpush2.msra.mxu0 0.0
      %1630 = vmatprep.subr.mxu0 0.0
      %1631 = vmatpush2.msra.mxu0 0.0
      %1632 = vmatprep.subr.mxu0 0.0
      %1633 = vmatpush2.msra.mxu0 0.0
      %1634 = vmatprep.subr.mxu0 0.0
      %1635 = vmatpush2.msra.mxu0 0.0
      %1636 = vmatprep.subr.mxu0 0.0
      %1637 = vmatpush2.msra.mxu0 0.0
      %1638 = vmatprep.subr.mxu0 0.0
      %1639 = vmatpush2.msra.mxu0 0.0
      %1640 = vmatprep.subr.mxu0 0.0
      %1641 = vmatpush2.msra.mxu0 0.0
      %1642 = vmatprep.subr.mxu0 0.0
      %1643 = vmatpush2.msra.mxu0 0.0
      %1644 = vmatprep.subr.mxu0 0.0
      %1645 = vmatpush2.msra.mxu0 0.0
      %1646 = vmatprep.subr.mxu0 0.0
      %1647 = vmatpush2.msra.mxu0 0.0
      %1648 = vmatprep.mubr.f32.mxu0 0.0
      %1649 = vmatmul.mubr.f32.gmra.mxu0 %v1579
      %v1650 = vpop.f32.mrf.mxu0
      %v1651 = vadd.f32 0.0, %v1650
      %v1652 = vpop.f32.mrf.mxu0
      %1653 = vdwg.mxu0
      %v1654 = vadd.f32 %v1575, %v1651
      %1655 = vrot.lane.b32.xlu0 %v360, 118
      %v1656 = vpop.permute.xlu0 %1655
      %v1658 = vsel %vm389, %v1102, 0
      %v1661 = vsel %vm393, %v1656, 0
      %1663 = vmatprep.subr.mxu0 0.0
      %1664 = vmatpush1.msra.mxu0 0.0
      %1665 = vmatprep.subr.mxu0 0.0
      %1666 = vmatpush1.msra.mxu0 0.0
      %1667 = vmatprep.subr.mxu0 0.0
      %1668 = vmatpush1.msra.mxu0 0.0
      %1669 = vmatprep.subr.mxu0 0.0
      %1670 = vmatpush1.msra.mxu0 0.0
      %1671 = vmatprep.subr.mxu0 0.0
      %1672 = vmatpush1.msra.mxu0 0.0
      %1673 = vmatprep.subr.mxu0 0.0
      %1674 = vmatpush1.msra.mxu0 0.0
      %1675 = vmatprep.subr.mxu0 0.0
      %1676 = vmatpush1.msra.mxu0 0.0
      %1677 = vmatprep.subr.mxu0 0.0
      %1678 = vmatpush1.msra.mxu0 0.0
      %1679 = vmatprep.subr.mxu0 0.0
      %1680 = vmatpush1.msra.mxu0 0.0
      %1681 = vmatprep.subr.mxu0 0.0
      %1682 = vmatpush1.msra.mxu0 0.0
      %1683 = vmatprep.subr.mxu0 0.0
      %1684 = vmatpush1.msra.mxu0 0.0
      %1685 = vmatprep.subr.mxu0 0.0
      %1686 = vmatpush1.msra.mxu0 0.0
      %1687 = vmatprep.subr.mxu0 0.0
      %1688 = vmatpush1.msra.mxu0 0.0
      %1689 = vmatprep.subr.mxu0 0.0
      %1690 = vmatpush1.msra.mxu0 0.0
      %1691 = vmatprep.subr.mxu0 0.0
      %1692 = vmatpush1.msra.mxu0 0.0
      %1693 = vmatprep.subr.mxu0 0.0
      %1694 = vmatpush1.msra.mxu0 %v1661
      %1695 = vmatprep.subr.mxu0 0.0
      %1696 = vmatpush2.msra.mxu0 0.0
      %1697 = vmatprep.subr.mxu0 0.0
      %1698 = vmatpush2.msra.mxu0 0.0
      %1699 = vmatprep.subr.mxu0 0.0
      %1700 = vmatpush2.msra.mxu0 0.0
      %1701 = vmatprep.subr.mxu0 0.0
      %1702 = vmatpush2.msra.mxu0 0.0
      %1703 = vmatprep.subr.mxu0 0.0
      %1704 = vmatpush2.msra.mxu0 0.0
      %1705 = vmatprep.subr.mxu0 0.0
      %1706 = vmatpush2.msra.mxu0 0.0
      %1707 = vmatprep.subr.mxu0 0.0
      %1708 = vmatpush2.msra.mxu0 0.0
      %1709 = vmatprep.subr.mxu0 0.0
      %1710 = vmatpush2.msra.mxu0 0.0
      %1711 = vmatprep.subr.mxu0 0.0
      %1712 = vmatpush2.msra.mxu0 0.0
      %1713 = vmatprep.subr.mxu0 0.0
      %1714 = vmatpush2.msra.mxu0 0.0
      %1715 = vmatprep.subr.mxu0 0.0
      %1716 = vmatpush2.msra.mxu0 0.0
      %1717 = vmatprep.subr.mxu0 0.0
      %1718 = vmatpush2.msra.mxu0 0.0
      %1719 = vmatprep.subr.mxu0 0.0
      %1720 = vmatpush2.msra.mxu0 0.0
      %1721 = vmatprep.subr.mxu0 0.0
      %1722 = vmatpush2.msra.mxu0 0.0
      %1723 = vmatprep.subr.mxu0 0.0
      %1724 = vmatpush2.msra.mxu0 0.0
      %1725 = vmatprep.subr.mxu0 0.0
      %1726 = vmatpush2.msra.mxu0 0.0
      %1727 = vmatprep.mubr.f32.mxu0 0.0
      %1728 = vmatmul.mubr.f32.gmra.mxu0 %v1658
      %v1729 = vpop.f32.mrf.mxu0
      %v1730 = vadd.f32 0.0, %v1729
      %v1731 = vpop.f32.mrf.mxu0
      %1732 = vdwg.mxu0
      %v1733 = vadd.f32 %v1654, %v1730
      %1734 = vrot.lane.b32.xlu0 %v360, 117
      %v1735 = vpop.permute.xlu0 %1734
      %v1737 = vsel %vm389, %v1103, 0
      %v1740 = vsel %vm393, %v1735, 0
      %1742 = vmatprep.subr.mxu0 0.0
      %1743 = vmatpush1.msra.mxu0 0.0
      %1744 = vmatprep.subr.mxu0 0.0
      %1745 = vmatpush1.msra.mxu0 0.0
      %1746 = vmatprep.subr.mxu0 0.0
      %1747 = vmatpush1.msra.mxu0 0.0
      %1748 = vmatprep.subr.mxu0 0.0
      %1749 = vmatpush1.msra.mxu0 0.0
      %1750 = vmatprep.subr.mxu0 0.0
      %1751 = vmatpush1.msra.mxu0 0.0
      %1752 = vmatprep.subr.mxu0 0.0
      %1753 = vmatpush1.msra.mxu0 0.0
      %1754 = vmatprep.subr.mxu0 0.0
      %1755 = vmatpush1.msra.mxu0 0.0
      %1756 = vmatprep.subr.mxu0 0.0
      %1757 = vmatpush1.msra.mxu0 0.0
      %1758 = vmatprep.subr.mxu0 0.0
      %1759 = vmatpush1.msra.mxu0 0.0
      %1760 = vmatprep.subr.mxu0 0.0
      %1761 = vmatpush1.msra.mxu0 0.0
      %1762 = vmatprep.subr.mxu0 0.0
      %1763 = vmatpush1.msra.mxu0 0.0
      %1764 = vmatprep.subr.mxu0 0.0
      %1765 = vmatpush1.msra.mxu0 0.0
      %1766 = vmatprep.subr.mxu0 0.0
      %1767 = vmatpush1.msra.mxu0 0.0
      %1768 = vmatprep.subr.mxu0 0.0
      %1769 = vmatpush1.msra.mxu0 0.0
      %1770 = vmatprep.subr.mxu0 0.0
      %1771 = vmatpush1.msra.mxu0 0.0
      %1772 = vmatprep.subr.mxu0 0.0
      %1773 = vmatpush1.msra.mxu0 %v1740
      %1774 = vmatprep.subr.mxu0 0.0
      %1775 = vmatpush2.msra.mxu0 0.0
      %1776 = vmatprep.subr.mxu0 0.0
      %1777 = vmatpush2.msra.mxu0 0.0
      %1778 = vmatprep.subr.mxu0 0.0
      %1779 = vmatpush2.msra.mxu0 0.0
      %1780 = vmatprep.subr.mxu0 0.0
      %1781 = vmatpush2.msra.mxu0 0.0
      %1782 = vmatprep.subr.mxu0 0.0
      %1783 = vmatpush2.msra.mxu0 0.0
      %1784 = vmatprep.subr.mxu0 0.0
      %1785 = vmatpush2.msra.mxu0 0.0
      %1786 = vmatprep.subr.mxu0 0.0
      %1787 = vmatpush2.msra.mxu0 0.0
      %1788 = vmatprep.subr.mxu0 0.0
      %1789 = vmatpush2.msra.mxu0 0.0
      %1790 = vmatprep.subr.mxu0 0.0
      %1791 = vmatpush2.msra.mxu0 0.0
      %1792 = vmatprep.subr.mxu0 0.0
      %1793 = vmatpush2.msra.mxu0 0.0
      %1794 = vmatprep.subr.mxu0 0.0
      %1795 = vmatpush2.msra.mxu0 0.0
      %1796 = vmatprep.subr.mxu0 0.0
      %1797 = vmatpush2.msra.mxu0 0.0
      %1798 = vmatprep.subr.mxu0 0.0
      %1799 = vmatpush2.msra.mxu0 0.0
      %1800 = vmatprep.subr.mxu0 0.0
      %1801 = vmatpush2.msra.mxu0 0.0
      %1802 = vmatprep.subr.mxu0 0.0
      %1803 = vmatpush2.msra.mxu0 0.0
      %1804 = vmatprep.subr.mxu0 0.0
      %1805 = vmatpush2.msra.mxu0 0.0
      %1806 = vmatprep.mubr.f32.mxu0 0.0
      %1807 = vmatmul.mubr.f32.gmra.mxu0 %v1737
      %v1808 = vpop.f32.mrf.mxu0
      %v1809 = vadd.f32 0.0, %v1808
      %v1810 = vpop.f32.mrf.mxu0
      %1811 = vdwg.mxu0
      %v1812 = vadd.f32 %v1733, %v1809
      %s1813 = scalar_lea.vmem %s3, 144
      %v1814 = vld [vmem:[%s1813] sm:$0xff]
      %v1815 = vld [vmem:[%s1813 + $0x8] sm:$0xff]
      %v1816 = vld [vmem:[%s1813 + $0x10] sm:$0xff]
      %v1817 = vld [vmem:[%s1813 + $0x18] sm:$0xff]
      %v1818 = vld [vmem:[%s1813 + $0x20] sm:$0xff]
      %v1819 = vld [vmem:[%s1813 + $0x28] sm:$0xff]
      %v1820 = vld [vmem:[%s1813 + $0x30] sm:$0xff]
      %v1821 = vld [vmem:[%s1813 + $0x38] sm:$0xff]
      %v1822 = vld [vmem:[%s1813 + $0x40] sm:$0xff]
      %v1823 = vstv %s365
      %v1824 = vmul.f32 %v1814, %v1823
      %v1825 = vmul.f32 %v1815, %v1823
      %v1826 = vmul.f32 %v1816, %v1823
      %v1827 = vmul.f32 %v1817, %v1823
      %v1828 = vmul.f32 %v1818, %v1823
      %v1829 = vmul.f32 %v1819, %v1823
      %v1830 = vmul.f32 %v1820, %v1823
      %v1831 = vmul.f32 %v1821, %v1823
      %v1832 = vmul.f32 %v1822, %v1823
      %1833 = vrot.lane.b32.xlu0 %v361, 11
      %v1834 = vpop.permute.xlu0 %1833
      %v1836 = vsel %vm389, %v1824, 0
      %v1839 = vsel %vm393, %v1834, 0
      %1841 = vmatprep.subr.mxu0 0.0
      %1842 = vmatpush1.msra.mxu0 0.0
      %1843 = vmatprep.subr.mxu0 0.0
      %1844 = vmatpush1.msra.mxu0 0.0
      %1845 = vmatprep.subr.mxu0 0.0
      %1846 = vmatpush1.msra.mxu0 0.0
      %1847 = vmatprep.subr.mxu0 0.0
      %1848 = vmatpush1.msra.mxu0 0.0
      %1849 = vmatprep.subr.mxu0 0.0
      %1850 = vmatpush1.msra.mxu0 0.0
      %1851 = vmatprep.subr.mxu0 0.0
      %1852 = vmatpush1.msra.mxu0 0.0
      %1853 = vmatprep.subr.mxu0 0.0
      %1854 = vmatpush1.msra.mxu0 0.0
      %1855 = vmatprep.subr.mxu0 0.0
      %1856 = vmatpush1.msra.mxu0 0.0
      %1857 = vmatprep.subr.mxu0 0.0
      %1858 = vmatpush1.msra.mxu0 0.0
      %1859 = vmatprep.subr.mxu0 0.0
      %1860 = vmatpush1.msra.mxu0 0.0
      %1861 = vmatprep.subr.mxu0 0.0
      %1862 = vmatpush1.msra.mxu0 0.0
      %1863 = vmatprep.subr.mxu0 0.0
      %1864 = vmatpush1.msra.mxu0 0.0
      %1865 = vmatprep.subr.mxu0 0.0
      %1866 = vmatpush1.msra.mxu0 0.0
      %1867 = vmatprep.subr.mxu0 0.0
      %1868 = vmatpush1.msra.mxu0 0.0
      %1869 = vmatprep.subr.mxu0 0.0
      %1870 = vmatpush1.msra.mxu0 0.0
      %1871 = vmatprep.subr.mxu0 0.0
      %1872 = vmatpush1.msra.mxu0 %v1839
      %1873 = vmatprep.subr.mxu0 0.0
      %1874 = vmatpush2.msra.mxu0 0.0
      %1875 = vmatprep.subr.mxu0 0.0
      %1876 = vmatpush2.msra.mxu0 0.0
      %1877 = vmatprep.subr.mxu0 0.0
      %1878 = vmatpush2.msra.mxu0 0.0
      %1879 = vmatprep.subr.mxu0 0.0
      %1880 = vmatpush2.msra.mxu0 0.0
      %1881 = vmatprep.subr.mxu0 0.0
      %1882 = vmatpush2.msra.mxu0 0.0
      %1883 = vmatprep.subr.mxu0 0.0
      %1884 = vmatpush2.msra.mxu0 0.0
      %1885 = vmatprep.subr.mxu0 0.0
      %1886 = vmatpush2.msra.mxu0 0.0
      %1887 = vmatprep.subr.mxu0 0.0
      %1888 = vmatpush2.msra.mxu0 0.0
      %1889 = vmatprep.subr.mxu0 0.0
      %1890 = vmatpush2.msra.mxu0 0.0
      %1891 = vmatprep.subr.mxu0 0.0
      %1892 = vmatpush2.msra.mxu0 0.0
      %1893 = vmatprep.subr.mxu0 0.0
      %1894 = vmatpush2.msra.mxu0 0.0
      %1895 = vmatprep.subr.mxu0 0.0
      %1896 = vmatpush2.msra.mxu0 0.0
      %1897 = vmatprep.subr.mxu0 0.0
      %1898 = vmatpush2.msra.mxu0 0.0
      %1899 = vmatprep.subr.mxu0 0.0
      %1900 = vmatpush2.msra.mxu0 0.0
      %1901 = vmatprep.subr.mxu0 0.0
      %1902 = vmatpush2.msra.mxu0 0.0
      %1903 = vmatprep.subr.mxu0 0.0
      %1904 = vmatpush2.msra.mxu0 0.0
      %1905 = vmatprep.mubr.f32.mxu0 0.0
      %1906 = vmatmul.mubr.f32.gmra.mxu0 %v1836
      %v1907 = vpop.f32.mrf.mxu0
      %v1908 = vadd.f32 0.0, %v1907
      %v1909 = vpop.f32.mrf.mxu0
      %1910 = vdwg.mxu0
      %v1911 = vadd.f32 %v1812, %v1908
      %1912 = vrot.lane.b32.xlu0 %v361, 10
      %v1913 = vpop.permute.xlu0 %1912
      %v1915 = vsel %vm389, %v1825, 0
      %v1918 = vsel %vm393, %v1913, 0
      %1920 = vmatprep.subr.mxu0 0.0
      %1921 = vmatpush1.msra.mxu0 0.0
      %1922 = vmatprep.subr.mxu0 0.0
      %1923 = vmatpush1.msra.mxu0 0.0
      %1924 = vmatprep.subr.mxu0 0.0
      %1925 = vmatpush1.msra.mxu0 0.0
      %1926 = vmatprep.subr.mxu0 0.0
      %1927 = vmatpush1.msra.mxu0 0.0
      %1928 = vmatprep.subr.mxu0 0.0
      %1929 = vmatpush1.msra.mxu0 0.0
      %1930 = vmatprep.subr.mxu0 0.0
      %1931 = vmatpush1.msra.mxu0 0.0
      %1932 = vmatprep.subr.mxu0 0.0
      %1933 = vmatpush1.msra.mxu0 0.0
      %1934 = vmatprep.subr.mxu0 0.0
      %1935 = vmatpush1.msra.mxu0 0.0
      %1936 = vmatprep.subr.mxu0 0.0
      %1937 = vmatpush1.msra.mxu0 0.0
      %1938 = vmatprep.subr.mxu0 0.0
      %1939 = vmatpush1.msra.mxu0 0.0
      %1940 = vmatprep.subr.mxu0 0.0
      %1941 = vmatpush1.msra.mxu0 0.0
      %1942 = vmatprep.subr.mxu0 0.0
      %1943 = vmatpush1.msra.mxu0 0.0
      %1944 = vmatprep.subr.mxu0 0.0
      %1945 = vmatpush1.msra.mxu0 0.0
      %1946 = vmatprep.subr.mxu0 0.0
      %1947 = vmatpush1.msra.mxu0 0.0
      %1948 = vmatprep.subr.mxu0 0.0
      %1949 = vmatpush1.msra.mxu0 0.0
      %1950 = vmatprep.subr.mxu0 0.0
      %1951 = vmatpush1.msra.mxu0 %v1918
      %1952 = vmatprep.subr.mxu0 0.0
      %1953 = vmatpush2.msra.mxu0 0.0
      %1954 = vmatprep.subr.mxu0 0.0
      %1955 = vmatpush2.msra.mxu0 0.0
      %1956 = vmatprep.subr.mxu0 0.0
      %1957 = vmatpush2.msra.mxu0 0.0
      %1958 = vmatprep.subr.mxu0 0.0
      %1959 = vmatpush2.msra.mxu0 0.0
      %1960 = vmatprep.subr.mxu0 0.0
      %1961 = vmatpush2.msra.mxu0 0.0
      %1962 = vmatprep.subr.mxu0 0.0
      %1963 = vmatpush2.msra.mxu0 0.0
      %1964 = vmatprep.subr.mxu0 0.0
      %1965 = vmatpush2.msra.mxu0 0.0
      %1966 = vmatprep.subr.mxu0 0.0
      %1967 = vmatpush2.msra.mxu0 0.0
      %1968 = vmatprep.subr.mxu0 0.0
      %1969 = vmatpush2.msra.mxu0 0.0
      %1970 = vmatprep.subr.mxu0 0.0
      %1971 = vmatpush2.msra.mxu0 0.0
      %1972 = vmatprep.subr.mxu0 0.0
      %1973 = vmatpush2.msra.mxu0 0.0
      %1974 = vmatprep.subr.mxu0 0.0
      %1975 = vmatpush2.msra.mxu0 0.0
      %1976 = vmatprep.subr.mxu0 0.0
      %1977 = vmatpush2.msra.mxu0 0.0
      %1978 = vmatprep.subr.mxu0 0.0
      %1979 = vmatpush2.msra.mxu0 0.0
      %1980 = vmatprep.subr.mxu0 0.0
      %1981 = vmatpush2.msra.mxu0 0.0
      %1982 = vmatprep.subr.mxu0 0.0
      %1983 = vmatpush2.msra.mxu0 0.0
      %1984 = vmatprep.mubr.f32.mxu0 0.0
      %1985 = vmatmul.mubr.f32.gmra.mxu0 %v1915
      %v1986 = vpop.f32.mrf.mxu0
      %v1987 = vadd.f32 0.0, %v1986
      %v1988 = vpop.f32.mrf.mxu0
      %1989 = vdwg.mxu0
      %v1990 = vadd.f32 %v1911, %v1987
      %1991 = vrot.lane.b32.xlu0 %v361, 9
      %v1992 = vpop.permute.xlu0 %1991
      %v1994 = vsel %vm389, %v1826, 0
      %v1997 = vsel %vm393, %v1992, 0
      %1999 = vmatprep.subr.mxu0 0.0
      %2000 = vmatpush1.msra.mxu0 0.0
      %2001 = vmatprep.subr.mxu0 0.0
      %2002 = vmatpush1.msra.mxu0 0.0
      %2003 = vmatprep.subr.mxu0 0.0
      %2004 = vmatpush1.msra.mxu0 0.0
      %2005 = vmatprep.subr.mxu0 0.0
      %2006 = vmatpush1.msra.mxu0 0.0
      %2007 = vmatprep.subr.mxu0 0.0
      %2008 = vmatpush1.msra.mxu0 0.0
      %2009 = vmatprep.subr.mxu0 0.0
      %2010 = vmatpush1.msra.mxu0 0.0
      %2011 = vmatprep.subr.mxu0 0.0
      %2012 = vmatpush1.msra.mxu0 0.0
      %2013 = vmatprep.subr.mxu0 0.0
      %2014 = vmatpush1.msra.mxu0 0.0
      %2015 = vmatprep.subr.mxu0 0.0
      %2016 = vmatpush1.msra.mxu0 0.0
      %2017 = vmatprep.subr.mxu0 0.0
      %2018 = vmatpush1.msra.mxu0 0.0
      %2019 = vmatprep.subr.mxu0 0.0
      %2020 = vmatpush1.msra.mxu0 0.0
      %2021 = vmatprep.subr.mxu0 0.0
      %2022 = vmatpush1.msra.mxu0 0.0
      %2023 = vmatprep.subr.mxu0 0.0
      %2024 = vmatpush1.msra.mxu0 0.0
      %2025 = vmatprep.subr.mxu0 0.0
      %2026 = vmatpush1.msra.mxu0 0.0
      %2027 = vmatprep.subr.mxu0 0.0
      %2028 = vmatpush1.msra.mxu0 0.0
      %2029 = vmatprep.subr.mxu0 0.0
      %2030 = vmatpush1.msra.mxu0 %v1997
      %2031 = vmatprep.subr.mxu0 0.0
      %2032 = vmatpush2.msra.mxu0 0.0
      %2033 = vmatprep.subr.mxu0 0.0
      %2034 = vmatpush2.msra.mxu0 0.0
      %2035 = vmatprep.subr.mxu0 0.0
      %2036 = vmatpush2.msra.mxu0 0.0
      %2037 = vmatprep.subr.mxu0 0.0
      %2038 = vmatpush2.msra.mxu0 0.0
      %2039 = vmatprep.subr.mxu0 0.0
      %2040 = vmatpush2.msra.mxu0 0.0
      %2041 = vmatprep.subr.mxu0 0.0
      %2042 = vmatpush2.msra.mxu0 0.0
      %2043 = vmatprep.subr.mxu0 0.0
      %2044 = vmatpush2.msra.mxu0 0.0
      %2045 = vmatprep.subr.mxu0 0.0
      %2046 = vmatpush2.msra.mxu0 0.0
      %2047 = vmatprep.subr.mxu0 0.0
      %2048 = vmatpush2.msra.mxu0 0.0
      %2049 = vmatprep.subr.mxu0 0.0
      %2050 = vmatpush2.msra.mxu0 0.0
      %2051 = vmatprep.subr.mxu0 0.0
      %2052 = vmatpush2.msra.mxu0 0.0
      %2053 = vmatprep.subr.mxu0 0.0
      %2054 = vmatpush2.msra.mxu0 0.0
      %2055 = vmatprep.subr.mxu0 0.0
      %2056 = vmatpush2.msra.mxu0 0.0
      %2057 = vmatprep.subr.mxu0 0.0
      %2058 = vmatpush2.msra.mxu0 0.0
      %2059 = vmatprep.subr.mxu0 0.0
      %2060 = vmatpush2.msra.mxu0 0.0
      %2061 = vmatprep.subr.mxu0 0.0
      %2062 = vmatpush2.msra.mxu0 0.0
      %2063 = vmatprep.mubr.f32.mxu0 0.0
      %2064 = vmatmul.mubr.f32.gmra.mxu0 %v1994
      %v2065 = vpop.f32.mrf.mxu0
      %v2066 = vadd.f32 0.0, %v2065
      %v2067 = vpop.f32.mrf.mxu0
      %2068 = vdwg.mxu0
      %v2069 = vadd.f32 %v1990, %v2066
      %2070 = vrot.lane.b32.xlu0 %v361, 1
      %v2071 = vpop.permute.xlu0 %2070
      %v2073 = vsel %vm389, %v1827, 0
      %v2076 = vsel %vm393, %v2071, 0
      %2078 = vmatprep.subr.mxu0 0.0
      %2079 = vmatpush1.msra.mxu0 0.0
      %2080 = vmatprep.subr.mxu0 0.0
      %2081 = vmatpush1.msra.mxu0 0.0
      %2082 = vmatprep.subr.mxu0 0.0
      %2083 = vmatpush1.msra.mxu0 0.0
      %2084 = vmatprep.subr.mxu0 0.0
      %2085 = vmatpush1.msra.mxu0 0.0
      %2086 = vmatprep.subr.mxu0 0.0
      %2087 = vmatpush1.msra.mxu0 0.0
      %2088 = vmatprep.subr.mxu0 0.0
      %2089 = vmatpush1.msra.mxu0 0.0
      %2090 = vmatprep.subr.mxu0 0.0
      %2091 = vmatpush1.msra.mxu0 0.0
      %2092 = vmatprep.subr.mxu0 0.0
      %2093 = vmatpush1.msra.mxu0 0.0
      %2094 = vmatprep.subr.mxu0 0.0
      %2095 = vmatpush1.msra.mxu0 0.0
      %2096 = vmatprep.subr.mxu0 0.0
      %2097 = vmatpush1.msra.mxu0 0.0
      %2098 = vmatprep.subr.mxu0 0.0
      %2099 = vmatpush1.msra.mxu0 0.0
      %2100 = vmatprep.subr.mxu0 0.0
      %2101 = vmatpush1.msra.mxu0 0.0
      %2102 = vmatprep.subr.mxu0 0.0
      %2103 = vmatpush1.msra.mxu0 0.0
      %2104 = vmatprep.subr.mxu0 0.0
      %2105 = vmatpush1.msra.mxu0 0.0
      %2106 = vmatprep.subr.mxu0 0.0
      %2107 = vmatpush1.msra.mxu0 0.0
      %2108 = vmatprep.subr.mxu0 0.0
      %2109 = vmatpush1.msra.mxu0 %v2076
      %2110 = vmatprep.subr.mxu0 0.0
      %2111 = vmatpush2.msra.mxu0 0.0
      %2112 = vmatprep.subr.mxu0 0.0
      %2113 = vmatpush2.msra.mxu0 0.0
      %2114 = vmatprep.subr.mxu0 0.0
      %2115 = vmatpush2.msra.mxu0 0.0
      %2116 = vmatprep.subr.mxu0 0.0
      %2117 = vmatpush2.msra.mxu0 0.0
      %2118 = vmatprep.subr.mxu0 0.0
      %2119 = vmatpush2.msra.mxu0 0.0
      %2120 = vmatprep.subr.mxu0 0.0
      %2121 = vmatpush2.msra.mxu0 0.0
      %2122 = vmatprep.subr.mxu0 0.0
      %2123 = vmatpush2.msra.mxu0 0.0
      %2124 = vmatprep.subr.mxu0 0.0
      %2125 = vmatpush2.msra.mxu0 0.0
      %2126 = vmatprep.subr.mxu0 0.0
      %2127 = vmatpush2.msra.mxu0 0.0
      %2128 = vmatprep.subr.mxu0 0.0
      %2129 = vmatpush2.msra.mxu0 0.0
      %2130 = vmatprep.subr.mxu0 0.0
      %2131 = vmatpush2.msra.mxu0 0.0
      %2132 = vmatprep.subr.mxu0 0.0
      %2133 = vmatpush2.msra.mxu0 0.0
      %2134 = vmatprep.subr.mxu0 0.0
      %2135 = vmatpush2.msra.mxu0 0.0
      %2136 = vmatprep.subr.mxu0 0.0
      %2137 = vmatpush2.msra.mxu0 0.0
      %2138 = vmatprep.subr.mxu0 0.0
      %2139 = vmatpush2.msra.mxu0 0.0
      %2140 = vmatprep.subr.mxu0 0.0
      %2141 = vmatpush2.msra.mxu0 0.0
      %2142 = vmatprep.mubr.f32.mxu0 0.0
      %2143 = vmatmul.mubr.f32.gmra.mxu0 %v2073
      %v2144 = vpop.f32.mrf.mxu0
      %v2145 = vadd.f32 0.0, %v2144
      %v2146 = vpop.f32.mrf.mxu0
      %2147 = vdwg.mxu0
      %v2148 = vadd.f32 %v2069, %v2145
      %v2150 = vsel %vm389, %v1828, 0
      %v2153 = vsel %vm393, %v361, 0
      %2155 = vmatprep.subr.mxu0 0.0
      %2156 = vmatpush1.msra.mxu0 0.0
      %2157 = vmatprep.subr.mxu0 0.0
      %2158 = vmatpush1.msra.mxu0 0.0
      %2159 = vmatprep.subr.mxu0 0.0
      %2160 = vmatpush1.msra.mxu0 0.0
      %2161 = vmatprep.subr.mxu0 0.0
      %2162 = vmatpush1.msra.mxu0 0.0
      %2163 = vmatprep.subr.mxu0 0.0
      %2164 = vmatpush1.msra.mxu0 0.0
      %2165 = vmatprep.subr.mxu0 0.0
      %2166 = vmatpush1.msra.mxu0 0.0
      %2167 = vmatprep.subr.mxu0 0.0
      %2168 = vmatpush1.msra.mxu0 0.0
      %2169 = vmatprep.subr.mxu0 0.0
      %2170 = vmatpush1.msra.mxu0 0.0
      %2171 = vmatprep.subr.mxu0 0.0
      %2172 = vmatpush1.msra.mxu0 0.0
      %2173 = vmatprep.subr.mxu0 0.0
      %2174 = vmatpush1.msra.mxu0 0.0
      %2175 = vmatprep.subr.mxu0 0.0
      %2176 = vmatpush1.msra.mxu0 0.0
      %2177 = vmatprep.subr.mxu0 0.0
      %2178 = vmatpush1.msra.mxu0 0.0
      %2179 = vmatprep.subr.mxu0 0.0
      %2180 = vmatpush1.msra.mxu0 0.0
      %2181 = vmatprep.subr.mxu0 0.0
      %2182 = vmatpush1.msra.mxu0 0.0
      %2183 = vmatprep.subr.mxu0 0.0
      %2184 = vmatpush1.msra.mxu0 0.0
      %2185 = vmatprep.subr.mxu0 0.0
      %2186 = vmatpush1.msra.mxu0 %v2153
      %2187 = vmatprep.subr.mxu0 0.0
      %2188 = vmatpush2.msra.mxu0 0.0
      %2189 = vmatprep.subr.mxu0 0.0
      %2190 = vmatpush2.msra.mxu0 0.0
      %2191 = vmatprep.subr.mxu0 0.0
      %2192 = vmatpush2.msra.mxu0 0.0
      %2193 = vmatprep.subr.mxu0 0.0
      %2194 = vmatpush2.msra.mxu0 0.0
      %2195 = vmatprep.subr.mxu0 0.0
      %2196 = vmatpush2.msra.mxu0 0.0
      %2197 = vmatprep.subr.mxu0 0.0
      %2198 = vmatpush2.msra.mxu0 0.0
      %2199 = vmatprep.subr.mxu0 0.0
      %2200 = vmatpush2.msra.mxu0 0.0
      %2201 = vmatprep.subr.mxu0 0.0
      %2202 = vmatpush2.msra.mxu0 0.0
      %2203 = vmatprep.subr.mxu0 0.0
      %2204 = vmatpush2.msra.mxu0 0.0
      %2205 = vmatprep.subr.mxu0 0.0
      %2206 = vmatpush2.msra.mxu0 0.0
      %2207 = vmatprep.subr.mxu0 0.0
      %2208 = vmatpush2.msra.mxu0 0.0
      %2209 = vmatprep.subr.mxu0 0.0
      %2210 = vmatpush2.msra.mxu0 0.0
      %2211 = vmatprep.subr.mxu0 0.0
      %2212 = vmatpush2.msra.mxu0 0.0
      %2213 = vmatprep.subr.mxu0 0.0
      %2214 = vmatpush2.msra.mxu0 0.0
      %2215 = vmatprep.subr.mxu0 0.0
      %2216 = vmatpush2.msra.mxu0 0.0
      %2217 = vmatprep.subr.mxu0 0.0
      %2218 = vmatpush2.msra.mxu0 0.0
      %2219 = vmatprep.mubr.f32.mxu0 0.0
      %2220 = vmatmul.mubr.f32.gmra.mxu0 %v2150
      %v2221 = vpop.f32.mrf.mxu0
      %v2222 = vadd.f32 0.0, %v2221
      %v2223 = vpop.f32.mrf.mxu0
      %2224 = vdwg.mxu0
      %v2225 = vadd.f32 %v2148, %v2222
      %2226 = vrot.lane.b32.xlu0 %v361, 127
      %v2227 = vpop.permute.xlu0 %2226
      %v2229 = vsel %vm389, %v1829, 0
      %v2232 = vsel %vm393, %v2227, 0
      %2234 = vmatprep.subr.mxu0 0.0
      %2235 = vmatpush1.msra.mxu0 0.0
      %2236 = vmatprep.subr.mxu0 0.0
      %2237 = vmatpush1.msra.mxu0 0.0
      %2238 = vmatprep.subr.mxu0 0.0
      %2239 = vmatpush1.msra.mxu0 0.0
      %2240 = vmatprep.subr.mxu0 0.0
      %2241 = vmatpush1.msra.mxu0 0.0
      %2242 = vmatprep.subr.mxu0 0.0
      %2243 = vmatpush1.msra.mxu0 0.0
      %2244 = vmatprep.subr.mxu0 0.0
      %2245 = vmatpush1.msra.mxu0 0.0
      %2246 = vmatprep.subr.mxu0 0.0
      %2247 = vmatpush1.msra.mxu0 0.0
      %2248 = vmatprep.subr.mxu0 0.0
      %2249 = vmatpush1.msra.mxu0 0.0
      %2250 = vmatprep.subr.mxu0 0.0
      %2251 = vmatpush1.msra.mxu0 0.0
      %2252 = vmatprep.subr.mxu0 0.0
      %2253 = vmatpush1.msra.mxu0 0.0
      %2254 = vmatprep.subr.mxu0 0.0
      %2255 = vmatpush1.msra.mxu0 0.0
      %2256 = vmatprep.subr.mxu0 0.0
      %2257 = vmatpush1.msra.mxu0 0.0
      %2258 = vmatprep.subr.mxu0 0.0
      %2259 = vmatpush1.msra.mxu0 0.0
      %2260 = vmatprep.subr.mxu0 0.0
      %2261 = vmatpush1.msra.mxu0 0.0
      %2262 = vmatprep.subr.mxu0 0.0
      %2263 = vmatpush1.msra.mxu0 0.0
      %2264 = vmatprep.subr.mxu0 0.0
      %2265 = vmatpush1.msra.mxu0 %v2232
      %2266 = vmatprep.subr.mxu0 0.0
      %2267 = vmatpush2.msra.mxu0 0.0
      %2268 = vmatprep.subr.mxu0 0.0
      %2269 = vmatpush2.msra.mxu0 0.0
      %2270 = vmatprep.subr.mxu0 0.0
      %2271 = vmatpush2.msra.mxu0 0.0
      %2272 = vmatprep.subr.mxu0 0.0
      %2273 = vmatpush2.msra.mxu0 0.0
      %2274 = vmatprep.subr.mxu0 0.0
      %2275 = vmatpush2.msra.mxu0 0.0
      %2276 = vmatprep.subr.mxu0 0.0
      %2277 = vmatpush2.msra.mxu0 0.0
      %2278 = vmatprep.subr.mxu0 0.0
      %2279 = vmatpush2.msra.mxu0 0.0
      %2280 = vmatprep.subr.mxu0 0.0
      %2281 = vmatpush2.msra.mxu0 0.0
      %2282 = vmatprep.subr.mxu0 0.0
      %2283 = vmatpush2.msra.mxu0 0.0
      %2284 = vmatprep.subr.mxu0 0.0
      %2285 = vmatpush2.msra.mxu0 0.0
      %2286 = vmatprep.subr.mxu0 0.0
      %2287 = vmatpush2.msra.mxu0 0.0
      %2288 = vmatprep.subr.mxu0 0.0
      %2289 = vmatpush2.msra.mxu0 0.0
      %2290 = vmatprep.subr.mxu0 0.0
      %2291 = vmatpush2.msra.mxu0 0.0
      %2292 = vmatprep.subr.mxu0 0.0
      %2293 = vmatpush2.msra.mxu0 0.0
      %2294 = vmatprep.subr.mxu0 0.0
      %2295 = vmatpush2.msra.mxu0 0.0
      %2296 = vmatprep.subr.mxu0 0.0
      %2297 = vmatpush2.msra.mxu0 0.0
      %2298 = vmatprep.mubr.f32.mxu0 0.0
      %2299 = vmatmul.mubr.f32.gmra.mxu0 %v2229
      %v2300 = vpop.f32.mrf.mxu0
      %v2301 = vadd.f32 0.0, %v2300
      %v2302 = vpop.f32.mrf.mxu0
      %2303 = vdwg.mxu0
      %v2304 = vadd.f32 %v2225, %v2301
      %2305 = vrot.lane.b32.xlu0 %v361, 119
      %v2306 = vpop.permute.xlu0 %2305
      %v2308 = vsel %vm389, %v1830, 0
      %v2311 = vsel %vm393, %v2306, 0
      %2313 = vmatprep.subr.mxu0 0.0
      %2314 = vmatpush1.msra.mxu0 0.0
      %2315 = vmatprep.subr.mxu0 0.0
      %2316 = vmatpush1.msra.mxu0 0.0
      %2317 = vmatprep.subr.mxu0 0.0
      %2318 = vmatpush1.msra.mxu0 0.0
      %2319 = vmatprep.subr.mxu0 0.0
      %2320 = vmatpush1.msra.mxu0 0.0
      %2321 = vmatprep.subr.mxu0 0.0
      %2322 = vmatpush1.msra.mxu0 0.0
      %2323 = vmatprep.subr.mxu0 0.0
      %2324 = vmatpush1.msra.mxu0 0.0
      %2325 = vmatprep.subr.mxu0 0.0
      %2326 = vmatpush1.msra.mxu0 0.0
      %2327 = vmatprep.subr.mxu0 0.0
      %2328 = vmatpush1.msra.mxu0 0.0
      %2329 = vmatprep.subr.mxu0 0.0
      %2330 = vmatpush1.msra.mxu0 0.0
      %2331 = vmatprep.subr.mxu0 0.0
      %2332 = vmatpush1.msra.mxu0 0.0
      %2333 = vmatprep.subr.mxu0 0.0
      %2334 = vmatpush1.msra.mxu0 0.0
      %2335 = vmatprep.subr.mxu0 0.0
      %2336 = vmatpush1.msra.mxu0 0.0
      %2337 = vmatprep.subr.mxu0 0.0
      %2338 = vmatpush1.msra.mxu0 0.0
      %2339 = vmatprep.subr.mxu0 0.0
      %2340 = vmatpush1.msra.mxu0 0.0
      %2341 = vmatprep.subr.mxu0 0.0
      %2342 = vmatpush1.msra.mxu0 0.0
      %2343 = vmatprep.subr.mxu0 0.0
      %2344 = vmatpush1.msra.mxu0 %v2311
      %2345 = vmatprep.subr.mxu0 0.0
      %2346 = vmatpush2.msra.mxu0 0.0
      %2347 = vmatprep.subr.mxu0 0.0
      %2348 = vmatpush2.msra.mxu0 0.0
      %2349 = vmatprep.subr.mxu0 0.0
      %2350 = vmatpush2.msra.mxu0 0.0
      %2351 = vmatprep.subr.mxu0 0.0
      %2352 = vmatpush2.msra.mxu0 0.0
      %2353 = vmatprep.subr.mxu0 0.0
      %2354 = vmatpush2.msra.mxu0 0.0
      %2355 = vmatprep.subr.mxu0 0.0
      %2356 = vmatpush2.msra.mxu0 0.0
      %2357 = vmatprep.subr.mxu0 0.0
      %2358 = vmatpush2.msra.mxu0 0.0
      %2359 = vmatprep.subr.mxu0 0.0
      %2360 = vmatpush2.msra.mxu0 0.0
      %2361 = vmatprep.subr.mxu0 0.0
      %2362 = vmatpush2.msra.mxu0 0.0
      %2363 = vmatprep.subr.mxu0 0.0
      %2364 = vmatpush2.msra.mxu0 0.0
      %2365 = vmatprep.subr.mxu0 0.0
      %2366 = vmatpush2.msra.mxu0 0.0
      %2367 = vmatprep.subr.mxu0 0.0
      %2368 = vmatpush2.msra.mxu0 0.0
      %2369 = vmatprep.subr.mxu0 0.0
      %2370 = vmatpush2.msra.mxu0 0.0
      %2371 = vmatprep.subr.mxu0 0.0
      %2372 = vmatpush2.msra.mxu0 0.0
      %2373 = vmatprep.subr.mxu0 0.0
      %2374 = vmatpush2.msra.mxu0 0.0
      %2375 = vmatprep.subr.mxu0 0.0
      %2376 = vmatpush2.msra.mxu0 0.0
      %2377 = vmatprep.mubr.f32.mxu0 0.0
      %2378 = vmatmul.mubr.f32.gmra.mxu0 %v2308
      %v2379 = vpop.f32.mrf.mxu0
      %v2380 = vadd.f32 0.0, %v2379
      %v2381 = vpop.f32.mrf.mxu0
      %2382 = vdwg.mxu0
      %v2383 = vadd.f32 %v2304, %v2380
      %2384 = vrot.lane.b32.xlu0 %v361, 118
      %v2385 = vpop.permute.xlu0 %2384
      %v2387 = vsel %vm389, %v1831, 0
      %v2390 = vsel %vm393, %v2385, 0
      %2392 = vmatprep.subr.mxu0 0.0
      %2393 = vmatpush1.msra.mxu0 0.0
      %2394 = vmatprep.subr.mxu0 0.0
      %2395 = vmatpush1.msra.mxu0 0.0
      %2396 = vmatprep.subr.mxu0 0.0
      %2397 = vmatpush1.msra.mxu0 0.0
      %2398 = vmatprep.subr.mxu0 0.0
      %2399 = vmatpush1.msra.mxu0 0.0
      %2400 = vmatprep.subr.mxu0 0.0
      %2401 = vmatpush1.msra.mxu0 0.0
      %2402 = vmatprep.subr.mxu0 0.0
      %2403 = vmatpush1.msra.mxu0 0.0
      %2404 = vmatprep.subr.mxu0 0.0
      %2405 = vmatpush1.msra.mxu0 0.0
      %2406 = vmatprep.subr.mxu0 0.0
      %2407 = vmatpush1.msra.mxu0 0.0
      %2408 = vmatprep.subr.mxu0 0.0
      %2409 = vmatpush1.msra.mxu0 0.0
      %2410 = vmatprep.subr.mxu0 0.0
      %2411 = vmatpush1.msra.mxu0 0.0
      %2412 = vmatprep.subr.mxu0 0.0
      %2413 = vmatpush1.msra.mxu0 0.0
      %2414 = vmatprep.subr.mxu0 0.0
      %2415 = vmatpush1.msra.mxu0 0.0
      %2416 = vmatprep.subr.mxu0 0.0
      %2417 = vmatpush1.msra.mxu0 0.0
      %2418 = vmatprep.subr.mxu0 0.0
      %2419 = vmatpush1.msra.mxu0 0.0
      %2420 = vmatprep.subr.mxu0 0.0
      %2421 = vmatpush1.msra.mxu0 0.0
      %2422 = vmatprep.subr.mxu0 0.0
      %2423 = vmatpush1.msra.mxu0 %v2390
      %2424 = vmatprep.subr.mxu0 0.0
      %2425 = vmatpush2.msra.mxu0 0.0
      %2426 = vmatprep.subr.mxu0 0.0
      %2427 = vmatpush2.msra.mxu0 0.0
      %2428 = vmatprep.subr.mxu0 0.0
      %2429 = vmatpush2.msra.mxu0 0.0
      %2430 = vmatprep.subr.mxu0 0.0
      %2431 = vmatpush2.msra.mxu0 0.0
      %2432 = vmatprep.subr.mxu0 0.0
      %2433 = vmatpush2.msra.mxu0 0.0
      %2434 = vmatprep.subr.mxu0 0.0
      %2435 = vmatpush2.msra.mxu0 0.0
      %2436 = vmatprep.subr.mxu0 0.0
      %2437 = vmatpush2.msra.mxu0 0.0
      %2438 = vmatprep.subr.mxu0 0.0
      %2439 = vmatpush2.msra.mxu0 0.0
      %2440 = vmatprep.subr.mxu0 0.0
      %2441 = vmatpush2.msra.mxu0 0.0
      %2442 = vmatprep.subr.mxu0 0.0
      %2443 = vmatpush2.msra.mxu0 0.0
      %2444 = vmatprep.subr.mxu0 0.0
      %2445 = vmatpush2.msra.mxu0 0.0
      %2446 = vmatprep.subr.mxu0 0.0
      %2447 = vmatpush2.msra.mxu0 0.0
      %2448 = vmatprep.subr.mxu0 0.0
      %2449 = vmatpush2.msra.mxu0 0.0
      %2450 = vmatprep.subr.mxu0 0.0
      %2451 = vmatpush2.msra.mxu0 0.0
      %2452 = vmatprep.subr.mxu0 0.0
      %2453 = vmatpush2.msra.mxu0 0.0
      %2454 = vmatprep.subr.mxu0 0.0
      %2455 = vmatpush2.msra.mxu0 0.0
      %2456 = vmatprep.mubr.f32.mxu0 0.0
      %2457 = vmatmul.mubr.f32.gmra.mxu0 %v2387
      %v2458 = vpop.f32.mrf.mxu0
      %v2459 = vadd.f32 0.0, %v2458
      %v2460 = vpop.f32.mrf.mxu0
      %2461 = vdwg.mxu0
      %v2462 = vadd.f32 %v2383, %v2459
      %2463 = vrot.lane.b32.xlu0 %v361, 117
      %v2464 = vpop.permute.xlu0 %2463
      %v2466 = vsel %vm389, %v1832, 0
      %v2469 = vsel %vm393, %v2464, 0
      %2471 = vmatprep.subr.mxu0 0.0
      %2472 = vmatpush1.msra.mxu0 0.0
      %2473 = vmatprep.subr.mxu0 0.0
      %2474 = vmatpush1.msra.mxu0 0.0
      %2475 = vmatprep.subr.mxu0 0.0
      %2476 = vmatpush1.msra.mxu0 0.0
      %2477 = vmatprep.subr.mxu0 0.0
      %2478 = vmatpush1.msra.mxu0 0.0
      %2479 = vmatprep.subr.mxu0 0.0
      %2480 = vmatpush1.msra.mxu0 0.0
      %2481 = vmatprep.subr.mxu0 0.0
      %2482 = vmatpush1.msra.mxu0 0.0
      %2483 = vmatprep.subr.mxu0 0.0
      %2484 = vmatpush1.msra.mxu0 0.0
      %2485 = vmatprep.subr.mxu0 0.0
      %2486 = vmatpush1.msra.mxu0 0.0
      %2487 = vmatprep.subr.mxu0 0.0
      %2488 = vmatpush1.msra.mxu0 0.0
      %2489 = vmatprep.subr.mxu0 0.0
      %2490 = vmatpush1.msra.mxu0 0.0
      %2491 = vmatprep.subr.mxu0 0.0
      %2492 = vmatpush1.msra.mxu0 0.0
      %2493 = vmatprep.subr.mxu0 0.0
      %2494 = vmatpush1.msra.mxu0 0.0
      %2495 = vmatprep.subr.mxu0 0.0
      %2496 = vmatpush1.msra.mxu0 0.0
      %2497 = vmatprep.subr.mxu0 0.0
      %2498 = vmatpush1.msra.mxu0 0.0
      %2499 = vmatprep.subr.mxu0 0.0
      %2500 = vmatpush1.msra.mxu0 0.0
      %2501 = vmatprep.subr.mxu0 0.0
      %2502 = vmatpush1.msra.mxu0 %v2469
      %2503 = vmatprep.subr.mxu0 0.0
      %2504 = vmatpush2.msra.mxu0 0.0
      %2505 = vmatprep.subr.mxu0 0.0
      %2506 = vmatpush2.msra.mxu0 0.0
      %2507 = vmatprep.subr.mxu0 0.0
      %2508 = vmatpush2.msra.mxu0 0.0
      %2509 = vmatprep.subr.mxu0 0.0
      %2510 = vmatpush2.msra.mxu0 0.0
      %2511 = vmatprep.subr.mxu0 0.0
      %2512 = vmatpush2.msra.mxu0 0.0
      %2513 = vmatprep.subr.mxu0 0.0
      %2514 = vmatpush2.msra.mxu0 0.0
      %2515 = vmatprep.subr.mxu0 0.0
      %2516 = vmatpush2.msra.mxu0 0.0
      %2517 = vmatprep.subr.mxu0 0.0
      %2518 = vmatpush2.msra.mxu0 0.0
      %2519 = vmatprep.subr.mxu0 0.0
      %2520 = vmatpush2.msra.mxu0 0.0
      %2521 = vmatprep.subr.mxu0 0.0
      %2522 = vmatpush2.msra.mxu0 0.0
      %2523 = vmatprep.subr.mxu0 0.0
      %2524 = vmatpush2.msra.mxu0 0.0
      %2525 = vmatprep.subr.mxu0 0.0
      %2526 = vmatpush2.msra.mxu0 0.0
      %2527 = vmatprep.subr.mxu0 0.0
      %2528 = vmatpush2.msra.mxu0 0.0
      %2529 = vmatprep.subr.mxu0 0.0
      %2530 = vmatpush2.msra.mxu0 0.0
      %2531 = vmatprep.subr.mxu0 0.0
      %2532 = vmatpush2.msra.mxu0 0.0
      %2533 = vmatprep.subr.mxu0 0.0
      %2534 = vmatpush2.msra.mxu0 0.0
      %2535 = vmatprep.mubr.f32.mxu0 0.0
      %2536 = vmatmul.mubr.f32.gmra.mxu0 %v2466
      %v2537 = vpop.f32.mrf.mxu0
      %v2538 = vadd.f32 0.0, %v2537
      %v2539 = vpop.f32.mrf.mxu0
      %2540 = vdwg.mxu0
      %v2541 = vadd.f32 %v2462, %v2538
      %v2542 = vld [vmem:[%s4] sm:$0x1]
      %v2544 = vlaneseq
      %v2545 = vshrl.u32 %v2544, 7
      %v2546 = vsub.s32 0, %v2545
      %v2547 = vrot.slane %v2542, %v2546
      %v2549 = vmul.f32 %v2541, %v2547
      %v2550 = vld [vmem:[#allocation2] sm:$0xff]
      %2551 = vadd.xlane.f32.xlu0 %v2549
      %v2552 = vpop.xlane.xlu0 %2551
      %v2553 = vadd.f32 %v2550, %v2552
      %vm2554 = vcmask 7168
      %2555 = vst.msk [vmem:[#allocation2] sm:$0xff] %vm2554, %v2553
      %v2556 = vld [vmem:[#allocation3] sm:$0xff]
      %v2557 = vmul.f32 %v2549, %v2541
      %2558 = vadd.xlane.f32.xlu0 %v2557
      %v2559 = vpop.xlane.xlu0 %2558
      %v2560 = vadd.f32 %v2556, %v2559
      %2561 = vst.msk [vmem:[#allocation3] sm:$0xff] %vm2554, %v2560
      %s2562 = smul.u32 %s21, 8
      %s2563 = scalar_lea.vmem %s351, %s2562
      %2564 = vst [vmem:[%s2563] sm:$0xff] %v2541
      %p2565 = scmp.eq.s32.totalorder %s21, 7
      // Predicated region
      $region45: #{hffm_forward.3} parent=39 // pred_check
        %p2566 = pneg %p2565
      $region46: #{hffm_forward.3} parent=39 // pred_check_branch
        %2568 = sbr.rel (%p2566) target = $region48
      $region47: #{hffm_forward.3} parent=39 // pred_region
        %v2569 = vld [vmem:[#allocation2] sm:$0xff]
        %v2570 = vmul.f32 %v2569, 0.001953125
        %v2571 = vld [vmem:[#allocation3] sm:$0xff]
        %v2572 = vmul.f32 %v2571, 0.001953125
        %v2573 = vmul.f32 %v2570, %v2570
        %v2574 = vsub.f32 %v2572, %v2573
        %v2575 = vadd.f32 %v2574, 1e-05
        %v2576 = vrsqrt.pop %v2575
        %v2577 = vsub.f32 0.0, %v2570
        %v2578 = vmul.f32 %v2577, %v2576
        %v2579 = vld [vmem:[%s351] sm:$0xff]
        %v2580 = vld [vmem:[%s351 + $0x8] sm:$0xff]
        %v2581 = vld [vmem:[%s351 + $0x10] sm:$0xff]
        %v2582 = vld [vmem:[%s351 + $0x18] sm:$0xff]
        %v2583 = vld [vmem:[%s351 + $0x20] sm:$0xff]
        %v2584 = vld [vmem:[%s351 + $0x28] sm:$0xff]
        %v2585 = vld [vmem:[%s351 + $0x30] sm:$0xff]
        %v2586 = vld [vmem:[%s351 + $0x38] sm:$0xff]
        %2588 = vset.pattern.permute.xlu0 0
        %2589 = vperm.xlu0 %2588, %v2576
        %v2590 = vpop.permute.xlu0 %2589
        %v2592 = vmul.f32 %v2579, %v2590
        %v2593 = vmul.f32 %v2580, %v2590
        %v2594 = vmul.f32 %v2581, %v2590
        %v2595 = vmul.f32 %v2582, %v2590
        %v2596 = vmul.f32 %v2583, %v2590
        %v2597 = vmul.f32 %v2584, %v2590
        %v2598 = vmul.f32 %v2585, %v2590
        %v2599 = vmul.f32 %v2586, %v2590
        %2601 = vset.pattern.permute.xlu0 0
        %2602 = vperm.xlu0 %2601, %v2578
        %v2603 = vpop.permute.xlu0 %2602
        %v2605 = vadd.f32 %v2592, %v2603
        %v2606 = vadd.f32 %v2593, %v2603
        %v2607 = vadd.f32 %v2594, %v2603
        %v2608 = vadd.f32 %v2595, %v2603
        %v2609 = vadd.f32 %v2596, %v2603
        %v2610 = vadd.f32 %v2597, %v2603
        %v2611 = vadd.f32 %v2598, %v2603
        %v2612 = vadd.f32 %v2599, %v2603
        %vm2613 = vcmp.ge.f32.partialorder %v2605, 0.0
        %vm2614 = vcmp.ge.f32.partialorder %v2606, 0.0
        %vm2615 = vcmp.ge.f32.partialorder %v2607, 0.0
        %vm2616 = vcmp.ge.f32.partialorder %v2608, 0.0
        %vm2617 = vcmp.ge.f32.partialorder %v2609, 0.0
        %vm2618 = vcmp.ge.f32.partialorder %v2610, 0.0
        %vm2619 = vcmp.ge.f32.partialorder %v2611, 0.0
        %vm2620 = vcmp.ge.f32.partialorder %v2612, 0.0
        %v2621 = vmul.f32 %v2605, 0.1
        %v2622 = vmul.f32 %v2606, 0.1
        %v2623 = vmul.f32 %v2607, 0.1
        %v2624 = vmul.f32 %v2608, 0.1
        %v2625 = vmul.f32 %v2609, 0.1
        %v2626 = vmul.f32 %v2610, 0.1
        %v2627 = vmul.f32 %v2611, 0.1
        %v2628 = vmul.f32 %v2612, 0.1
        %v2629 = vsel %vm2613, %v2605, %v2621
        %v2630 = vsel %vm2614, %v2606, %v2622
        %v2631 = vsel %vm2615, %v2607, %v2623
        %v2632 = vsel %vm2616, %v2608, %v2624
        %v2633 = vsel %vm2617, %v2609, %v2625
        %v2634 = vsel %vm2618, %v2610, %v2626
        %v2635 = vsel %vm2619, %v2611, %v2627
        %v2636 = vsel %vm2620, %v2612, %v2628
        %v2637 = vmul.f32 %v2629, %v2547
        %v2638 = vmul.f32 %v2630, %v2547
        %v2639 = vmul.f32 %v2631, %v2547
        %v2640 = vmul.f32 %v2632, %v2547
        %v2641 = vmul.f32 %v2633, %v2547
        %v2642 = vmul.f32 %v2634, %v2547
        %v2643 = vmul.f32 %v2635, %v2547
        %v2644 = vmul.f32 %v2636, %v2547
        %2645 = vst [vmem:[%s351] sm:$0xff] %v2637
        %2646 = vst [vmem:[%s351 + $0x8] sm:$0xff] %v2638
        %2647 = vst [vmem:[%s351 + $0x10] sm:$0xff] %v2639
        %2648 = vst [vmem:[%s351 + $0x18] sm:$0xff] %v2640
        %2649 = vst [vmem:[%s351 + $0x20] sm:$0xff] %v2641
        %2650 = vst [vmem:[%s351 + $0x28] sm:$0xff] %v2642
        %2651 = vst [vmem:[%s351 + $0x30] sm:$0xff] %v2643
        %2652 = vst [vmem:[%s351 + $0x38] sm:$0xff] %v2644
      $region48: #{hffm_forward.3} parent=39 // pred_fallthru
        _
      %p2653 = scmp.lt.s32.totalorder %s20, 1
      %s2654 = scalar_select %p2653, %s20, 1
      %s2655 = smul.addr %s2654, 8
      %s2656 = smul.addr %s2655, 8
      %s2657 = scalar_lea.vmem %s5, %s2656
      // Predicated region
      $region49: #{hffm_forward.3} parent=39 // pred_check
        %p2658 = pneg %p184
      $region50: #{hffm_forward.3} parent=39 // pred_check_branch
        %2660 = sbr.rel (%p2658) target = $region52
      $region51: #{hffm_forward.3} parent=39 // pred_region
        _
      $region52: #{hffm_forward.3} parent=39 // pred_fallthru
        _
    $region40: #{hffm_forward.3} parent=5 // pred_fallthru
      _
    %p2661 = scmp.le.s32.totalorder 2, %s11
    // Predicated region
    $region53: #{hffm_forward.3} parent=5 // pred_check
      %p2662 = pneg %p2661
    $region54: #{hffm_forward.3} parent=5 // pred_check_branch
      %2664 = sbr.rel (%p2662) target = $region56
    $region55: #{hffm_forward.3} parent=5 // pred_region
      %s2665 = ssub.s32 %s11, 2
      // Predicated region
      $region57: #{hffm_forward.3} parent=55 // pred_check
        %p2666 = pneg %p190
      $region58: #{hffm_forward.3} parent=55 // pred_check_branch
        %2668 = sbr.rel (%p2666) target = $region60
      $region59: #{hffm_forward.3} parent=55 // pred_region
        %p2669 = scmp.lt.s32.totalorder %s22, 1
        %s2670 = scalar_select %p2669, %s22, 1
        %s2671 = smul.addr %s2670, 8
        %s2672 = smul.addr %s2671, 8
        %s2673 = scalar_lea.vmem %s5, %s2672
      $region60: #{hffm_forward.3} parent=55 // pred_fallthru
        _
    $region56: #{hffm_forward.3} parent=5 // pred_fallthru
      _
  $region6: #{hffm_forward.3} parent=0 // loop_footer
    %s15 = sadd.s32 1, %s11
  $region7: #{hffm_forward.3} parent=0 // loop_footer_branch
    %10 = sbr.rel target = $region3
  $region8: #{hffm_forward.3} parent=0 // loop_exit
    _

// kernel: hffm_forward.4
$region0: #{hffm_forward.4}
  #allocation0 [shape = 'u32[]', space=smem, size = 0x4, offset = 0x4, fixed_abs, tag = 'smem constant byte address 0x4 - core index']
  #allocation1 [shape = 'u32[144,128]{1,0:T(1,128)}', space=vmem, size = 0x12000, scoped, tag = 'internal scratch']
  #allocation2 [shape = 'f32[8,1]{1,0:T(8,128)}', space=vmem, size = 0x1000, scoped, tag = 'scratch operand']
  #allocation3 [shape = 'f32[8,1]{1,0:T(8,128)}', space=vmem, size = 0x1000, scoped, tag = 'scratch operand']
  %s0 = inlined_call_operand.vmem [shape: f32[2,8,8,128], index: 0, kind: input, shape index: {}, may-alias: {0,1,2}]
  %s1 = inlined_call_operand.vmem [shape: f32[2,8,8,128], index: 1, kind: input, shape index: {}, may-alias: {0,1,2}]
  %s2 = inlined_call_operand.vmem [shape: f32[2,8,8,128], index: 2, kind: input, shape index: {}, may-alias: {0,1,2}]
  %s3 = inlined_call_operand.vmem [shape: f32[3,9,8,8], index: 3, kind: input, shape index: {}]
  %s4 = inlined_call_operand.vmem [shape: f32[1,128], index: 4, kind: input, shape index: {}]
  %s5 = inlined_call_operand.vmem [shape: f32[2,8,8,128], index: 5, kind: output, shape index: {}]
  %s6 = sld [smem:[#allocation0]]
  $region61: #{hffm_forward.4} parent=0
    _
  %s8 = ssub.s32 1, %s6
  %s9 = scalar_select 0, %s8, %s6
  loop: start=0, step=1, limit=18
  $region2: #{hffm_forward.4} parent=0 // loop_pre_header
    _
  $region3: #{hffm_forward.4} parent=0 // loop_header
    %s11 = sphi 0, %s15
    %p12 = scmp.ge.s32.totalorder %s11, 18
    %s18 = sphi 0, %s30
    %s19 = sphi 0, %s26
    %s20 = sphi 0, %s18
    %s21 = sphi 0, %s19
    %s22 = sphi 0, %s20
    %s23 = sphi 0, %s21
    %s41 = sphi 0, %s43
    %s44 = sphi 0, %s41
    %s45 = sphi 0, %s44
    %s61 = sphi 0, %s45
    %s69 = sphi 0, %s71
    %s72 = sphi 0, %s69
    %s73 = sphi 0, %s72
    %s89 = sphi 0, %s73
    %s103 = sphi 0, %s105
    %s106 = sphi 0, %s103
    %s107 = sphi 0, %s106
    %s123 = sphi 0, %s107
    %s127 = sphi 0, %s127
    %s129 = sphi 0, %s127
    %s130 = sphi 0, %s129
    %s144 = sphi 0, %s130
    %s148 = sphi 0, %s148
    %s150 = sphi 0, %s148
    %s151 = sphi 0, %s150
    %s165 = sphi 0, %s151
    %s171 = sphi 0, %s173
    %s174 = sphi 0, %s171
    %s175 = sphi 0, %s174
    %s191 = sphi 0, %s175
  $region4: #{hffm_forward.4} parent=0 // loop_header_branch
    %14 = sbr.rel (%p12) target = $region8
  $region5: #{hffm_forward.4} parent=0 // loop_body
    %s16 = ssub.s32 %s11, 1
    %s17 = ssub.s32 %s11, 2
    %s24 = sadd.s32 1, %s19
    %p25 = scmp.ge.s32.totalorder %s24, 8
    %s26 = scalar_select %p25, 0, %s24
    %s27 = sadd.s32 1, %s18
    %s28 = scalar_select %p25, %s27, %s18
    %p29 = scmp.ge.s32.totalorder %s28, 2
    %s30 = scalar_select %p29, 0, %s28
    %s31 = ssub.s32 %s19, 1
    %p32 = scmp.gt.s32.totalorder %s31, 0
    %s33 = scalar_select %p32, %s31, 0
    %s34 = ssub.s32 %s26, 1
    %p35 = scmp.gt.s32.totalorder %s34, 0
    %s36 = scalar_select %p35, %s34, 0
    %s37 = ssub.s32 %s18, %s30
    %s38 = ssub.s32 %s33, %s36
    %s39 = sor.u32 %s37, %s38
    %p40 = scmp.eq.s32.totalorder %s39, 0
    %s42 = sadd.s32 %s41, 1
    %s43 = scalar_select %p40, %s41, %s42
    %p46 = pneg %p40
    %p47 = scmp.eq.s32.totalorder %s11, 15
    %p48 = por %p46, %p47
    %p49 = scmp.ne.s32.totalorder %s41, %s44
    %p50 = scmp.eq.s32.totalorder %s11, 0
    %p51 = por %p49, %p50
    %p52 = scmp.ne.s32.totalorder %s41, %s44
    %p53 = scmp.eq.s32.totalorder %s16, 15
    %p54 = por %p52, %p53
    %p55 = scmp.ne.s32.totalorder %s44, %s45
    %p56 = scmp.eq.s32.totalorder %s16, 0
    %p57 = por %p55, %p56
    %p58 = scmp.ne.s32.totalorder %s44, %s45
    %p59 = scmp.eq.s32.totalorder %s17, 15
    %p60 = por %p58, %p59
    %p62 = scmp.ne.s32.totalorder %s45, %s61
    %p63 = scmp.eq.s32.totalorder %s17, 0
    %p64 = por %p62, %p63
    %s65 = ssub.s32 %s18, %s30
    %s66 = ssub.s32 %s19, %s26
    %s67 = sor.u32 %s65, %s66
    %p68 = scmp.eq.s32.totalorder %s67, 0
    %s70 = sadd.s32 %s69, 1
    %s71 = scalar_select %p68, %s69, %s70
    %p74 = pneg %p68
    %p75 = scmp.eq.s32.totalorder %s11, 15
    %p76 = por %p74, %p75
    %p77 = scmp.ne.s32.totalorder %s69, %s72
    %p78 = scmp.eq.s32.totalorder %s11, 0
    %p79 = por %p77, %p78
    %p80 = scmp.ne.s32.totalorder %s69, %s72
    %p81 = scmp.eq.s32.totalorder %s16, 15
    %p82 = por %p80, %p81
    %p83 = scmp.ne.s32.totalorder %s72, %s73
    %p84 = scmp.eq.s32.totalorder %s16, 0
    %p85 = por %p83, %p84
    %p86 = scmp.ne.s32.totalorder %s72, %s73
    %p87 = scmp.eq.s32.totalorder %s17, 15
    %p88 = por %p86, %p87
    %p90 = scmp.ne.s32.totalorder %s73, %s89
    %p91 = scmp.eq.s32.totalorder %s17, 0
    %p92 = por %p90, %p91
    %s93 = sadd.s32 %s19, 1
    %p94 = scmp.lt.s32.totalorder %s93, 7
    %s95 = scalar_select %p94, %s93, 7
    %s96 = sadd.s32 %s26, 1
    %p97 = scmp.lt.s32.totalorder %s96, 7
    %s98 = scalar_select %p97, %s96, 7
    %s99 = ssub.s32 %s18, %s30
    %s100 = ssub.s32 %s95, %s98
    %s101 = sor.u32 %s99, %s100
    %p102 = scmp.eq.s32.totalorder %s101, 0
    %s104 = sadd.s32 %s103, 1
    %s105 = scalar_select %p102, %s103, %s104
    %p108 = pneg %p102
    %p109 = scmp.eq.s32.totalorder %s11, 15
    %p110 = por %p108, %p109
    %p111 = scmp.ne.s32.totalorder %s103, %s106
    %p112 = scmp.eq.s32.totalorder %s11, 0
    %p113 = por %p111, %p112
    %p114 = scmp.ne.s32.totalorder %s103, %s106
    %p115 = scmp.eq.s32.totalorder %s16, 15
    %p116 = por %p114, %p115
    %p117 = scmp.ne.s32.totalorder %s106, %s107
    %p118 = scmp.eq.s32.totalorder %s16, 0
    %p119 = por %p117, %p118
    %p120 = scmp.ne.s32.totalorder %s106, %s107
    %p121 = scmp.eq.s32.totalorder %s17, 15
    %p122 = por %p120, %p121
    %p124 = scmp.ne.s32.totalorder %s107, %s123
    %p125 = scmp.eq.s32.totalorder %s17, 0
    %p126 = por %p124, %p125
    %s128 = sadd.s32 %s127, 1
    %p131 = scmp.eq.s32.totalorder %s11, 15
    %p132 = scmp.ne.s32.totalorder %s127, %s129
    %p133 = scmp.eq.s32.totalorder %s11, 0
    %p134 = por %p132, %p133
    %p135 = scmp.ne.s32.totalorder %s127, %s129
    %p136 = scmp.eq.s32.totalorder %s16, 15
    %p137 = por %p135, %p136
    %p138 = scmp.ne.s32.totalorder %s129, %s130
    %p139 = scmp.eq.s32.totalorder %s16, 0
    %p140 = por %p138, %p139
    %p141 = scmp.ne.s32.totalorder %s129, %s130
    %p142 = scmp.eq.s32.totalorder %s17, 15
    %p143 = por %p141, %p142
    %p145 = scmp.ne.s32.totalorder %s130, %s144
    %p146 = scmp.eq.s32.totalorder %s17, 0
    %p147 = por %p145, %p146
    %s149 = sadd.s32 %s148, 1
    %p152 = scmp.eq.s32.totalorder %s11, 15
    %p153 = scmp.ne.s32.totalorder %s148, %s150
    %p154 = scmp.eq.s32.totalorder %s11, 0
    %p155 = por %p153, %p154
    %p156 = scmp.ne.s32.totalorder %s148, %s150
    %p157 = scmp.eq.s32.totalorder %s16, 15
    %p158 = por %p156, %p157
    %p159 = scmp.ne.s32.totalorder %s150, %s151
    %p160 = scmp.eq.s32.totalorder %s16, 0
    %p161 = por %p159, %p160
    %p162 = scmp.ne.s32.totalorder %s150, %s151
    %p163 = scmp.eq.s32.totalorder %s17, 15
    %p164 = por %p162, %p163
    %p166 = scmp.ne.s32.totalorder %s151, %s165
    %p167 = scmp.eq.s32.totalorder %s17, 0
    %p168 = por %p166, %p167
    %s169 = ssub.s32 %s18, %s30
    %p170 = scmp.eq.s32.totalorder %s169, 0
    %s172 = sadd.s32 %s171, 1
    %s173 = scalar_select %p170, %s171, %s172
    %p176 = pneg %p170
    %p177 = scmp.eq.s32.totalorder %s11, 15
    %p178 = por %p176, %p177
    %p179 = scmp.ne.s32.totalorder %s171, %s174
    %p180 = scmp.eq.s32.totalorder %s11, 0
    %p181 = por %p179, %p180
    %p182 = scmp.ne.s32.totalorder %s171, %s174
    %p183 = scmp.eq.s32.totalorder %s16, 15
    %p184 = por %p182, %p183
    %p185 = scmp.ne.s32.totalorder %s174, %s175
    %p186 = scmp.eq.s32.totalorder %s16, 0
    %p187 = por %p185, %p186
    %p188 = scmp.ne.s32.totalorder %s174, %s175
    %p189 = scmp.eq.s32.totalorder %s17, 15
    %p190 = por %p188, %p189
    %p192 = scmp.ne.s32.totalorder %s175, %s191
    %p193 = scmp.eq.s32.totalorder %s17, 0
    %p194 = por %p192, %p193
    %p195 = scmp.le.s32.totalorder 1, %s11
    %p196 = scmp.lt.s32.totalorder %s11, 17
    %p197 = pnand %p195, %p196
    %p198 = pneg %p197
    // Predicated region
    $region9: #{hffm_forward.4} parent=5 // pred_check
      _
    $region10: #{hffm_forward.4} parent=5 // pred_check_branch
      %200 = sbr.rel (%p197) target = $region12
    $region11: #{hffm_forward.4} parent=5 // pred_region
      %s201 = ssub.s32 %s11, 1
      // Predicated region
      $region13: #{hffm_forward.4} parent=11 // pred_check
        %p202 = pneg %p140
      $region14: #{hffm_forward.4} parent=11 // pred_check_branch
        %204 = sbr.rel (%p202) target = $region16
      $region15: #{hffm_forward.4} parent=11 // pred_region
        _
      $region16: #{hffm_forward.4} parent=11 // pred_fallthru
        _
      // Predicated region
      $region17: #{hffm_forward.4} parent=11 // pred_check
        %p205 = pneg %p161
      $region18: #{hffm_forward.4} parent=11 // pred_check_branch
        %207 = sbr.rel (%p205) target = $region20
      $region19: #{hffm_forward.4} parent=11 // pred_region
        _
      $region20: #{hffm_forward.4} parent=11 // pred_fallthru
        _
    $region12: #{hffm_forward.4} parent=5 // pred_fallthru
      _
    %p208 = scmp.lt.s32.totalorder %s11, 16
    // Predicated region
    $region21: #{hffm_forward.4} parent=5 // pred_check
      %p209 = pneg %p208
    $region22: #{hffm_forward.4} parent=5 // pred_check_branch
      %211 = sbr.rel (%p209) target = $region24
    $region23: #{hffm_forward.4} parent=5 // pred_region
      // Predicated region
      $region25: #{hffm_forward.4} parent=23 // pred_check
        %p212 = pneg %p51
      $region26: #{hffm_forward.4} parent=23 // pred_check_branch
        %214 = sbr.rel (%p212) target = $region28
      $region27: #{hffm_forward.4} parent=23 // pred_region
        %s215 = ssub.s32 %s19, 1
        %p216 = scmp.gt.s32.totalorder %s215, 0
        %s217 = scalar_select %p216, %s215, 0
        %p218 = scmp.lt.s32.totalorder %s18, 1
        %s219 = scalar_select %p218, %s18, 1
        %p220 = scmp.lt.s32.totalorder %s217, 7
        %s221 = scalar_select %p220, %s217, 7
        %s222 = smul.addr %s219, 8
        %s223 = sadd.s32 %s221, %s222
        %s224 = smul.addr %s223, 8
        %s225 = scalar_lea.vmem %s0, %s224
        %s226 = ssub.s32 %s19, 1
        %p227 = scmp.gt.s32.totalorder %s226, 0
        %s228 = scalar_select %p227, %s226, 0
      $region28: #{hffm_forward.4} parent=23 // pred_fallthru
        _
      // Predicated region
      $region29: #{hffm_forward.4} parent=23 // pred_check
        %p229 = pneg %p79
      $region30: #{hffm_forward.4} parent=23 // pred_check_branch
        %231 = sbr.rel (%p229) target = $region32
      $region31: #{hffm_forward.4} parent=23 // pred_region
        %p232 = scmp.lt.s32.totalorder %s18, 1
        %s233 = scalar_select %p232, %s18, 1
        %p234 = scmp.lt.s32.totalorder %s19, 7
        %s235 = scalar_select %p234, %s19, 7
        %s236 = smul.addr %s233, 8
        %s237 = sadd.s32 %s235, %s236
        %s238 = smul.addr %s237, 8
        %s239 = scalar_lea.vmem %s1, %s238
      $region32: #{hffm_forward.4} parent=23 // pred_fallthru
        _
      // Predicated region
      $region33: #{hffm_forward.4} parent=23 // pred_check
        %p240 = pneg %p113
      $region34: #{hffm_forward.4} parent=23 // pred_check_branch
        %242 = sbr.rel (%p240) target = $region36
      $region35: #{hffm_forward.4} parent=23 // pred_region
        %s243 = sadd.s32 %s19, 1
        %p244 = scmp.lt.s32.totalorder %s243, 7
        %s245 = scalar_select %p244, %s243, 7
        %p246 = scmp.lt.s32.totalorder %s18, 1
        %s247 = scalar_select %p246, %s18, 1
        %p248 = scmp.lt.s32.totalorder %s245, 7
        %s249 = scalar_select %p248, %s245, 7
        %s250 = smul.addr %s247, 8
        %s251 = sadd.s32 %s249, %s250
        %s252 = smul.addr %s251, 8
        %s253 = scalar_lea.vmem %s2, %s252
        %s254 = sadd.s32 %s19, 1
        %p255 = scmp.lt.s32.totalorder %s254, 7
        %s256 = scalar_select %p255, %s254, 7
      $region36: #{hffm_forward.4} parent=23 // pred_fallthru
        _
    $region24: #{hffm_forward.4} parent=5 // pred_fallthru
      _
    %p257 = scmp.le.s32.totalorder 1, %s11
    %p258 = scmp.lt.s32.totalorder %s11, 17
    %p259 = pnand %p257, %p258
    %p260 = pneg %p259
    // Predicated region
    $region37: #{hffm_forward.4} parent=5 // pred_check
      _
    $region38: #{hffm_forward.4} parent=5 // pred_check_branch
      %262 = sbr.rel (%p259) target = $region40
    $region39: #{hffm_forward.4} parent=5 // pred_region
      %s263 = ssub.s32 %s11, 1
      %s264 = ssub.s32 %s21, 1
      %p265 = scmp.gt.s32.totalorder %s264, 0
      %s266 = scalar_select %p265, %s264, 0
      %p267 = scmp.lt.s32.totalorder %s20, 1
      %s268 = scalar_select %p267, %s20, 1
      %p269 = scmp.lt.s32.totalorder %s266, 7
      %s270 = scalar_select %p269, %s266, 7
      %s271 = smul.addr %s268, 8
      %s272 = sadd.s32 %s270, %s271
      %s273 = smul.addr %s272, 8
      %s274 = scalar_lea.vmem %s0, %s273
      %p275 = pneg %p57
      %p276 = pneg %p54
      %p277 = scmp.lt.s32.totalorder %s20, 1
      %s278 = scalar_select %p277, %s20, 1
      %p279 = scmp.lt.s32.totalorder %s21, 7
      %s280 = scalar_select %p279, %s21, 7
      %s281 = smul.addr %s278, 8
      %s282 = sadd.s32 %s280, %s281
      %s283 = smul.addr %s282, 8
      %s284 = scalar_lea.vmem %s1, %s283
      %p285 = pneg %p85
      %p286 = pneg %p82
      %s287 = sadd.s32 %s21, 1
      %p288 = scmp.lt.s32.totalorder %s287, 7
      %s289 = scalar_select %p288, %s287, 7
      %p290 = scmp.lt.s32.totalorder %s20, 1
      %s291 = scalar_select %p290, %s20, 1
      %p292 = scmp.lt.s32.totalorder %s289, 7
      %s293 = scalar_select %p292, %s289, 7
      %s294 = smul.addr %s291, 8
      %s295 = sadd.s32 %s293, %s294
      %s296 = smul.addr %s295, 8
      %s297 = scalar_lea.vmem %s2, %s296
      %p298 = pneg %p119
      %p299 = pneg %p116
      %p300 = pneg %p140
      %p301 = pneg %p137
      %p302 = pneg %p161
      %p303 = pneg %p158
      %p304 = pneg %p187
      %p305 = pneg %p184
      %p306 = scmp.lt.s32.totalorder %s20, 1
      %s307 = scalar_select %p306, %s20, 1
      %s308 = smul.addr %s307, 8
      %s309 = smul.addr %s308, 8
      %s310 = scalar_lea.vmem %s5, %s309
      %s311 = ssub.s32 %s21, 1
      %p312 = scmp.gt.s32.totalorder %s311, 0
      %s313 = scalar_select %p312, %s311, 0
      %p314 = scmp.lt.s32.totalorder %s20, 1
      %s315 = scalar_select %p314, %s20, 1
      %p316 = scmp.lt.s32.totalorder %s313, 7
      %s317 = scalar_select %p316, %s313, 7
      %s318 = smul.addr %s315, 8
      %s319 = sadd.s32 %s317, %s318
      %s320 = smul.addr %s319, 8
      %s321 = scalar_lea.vmem %s0, %s320
      %s322 = ssub.s32 %s21, 1
      %p323 = scmp.gt.s32.totalorder %s322, 0
      %s324 = scalar_select %p323, %s322, 0
      %p325 = scmp.lt.s32.totalorder %s20, 1
      %s326 = scalar_select %p325, %s20, 1
      %p327 = scmp.lt.s32.totalorder %s21, 7
      %s328 = scalar_select %p327, %s21, 7
      %s329 = smul.addr %s326, 8
      %s330 = sadd.s32 %s328, %s329
      %s331 = smul.addr %s330, 8
      %s332 = scalar_lea.vmem %s1, %s331
      %s333 = sadd.s32 %s21, 1
      %p334 = scmp.lt.s32.totalorder %s333, 7
      %s335 = scalar_select %p334, %s333, 7
      %p336 = scmp.lt.s32.totalorder %s20, 1
      %s337 = scalar_select %p336, %s20, 1
      %p338 = scmp.lt.s32.totalorder %s335, 7
      %s339 = scalar_select %p338, %s335, 7
      %s340 = smul.addr %s337, 8
      %s341 = sadd.s32 %s339, %s340
      %s342 = smul.addr %s341, 8
      %s343 = scalar_lea.vmem %s2, %s342
      %s344 = sadd.s32 %s21, 1
      %p345 = scmp.lt.s32.totalorder %s344, 7
      %s346 = scalar_select %p345, %s344, 7
      %p347 = scmp.lt.s32.totalorder %s20, 1
      %s348 = scalar_select %p347, %s20, 1
      %s349 = smul.addr %s348, 8
      %s350 = smul.addr %s349, 8
      %s351 = scalar_lea.vmem %s5, %s350
      %p352 = scmp.eq.s32.totalorder %s21, 0
      // Predicated region
      $region41: #{hffm_forward.4} parent=39 // pred_check
        %p353 = pneg %p352
      $region42: #{hffm_forward.4} parent=39 // pred_check_branch
        %355 = sbr.rel (%p353) target = $region44
      $region43: #{hffm_forward.4} parent=39 // pred_region
        %vm356 = vcmask 7168
        %357 = vst.msk [vmem:[#allocation2] sm:$0xff] %vm356, 0.0
        %358 = vst.msk [vmem:[#allocation3] sm:$0xff] %vm356, 0.0
      $region44: #{hffm_forward.4} parent=39 // pred_fallthru
        _
      %v359 = vld [vmem:[%s321] sm:$0xff]
      %v360 = vld [vmem:[%s332] sm:$0xff]
      %v361 = vld [vmem:[%s343] sm:$0xff]
      %p362 = scmp.gt.s32.totalorder %s21, 0
      %s363 = scalar_select %p362, 1.0, 0.0
      %p364 = scmp.lt.s32.totalorder %s21, 7
      %s365 = scalar_select %p364, 1.0, 0.0
      %v366 = vld [vmem:[%s3] sm:$0xff]
      %v367 = vld [vmem:[%s3 + $0x8] sm:$0xff]
      %v368 = vld [vmem:[%s3 + $0x10] sm:$0xff]
      %v369 = vld [vmem:[%s3 + $0x18] sm:$0xff]
      %v370 = vld [vmem:[%s3 + $0x20] sm:$0xff]
      %v371 = vld [vmem:[%s3 + $0x28] sm:$0xff]
      %v372 = vld [vmem:[%s3 + $0x30] sm:$0xff]
      %v373 = vld [vmem:[%s3 + $0x38] sm:$0xff]
      %v374 = vld [vmem:[%s3 + $0x40] sm:$0xff]
      %v375 = vstv %s363
      %v376 = vmul.f32 %v366, %v375
      %v377 = vmul.f32 %v367, %v375
      %v378 = vmul.f32 %v368, %v375
      %v379 = vmul.f32 %v369, %v375
      %v380 = vmul.f32 %v370, %v375
      %v381 = vmul.f32 %v371, %v375
      %v382 = vmul.f32 %v372, %v375
      %v383 = vmul.f32 %v373, %v375
      %v384 = vmul.f32 %v374, %v375
      %385 = vrot.lane.b32.xlu0 %v359, 11
      %v386 = vpop.permute.xlu0 %385
      %387 = vrot.lane.b32.xlu0 %v359, 10
      %v388 = vpop.permute.xlu0 %387
      %vm389 = vcmask 64512
      %v391 = vsel %vm389, %v377, 0
      %393 = vmatprep.subr.mxu0 0.0
      %394 = vmatpush1.msra.mxu0 0.0
      %395 = vmatprep.subr.mxu0 0.0
      %396 = vmatpush1.msra.mxu0 0.0
      %397 = vmatprep.subr.mxu0 0.0
      %398 = vmatpush1.msra.mxu0 0.0
      %399 = vmatprep.subr.mxu0 0.0
      %400 = vmatpush1.msra.mxu0 0.0
      %401 = vmatprep.subr.mxu0 0.0
      %402 = vmatpush1.msra.mxu0 0.0
      %403 = vmatprep.subr.mxu0 0.0
      %404 = vmatpush1.msra.mxu0 0.0
      %405 = vmatprep.subr.mxu0 0.0
      %406 = vmatpush1.msra.mxu0 0.0
      %407 = vmatprep.subr.mxu0 0.0
      %408 = vmatpush1.msra.mxu0 0.0
      %409 = vmatprep.subr.mxu0 0.0
      %410 = vmatpush1.msra.mxu0 0.0
      %411 = vmatprep.subr.mxu0 0.0
      %412 = vmatpush1.msra.mxu0 0.0
      %413 = vmatprep.subr.mxu0 0.0
      %414 = vmatpush1.msra.mxu0 0.0
      %415 = vmatprep.subr.mxu0 0.0
      %416 = vmatpush1.msra.mxu0 0.0
      %417 = vmatprep.subr.mxu0 0.0
      %418 = vmatpush1.msra.mxu0 0.0
      %419 = vmatprep.subr.mxu0 0.0
      %420 = vmatpush1.msra.mxu0 0.0
      %421 = vmatprep.subr.mxu0 0.0
      %422 = vmatpush1.msra.mxu0 0.0
      %423 = vmatprep.subr.mxu0 0.0
      %424 = vmatpush1.msra.mxu0 %v388
      %425 = vmatprep.subr.mxu0 0.0
      %426 = vmatpush2.msra.mxu0 0.0
      %427 = vmatprep.subr.mxu0 0.0
      %428 = vmatpush2.msra.mxu0 0.0
      %429 = vmatprep.subr.mxu0 0.0
      %430 = vmatpush2.msra.mxu0 0.0
      %431 = vmatprep.subr.mxu0 0.0
      %432 = vmatpush2.msra.mxu0 0.0
      %433 = vmatprep.subr.mxu0 0.0
      %434 = vmatpush2.msra.mxu0 0.0
      %435 = vmatprep.subr.mxu0 0.0
      %436 = vmatpush2.msra.mxu0 0.0
      %437 = vmatprep.subr.mxu0 0.0
      %438 = vmatpush2.msra.mxu0 0.0
      %439 = vmatprep.subr.mxu0 0.0
      %440 = vmatpush2.msra.mxu0 0.0
      %441 = vmatprep.subr.mxu0 0.0
      %442 = vmatpush2.msra.mxu0 0.0
      %443 = vmatprep.subr.mxu0 0.0
      %444 = vmatpush2.msra.mxu0 0.0
      %445 = vmatprep.subr.mxu0 0.0
      %446 = vmatpush2.msra.mxu0 0.0
      %447 = vmatprep.subr.mxu0 0.0
      %448 = vmatpush2.msra.mxu0 0.0
      %449 = vmatprep.subr.mxu0 0.0
      %450 = vmatpush2.msra.mxu0 0.0
      %451 = vmatprep.subr.mxu0 0.0
      %452 = vmatpush2.msra.mxu0 0.0
      %453 = vmatprep.subr.mxu0 0.0
      %454 = vmatpush2.msra.mxu0 0.0
      %455 = vmatprep.subr.mxu0 0.0
      %456 = vmatpush2.msra.mxu0 0.0
      %457 = vmatprep.mubr.f32.mxu0 0.0
      %458 = vmatmul.mubr.f32.gmra.mxu0 %v391
      %v459 = vpop.f32.mrf.mxu0
      %v460 = vadd.f32 0.0, %v459
      %v461 = vpop.f32.mrf.mxu0
      %462 = vdwg.mxu0
      %v464 = vsel %vm389, %v376, 0
      %466 = vmatprep.subr.mxu0 0.0
      %467 = vmatpush1.msra.mxu0 0.0
      %468 = vmatprep.subr.mxu0 0.0
      %469 = vmatpush1.msra.mxu0 0.0
      %470 = vmatprep.subr.mxu0 0.0
      %471 = vmatpush1.msra.mxu0 0.0
      %472 = vmatprep.subr.mxu0 0.0
      %473 = vmatpush1.msra.mxu0 0.0
      %474 = vmatprep.subr.mxu0 0.0
      %475 = vmatpush1.msra.mxu0 0.0
      %476 = vmatprep.subr.mxu0 0.0
      %477 = vmatpush1.msra.mxu0 0.0
      %478 = vmatprep.subr.mxu0 0.0
      %479 = vmatpush1.msra.mxu0 0.0
      %480 = vmatprep.subr.mxu0 0.0
      %481 = vmatpush1.msra.mxu0 0.0
      %482 = vmatprep.subr.mxu0 0.0
      %483 = vmatpush1.msra.mxu0 0.0
      %484 = vmatprep.subr.mxu0 0.0
      %485 = vmatpush1.msra.mxu0 0.0
      %486 = vmatprep.subr.mxu0 0.0
      %487 = vmatpush1.msra.mxu0 0.0
      %488 = vmatprep.subr.mxu0 0.0
      %489 = vmatpush1.msra.mxu0 0.0
      %490 = vmatprep.subr.mxu0 0.0
      %491 = vmatpush1.msra.mxu0 0.0
      %492 = vmatprep.subr.mxu0 0.0
      %493 = vmatpush1.msra.mxu0 0.0
      %494 = vmatprep.subr.mxu0 0.0
      %495 = vmatpush1.msra.mxu0 0.0
      %496 = vmatprep.subr.mxu0 0.0
      %497 = vmatpush1.msra.mxu0 %v386
      %498 = vmatprep.subr.mxu0 0.0
      %499 = vmatpush2.msra.mxu0 0.0
      %500 = vmatprep.subr.mxu0 0.0
      %501 = vmatpush2.msra.mxu0 0.0
      %502 = vmatprep.subr.mxu0 0.0
      %503 = vmatpush2.msra.mxu0 0.0
      %504 = vmatprep.subr.mxu0 0.0
      %505 = vmatpush2.msra.mxu0 0.0
      %506 = vmatprep.subr.mxu0 0.0
      %507 = vmatpush2.msra.mxu0 0.0
      %508 = vmatprep.subr.mxu0 0.0
      %509 = vmatpush2.msra.mxu0 0.0
      %510 = vmatprep.subr.mxu0 0.0
      %511 = vmatpush2.msra.mxu0 0.0
      %512 = vmatprep.subr.mxu0 0.0
      %513 = vmatpush2.msra.mxu0 0.0
      %514 = vmatprep.subr.mxu0 0.0
      %515 = vmatpush2.msra.mxu0 0.0
      %516 = vmatprep.subr.mxu0 0.0
      %517 = vmatpush2.msra.mxu0 0.0
      %518 = vmatprep.subr.mxu0 0.0
      %519 = vmatpush2.msra.mxu0 0.0
      %520 = vmatprep.subr.mxu0 0.0
      %521 = vmatpush2.msra.mxu0 0.0
      %522 = vmatprep.subr.mxu0 0.0
      %523 = vmatpush2.msra.mxu0 0.0
      %524 = vmatprep.subr.mxu0 0.0
      %525 = vmatpush2.msra.mxu0 0.0
      %526 = vmatprep.subr.mxu0 0.0
      %527 = vmatpush2.msra.mxu0 0.0
      %528 = vmatprep.subr.mxu0 0.0
      %529 = vmatpush2.msra.mxu0 0.0
      %530 = vmatprep.mubr.f32.mxu0 0.0
      %531 = vmatmul.mubr.f32.gmra.mxu0 %v464
      %v532 = vpop.f32.mrf.mxu0
      %v533 = vadd.f32 %v460, %v532
      %v534 = vpop.f32.mrf.mxu0
      %535 = vdwg.mxu0
      %536 = vrot.lane.b32.xlu0 %v359, 9
      %v537 = vpop.permute.xlu0 %536
      %v539 = vsel %vm389, %v378, 0
      %541 = vmatprep.subr.mxu0 0.0
      %542 = vmatpush1.msra.mxu0 0.0
      %543 = vmatprep.subr.mxu0 0.0
      %544 = vmatpush1.msra.mxu0 0.0
      %545 = vmatprep.subr.mxu0 0.0
      %546 = vmatpush1.msra.mxu0 0.0
      %547 = vmatprep.subr.mxu0 0.0
      %548 = vmatpush1.msra.mxu0 0.0
      %549 = vmatprep.subr.mxu0 0.0
      %550 = vmatpush1.msra.mxu0 0.0
      %551 = vmatprep.subr.mxu0 0.0
      %552 = vmatpush1.msra.mxu0 0.0
      %553 = vmatprep.subr.mxu0 0.0
      %554 = vmatpush1.msra.mxu0 0.0
      %555 = vmatprep.subr.mxu0 0.0
      %556 = vmatpush1.msra.mxu0 0.0
      %557 = vmatprep.subr.mxu0 0.0
      %558 = vmatpush1.msra.mxu0 0.0
      %559 = vmatprep.subr.mxu0 0.0
      %560 = vmatpush1.msra.mxu0 0.0
      %561 = vmatprep.subr.mxu0 0.0
      %562 = vmatpush1.msra.mxu0 0.0
      %563 = vmatprep.subr.mxu0 0.0
      %564 = vmatpush1.msra.mxu0 0.0
      %565 = vmatprep.subr.mxu0 0.0
      %566 = vmatpush1.msra.mxu0 0.0
      %567 = vmatprep.subr.mxu0 0.0
      %568 = vmatpush1.msra.mxu0 0.0
      %569 = vmatprep.subr.mxu0 0.0
      %570 = vmatpush1.msra.mxu0 0.0
      %571 = vmatprep.subr.mxu0 0.0
      %572 = vmatpush1.msra.mxu0 %v537
      %573 = vmatprep.subr.mxu0 0.0
      %574 = vmatpush2.msra.mxu0 0.0
      %575 = vmatprep.subr.mxu0 0.0
      %576 = vmatpush2.msra.mxu0 0.0
      %577 = vmatprep.subr.mxu0 0.0
      %578 = vmatpush2.msra.mxu0 0.0
      %579 = vmatprep.subr.mxu0 0.0
      %580 = vmatpush2.msra.mxu0 0.0
      %581 = vmatprep.subr.mxu0 0.0
      %582 = vmatpush2.msra.mxu0 0.0
      %583 = vmatprep.subr.mxu0 0.0
      %584 = vmatpush2.msra.mxu0 0.0
      %585 = vmatprep.subr.mxu0 0.0
      %586 = vmatpush2.msra.mxu0 0.0
      %587 = vmatprep.subr.mxu0 0.0
      %588 = vmatpush2.msra.mxu0 0.0
      %589 = vmatprep.subr.mxu0 0.0
      %590 = vmatpush2.msra.mxu0 0.0
      %591 = vmatprep.subr.mxu0 0.0
      %592 = vmatpush2.msra.mxu0 0.0
      %593 = vmatprep.subr.mxu0 0.0
      %594 = vmatpush2.msra.mxu0 0.0
      %595 = vmatprep.subr.mxu0 0.0
      %596 = vmatpush2.msra.mxu0 0.0
      %597 = vmatprep.subr.mxu0 0.0
      %598 = vmatpush2.msra.mxu0 0.0
      %599 = vmatprep.subr.mxu0 0.0
      %600 = vmatpush2.msra.mxu0 0.0
      %601 = vmatprep.subr.mxu0 0.0
      %602 = vmatpush2.msra.mxu0 0.0
      %603 = vmatprep.subr.mxu0 0.0
      %604 = vmatpush2.msra.mxu0 0.0
      %605 = vmatprep.mubr.f32.mxu0 0.0
      %606 = vmatmul.mubr.f32.gmra.mxu0 %v539
      %v607 = vpop.f32.mrf.mxu0
      %v608 = vadd.f32 0.0, %v607
      %v609 = vpop.f32.mrf.mxu0
      %610 = vdwg.mxu0
      %v611 = vadd.f32 %v533, %v608
      %612 = vrot.lane.b32.xlu0 %v359, 1
      %v613 = vpop.permute.xlu0 %612
      %v615 = vsel %vm389, %v379, 0
      %617 = vmatprep.subr.mxu0 0.0
      %618 = vmatpush1.msra.mxu0 0.0
      %619 = vmatprep.subr.mxu0 0.0
      %620 = vmatpush1.msra.mxu0 0.0
      %621 = vmatprep.subr.mxu0 0.0
      %622 = vmatpush1.msra.mxu0 0.0
      %623 = vmatprep.subr.mxu0 0.0
      %624 = vmatpush1.msra.mxu0 0.0
      %625 = vmatprep.subr.mxu0 0.0
      %626 = vmatpush1.msra.mxu0 0.0
      %627 = vmatprep.subr.mxu0 0.0
      %628 = vmatpush1.msra.mxu0 0.0
      %629 = vmatprep.subr.mxu0 0.0
      %630 = vmatpush1.msra.mxu0 0.0
      %631 = vmatprep.subr.mxu0 0.0
      %632 = vmatpush1.msra.mxu0 0.0
      %633 = vmatprep.subr.mxu0 0.0
      %634 = vmatpush1.msra.mxu0 0.0
      %635 = vmatprep.subr.mxu0 0.0
      %636 = vmatpush1.msra.mxu0 0.0
      %637 = vmatprep.subr.mxu0 0.0
      %638 = vmatpush1.msra.mxu0 0.0
      %639 = vmatprep.subr.mxu0 0.0
      %640 = vmatpush1.msra.mxu0 0.0
      %641 = vmatprep.subr.mxu0 0.0
      %642 = vmatpush1.msra.mxu0 0.0
      %643 = vmatprep.subr.mxu0 0.0
      %644 = vmatpush1.msra.mxu0 0.0
      %645 = vmatprep.subr.mxu0 0.0
      %646 = vmatpush1.msra.mxu0 0.0
      %647 = vmatprep.subr.mxu0 0.0
      %648 = vmatpush1.msra.mxu0 %v613
      %649 = vmatprep.subr.mxu0 0.0
      %650 = vmatpush2.msra.mxu0 0.0
      %651 = vmatprep.subr.mxu0 0.0
      %652 = vmatpush2.msra.mxu0 0.0
      %653 = vmatprep.subr.mxu0 0.0
      %654 = vmatpush2.msra.mxu0 0.0
      %655 = vmatprep.subr.mxu0 0.0
      %656 = vmatpush2.msra.mxu0 0.0
      %657 = vmatprep.subr.mxu0 0.0
      %658 = vmatpush2.msra.mxu0 0.0
      %659 = vmatprep.subr.mxu0 0.0
      %660 = vmatpush2.msra.mxu0 0.0
      %661 = vmatprep.subr.mxu0 0.0
      %662 = vmatpush2.msra.mxu0 0.0
      %663 = vmatprep.subr.mxu0 0.0
      %664 = vmatpush2.msra.mxu0 0.0
      %665 = vmatprep.subr.mxu0 0.0
      %666 = vmatpush2.msra.mxu0 0.0
      %667 = vmatprep.subr.mxu0 0.0
      %668 = vmatpush2.msra.mxu0 0.0
      %669 = vmatprep.subr.mxu0 0.0
      %670 = vmatpush2.msra.mxu0 0.0
      %671 = vmatprep.subr.mxu0 0.0
      %672 = vmatpush2.msra.mxu0 0.0
      %673 = vmatprep.subr.mxu0 0.0
      %674 = vmatpush2.msra.mxu0 0.0
      %675 = vmatprep.subr.mxu0 0.0
      %676 = vmatpush2.msra.mxu0 0.0
      %677 = vmatprep.subr.mxu0 0.0
      %678 = vmatpush2.msra.mxu0 0.0
      %679 = vmatprep.subr.mxu0 0.0
      %680 = vmatpush2.msra.mxu0 0.0
      %681 = vmatprep.mubr.f32.mxu0 0.0
      %682 = vmatmul.mubr.f32.gmra.mxu0 %v615
      %v683 = vpop.f32.mrf.mxu0
      %v684 = vadd.f32 0.0, %v683
      %v685 = vpop.f32.mrf.mxu0
      %686 = vdwg.mxu0
      %v687 = vadd.f32 %v611, %v684
      %v689 = vsel %vm389, %v380, 0
      %691 = vmatprep.subr.mxu0 0.0
      %692 = vmatpush1.msra.mxu0 0.0
      %693 = vmatprep.subr.mxu0 0.0
      %694 = vmatpush1.msra.mxu0 0.0
      %695 = vmatprep.subr.mxu0 0.0
      %696 = vmatpush1.msra.mxu0 0.0
      %697 = vmatprep.subr.mxu0 0.0
      %698 = vmatpush1.msra.mxu0 0.0
      %699 = vmatprep.subr.mxu0 0.0
      %700 = vmatpush1.msra.mxu0 0.0
      %701 = vmatprep.subr.mxu0 0.0
      %702 = vmatpush1.msra.mxu0 0.0
      %703 = vmatprep.subr.mxu0 0.0
      %704 = vmatpush1.msra.mxu0 0.0
      %705 = vmatprep.subr.mxu0 0.0
      %706 = vmatpush1.msra.mxu0 0.0
      %707 = vmatprep.subr.mxu0 0.0
      %708 = vmatpush1.msra.mxu0 0.0
      %709 = vmatprep.subr.mxu0 0.0
      %710 = vmatpush1.msra.mxu0 0.0
      %711 = vmatprep.subr.mxu0 0.0
      %712 = vmatpush1.msra.mxu0 0.0
      %713 = vmatprep.subr.mxu0 0.0
      %714 = vmatpush1.msra.mxu0 0.0
      %715 = vmatprep.subr.mxu0 0.0
      %716 = vmatpush1.msra.mxu0 0.0
      %717 = vmatprep.subr.mxu0 0.0
      %718 = vmatpush1.msra.mxu0 0.0
      %719 = vmatprep.subr.mxu0 0.0
      %720 = vmatpush1.msra.mxu0 0.0
      %721 = vmatprep.subr.mxu0 0.0
      %722 = vmatpush1.msra.mxu0 %v359
      %723 = vmatprep.subr.mxu0 0.0
      %724 = vmatpush2.msra.mxu0 0.0
      %725 = vmatprep.subr.mxu0 0.0
      %726 = vmatpush2.msra.mxu0 0.0
      %727 = vmatprep.subr.mxu0 0.0
      %728 = vmatpush2.msra.mxu0 0.0
      %729 = vmatprep.subr.mxu0 0.0
      %730 = vmatpush2.msra.mxu0 0.0
      %731 = vmatprep.subr.mxu0 0.0
      %732 = vmatpush2.msra.mxu0 0.0
      %733 = vmatprep.subr.mxu0 0.0
      %734 = vmatpush2.msra.mxu0 0.0
      %735 = vmatprep.subr.mxu0 0.0
      %736 = vmatpush2.msra.mxu0 0.0
      %737 = vmatprep.subr.mxu0 0.0
      %738 = vmatpush2.msra.mxu0 0.0
      %739 = vmatprep.subr.mxu0 0.0
      %740 = vmatpush2.msra.mxu0 0.0
      %741 = vmatprep.subr.mxu0 0.0
      %742 = vmatpush2.msra.mxu0 0.0
      %743 = vmatprep.subr.mxu0 0.0
      %744 = vmatpush2.msra.mxu0 0.0
      %745 = vmatprep.subr.mxu0 0.0
      %746 = vmatpush2.msra.mxu0 0.0
      %747 = vmatprep.subr.mxu0 0.0
      %748 = vmatpush2.msra.mxu0 0.0
      %749 = vmatprep.subr.mxu0 0.0
      %750 = vmatpush2.msra.mxu0 0.0
      %751 = vmatprep.subr.mxu0 0.0
      %752 = vmatpush2.msra.mxu0 0.0
      %753 = vmatprep.subr.mxu0 0.0
      %754 = vmatpush2.msra.mxu0 0.0
      %755 = vmatprep.mubr.f32.mxu0 0.0
      %756 = vmatmul.mubr.f32.gmra.mxu0 %v689
      %v757 = vpop.f32.mrf.mxu0
      %v758 = vadd.f32 0.0, %v757
      %v759 = vpop.f32.mrf.mxu0
      %760 = vdwg.mxu0
      %v761 = vadd.f32 %v687, %v758
      %762 = vrot.lane.b32.xlu0 %v359, 127
      %v763 = vpop.permute.xlu0 %762
      %v765 = vsel %vm389, %v381, 0
      %767 = vmatprep.subr.mxu0 0.0
      %768 = vmatpush1.msra.mxu0 0.0
      %769 = vmatprep.subr.mxu0 0.0
      %770 = vmatpush1.msra.mxu0 0.0
      %771 = vmatprep.subr.mxu0 0.0
      %772 = vmatpush1.msra.mxu0 0.0
      %773 = vmatprep.subr.mxu0 0.0
      %774 = vmatpush1.msra.mxu0 0.0
      %775 = vmatprep.subr.mxu0 0.0
      %776 = vmatpush1.msra.mxu0 0.0
      %777 = vmatprep.subr.mxu0 0.0
      %778 = vmatpush1.msra.mxu0 0.0
      %779 = vmatprep.subr.mxu0 0.0
      %780 = vmatpush1.msra.mxu0 0.0
      %781 = vmatprep.subr.mxu0 0.0
      %782 = vmatpush1.msra.mxu0 0.0
      %783 = vmatprep.subr.mxu0 0.0
      %784 = vmatpush1.msra.mxu0 0.0
      %785 = vmatprep.subr.mxu0 0.0
      %786 = vmatpush1.msra.mxu0 0.0
      %787 = vmatprep.subr.mxu0 0.0
      %788 = vmatpush1.msra.mxu0 0.0
      %789 = vmatprep.subr.mxu0 0.0
      %790 = vmatpush1.msra.mxu0 0.0
      %791 = vmatprep.subr.mxu0 0.0
      %792 = vmatpush1.msra.mxu0 0.0
      %793 = vmatprep.subr.mxu0 0.0
      %794 = vmatpush1.msra.mxu0 0.0
      %795 = vmatprep.subr.mxu0 0.0
      %796 = vmatpush1.msra.mxu0 0.0
      %797 = vmatprep.subr.mxu0 0.0
      %798 = vmatpush1.msra.mxu0 %v763
      %799 = vmatprep.subr.mxu0 0.0
      %800 = vmatpush2.msra.mxu0 0.0
      %801 = vmatprep.subr.mxu0 0.0
      %802 = vmatpush2.msra.mxu0 0.0
      %803 = vmatprep.subr.mxu0 0.0
      %804 = vmatpush2.msra.mxu0 0.0
      %805 = vmatprep.subr.mxu0 0.0
      %806 = vmatpush2.msra.mxu0 0.0
      %807 = vmatprep.subr.mxu0 0.0
      %808 = vmatpush2.msra.mxu0 0.0
      %809 = vmatprep.subr.mxu0 0.0
      %810 = vmatpush2.msra.mxu0 0.0
      %811 = vmatprep.subr.mxu0 0.0
      %812 = vmatpush2.msra.mxu0 0.0
      %813 = vmatprep.subr.mxu0 0.0
      %814 = vmatpush2.msra.mxu0 0.0
      %815 = vmatprep.subr.mxu0 0.0
      %816 = vmatpush2.msra.mxu0 0.0
      %817 = vmatprep.subr.mxu0 0.0
      %818 = vmatpush2.msra.mxu0 0.0
      %819 = vmatprep.subr.mxu0 0.0
      %820 = vmatpush2.msra.mxu0 0.0
      %821 = vmatprep.subr.mxu0 0.0
      %822 = vmatpush2.msra.mxu0 0.0
      %823 = vmatprep.subr.mxu0 0.0
      %824 = vmatpush2.msra.mxu0 0.0
      %825 = vmatprep.subr.mxu0 0.0
      %826 = vmatpush2.msra.mxu0 0.0
      %827 = vmatprep.subr.mxu0 0.0
      %828 = vmatpush2.msra.mxu0 0.0
      %829 = vmatprep.subr.mxu0 0.0
      %830 = vmatpush2.msra.mxu0 0.0
      %831 = vmatprep.mubr.f32.mxu0 0.0
      %832 = vmatmul.mubr.f32.gmra.mxu0 %v765
      %v833 = vpop.f32.mrf.mxu0
      %v834 = vadd.f32 0.0, %v833
      %v835 = vpop.f32.mrf.mxu0
      %836 = vdwg.mxu0
      %v837 = vadd.f32 %v761, %v834
      %838 = vrot.lane.b32.xlu0 %v359, 119
      %v839 = vpop.permute.xlu0 %838
      %v841 = vsel %vm389, %v382, 0
      %843 = vmatprep.subr.mxu0 0.0
      %844 = vmatpush1.msra.mxu0 0.0
      %845 = vmatprep.subr.mxu0 0.0
      %846 = vmatpush1.msra.mxu0 0.0
      %847 = vmatprep.subr.mxu0 0.0
      %848 = vmatpush1.msra.mxu0 0.0
      %849 = vmatprep.subr.mxu0 0.0
      %850 = vmatpush1.msra.mxu0 0.0
      %851 = vmatprep.subr.mxu0 0.0
      %852 = vmatpush1.msra.mxu0 0.0
      %853 = vmatprep.subr.mxu0 0.0
      %854 = vmatpush1.msra.mxu0 0.0
      %855 = vmatprep.subr.mxu0 0.0
      %856 = vmatpush1.msra.mxu0 0.0
      %857 = vmatprep.subr.mxu0 0.0
      %858 = vmatpush1.msra.mxu0 0.0
      %859 = vmatprep.subr.mxu0 0.0
      %860 = vmatpush1.msra.mxu0 0.0
      %861 = vmatprep.subr.mxu0 0.0
      %862 = vmatpush1.msra.mxu0 0.0
      %863 = vmatprep.subr.mxu0 0.0
      %864 = vmatpush1.msra.mxu0 0.0
      %865 = vmatprep.subr.mxu0 0.0
      %866 = vmatpush1.msra.mxu0 0.0
      %867 = vmatprep.subr.mxu0 0.0
      %868 = vmatpush1.msra.mxu0 0.0
      %869 = vmatprep.subr.mxu0 0.0
      %870 = vmatpush1.msra.mxu0 0.0
      %871 = vmatprep.subr.mxu0 0.0
      %872 = vmatpush1.msra.mxu0 0.0
      %873 = vmatprep.subr.mxu0 0.0
      %874 = vmatpush1.msra.mxu0 %v839
      %875 = vmatprep.subr.mxu0 0.0
      %876 = vmatpush2.msra.mxu0 0.0
      %877 = vmatprep.subr.mxu0 0.0
      %878 = vmatpush2.msra.mxu0 0.0
      %879 = vmatprep.subr.mxu0 0.0
      %880 = vmatpush2.msra.mxu0 0.0
      %881 = vmatprep.subr.mxu0 0.0
      %882 = vmatpush2.msra.mxu0 0.0
      %883 = vmatprep.subr.mxu0 0.0
      %884 = vmatpush2.msra.mxu0 0.0
      %885 = vmatprep.subr.mxu0 0.0
      %886 = vmatpush2.msra.mxu0 0.0
      %887 = vmatprep.subr.mxu0 0.0
      %888 = vmatpush2.msra.mxu0 0.0
      %889 = vmatprep.subr.mxu0 0.0
      %890 = vmatpush2.msra.mxu0 0.0
      %891 = vmatprep.subr.mxu0 0.0
      %892 = vmatpush2.msra.mxu0 0.0
      %893 = vmatprep.subr.mxu0 0.0
      %894 = vmatpush2.msra.mxu0 0.0
      %895 = vmatprep.subr.mxu0 0.0
      %896 = vmatpush2.msra.mxu0 0.0
      %897 = vmatprep.subr.mxu0 0.0
      %898 = vmatpush2.msra.mxu0 0.0
      %899 = vmatprep.subr.mxu0 0.0
      %900 = vmatpush2.msra.mxu0 0.0
      %901 = vmatprep.subr.mxu0 0.0
      %902 = vmatpush2.msra.mxu0 0.0
      %903 = vmatprep.subr.mxu0 0.0
      %904 = vmatpush2.msra.mxu0 0.0
      %905 = vmatprep.subr.mxu0 0.0
      %906 = vmatpush2.msra.mxu0 0.0
      %907 = vmatprep.mubr.f32.mxu0 0.0
      %908 = vmatmul.mubr.f32.gmra.mxu0 %v841
      %v909 = vpop.f32.mrf.mxu0
      %v910 = vadd.f32 0.0, %v909
      %v911 = vpop.f32.mrf.mxu0
      %912 = vdwg.mxu0
      %v913 = vadd.f32 %v837, %v910
      %914 = vrot.lane.b32.xlu0 %v359, 118
      %v915 = vpop.permute.xlu0 %914
      %v917 = vsel %vm389, %v383, 0
      %919 = vmatprep.subr.mxu0 0.0
      %920 = vmatpush1.msra.mxu0 0.0
      %921 = vmatprep.subr.mxu0 0.0
      %922 = vmatpush1.msra.mxu0 0.0
      %923 = vmatprep.subr.mxu0 0.0
      %924 = vmatpush1.msra.mxu0 0.0
      %925 = vmatprep.subr.mxu0 0.0
      %926 = vmatpush1.msra.mxu0 0.0
      %927 = vmatprep.subr.mxu0 0.0
      %928 = vmatpush1.msra.mxu0 0.0
      %929 = vmatprep.subr.mxu0 0.0
      %930 = vmatpush1.msra.mxu0 0.0
      %931 = vmatprep.subr.mxu0 0.0
      %932 = vmatpush1.msra.mxu0 0.0
      %933 = vmatprep.subr.mxu0 0.0
      %934 = vmatpush1.msra.mxu0 0.0
      %935 = vmatprep.subr.mxu0 0.0
      %936 = vmatpush1.msra.mxu0 0.0
      %937 = vmatprep.subr.mxu0 0.0
      %938 = vmatpush1.msra.mxu0 0.0
      %939 = vmatprep.subr.mxu0 0.0
      %940 = vmatpush1.msra.mxu0 0.0
      %941 = vmatprep.subr.mxu0 0.0
      %942 = vmatpush1.msra.mxu0 0.0
      %943 = vmatprep.subr.mxu0 0.0
      %944 = vmatpush1.msra.mxu0 0.0
      %945 = vmatprep.subr.mxu0 0.0
      %946 = vmatpush1.msra.mxu0 0.0
      %947 = vmatprep.subr.mxu0 0.0
      %948 = vmatpush1.msra.mxu0 0.0
      %949 = vmatprep.subr.mxu0 0.0
      %950 = vmatpush1.msra.mxu0 %v915
      %951 = vmatprep.subr.mxu0 0.0
      %952 = vmatpush2.msra.mxu0 0.0
      %953 = vmatprep.subr.mxu0 0.0
      %954 = vmatpush2.msra.mxu0 0.0
      %955 = vmatprep.subr.mxu0 0.0
      %956 = vmatpush2.msra.mxu0 0.0
      %957 = vmatprep.subr.mxu0 0.0
      %958 = vmatpush2.msra.mxu0 0.0
      %959 = vmatprep.subr.mxu0 0.0
      %960 = vmatpush2.msra.mxu0 0.0
      %961 = vmatprep.subr.mxu0 0.0
      %962 = vmatpush2.msra.mxu0 0.0
      %963 = vmatprep.subr.mxu0 0.0
      %964 = vmatpush2.msra.mxu0 0.0
      %965 = vmatprep.subr.mxu0 0.0
      %966 = vmatpush2.msra.mxu0 0.0
      %967 = vmatprep.subr.mxu0 0.0
      %968 = vmatpush2.msra.mxu0 0.0
      %969 = vmatprep.subr.mxu0 0.0
      %970 = vmatpush2.msra.mxu0 0.0
      %971 = vmatprep.subr.mxu0 0.0
      %972 = vmatpush2.msra.mxu0 0.0
      %973 = vmatprep.subr.mxu0 0.0
      %974 = vmatpush2.msra.mxu0 0.0
      %975 = vmatprep.subr.mxu0 0.0
      %976 = vmatpush2.msra.mxu0 0.0
      %977 = vmatprep.subr.mxu0 0.0
      %978 = vmatpush2.msra.mxu0 0.0
      %979 = vmatprep.subr.mxu0 0.0
      %980 = vmatpush2.msra.mxu0 0.0
      %981 = vmatprep.subr.mxu0 0.0
      %982 = vmatpush2.msra.mxu0 0.0
      %983 = vmatprep.mubr.f32.mxu0 0.0
      %984 = vmatmul.mubr.f32.gmra.mxu0 %v917
      %v985 = vpop.f32.mrf.mxu0
      %v986 = vadd.f32 0.0, %v985
      %v987 = vpop.f32.mrf.mxu0
      %988 = vdwg.mxu0
      %v989 = vadd.f32 %v913, %v986
      %990 = vrot.lane.b32.xlu0 %v359, 117
      %v991 = vpop.permute.xlu0 %990
      %v993 = vsel %vm389, %v384, 0
      %995 = vmatprep.subr.mxu0 0.0
      %996 = vmatpush1.msra.mxu0 0.0
      %997 = vmatprep.subr.mxu0 0.0
      %998 = vmatpush1.msra.mxu0 0.0
      %999 = vmatprep.subr.mxu0 0.0
      %1000 = vmatpush1.msra.mxu0 0.0
      %1001 = vmatprep.subr.mxu0 0.0
      %1002 = vmatpush1.msra.mxu0 0.0
      %1003 = vmatprep.subr.mxu0 0.0
      %1004 = vmatpush1.msra.mxu0 0.0
      %1005 = vmatprep.subr.mxu0 0.0
      %1006 = vmatpush1.msra.mxu0 0.0
      %1007 = vmatprep.subr.mxu0 0.0
      %1008 = vmatpush1.msra.mxu0 0.0
      %1009 = vmatprep.subr.mxu0 0.0
      %1010 = vmatpush1.msra.mxu0 0.0
      %1011 = vmatprep.subr.mxu0 0.0
      %1012 = vmatpush1.msra.mxu0 0.0
      %1013 = vmatprep.subr.mxu0 0.0
      %1014 = vmatpush1.msra.mxu0 0.0
      %1015 = vmatprep.subr.mxu0 0.0
      %1016 = vmatpush1.msra.mxu0 0.0
      %1017 = vmatprep.subr.mxu0 0.0
      %1018 = vmatpush1.msra.mxu0 0.0
      %1019 = vmatprep.subr.mxu0 0.0
      %1020 = vmatpush1.msra.mxu0 0.0
      %1021 = vmatprep.subr.mxu0 0.0
      %1022 = vmatpush1.msra.mxu0 0.0
      %1023 = vmatprep.subr.mxu0 0.0
      %1024 = vmatpush1.msra.mxu0 0.0
      %1025 = vmatprep.subr.mxu0 0.0
      %1026 = vmatpush1.msra.mxu0 %v991
      %1027 = vmatprep.subr.mxu0 0.0
      %1028 = vmatpush2.msra.mxu0 0.0
      %1029 = vmatprep.subr.mxu0 0.0
      %1030 = vmatpush2.msra.mxu0 0.0
      %1031 = vmatprep.subr.mxu0 0.0
      %1032 = vmatpush2.msra.mxu0 0.0
      %1033 = vmatprep.subr.mxu0 0.0
      %1034 = vmatpush2.msra.mxu0 0.0
      %1035 = vmatprep.subr.mxu0 0.0
      %1036 = vmatpush2.msra.mxu0 0.0
      %1037 = vmatprep.subr.mxu0 0.0
      %1038 = vmatpush2.msra.mxu0 0.0
      %1039 = vmatprep.subr.mxu0 0.0
      %1040 = vmatpush2.msra.mxu0 0.0
      %1041 = vmatprep.subr.mxu0 0.0
      %1042 = vmatpush2.msra.mxu0 0.0
      %1043 = vmatprep.subr.mxu0 0.0
      %1044 = vmatpush2.msra.mxu0 0.0
      %1045 = vmatprep.subr.mxu0 0.0
      %1046 = vmatpush2.msra.mxu0 0.0
      %1047 = vmatprep.subr.mxu0 0.0
      %1048 = vmatpush2.msra.mxu0 0.0
      %1049 = vmatprep.subr.mxu0 0.0
      %1050 = vmatpush2.msra.mxu0 0.0
      %1051 = vmatprep.subr.mxu0 0.0
      %1052 = vmatpush2.msra.mxu0 0.0
      %1053 = vmatprep.subr.mxu0 0.0
      %1054 = vmatpush2.msra.mxu0 0.0
      %1055 = vmatprep.subr.mxu0 0.0
      %1056 = vmatpush2.msra.mxu0 0.0
      %1057 = vmatprep.subr.mxu0 0.0
      %1058 = vmatpush2.msra.mxu0 0.0
      %1059 = vmatprep.mubr.f32.mxu0 0.0
      %1060 = vmatmul.mubr.f32.gmra.mxu0 %v993
      %v1061 = vpop.f32.mrf.mxu0
      %v1062 = vadd.f32 0.0, %v1061
      %v1063 = vpop.f32.mrf.mxu0
      %1064 = vdwg.mxu0
      %v1065 = vadd.f32 %v989, %v1062
      %s1066 = scalar_lea.vmem %s3, 72
      %v1067 = vld [vmem:[%s1066] sm:$0xff]
      %v1068 = vld [vmem:[%s1066 + $0x8] sm:$0xff]
      %v1069 = vld [vmem:[%s1066 + $0x10] sm:$0xff]
      %v1070 = vld [vmem:[%s1066 + $0x18] sm:$0xff]
      %v1071 = vld [vmem:[%s1066 + $0x20] sm:$0xff]
      %v1072 = vld [vmem:[%s1066 + $0x28] sm:$0xff]
      %v1073 = vld [vmem:[%s1066 + $0x30] sm:$0xff]
      %v1074 = vld [vmem:[%s1066 + $0x38] sm:$0xff]
      %v1075 = vld [vmem:[%s1066 + $0x40] sm:$0xff]
      %1076 = vrot.lane.b32.xlu0 %v360, 11
      %v1077 = vpop.permute.xlu0 %1076
      %v1079 = vsel %vm389, %v1067, 0
      %1081 = vmatprep.subr.mxu0 0.0
      %1082 = vmatpush1.msra.mxu0 0.0
      %1083 = vmatprep.subr.mxu0 0.0
      %1084 = vmatpush1.msra.mxu0 0.0
      %1085 = vmatprep.subr.mxu0 0.0
      %1086 = vmatpush1.msra.mxu0 0.0
      %1087 = vmatprep.subr.mxu0 0.0
      %1088 = vmatpush1.msra.mxu0 0.0
      %1089 = vmatprep.subr.mxu0 0.0
      %1090 = vmatpush1.msra.mxu0 0.0
      %1091 = vmatprep.subr.mxu0 0.0
      %1092 = vmatpush1.msra.mxu0 0.0
      %1093 = vmatprep.subr.mxu0 0.0
      %1094 = vmatpush1.msra.mxu0 0.0
      %1095 = vmatprep.subr.mxu0 0.0
      %1096 = vmatpush1.msra.mxu0 0.0
      %1097 = vmatprep.subr.mxu0 0.0
      %1098 = vmatpush1.msra.mxu0 0.0
      %1099 = vmatprep.subr.mxu0 0.0
      %1100 = vmatpush1.msra.mxu0 0.0
      %1101 = vmatprep.subr.mxu0 0.0
      %1102 = vmatpush1.msra.mxu0 0.0
      %1103 = vmatprep.subr.mxu0 0.0
      %1104 = vmatpush1.msra.mxu0 0.0
      %1105 = vmatprep.subr.mxu0 0.0
      %1106 = vmatpush1.msra.mxu0 0.0
      %1107 = vmatprep.subr.mxu0 0.0
      %1108 = vmatpush1.msra.mxu0 0.0
      %1109 = vmatprep.subr.mxu0 0.0
      %1110 = vmatpush1.msra.mxu0 0.0
      %1111 = vmatprep.subr.mxu0 0.0
      %1112 = vmatpush1.msra.mxu0 %v1077
      %1113 = vmatprep.subr.mxu0 0.0
      %1114 = vmatpush2.msra.mxu0 0.0
      %1115 = vmatprep.subr.mxu0 0.0
      %1116 = vmatpush2.msra.mxu0 0.0
      %1117 = vmatprep.subr.mxu0 0.0
      %1118 = vmatpush2.msra.mxu0 0.0
      %1119 = vmatprep.subr.mxu0 0.0
      %1120 = vmatpush2.msra.mxu0 0.0
      %1121 = vmatprep.subr.mxu0 0.0
      %1122 = vmatpush2.msra.mxu0 0.0
      %1123 = vmatprep.subr.mxu0 0.0
      %1124 = vmatpush2.msra.mxu0 0.0
      %1125 = vmatprep.subr.mxu0 0.0
      %1126 = vmatpush2.msra.mxu0 0.0
      %1127 = vmatprep.subr.mxu0 0.0
      %1128 = vmatpush2.msra.mxu0 0.0
      %1129 = vmatprep.subr.mxu0 0.0
      %1130 = vmatpush2.msra.mxu0 0.0
      %1131 = vmatprep.subr.mxu0 0.0
      %1132 = vmatpush2.msra.mxu0 0.0
      %1133 = vmatprep.subr.mxu0 0.0
      %1134 = vmatpush2.msra.mxu0 0.0
      %1135 = vmatprep.subr.mxu0 0.0
      %1136 = vmatpush2.msra.mxu0 0.0
      %1137 = vmatprep.subr.mxu0 0.0
      %1138 = vmatpush2.msra.mxu0 0.0
      %1139 = vmatprep.subr.mxu0 0.0
      %1140 = vmatpush2.msra.mxu0 0.0
      %1141 = vmatprep.subr.mxu0 0.0
      %1142 = vmatpush2.msra.mxu0 0.0
      %1143 = vmatprep.subr.mxu0 0.0
      %1144 = vmatpush2.msra.mxu0 0.0
      %1145 = vmatprep.mubr.f32.mxu0 0.0
      %1146 = vmatmul.mubr.f32.gmra.mxu0 %v1079
      %v1147 = vpop.f32.mrf.mxu0
      %v1148 = vadd.f32 0.0, %v1147
      %v1149 = vpop.f32.mrf.mxu0
      %1150 = vdwg.mxu0
      %v1151 = vadd.f32 %v1065, %v1148
      %1152 = vrot.lane.b32.xlu0 %v360, 10
      %v1153 = vpop.permute.xlu0 %1152
      %v1155 = vsel %vm389, %v1068, 0
      %1157 = vmatprep.subr.mxu0 0.0
      %1158 = vmatpush1.msra.mxu0 0.0
      %1159 = vmatprep.subr.mxu0 0.0
      %1160 = vmatpush1.msra.mxu0 0.0
      %1161 = vmatprep.subr.mxu0 0.0
      %1162 = vmatpush1.msra.mxu0 0.0
      %1163 = vmatprep.subr.mxu0 0.0
      %1164 = vmatpush1.msra.mxu0 0.0
      %1165 = vmatprep.subr.mxu0 0.0
      %1166 = vmatpush1.msra.mxu0 0.0
      %1167 = vmatprep.subr.mxu0 0.0
      %1168 = vmatpush1.msra.mxu0 0.0
      %1169 = vmatprep.subr.mxu0 0.0
      %1170 = vmatpush1.msra.mxu0 0.0
      %1171 = vmatprep.subr.mxu0 0.0
      %1172 = vmatpush1.msra.mxu0 0.0
      %1173 = vmatprep.subr.mxu0 0.0
      %1174 = vmatpush1.msra.mxu0 0.0
      %1175 = vmatprep.subr.mxu0 0.0
      %1176 = vmatpush1.msra.mxu0 0.0
      %1177 = vmatprep.subr.mxu0 0.0
      %1178 = vmatpush1.msra.mxu0 0.0
      %1179 = vmatprep.subr.mxu0 0.0
      %1180 = vmatpush1.msra.mxu0 0.0
      %1181 = vmatprep.subr.mxu0 0.0
      %1182 = vmatpush1.msra.mxu0 0.0
      %1183 = vmatprep.subr.mxu0 0.0
      %1184 = vmatpush1.msra.mxu0 0.0
      %1185 = vmatprep.subr.mxu0 0.0
      %1186 = vmatpush1.msra.mxu0 0.0
      %1187 = vmatprep.subr.mxu0 0.0
      %1188 = vmatpush1.msra.mxu0 %v1153
      %1189 = vmatprep.subr.mxu0 0.0
      %1190 = vmatpush2.msra.mxu0 0.0
      %1191 = vmatprep.subr.mxu0 0.0
      %1192 = vmatpush2.msra.mxu0 0.0
      %1193 = vmatprep.subr.mxu0 0.0
      %1194 = vmatpush2.msra.mxu0 0.0
      %1195 = vmatprep.subr.mxu0 0.0
      %1196 = vmatpush2.msra.mxu0 0.0
      %1197 = vmatprep.subr.mxu0 0.0
      %1198 = vmatpush2.msra.mxu0 0.0
      %1199 = vmatprep.subr.mxu0 0.0
      %1200 = vmatpush2.msra.mxu0 0.0
      %1201 = vmatprep.subr.mxu0 0.0
      %1202 = vmatpush2.msra.mxu0 0.0
      %1203 = vmatprep.subr.mxu0 0.0
      %1204 = vmatpush2.msra.mxu0 0.0
      %1205 = vmatprep.subr.mxu0 0.0
      %1206 = vmatpush2.msra.mxu0 0.0
      %1207 = vmatprep.subr.mxu0 0.0
      %1208 = vmatpush2.msra.mxu0 0.0
      %1209 = vmatprep.subr.mxu0 0.0
      %1210 = vmatpush2.msra.mxu0 0.0
      %1211 = vmatprep.subr.mxu0 0.0
      %1212 = vmatpush2.msra.mxu0 0.0
      %1213 = vmatprep.subr.mxu0 0.0
      %1214 = vmatpush2.msra.mxu0 0.0
      %1215 = vmatprep.subr.mxu0 0.0
      %1216 = vmatpush2.msra.mxu0 0.0
      %1217 = vmatprep.subr.mxu0 0.0
      %1218 = vmatpush2.msra.mxu0 0.0
      %1219 = vmatprep.subr.mxu0 0.0
      %1220 = vmatpush2.msra.mxu0 0.0
      %1221 = vmatprep.mubr.f32.mxu0 0.0
      %1222 = vmatmul.mubr.f32.gmra.mxu0 %v1155
      %v1223 = vpop.f32.mrf.mxu0
      %v1224 = vadd.f32 0.0, %v1223
      %v1225 = vpop.f32.mrf.mxu0
      %1226 = vdwg.mxu0
      %v1227 = vadd.f32 %v1151, %v1224
      %1228 = vrot.lane.b32.xlu0 %v360, 9
      %v1229 = vpop.permute.xlu0 %1228
      %v1231 = vsel %vm389, %v1069, 0
      %1233 = vmatprep.subr.mxu0 0.0
      %1234 = vmatpush1.msra.mxu0 0.0
      %1235 = vmatprep.subr.mxu0 0.0
      %1236 = vmatpush1.msra.mxu0 0.0
      %1237 = vmatprep.subr.mxu0 0.0
      %1238 = vmatpush1.msra.mxu0 0.0
      %1239 = vmatprep.subr.mxu0 0.0
      %1240 = vmatpush1.msra.mxu0 0.0
      %1241 = vmatprep.subr.mxu0 0.0
      %1242 = vmatpush1.msra.mxu0 0.0
      %1243 = vmatprep.subr.mxu0 0.0
      %1244 = vmatpush1.msra.mxu0 0.0
      %1245 = vmatprep.subr.mxu0 0.0
      %1246 = vmatpush1.msra.mxu0 0.0
      %1247 = vmatprep.subr.mxu0 0.0
      %1248 = vmatpush1.msra.mxu0 0.0
      %1249 = vmatprep.subr.mxu0 0.0
      %1250 = vmatpush1.msra.mxu0 0.0
      %1251 = vmatprep.subr.mxu0 0.0
      %1252 = vmatpush1.msra.mxu0 0.0
      %1253 = vmatprep.subr.mxu0 0.0
      %1254 = vmatpush1.msra.mxu0 0.0
      %1255 = vmatprep.subr.mxu0 0.0
      %1256 = vmatpush1.msra.mxu0 0.0
      %1257 = vmatprep.subr.mxu0 0.0
      %1258 = vmatpush1.msra.mxu0 0.0
      %1259 = vmatprep.subr.mxu0 0.0
      %1260 = vmatpush1.msra.mxu0 0.0
      %1261 = vmatprep.subr.mxu0 0.0
      %1262 = vmatpush1.msra.mxu0 0.0
      %1263 = vmatprep.subr.mxu0 0.0
      %1264 = vmatpush1.msra.mxu0 %v1229
      %1265 = vmatprep.subr.mxu0 0.0
      %1266 = vmatpush2.msra.mxu0 0.0
      %1267 = vmatprep.subr.mxu0 0.0
      %1268 = vmatpush2.msra.mxu0 0.0
      %1269 = vmatprep.subr.mxu0 0.0
      %1270 = vmatpush2.msra.mxu0 0.0
      %1271 = vmatprep.subr.mxu0 0.0
      %1272 = vmatpush2.msra.mxu0 0.0
      %1273 = vmatprep.subr.mxu0 0.0
      %1274 = vmatpush2.msra.mxu0 0.0
      %1275 = vmatprep.subr.mxu0 0.0
      %1276 = vmatpush2.msra.mxu0 0.0
      %1277 = vmatprep.subr.mxu0 0.0
      %1278 = vmatpush2.msra.mxu0 0.0
      %1279 = vmatprep.subr.mxu0 0.0
      %1280 = vmatpush2.msra.mxu0 0.0
      %1281 = vmatprep.subr.mxu0 0.0
      %1282 = vmatpush2.msra.mxu0 0.0
      %1283 = vmatprep.subr.mxu0 0.0
      %1284 = vmatpush2.msra.mxu0 0.0
      %1285 = vmatprep.subr.mxu0 0.0
      %1286 = vmatpush2.msra.mxu0 0.0
      %1287 = vmatprep.subr.mxu0 0.0
      %1288 = vmatpush2.msra.mxu0 0.0
      %1289 = vmatprep.subr.mxu0 0.0
      %1290 = vmatpush2.msra.mxu0 0.0
      %1291 = vmatprep.subr.mxu0 0.0
      %1292 = vmatpush2.msra.mxu0 0.0
      %1293 = vmatprep.subr.mxu0 0.0
      %1294 = vmatpush2.msra.mxu0 0.0
      %1295 = vmatprep.subr.mxu0 0.0
      %1296 = vmatpush2.msra.mxu0 0.0
      %1297 = vmatprep.mubr.f32.mxu0 0.0
      %1298 = vmatmul.mubr.f32.gmra.mxu0 %v1231
      %v1299 = vpop.f32.mrf.mxu0
      %v1300 = vadd.f32 0.0, %v1299
      %v1301 = vpop.f32.mrf.mxu0
      %1302 = vdwg.mxu0
      %v1303 = vadd.f32 %v1227, %v1300
      %1304 = vrot.lane.b32.xlu0 %v360, 1
      %v1305 = vpop.permute.xlu0 %1304
      %v1307 = vsel %vm389, %v1070, 0
      %1309 = vmatprep.subr.mxu0 0.0
      %1310 = vmatpush1.msra.mxu0 0.0
      %1311 = vmatprep.subr.mxu0 0.0
      %1312 = vmatpush1.msra.mxu0 0.0
      %1313 = vmatprep.subr.mxu0 0.0
      %1314 = vmatpush1.msra.mxu0 0.0
      %1315 = vmatprep.subr.mxu0 0.0
      %1316 = vmatpush1.msra.mxu0 0.0
      %1317 = vmatprep.subr.mxu0 0.0
      %1318 = vmatpush1.msra.mxu0 0.0
      %1319 = vmatprep.subr.mxu0 0.0
      %1320 = vmatpush1.msra.mxu0 0.0
      %1321 = vmatprep.subr.mxu0 0.0
      %1322 = vmatpush1.msra.mxu0 0.0
      %1323 = vmatprep.subr.mxu0 0.0
      %1324 = vmatpush1.msra.mxu0 0.0
      %1325 = vmatprep.subr.mxu0 0.0
      %1326 = vmatpush1.msra.mxu0 0.0
      %1327 = vmatprep.subr.mxu0 0.0
      %1328 = vmatpush1.msra.mxu0 0.0
      %1329 = vmatprep.subr.mxu0 0.0
      %1330 = vmatpush1.msra.mxu0 0.0
      %1331 = vmatprep.subr.mxu0 0.0
      %1332 = vmatpush1.msra.mxu0 0.0
      %1333 = vmatprep.subr.mxu0 0.0
      %1334 = vmatpush1.msra.mxu0 0.0
      %1335 = vmatprep.subr.mxu0 0.0
      %1336 = vmatpush1.msra.mxu0 0.0
      %1337 = vmatprep.subr.mxu0 0.0
      %1338 = vmatpush1.msra.mxu0 0.0
      %1339 = vmatprep.subr.mxu0 0.0
      %1340 = vmatpush1.msra.mxu0 %v1305
      %1341 = vmatprep.subr.mxu0 0.0
      %1342 = vmatpush2.msra.mxu0 0.0
      %1343 = vmatprep.subr.mxu0 0.0
      %1344 = vmatpush2.msra.mxu0 0.0
      %1345 = vmatprep.subr.mxu0 0.0
      %1346 = vmatpush2.msra.mxu0 0.0
      %1347 = vmatprep.subr.mxu0 0.0
      %1348 = vmatpush2.msra.mxu0 0.0
      %1349 = vmatprep.subr.mxu0 0.0
      %1350 = vmatpush2.msra.mxu0 0.0
      %1351 = vmatprep.subr.mxu0 0.0
      %1352 = vmatpush2.msra.mxu0 0.0
      %1353 = vmatprep.subr.mxu0 0.0
      %1354 = vmatpush2.msra.mxu0 0.0
      %1355 = vmatprep.subr.mxu0 0.0
      %1356 = vmatpush2.msra.mxu0 0.0
      %1357 = vmatprep.subr.mxu0 0.0
      %1358 = vmatpush2.msra.mxu0 0.0
      %1359 = vmatprep.subr.mxu0 0.0
      %1360 = vmatpush2.msra.mxu0 0.0
      %1361 = vmatprep.subr.mxu0 0.0
      %1362 = vmatpush2.msra.mxu0 0.0
      %1363 = vmatprep.subr.mxu0 0.0
      %1364 = vmatpush2.msra.mxu0 0.0
      %1365 = vmatprep.subr.mxu0 0.0
      %1366 = vmatpush2.msra.mxu0 0.0
      %1367 = vmatprep.subr.mxu0 0.0
      %1368 = vmatpush2.msra.mxu0 0.0
      %1369 = vmatprep.subr.mxu0 0.0
      %1370 = vmatpush2.msra.mxu0 0.0
      %1371 = vmatprep.subr.mxu0 0.0
      %1372 = vmatpush2.msra.mxu0 0.0
      %1373 = vmatprep.mubr.f32.mxu0 0.0
      %1374 = vmatmul.mubr.f32.gmra.mxu0 %v1307
      %v1375 = vpop.f32.mrf.mxu0
      %v1376 = vadd.f32 0.0, %v1375
      %v1377 = vpop.f32.mrf.mxu0
      %1378 = vdwg.mxu0
      %v1379 = vadd.f32 %v1303, %v1376
      %v1381 = vsel %vm389, %v1071, 0
      %1383 = vmatprep.subr.mxu0 0.0
      %1384 = vmatpush1.msra.mxu0 0.0
      %1385 = vmatprep.subr.mxu0 0.0
      %1386 = vmatpush1.msra.mxu0 0.0
      %1387 = vmatprep.subr.mxu0 0.0
      %1388 = vmatpush1.msra.mxu0 0.0
      %1389 = vmatprep.subr.mxu0 0.0
      %1390 = vmatpush1.msra.mxu0 0.0
      %1391 = vmatprep.subr.mxu0 0.0
      %1392 = vmatpush1.msra.mxu0 0.0
      %1393 = vmatprep.subr.mxu0 0.0
      %1394 = vmatpush1.msra.mxu0 0.0
      %1395 = vmatprep.subr.mxu0 0.0
      %1396 = vmatpush1.msra.mxu0 0.0
      %1397 = vmatprep.subr.mxu0 0.0
      %1398 = vmatpush1.msra.mxu0 0.0
      %1399 = vmatprep.subr.mxu0 0.0
      %1400 = vmatpush1.msra.mxu0 0.0
      %1401 = vmatprep.subr.mxu0 0.0
      %1402 = vmatpush1.msra.mxu0 0.0
      %1403 = vmatprep.subr.mxu0 0.0
      %1404 = vmatpush1.msra.mxu0 0.0
      %1405 = vmatprep.subr.mxu0 0.0
      %1406 = vmatpush1.msra.mxu0 0.0
      %1407 = vmatprep.subr.mxu0 0.0
      %1408 = vmatpush1.msra.mxu0 0.0
      %1409 = vmatprep.subr.mxu0 0.0
      %1410 = vmatpush1.msra.mxu0 0.0
      %1411 = vmatprep.subr.mxu0 0.0
      %1412 = vmatpush1.msra.mxu0 0.0
      %1413 = vmatprep.subr.mxu0 0.0
      %1414 = vmatpush1.msra.mxu0 %v360
      %1415 = vmatprep.subr.mxu0 0.0
      %1416 = vmatpush2.msra.mxu0 0.0
      %1417 = vmatprep.subr.mxu0 0.0
      %1418 = vmatpush2.msra.mxu0 0.0
      %1419 = vmatprep.subr.mxu0 0.0
      %1420 = vmatpush2.msra.mxu0 0.0
      %1421 = vmatprep.subr.mxu0 0.0
      %1422 = vmatpush2.msra.mxu0 0.0
      %1423 = vmatprep.subr.mxu0 0.0
      %1424 = vmatpush2.msra.mxu0 0.0
      %1425 = vmatprep.subr.mxu0 0.0
      %1426 = vmatpush2.msra.mxu0 0.0
      %1427 = vmatprep.subr.mxu0 0.0
      %1428 = vmatpush2.msra.mxu0 0.0
      %1429 = vmatprep.subr.mxu0 0.0
      %1430 = vmatpush2.msra.mxu0 0.0
      %1431 = vmatprep.subr.mxu0 0.0
      %1432 = vmatpush2.msra.mxu0 0.0
      %1433 = vmatprep.subr.mxu0 0.0
      %1434 = vmatpush2.msra.mxu0 0.0
      %1435 = vmatprep.subr.mxu0 0.0
      %1436 = vmatpush2.msra.mxu0 0.0
      %1437 = vmatprep.subr.mxu0 0.0
      %1438 = vmatpush2.msra.mxu0 0.0
      %1439 = vmatprep.subr.mxu0 0.0
      %1440 = vmatpush2.msra.mxu0 0.0
      %1441 = vmatprep.subr.mxu0 0.0
      %1442 = vmatpush2.msra.mxu0 0.0
      %1443 = vmatprep.subr.mxu0 0.0
      %1444 = vmatpush2.msra.mxu0 0.0
      %1445 = vmatprep.subr.mxu0 0.0
      %1446 = vmatpush2.msra.mxu0 0.0
      %1447 = vmatprep.mubr.f32.mxu0 0.0
      %1448 = vmatmul.mubr.f32.gmra.mxu0 %v1381
      %v1449 = vpop.f32.mrf.mxu0
      %v1450 = vadd.f32 0.0, %v1449
      %v1451 = vpop.f32.mrf.mxu0
      %1452 = vdwg.mxu0
      %v1453 = vadd.f32 %v1379, %v1450
      %1454 = vrot.lane.b32.xlu0 %v360, 127
      %v1455 = vpop.permute.xlu0 %1454
      %v1457 = vsel %vm389, %v1072, 0
      %1459 = vmatprep.subr.mxu0 0.0
      %1460 = vmatpush1.msra.mxu0 0.0
      %1461 = vmatprep.subr.mxu0 0.0
      %1462 = vmatpush1.msra.mxu0 0.0
      %1463 = vmatprep.subr.mxu0 0.0
      %1464 = vmatpush1.msra.mxu0 0.0
      %1465 = vmatprep.subr.mxu0 0.0
      %1466 = vmatpush1.msra.mxu0 0.0
      %1467 = vmatprep.subr.mxu0 0.0
      %1468 = vmatpush1.msra.mxu0 0.0
      %1469 = vmatprep.subr.mxu0 0.0
      %1470 = vmatpush1.msra.mxu0 0.0
      %1471 = vmatprep.subr.mxu0 0.0
      %1472 = vmatpush1.msra.mxu0 0.0
      %1473 = vmatprep.subr.mxu0 0.0
      %1474 = vmatpush1.msra.mxu0 0.0
      %1475 = vmatprep.subr.mxu0 0.0
      %1476 = vmatpush1.msra.mxu0 0.0
      %1477 = vmatprep.subr.mxu0 0.0
      %1478 = vmatpush1.msra.mxu0 0.0
      %1479 = vmatprep.subr.mxu0 0.0
      %1480 = vmatpush1.msra.mxu0 0.0
      %1481 = vmatprep.subr.mxu0 0.0
      %1482 = vmatpush1.msra.mxu0 0.0
      %1483 = vmatprep.subr.mxu0 0.0
      %1484 = vmatpush1.msra.mxu0 0.0
      %1485 = vmatprep.subr.mxu0 0.0
      %1486 = vmatpush1.msra.mxu0 0.0
      %1487 = vmatprep.subr.mxu0 0.0
      %1488 = vmatpush1.msra.mxu0 0.0
      %1489 = vmatprep.subr.mxu0 0.0
      %1490 = vmatpush1.msra.mxu0 %v1455
      %1491 = vmatprep.subr.mxu0 0.0
      %1492 = vmatpush2.msra.mxu0 0.0
      %1493 = vmatprep.subr.mxu0 0.0
      %1494 = vmatpush2.msra.mxu0 0.0
      %1495 = vmatprep.subr.mxu0 0.0
      %1496 = vmatpush2.msra.mxu0 0.0
      %1497 = vmatprep.subr.mxu0 0.0
      %1498 = vmatpush2.msra.mxu0 0.0
      %1499 = vmatprep.subr.mxu0 0.0
      %1500 = vmatpush2.msra.mxu0 0.0
      %1501 = vmatprep.subr.mxu0 0.0
      %1502 = vmatpush2.msra.mxu0 0.0
      %1503 = vmatprep.subr.mxu0 0.0
      %1504 = vmatpush2.msra.mxu0 0.0
      %1505 = vmatprep.subr.mxu0 0.0
      %1506 = vmatpush2.msra.mxu0 0.0
      %1507 = vmatprep.subr.mxu0 0.0
      %1508 = vmatpush2.msra.mxu0 0.0
      %1509 = vmatprep.subr.mxu0 0.0
      %1510 = vmatpush2.msra.mxu0 0.0
      %1511 = vmatprep.subr.mxu0 0.0
      %1512 = vmatpush2.msra.mxu0 0.0
      %1513 = vmatprep.subr.mxu0 0.0
      %1514 = vmatpush2.msra.mxu0 0.0
      %1515 = vmatprep.subr.mxu0 0.0
      %1516 = vmatpush2.msra.mxu0 0.0
      %1517 = vmatprep.subr.mxu0 0.0
      %1518 = vmatpush2.msra.mxu0 0.0
      %1519 = vmatprep.subr.mxu0 0.0
      %1520 = vmatpush2.msra.mxu0 0.0
      %1521 = vmatprep.subr.mxu0 0.0
      %1522 = vmatpush2.msra.mxu0 0.0
      %1523 = vmatprep.mubr.f32.mxu0 0.0
      %1524 = vmatmul.mubr.f32.gmra.mxu0 %v1457
      %v1525 = vpop.f32.mrf.mxu0
      %v1526 = vadd.f32 0.0, %v1525
      %v1527 = vpop.f32.mrf.mxu0
      %1528 = vdwg.mxu0
      %v1529 = vadd.f32 %v1453, %v1526
      %1530 = vrot.lane.b32.xlu0 %v360, 119
      %v1531 = vpop.permute.xlu0 %1530
      %v1533 = vsel %vm389, %v1073, 0
      %1535 = vmatprep.subr.mxu0 0.0
      %1536 = vmatpush1.msra.mxu0 0.0
      %1537 = vmatprep.subr.mxu0 0.0
      %1538 = vmatpush1.msra.mxu0 0.0
      %1539 = vmatprep.subr.mxu0 0.0
      %1540 = vmatpush1.msra.mxu0 0.0
      %1541 = vmatprep.subr.mxu0 0.0
      %1542 = vmatpush1.msra.mxu0 0.0
      %1543 = vmatprep.subr.mxu0 0.0
      %1544 = vmatpush1.msra.mxu0 0.0
      %1545 = vmatprep.subr.mxu0 0.0
      %1546 = vmatpush1.msra.mxu0 0.0
      %1547 = vmatprep.subr.mxu0 0.0
      %1548 = vmatpush1.msra.mxu0 0.0
      %1549 = vmatprep.subr.mxu0 0.0
      %1550 = vmatpush1.msra.mxu0 0.0
      %1551 = vmatprep.subr.mxu0 0.0
      %1552 = vmatpush1.msra.mxu0 0.0
      %1553 = vmatprep.subr.mxu0 0.0
      %1554 = vmatpush1.msra.mxu0 0.0
      %1555 = vmatprep.subr.mxu0 0.0
      %1556 = vmatpush1.msra.mxu0 0.0
      %1557 = vmatprep.subr.mxu0 0.0
      %1558 = vmatpush1.msra.mxu0 0.0
      %1559 = vmatprep.subr.mxu0 0.0
      %1560 = vmatpush1.msra.mxu0 0.0
      %1561 = vmatprep.subr.mxu0 0.0
      %1562 = vmatpush1.msra.mxu0 0.0
      %1563 = vmatprep.subr.mxu0 0.0
      %1564 = vmatpush1.msra.mxu0 0.0
      %1565 = vmatprep.subr.mxu0 0.0
      %1566 = vmatpush1.msra.mxu0 %v1531
      %1567 = vmatprep.subr.mxu0 0.0
      %1568 = vmatpush2.msra.mxu0 0.0
      %1569 = vmatprep.subr.mxu0 0.0
      %1570 = vmatpush2.msra.mxu0 0.0
      %1571 = vmatprep.subr.mxu0 0.0
      %1572 = vmatpush2.msra.mxu0 0.0
      %1573 = vmatprep.subr.mxu0 0.0
      %1574 = vmatpush2.msra.mxu0 0.0
      %1575 = vmatprep.subr.mxu0 0.0
      %1576 = vmatpush2.msra.mxu0 0.0
      %1577 = vmatprep.subr.mxu0 0.0
      %1578 = vmatpush2.msra.mxu0 0.0
      %1579 = vmatprep.subr.mxu0 0.0
      %1580 = vmatpush2.msra.mxu0 0.0
      %1581 = vmatprep.subr.mxu0 0.0
      %1582 = vmatpush2.msra.mxu0 0.0
      %1583 = vmatprep.subr.mxu0 0.0
      %1584 = vmatpush2.msra.mxu0 0.0
      %1585 = vmatprep.subr.mxu0 0.0
      %1586 = vmatpush2.msra.mxu0 0.0
      %1587 = vmatprep.subr.mxu0 0.0
      %1588 = vmatpush2.msra.mxu0 0.0
      %1589 = vmatprep.subr.mxu0 0.0
      %1590 = vmatpush2.msra.mxu0 0.0
      %1591 = vmatprep.subr.mxu0 0.0
      %1592 = vmatpush2.msra.mxu0 0.0
      %1593 = vmatprep.subr.mxu0 0.0
      %1594 = vmatpush2.msra.mxu0 0.0
      %1595 = vmatprep.subr.mxu0 0.0
      %1596 = vmatpush2.msra.mxu0 0.0
      %1597 = vmatprep.subr.mxu0 0.0
      %1598 = vmatpush2.msra.mxu0 0.0
      %1599 = vmatprep.mubr.f32.mxu0 0.0
      %1600 = vmatmul.mubr.f32.gmra.mxu0 %v1533
      %v1601 = vpop.f32.mrf.mxu0
      %v1602 = vadd.f32 0.0, %v1601
      %v1603 = vpop.f32.mrf.mxu0
      %1604 = vdwg.mxu0
      %v1605 = vadd.f32 %v1529, %v1602
      %1606 = vrot.lane.b32.xlu0 %v360, 118
      %v1607 = vpop.permute.xlu0 %1606
      %v1609 = vsel %vm389, %v1074, 0
      %1611 = vmatprep.subr.mxu0 0.0
      %1612 = vmatpush1.msra.mxu0 0.0
      %1613 = vmatprep.subr.mxu0 0.0
      %1614 = vmatpush1.msra.mxu0 0.0
      %1615 = vmatprep.subr.mxu0 0.0
      %1616 = vmatpush1.msra.mxu0 0.0
      %1617 = vmatprep.subr.mxu0 0.0
      %1618 = vmatpush1.msra.mxu0 0.0
      %1619 = vmatprep.subr.mxu0 0.0
      %1620 = vmatpush1.msra.mxu0 0.0
      %1621 = vmatprep.subr.mxu0 0.0
      %1622 = vmatpush1.msra.mxu0 0.0
      %1623 = vmatprep.subr.mxu0 0.0
      %1624 = vmatpush1.msra.mxu0 0.0
      %1625 = vmatprep.subr.mxu0 0.0
      %1626 = vmatpush1.msra.mxu0 0.0
      %1627 = vmatprep.subr.mxu0 0.0
      %1628 = vmatpush1.msra.mxu0 0.0
      %1629 = vmatprep.subr.mxu0 0.0
      %1630 = vmatpush1.msra.mxu0 0.0
      %1631 = vmatprep.subr.mxu0 0.0
      %1632 = vmatpush1.msra.mxu0 0.0
      %1633 = vmatprep.subr.mxu0 0.0
      %1634 = vmatpush1.msra.mxu0 0.0
      %1635 = vmatprep.subr.mxu0 0.0
      %1636 = vmatpush1.msra.mxu0 0.0
      %1637 = vmatprep.subr.mxu0 0.0
      %1638 = vmatpush1.msra.mxu0 0.0
      %1639 = vmatprep.subr.mxu0 0.0
      %1640 = vmatpush1.msra.mxu0 0.0
      %1641 = vmatprep.subr.mxu0 0.0
      %1642 = vmatpush1.msra.mxu0 %v1607
      %1643 = vmatprep.subr.mxu0 0.0
      %1644 = vmatpush2.msra.mxu0 0.0
      %1645 = vmatprep.subr.mxu0 0.0
      %1646 = vmatpush2.msra.mxu0 0.0
      %1647 = vmatprep.subr.mxu0 0.0
      %1648 = vmatpush2.msra.mxu0 0.0
      %1649 = vmatprep.subr.mxu0 0.0
      %1650 = vmatpush2.msra.mxu0 0.0
      %1651 = vmatprep.subr.mxu0 0.0
      %1652 = vmatpush2.msra.mxu0 0.0
      %1653 = vmatprep.subr.mxu0 0.0
      %1654 = vmatpush2.msra.mxu0 0.0
      %1655 = vmatprep.subr.mxu0 0.0
      %1656 = vmatpush2.msra.mxu0 0.0
      %1657 = vmatprep.subr.mxu0 0.0
      %1658 = vmatpush2.msra.mxu0 0.0
      %1659 = vmatprep.subr.mxu0 0.0
      %1660 = vmatpush2.msra.mxu0 0.0
      %1661 = vmatprep.subr.mxu0 0.0
      %1662 = vmatpush2.msra.mxu0 0.0
      %1663 = vmatprep.subr.mxu0 0.0
      %1664 = vmatpush2.msra.mxu0 0.0
      %1665 = vmatprep.subr.mxu0 0.0
      %1666 = vmatpush2.msra.mxu0 0.0
      %1667 = vmatprep.subr.mxu0 0.0
      %1668 = vmatpush2.msra.mxu0 0.0
      %1669 = vmatprep.subr.mxu0 0.0
      %1670 = vmatpush2.msra.mxu0 0.0
      %1671 = vmatprep.subr.mxu0 0.0
      %1672 = vmatpush2.msra.mxu0 0.0
      %1673 = vmatprep.subr.mxu0 0.0
      %1674 = vmatpush2.msra.mxu0 0.0
      %1675 = vmatprep.mubr.f32.mxu0 0.0
      %1676 = vmatmul.mubr.f32.gmra.mxu0 %v1609
      %v1677 = vpop.f32.mrf.mxu0
      %v1678 = vadd.f32 0.0, %v1677
      %v1679 = vpop.f32.mrf.mxu0
      %1680 = vdwg.mxu0
      %v1681 = vadd.f32 %v1605, %v1678
      %1682 = vrot.lane.b32.xlu0 %v360, 117
      %v1683 = vpop.permute.xlu0 %1682
      %v1685 = vsel %vm389, %v1075, 0
      %1687 = vmatprep.subr.mxu0 0.0
      %1688 = vmatpush1.msra.mxu0 0.0
      %1689 = vmatprep.subr.mxu0 0.0
      %1690 = vmatpush1.msra.mxu0 0.0
      %1691 = vmatprep.subr.mxu0 0.0
      %1692 = vmatpush1.msra.mxu0 0.0
      %1693 = vmatprep.subr.mxu0 0.0
      %1694 = vmatpush1.msra.mxu0 0.0
      %1695 = vmatprep.subr.mxu0 0.0
      %1696 = vmatpush1.msra.mxu0 0.0
      %1697 = vmatprep.subr.mxu0 0.0
      %1698 = vmatpush1.msra.mxu0 0.0
      %1699 = vmatprep.subr.mxu0 0.0
      %1700 = vmatpush1.msra.mxu0 0.0
      %1701 = vmatprep.subr.mxu0 0.0
      %1702 = vmatpush1.msra.mxu0 0.0
      %1703 = vmatprep.subr.mxu0 0.0
      %1704 = vmatpush1.msra.mxu0 0.0
      %1705 = vmatprep.subr.mxu0 0.0
      %1706 = vmatpush1.msra.mxu0 0.0
      %1707 = vmatprep.subr.mxu0 0.0
      %1708 = vmatpush1.msra.mxu0 0.0
      %1709 = vmatprep.subr.mxu0 0.0
      %1710 = vmatpush1.msra.mxu0 0.0
      %1711 = vmatprep.subr.mxu0 0.0
      %1712 = vmatpush1.msra.mxu0 0.0
      %1713 = vmatprep.subr.mxu0 0.0
      %1714 = vmatpush1.msra.mxu0 0.0
      %1715 = vmatprep.subr.mxu0 0.0
      %1716 = vmatpush1.msra.mxu0 0.0
      %1717 = vmatprep.subr.mxu0 0.0
      %1718 = vmatpush1.msra.mxu0 %v1683
      %1719 = vmatprep.subr.mxu0 0.0
      %1720 = vmatpush2.msra.mxu0 0.0
      %1721 = vmatprep.subr.mxu0 0.0
      %1722 = vmatpush2.msra.mxu0 0.0
      %1723 = vmatprep.subr.mxu0 0.0
      %1724 = vmatpush2.msra.mxu0 0.0
      %1725 = vmatprep.subr.mxu0 0.0
      %1726 = vmatpush2.msra.mxu0 0.0
      %1727 = vmatprep.subr.mxu0 0.0
      %1728 = vmatpush2.msra.mxu0 0.0
      %1729 = vmatprep.subr.mxu0 0.0
      %1730 = vmatpush2.msra.mxu0 0.0
      %1731 = vmatprep.subr.mxu0 0.0
      %1732 = vmatpush2.msra.mxu0 0.0
      %1733 = vmatprep.subr.mxu0 0.0
      %1734 = vmatpush2.msra.mxu0 0.0
      %1735 = vmatprep.subr.mxu0 0.0
      %1736 = vmatpush2.msra.mxu0 0.0
      %1737 = vmatprep.subr.mxu0 0.0
      %1738 = vmatpush2.msra.mxu0 0.0
      %1739 = vmatprep.subr.mxu0 0.0
      %1740 = vmatpush2.msra.mxu0 0.0
      %1741 = vmatprep.subr.mxu0 0.0
      %1742 = vmatpush2.msra.mxu0 0.0
      %1743 = vmatprep.subr.mxu0 0.0
      %1744 = vmatpush2.msra.mxu0 0.0
      %1745 = vmatprep.subr.mxu0 0.0
      %1746 = vmatpush2.msra.mxu0 0.0
      %1747 = vmatprep.subr.mxu0 0.0
      %1748 = vmatpush2.msra.mxu0 0.0
      %1749 = vmatprep.subr.mxu0 0.0
      %1750 = vmatpush2.msra.mxu0 0.0
      %1751 = vmatprep.mubr.f32.mxu0 0.0
      %1752 = vmatmul.mubr.f32.gmra.mxu0 %v1685
      %v1753 = vpop.f32.mrf.mxu0
      %v1754 = vadd.f32 0.0, %v1753
      %v1755 = vpop.f32.mrf.mxu0
      %1756 = vdwg.mxu0
      %v1757 = vadd.f32 %v1681, %v1754
      %s1758 = scalar_lea.vmem %s3, 144
      %v1759 = vld [vmem:[%s1758] sm:$0xff]
      %v1760 = vld [vmem:[%s1758 + $0x8] sm:$0xff]
      %v1761 = vld [vmem:[%s1758 + $0x10] sm:$0xff]
      %v1762 = vld [vmem:[%s1758 + $0x18] sm:$0xff]
      %v1763 = vld [vmem:[%s1758 + $0x20] sm:$0xff]
      %v1764 = vld [vmem:[%s1758 + $0x28] sm:$0xff]
      %v1765 = vld [vmem:[%s1758 + $0x30] sm:$0xff]
      %v1766 = vld [vmem:[%s1758 + $0x38] sm:$0xff]
      %v1767 = vld [vmem:[%s1758 + $0x40] sm:$0xff]
      %v1768 = vstv %s365
      %v1769 = vmul.f32 %v1759, %v1768
      %v1770 = vmul.f32 %v1760, %v1768
      %v1771 = vmul.f32 %v1761, %v1768
      %v1772 = vmul.f32 %v1762, %v1768
      %v1773 = vmul.f32 %v1763, %v1768
      %v1774 = vmul.f32 %v1764, %v1768
      %v1775 = vmul.f32 %v1765, %v1768
      %v1776 = vmul.f32 %v1766, %v1768
      %v1777 = vmul.f32 %v1767, %v1768
      %1778 = vrot.lane.b32.xlu0 %v361, 11
      %v1779 = vpop.permute.xlu0 %1778
      %v1781 = vsel %vm389, %v1769, 0
      %1783 = vmatprep.subr.mxu0 0.0
      %1784 = vmatpush1.msra.mxu0 0.0
      %1785 = vmatprep.subr.mxu0 0.0
      %1786 = vmatpush1.msra.mxu0 0.0
      %1787 = vmatprep.subr.mxu0 0.0
      %1788 = vmatpush1.msra.mxu0 0.0
      %1789 = vmatprep.subr.mxu0 0.0
      %1790 = vmatpush1.msra.mxu0 0.0
      %1791 = vmatprep.subr.mxu0 0.0
      %1792 = vmatpush1.msra.mxu0 0.0
      %1793 = vmatprep.subr.mxu0 0.0
      %1794 = vmatpush1.msra.mxu0 0.0
      %1795 = vmatprep.subr.mxu0 0.0
      %1796 = vmatpush1.msra.mxu0 0.0
      %1797 = vmatprep.subr.mxu0 0.0
      %1798 = vmatpush1.msra.mxu0 0.0
      %1799 = vmatprep.subr.mxu0 0.0
      %1800 = vmatpush1.msra.mxu0 0.0
      %1801 = vmatprep.subr.mxu0 0.0
      %1802 = vmatpush1.msra.mxu0 0.0
      %1803 = vmatprep.subr.mxu0 0.0
      %1804 = vmatpush1.msra.mxu0 0.0
      %1805 = vmatprep.subr.mxu0 0.0
      %1806 = vmatpush1.msra.mxu0 0.0
      %1807 = vmatprep.subr.mxu0 0.0
      %1808 = vmatpush1.msra.mxu0 0.0
      %1809 = vmatprep.subr.mxu0 0.0
      %1810 = vmatpush1.msra.mxu0 0.0
      %1811 = vmatprep.subr.mxu0 0.0
      %1812 = vmatpush1.msra.mxu0 0.0
      %1813 = vmatprep.subr.mxu0 0.0
      %1814 = vmatpush1.msra.mxu0 %v1779
      %1815 = vmatprep.subr.mxu0 0.0
      %1816 = vmatpush2.msra.mxu0 0.0
      %1817 = vmatprep.subr.mxu0 0.0
      %1818 = vmatpush2.msra.mxu0 0.0
      %1819 = vmatprep.subr.mxu0 0.0
      %1820 = vmatpush2.msra.mxu0 0.0
      %1821 = vmatprep.subr.mxu0 0.0
      %1822 = vmatpush2.msra.mxu0 0.0
      %1823 = vmatprep.subr.mxu0 0.0
      %1824 = vmatpush2.msra.mxu0 0.0
      %1825 = vmatprep.subr.mxu0 0.0
      %1826 = vmatpush2.msra.mxu0 0.0
      %1827 = vmatprep.subr.mxu0 0.0
      %1828 = vmatpush2.msra.mxu0 0.0
      %1829 = vmatprep.subr.mxu0 0.0
      %1830 = vmatpush2.msra.mxu0 0.0
      %1831 = vmatprep.subr.mxu0 0.0
      %1832 = vmatpush2.msra.mxu0 0.0
      %1833 = vmatprep.subr.mxu0 0.0
      %1834 = vmatpush2.msra.mxu0 0.0
      %1835 = vmatprep.subr.mxu0 0.0
      %1836 = vmatpush2.msra.mxu0 0.0
      %1837 = vmatprep.subr.mxu0 0.0
      %1838 = vmatpush2.msra.mxu0 0.0
      %1839 = vmatprep.subr.mxu0 0.0
      %1840 = vmatpush2.msra.mxu0 0.0
      %1841 = vmatprep.subr.mxu0 0.0
      %1842 = vmatpush2.msra.mxu0 0.0
      %1843 = vmatprep.subr.mxu0 0.0
      %1844 = vmatpush2.msra.mxu0 0.0
      %1845 = vmatprep.subr.mxu0 0.0
      %1846 = vmatpush2.msra.mxu0 0.0
      %1847 = vmatprep.mubr.f32.mxu0 0.0
      %1848 = vmatmul.mubr.f32.gmra.mxu0 %v1781
      %v1849 = vpop.f32.mrf.mxu0
      %v1850 = vadd.f32 0.0, %v1849
      %v1851 = vpop.f32.mrf.mxu0
      %1852 = vdwg.mxu0
      %v1853 = vadd.f32 %v1757, %v1850
      %1854 = vrot.lane.b32.xlu0 %v361, 10
      %v1855 = vpop.permute.xlu0 %1854
      %v1857 = vsel %vm389, %v1770, 0
      %1859 = vmatprep.subr.mxu0 0.0
      %1860 = vmatpush1.msra.mxu0 0.0
      %1861 = vmatprep.subr.mxu0 0.0
      %1862 = vmatpush1.msra.mxu0 0.0
      %1863 = vmatprep.subr.mxu0 0.0
      %1864 = vmatpush1.msra.mxu0 0.0
      %1865 = vmatprep.subr.mxu0 0.0
      %1866 = vmatpush1.msra.mxu0 0.0
      %1867 = vmatprep.subr.mxu0 0.0
      %1868 = vmatpush1.msra.mxu0 0.0
      %1869 = vmatprep.subr.mxu0 0.0
      %1870 = vmatpush1.msra.mxu0 0.0
      %1871 = vmatprep.subr.mxu0 0.0
      %1872 = vmatpush1.msra.mxu0 0.0
      %1873 = vmatprep.subr.mxu0 0.0
      %1874 = vmatpush1.msra.mxu0 0.0
      %1875 = vmatprep.subr.mxu0 0.0
      %1876 = vmatpush1.msra.mxu0 0.0
      %1877 = vmatprep.subr.mxu0 0.0
      %1878 = vmatpush1.msra.mxu0 0.0
      %1879 = vmatprep.subr.mxu0 0.0
      %1880 = vmatpush1.msra.mxu0 0.0
      %1881 = vmatprep.subr.mxu0 0.0
      %1882 = vmatpush1.msra.mxu0 0.0
      %1883 = vmatprep.subr.mxu0 0.0
      %1884 = vmatpush1.msra.mxu0 0.0
      %1885 = vmatprep.subr.mxu0 0.0
      %1886 = vmatpush1.msra.mxu0 0.0
      %1887 = vmatprep.subr.mxu0 0.0
      %1888 = vmatpush1.msra.mxu0 0.0
      %1889 = vmatprep.subr.mxu0 0.0
      %1890 = vmatpush1.msra.mxu0 %v1855
      %1891 = vmatprep.subr.mxu0 0.0
      %1892 = vmatpush2.msra.mxu0 0.0
      %1893 = vmatprep.subr.mxu0 0.0
      %1894 = vmatpush2.msra.mxu0 0.0
      %1895 = vmatprep.subr.mxu0 0.0
      %1896 = vmatpush2.msra.mxu0 0.0
      %1897 = vmatprep.subr.mxu0 0.0
      %1898 = vmatpush2.msra.mxu0 0.0
      %1899 = vmatprep.subr.mxu0 0.0
      %1900 = vmatpush2.msra.mxu0 0.0
      %1901 = vmatprep.subr.mxu0 0.0
      %1902 = vmatpush2.msra.mxu0 0.0
      %1903 = vmatprep.subr.mxu0 0.0
      %1904 = vmatpush2.msra.mxu0 0.0
      %1905 = vmatprep.subr.mxu0 0.0
      %1906 = vmatpush2.msra.mxu0 0.0
      %1907 = vmatprep.subr.mxu0 0.0
      %1908 = vmatpush2.msra.mxu0 0.0
      %1909 = vmatprep.subr.mxu0 0.0
      %1910 = vmatpush2.msra.mxu0 0.0
      %1911 = vmatprep.subr.mxu0 0.0
      %1912 = vmatpush2.msra.mxu0 0.0
      %1913 = vmatprep.subr.mxu0 0.0
      %1914 = vmatpush2.msra.mxu0 0.0
      %1915 = vmatprep.subr.mxu0 0.0
      %1916 = vmatpush2.msra.mxu0 0.0
      %1917 = vmatprep.subr.mxu0 0.0
      %1918 = vmatpush2.msra.mxu0 0.0
      %1919 = vmatprep.subr.mxu0 0.0
      %1920 = vmatpush2.msra.mxu0 0.0
      %1921 = vmatprep.subr.mxu0 0.0
      %1922 = vmatpush2.msra.mxu0 0.0
      %1923 = vmatprep.mubr.f32.mxu0 0.0
      %1924 = vmatmul.mubr.f32.gmra.mxu0 %v1857
      %v1925 = vpop.f32.mrf.mxu0
      %v1926 = vadd.f32 0.0, %v1925
      %v1927 = vpop.f32.mrf.mxu0
      %1928 = vdwg.mxu0
      %v1929 = vadd.f32 %v1853, %v1926
      %1930 = vrot.lane.b32.xlu0 %v361, 9
      %v1931 = vpop.permute.xlu0 %1930
      %v1933 = vsel %vm389, %v1771, 0
      %1935 = vmatprep.subr.mxu0 0.0
      %1936 = vmatpush1.msra.mxu0 0.0
      %1937 = vmatprep.subr.mxu0 0.0
      %1938 = vmatpush1.msra.mxu0 0.0
      %1939 = vmatprep.subr.mxu0 0.0
      %1940 = vmatpush1.msra.mxu0 0.0
      %1941 = vmatprep.subr.mxu0 0.0
      %1942 = vmatpush1.msra.mxu0 0.0
      %1943 = vmatprep.subr.mxu0 0.0
      %1944 = vmatpush1.msra.mxu0 0.0
      %1945 = vmatprep.subr.mxu0 0.0
      %1946 = vmatpush1.msra.mxu0 0.0
      %1947 = vmatprep.subr.mxu0 0.0
      %1948 = vmatpush1.msra.mxu0 0.0
      %1949 = vmatprep.subr.mxu0 0.0
      %1950 = vmatpush1.msra.mxu0 0.0
      %1951 = vmatprep.subr.mxu0 0.0
      %1952 = vmatpush1.msra.mxu0 0.0
      %1953 = vmatprep.subr.mxu0 0.0
      %1954 = vmatpush1.msra.mxu0 0.0
      %1955 = vmatprep.subr.mxu0 0.0
      %1956 = vmatpush1.msra.mxu0 0.0
      %1957 = vmatprep.subr.mxu0 0.0
      %1958 = vmatpush1.msra.mxu0 0.0
      %1959 = vmatprep.subr.mxu0 0.0
      %1960 = vmatpush1.msra.mxu0 0.0
      %1961 = vmatprep.subr.mxu0 0.0
      %1962 = vmatpush1.msra.mxu0 0.0
      %1963 = vmatprep.subr.mxu0 0.0
      %1964 = vmatpush1.msra.mxu0 0.0
      %1965 = vmatprep.subr.mxu0 0.0
      %1966 = vmatpush1.msra.mxu0 %v1931
      %1967 = vmatprep.subr.mxu0 0.0
      %1968 = vmatpush2.msra.mxu0 0.0
      %1969 = vmatprep.subr.mxu0 0.0
      %1970 = vmatpush2.msra.mxu0 0.0
      %1971 = vmatprep.subr.mxu0 0.0
      %1972 = vmatpush2.msra.mxu0 0.0
      %1973 = vmatprep.subr.mxu0 0.0
      %1974 = vmatpush2.msra.mxu0 0.0
      %1975 = vmatprep.subr.mxu0 0.0
      %1976 = vmatpush2.msra.mxu0 0.0
      %1977 = vmatprep.subr.mxu0 0.0
      %1978 = vmatpush2.msra.mxu0 0.0
      %1979 = vmatprep.subr.mxu0 0.0
      %1980 = vmatpush2.msra.mxu0 0.0
      %1981 = vmatprep.subr.mxu0 0.0
      %1982 = vmatpush2.msra.mxu0 0.0
      %1983 = vmatprep.subr.mxu0 0.0
      %1984 = vmatpush2.msra.mxu0 0.0
      %1985 = vmatprep.subr.mxu0 0.0
      %1986 = vmatpush2.msra.mxu0 0.0
      %1987 = vmatprep.subr.mxu0 0.0
      %1988 = vmatpush2.msra.mxu0 0.0
      %1989 = vmatprep.subr.mxu0 0.0
      %1990 = vmatpush2.msra.mxu0 0.0
      %1991 = vmatprep.subr.mxu0 0.0
      %1992 = vmatpush2.msra.mxu0 0.0
      %1993 = vmatprep.subr.mxu0 0.0
      %1994 = vmatpush2.msra.mxu0 0.0
      %1995 = vmatprep.subr.mxu0 0.0
      %1996 = vmatpush2.msra.mxu0 0.0
      %1997 = vmatprep.subr.mxu0 0.0
      %1998 = vmatpush2.msra.mxu0 0.0
      %1999 = vmatprep.mubr.f32.mxu0 0.0
      %2000 = vmatmul.mubr.f32.gmra.mxu0 %v1933
      %v2001 = vpop.f32.mrf.mxu0
      %v2002 = vadd.f32 0.0, %v2001
      %v2003 = vpop.f32.mrf.mxu0
      %2004 = vdwg.mxu0
      %v2005 = vadd.f32 %v1929, %v2002
      %2006 = vrot.lane.b32.xlu0 %v361, 1
      %v2007 = vpop.permute.xlu0 %2006
      %v2009 = vsel %vm389, %v1772, 0
      %2011 = vmatprep.subr.mxu0 0.0
      %2012 = vmatpush1.msra.mxu0 0.0
      %2013 = vmatprep.subr.mxu0 0.0
      %2014 = vmatpush1.msra.mxu0 0.0
      %2015 = vmatprep.subr.mxu0 0.0
      %2016 = vmatpush1.msra.mxu0 0.0
      %2017 = vmatprep.subr.mxu0 0.0
      %2018 = vmatpush1.msra.mxu0 0.0
      %2019 = vmatprep.subr.mxu0 0.0
      %2020 = vmatpush1.msra.mxu0 0.0
      %2021 = vmatprep.subr.mxu0 0.0
      %2022 = vmatpush1.msra.mxu0 0.0
      %2023 = vmatprep.subr.mxu0 0.0
      %2024 = vmatpush1.msra.mxu0 0.0
      %2025 = vmatprep.subr.mxu0 0.0
      %2026 = vmatpush1.msra.mxu0 0.0
      %2027 = vmatprep.subr.mxu0 0.0
      %2028 = vmatpush1.msra.mxu0 0.0
      %2029 = vmatprep.subr.mxu0 0.0
      %2030 = vmatpush1.msra.mxu0 0.0
      %2031 = vmatprep.subr.mxu0 0.0
      %2032 = vmatpush1.msra.mxu0 0.0
      %2033 = vmatprep.subr.mxu0 0.0
      %2034 = vmatpush1.msra.mxu0 0.0
      %2035 = vmatprep.subr.mxu0 0.0
      %2036 = vmatpush1.msra.mxu0 0.0
      %2037 = vmatprep.subr.mxu0 0.0
      %2038 = vmatpush1.msra.mxu0 0.0
      %2039 = vmatprep.subr.mxu0 0.0
      %2040 = vmatpush1.msra.mxu0 0.0
      %2041 = vmatprep.subr.mxu0 0.0
      %2042 = vmatpush1.msra.mxu0 %v2007
      %2043 = vmatprep.subr.mxu0 0.0
      %2044 = vmatpush2.msra.mxu0 0.0
      %2045 = vmatprep.subr.mxu0 0.0
      %2046 = vmatpush2.msra.mxu0 0.0
      %2047 = vmatprep.subr.mxu0 0.0
      %2048 = vmatpush2.msra.mxu0 0.0
      %2049 = vmatprep.subr.mxu0 0.0
      %2050 = vmatpush2.msra.mxu0 0.0
      %2051 = vmatprep.subr.mxu0 0.0
      %2052 = vmatpush2.msra.mxu0 0.0
      %2053 = vmatprep.subr.mxu0 0.0
      %2054 = vmatpush2.msra.mxu0 0.0
      %2055 = vmatprep.subr.mxu0 0.0
      %2056 = vmatpush2.msra.mxu0 0.0
      %2057 = vmatprep.subr.mxu0 0.0
      %2058 = vmatpush2.msra.mxu0 0.0
      %2059 = vmatprep.subr.mxu0 0.0
      %2060 = vmatpush2.msra.mxu0 0.0
      %2061 = vmatprep.subr.mxu0 0.0
      %2062 = vmatpush2.msra.mxu0 0.0
      %2063 = vmatprep.subr.mxu0 0.0
      %2064 = vmatpush2.msra.mxu0 0.0
      %2065 = vmatprep.subr.mxu0 0.0
      %2066 = vmatpush2.msra.mxu0 0.0
      %2067 = vmatprep.subr.mxu0 0.0
      %2068 = vmatpush2.msra.mxu0 0.0
      %2069 = vmatprep.subr.mxu0 0.0
      %2070 = vmatpush2.msra.mxu0 0.0
      %2071 = vmatprep.subr.mxu0 0.0
      %2072 = vmatpush2.msra.mxu0 0.0
      %2073 = vmatprep.subr.mxu0 0.0
      %2074 = vmatpush2.msra.mxu0 0.0
      %2075 = vmatprep.mubr.f32.mxu0 0.0
      %2076 = vmatmul.mubr.f32.gmra.mxu0 %v2009
      %v2077 = vpop.f32.mrf.mxu0
      %v2078 = vadd.f32 0.0, %v2077
      %v2079 = vpop.f32.mrf.mxu0
      %2080 = vdwg.mxu0
      %v2081 = vadd.f32 %v2005, %v2078
      %v2083 = vsel %vm389, %v1773, 0
      %2085 = vmatprep.subr.mxu0 0.0
      %2086 = vmatpush1.msra.mxu0 0.0
      %2087 = vmatprep.subr.mxu0 0.0
      %2088 = vmatpush1.msra.mxu0 0.0
      %2089 = vmatprep.subr.mxu0 0.0
      %2090 = vmatpush1.msra.mxu0 0.0
      %2091 = vmatprep.subr.mxu0 0.0
      %2092 = vmatpush1.msra.mxu0 0.0
      %2093 = vmatprep.subr.mxu0 0.0
      %2094 = vmatpush1.msra.mxu0 0.0
      %2095 = vmatprep.subr.mxu0 0.0
      %2096 = vmatpush1.msra.mxu0 0.0
      %2097 = vmatprep.subr.mxu0 0.0
      %2098 = vmatpush1.msra.mxu0 0.0
      %2099 = vmatprep.subr.mxu0 0.0
      %2100 = vmatpush1.msra.mxu0 0.0
      %2101 = vmatprep.subr.mxu0 0.0
      %2102 = vmatpush1.msra.mxu0 0.0
      %2103 = vmatprep.subr.mxu0 0.0
      %2104 = vmatpush1.msra.mxu0 0.0
      %2105 = vmatprep.subr.mxu0 0.0
      %2106 = vmatpush1.msra.mxu0 0.0
      %2107 = vmatprep.subr.mxu0 0.0
      %2108 = vmatpush1.msra.mxu0 0.0
      %2109 = vmatprep.subr.mxu0 0.0
      %2110 = vmatpush1.msra.mxu0 0.0
      %2111 = vmatprep.subr.mxu0 0.0
      %2112 = vmatpush1.msra.mxu0 0.0
      %2113 = vmatprep.subr.mxu0 0.0
      %2114 = vmatpush1.msra.mxu0 0.0
      %2115 = vmatprep.subr.mxu0 0.0
      %2116 = vmatpush1.msra.mxu0 %v361
      %2117 = vmatprep.subr.mxu0 0.0
      %2118 = vmatpush2.msra.mxu0 0.0
      %2119 = vmatprep.subr.mxu0 0.0
      %2120 = vmatpush2.msra.mxu0 0.0
      %2121 = vmatprep.subr.mxu0 0.0
      %2122 = vmatpush2.msra.mxu0 0.0
      %2123 = vmatprep.subr.mxu0 0.0
      %2124 = vmatpush2.msra.mxu0 0.0
      %2125 = vmatprep.subr.mxu0 0.0
      %2126 = vmatpush2.msra.mxu0 0.0
      %2127 = vmatprep.subr.mxu0 0.0
      %2128 = vmatpush2.msra.mxu0 0.0
      %2129 = vmatprep.subr.mxu0 0.0
      %2130 = vmatpush2.msra.mxu0 0.0
      %2131 = vmatprep.subr.mxu0 0.0
      %2132 = vmatpush2.msra.mxu0 0.0
      %2133 = vmatprep.subr.mxu0 0.0
      %2134 = vmatpush2.msra.mxu0 0.0
      %2135 = vmatprep.subr.mxu0 0.0
      %2136 = vmatpush2.msra.mxu0 0.0
      %2137 = vmatprep.subr.mxu0 0.0
      %2138 = vmatpush2.msra.mxu0 0.0
      %2139 = vmatprep.subr.mxu0 0.0
      %2140 = vmatpush2.msra.mxu0 0.0
      %2141 = vmatprep.subr.mxu0 0.0
      %2142 = vmatpush2.msra.mxu0 0.0
      %2143 = vmatprep.subr.mxu0 0.0
      %2144 = vmatpush2.msra.mxu0 0.0
      %2145 = vmatprep.subr.mxu0 0.0
      %2146 = vmatpush2.msra.mxu0 0.0
      %2147 = vmatprep.subr.mxu0 0.0
      %2148 = vmatpush2.msra.mxu0 0.0
      %2149 = vmatprep.mubr.f32.mxu0 0.0
      %2150 = vmatmul.mubr.f32.gmra.mxu0 %v2083
      %v2151 = vpop.f32.mrf.mxu0
      %v2152 = vadd.f32 0.0, %v2151
      %v2153 = vpop.f32.mrf.mxu0
      %2154 = vdwg.mxu0
      %v2155 = vadd.f32 %v2081, %v2152
      %2156 = vrot.lane.b32.xlu0 %v361, 127
      %v2157 = vpop.permute.xlu0 %2156
      %v2159 = vsel %vm389, %v1774, 0
      %2161 = vmatprep.subr.mxu0 0.0
      %2162 = vmatpush1.msra.mxu0 0.0
      %2163 = vmatprep.subr.mxu0 0.0
      %2164 = vmatpush1.msra.mxu0 0.0
      %2165 = vmatprep.subr.mxu0 0.0
      %2166 = vmatpush1.msra.mxu0 0.0
      %2167 = vmatprep.subr.mxu0 0.0
      %2168 = vmatpush1.msra.mxu0 0.0
      %2169 = vmatprep.subr.mxu0 0.0
      %2170 = vmatpush1.msra.mxu0 0.0
      %2171 = vmatprep.subr.mxu0 0.0
      %2172 = vmatpush1.msra.mxu0 0.0
      %2173 = vmatprep.subr.mxu0 0.0
      %2174 = vmatpush1.msra.mxu0 0.0
      %2175 = vmatprep.subr.mxu0 0.0
      %2176 = vmatpush1.msra.mxu0 0.0
      %2177 = vmatprep.subr.mxu0 0.0
      %2178 = vmatpush1.msra.mxu0 0.0
      %2179 = vmatprep.subr.mxu0 0.0
      %2180 = vmatpush1.msra.mxu0 0.0
      %2181 = vmatprep.subr.mxu0 0.0
      %2182 = vmatpush1.msra.mxu0 0.0
      %2183 = vmatprep.subr.mxu0 0.0
      %2184 = vmatpush1.msra.mxu0 0.0
      %2185 = vmatprep.subr.mxu0 0.0
      %2186 = vmatpush1.msra.mxu0 0.0
      %2187 = vmatprep.subr.mxu0 0.0
      %2188 = vmatpush1.msra.mxu0 0.0
      %2189 = vmatprep.subr.mxu0 0.0
      %2190 = vmatpush1.msra.mxu0 0.0
      %2191 = vmatprep.subr.mxu0 0.0
      %2192 = vmatpush1.msra.mxu0 %v2157
      %2193 = vmatprep.subr.mxu0 0.0
      %2194 = vmatpush2.msra.mxu0 0.0
      %2195 = vmatprep.subr.mxu0 0.0
      %2196 = vmatpush2.msra.mxu0 0.0
      %2197 = vmatprep.subr.mxu0 0.0
      %2198 = vmatpush2.msra.mxu0 0.0
      %2199 = vmatprep.subr.mxu0 0.0
      %2200 = vmatpush2.msra.mxu0 0.0
      %2201 = vmatprep.subr.mxu0 0.0
      %2202 = vmatpush2.msra.mxu0 0.0
      %2203 = vmatprep.subr.mxu0 0.0
      %2204 = vmatpush2.msra.mxu0 0.0
      %2205 = vmatprep.subr.mxu0 0.0
      %2206 = vmatpush2.msra.mxu0 0.0
      %2207 = vmatprep.subr.mxu0 0.0
      %2208 = vmatpush2.msra.mxu0 0.0
      %2209 = vmatprep.subr.mxu0 0.0
      %2210 = vmatpush2.msra.mxu0 0.0
      %2211 = vmatprep.subr.mxu0 0.0
      %2212 = vmatpush2.msra.mxu0 0.0
      %2213 = vmatprep.subr.mxu0 0.0
      %2214 = vmatpush2.msra.mxu0 0.0
      %2215 = vmatprep.subr.mxu0 0.0
      %2216 = vmatpush2.msra.mxu0 0.0
      %2217 = vmatprep.subr.mxu0 0.0
      %2218 = vmatpush2.msra.mxu0 0.0
      %2219 = vmatprep.subr.mxu0 0.0
      %2220 = vmatpush2.msra.mxu0 0.0
      %2221 = vmatprep.subr.mxu0 0.0
      %2222 = vmatpush2.msra.mxu0 0.0
      %2223 = vmatprep.subr.mxu0 0.0
      %2224 = vmatpush2.msra.mxu0 0.0
      %2225 = vmatprep.mubr.f32.mxu0 0.0
      %2226 = vmatmul.mubr.f32.gmra.mxu0 %v2159
      %v2227 = vpop.f32.mrf.mxu0
      %v2228 = vadd.f32 0.0, %v2227
      %v2229 = vpop.f32.mrf.mxu0
      %2230 = vdwg.mxu0
      %v2231 = vadd.f32 %v2155, %v2228
      %2232 = vrot.lane.b32.xlu0 %v361, 119
      %v2233 = vpop.permute.xlu0 %2232
      %v2235 = vsel %vm389, %v1775, 0
      %2237 = vmatprep.subr.mxu0 0.0
      %2238 = vmatpush1.msra.mxu0 0.0
      %2239 = vmatprep.subr.mxu0 0.0
      %2240 = vmatpush1.msra.mxu0 0.0
      %2241 = vmatprep.subr.mxu0 0.0
      %2242 = vmatpush1.msra.mxu0 0.0
      %2243 = vmatprep.subr.mxu0 0.0
      %2244 = vmatpush1.msra.mxu0 0.0
      %2245 = vmatprep.subr.mxu0 0.0
      %2246 = vmatpush1.msra.mxu0 0.0
      %2247 = vmatprep.subr.mxu0 0.0
      %2248 = vmatpush1.msra.mxu0 0.0
      %2249 = vmatprep.subr.mxu0 0.0
      %2250 = vmatpush1.msra.mxu0 0.0
      %2251 = vmatprep.subr.mxu0 0.0
      %2252 = vmatpush1.msra.mxu0 0.0
      %2253 = vmatprep.subr.mxu0 0.0
      %2254 = vmatpush1.msra.mxu0 0.0
      %2255 = vmatprep.subr.mxu0 0.0
      %2256 = vmatpush1.msra.mxu0 0.0
      %2257 = vmatprep.subr.mxu0 0.0
      %2258 = vmatpush1.msra.mxu0 0.0
      %2259 = vmatprep.subr.mxu0 0.0
      %2260 = vmatpush1.msra.mxu0 0.0
      %2261 = vmatprep.subr.mxu0 0.0
      %2262 = vmatpush1.msra.mxu0 0.0
      %2263 = vmatprep.subr.mxu0 0.0
      %2264 = vmatpush1.msra.mxu0 0.0
      %2265 = vmatprep.subr.mxu0 0.0
      %2266 = vmatpush1.msra.mxu0 0.0
      %2267 = vmatprep.subr.mxu0 0.0
      %2268 = vmatpush1.msra.mxu0 %v2233
      %2269 = vmatprep.subr.mxu0 0.0
      %2270 = vmatpush2.msra.mxu0 0.0
      %2271 = vmatprep.subr.mxu0 0.0
      %2272 = vmatpush2.msra.mxu0 0.0
      %2273 = vmatprep.subr.mxu0 0.0
      %2274 = vmatpush2.msra.mxu0 0.0
      %2275 = vmatprep.subr.mxu0 0.0
      %2276 = vmatpush2.msra.mxu0 0.0
      %2277 = vmatprep.subr.mxu0 0.0
      %2278 = vmatpush2.msra.mxu0 0.0
      %2279 = vmatprep.subr.mxu0 0.0
      %2280 = vmatpush2.msra.mxu0 0.0
      %2281 = vmatprep.subr.mxu0 0.0
      %2282 = vmatpush2.msra.mxu0 0.0
      %2283 = vmatprep.subr.mxu0 0.0
      %2284 = vmatpush2.msra.mxu0 0.0
      %2285 = vmatprep.subr.mxu0 0.0
      %2286 = vmatpush2.msra.mxu0 0.0
      %2287 = vmatprep.subr.mxu0 0.0
      %2288 = vmatpush2.msra.mxu0 0.0
      %2289 = vmatprep.subr.mxu0 0.0
      %2290 = vmatpush2.msra.mxu0 0.0
      %2291 = vmatprep.subr.mxu0 0.0
      %2292 = vmatpush2.msra.mxu0 0.0
      %2293 = vmatprep.subr.mxu0 0.0
      %2294 = vmatpush2.msra.mxu0 0.0
      %2295 = vmatprep.subr.mxu0 0.0
      %2296 = vmatpush2.msra.mxu0 0.0
      %2297 = vmatprep.subr.mxu0 0.0
      %2298 = vmatpush2.msra.mxu0 0.0
      %2299 = vmatprep.subr.mxu0 0.0
      %2300 = vmatpush2.msra.mxu0 0.0
      %2301 = vmatprep.mubr.f32.mxu0 0.0
      %2302 = vmatmul.mubr.f32.gmra.mxu0 %v2235
      %v2303 = vpop.f32.mrf.mxu0
      %v2304 = vadd.f32 0.0, %v2303
      %v2305 = vpop.f32.mrf.mxu0
      %2306 = vdwg.mxu0
      %v2307 = vadd.f32 %v2231, %v2304
      %2308 = vrot.lane.b32.xlu0 %v361, 118
      %v2309 = vpop.permute.xlu0 %2308
      %v2311 = vsel %vm389, %v1776, 0
      %2313 = vmatprep.subr.mxu0 0.0
      %2314 = vmatpush1.msra.mxu0 0.0
      %2315 = vmatprep.subr.mxu0 0.0
      %2316 = vmatpush1.msra.mxu0 0.0
      %2317 = vmatprep.subr.mxu0 0.0
      %2318 = vmatpush1.msra.mxu0 0.0
      %2319 = vmatprep.subr.mxu0 0.0
      %2320 = vmatpush1.msra.mxu0 0.0
      %2321 = vmatprep.subr.mxu0 0.0
      %2322 = vmatpush1.msra.mxu0 0.0
      %2323 = vmatprep.subr.mxu0 0.0
      %2324 = vmatpush1.msra.mxu0 0.0
      %2325 = vmatprep.subr.mxu0 0.0
      %2326 = vmatpush1.msra.mxu0 0.0
      %2327 = vmatprep.subr.mxu0 0.0
      %2328 = vmatpush1.msra.mxu0 0.0
      %2329 = vmatprep.subr.mxu0 0.0
      %2330 = vmatpush1.msra.mxu0 0.0
      %2331 = vmatprep.subr.mxu0 0.0
      %2332 = vmatpush1.msra.mxu0 0.0
      %2333 = vmatprep.subr.mxu0 0.0
      %2334 = vmatpush1.msra.mxu0 0.0
      %2335 = vmatprep.subr.mxu0 0.0
      %2336 = vmatpush1.msra.mxu0 0.0
      %2337 = vmatprep.subr.mxu0 0.0
      %2338 = vmatpush1.msra.mxu0 0.0
      %2339 = vmatprep.subr.mxu0 0.0
      %2340 = vmatpush1.msra.mxu0 0.0
      %2341 = vmatprep.subr.mxu0 0.0
      %2342 = vmatpush1.msra.mxu0 0.0
      %2343 = vmatprep.subr.mxu0 0.0
      %2344 = vmatpush1.msra.mxu0 %v2309
      %2345 = vmatprep.subr.mxu0 0.0
      %2346 = vmatpush2.msra.mxu0 0.0
      %2347 = vmatprep.subr.mxu0 0.0
      %2348 = vmatpush2.msra.mxu0 0.0
      %2349 = vmatprep.subr.mxu0 0.0
      %2350 = vmatpush2.msra.mxu0 0.0
      %2351 = vmatprep.subr.mxu0 0.0
      %2352 = vmatpush2.msra.mxu0 0.0
      %2353 = vmatprep.subr.mxu0 0.0
      %2354 = vmatpush2.msra.mxu0 0.0
      %2355 = vmatprep.subr.mxu0 0.0
      %2356 = vmatpush2.msra.mxu0 0.0
      %2357 = vmatprep.subr.mxu0 0.0
      %2358 = vmatpush2.msra.mxu0 0.0
      %2359 = vmatprep.subr.mxu0 0.0
      %2360 = vmatpush2.msra.mxu0 0.0
      %2361 = vmatprep.subr.mxu0 0.0
      %2362 = vmatpush2.msra.mxu0 0.0
      %2363 = vmatprep.subr.mxu0 0.0
      %2364 = vmatpush2.msra.mxu0 0.0
      %2365 = vmatprep.subr.mxu0 0.0
      %2366 = vmatpush2.msra.mxu0 0.0
      %2367 = vmatprep.subr.mxu0 0.0
      %2368 = vmatpush2.msra.mxu0 0.0
      %2369 = vmatprep.subr.mxu0 0.0
      %2370 = vmatpush2.msra.mxu0 0.0
      %2371 = vmatprep.subr.mxu0 0.0
      %2372 = vmatpush2.msra.mxu0 0.0
      %2373 = vmatprep.subr.mxu0 0.0
      %2374 = vmatpush2.msra.mxu0 0.0
      %2375 = vmatprep.subr.mxu0 0.0
      %2376 = vmatpush2.msra.mxu0 0.0
      %2377 = vmatprep.mubr.f32.mxu0 0.0
      %2378 = vmatmul.mubr.f32.gmra.mxu0 %v2311
      %v2379 = vpop.f32.mrf.mxu0
      %v2380 = vadd.f32 0.0, %v2379
      %v2381 = vpop.f32.mrf.mxu0
      %2382 = vdwg.mxu0
      %v2383 = vadd.f32 %v2307, %v2380
      %2384 = vrot.lane.b32.xlu0 %v361, 117
      %v2385 = vpop.permute.xlu0 %2384
      %v2387 = vsel %vm389, %v1777, 0
      %2389 = vmatprep.subr.mxu0 0.0
      %2390 = vmatpush1.msra.mxu0 0.0
      %2391 = vmatprep.subr.mxu0 0.0
      %2392 = vmatpush1.msra.mxu0 0.0
      %2393 = vmatprep.subr.mxu0 0.0
      %2394 = vmatpush1.msra.mxu0 0.0
      %2395 = vmatprep.subr.mxu0 0.0
      %2396 = vmatpush1.msra.mxu0 0.0
      %2397 = vmatprep.subr.mxu0 0.0
      %2398 = vmatpush1.msra.mxu0 0.0
      %2399 = vmatprep.subr.mxu0 0.0
      %2400 = vmatpush1.msra.mxu0 0.0
      %2401 = vmatprep.subr.mxu0 0.0
      %2402 = vmatpush1.msra.mxu0 0.0
      %2403 = vmatprep.subr.mxu0 0.0
      %2404 = vmatpush1.msra.mxu0 0.0
      %2405 = vmatprep.subr.mxu0 0.0
      %2406 = vmatpush1.msra.mxu0 0.0
      %2407 = vmatprep.subr.mxu0 0.0
      %2408 = vmatpush1.msra.mxu0 0.0
      %2409 = vmatprep.subr.mxu0 0.0
      %2410 = vmatpush1.msra.mxu0 0.0
      %2411 = vmatprep.subr.mxu0 0.0
      %2412 = vmatpush1.msra.mxu0 0.0
      %2413 = vmatprep.subr.mxu0 0.0
      %2414 = vmatpush1.msra.mxu0 0.0
      %2415 = vmatprep.subr.mxu0 0.0
      %2416 = vmatpush1.msra.mxu0 0.0
      %2417 = vmatprep.subr.mxu0 0.0
      %2418 = vmatpush1.msra.mxu0 0.0
      %2419 = vmatprep.subr.mxu0 0.0
      %2420 = vmatpush1.msra.mxu0 %v2385
      %2421 = vmatprep.subr.mxu0 0.0
      %2422 = vmatpush2.msra.mxu0 0.0
      %2423 = vmatprep.subr.mxu0 0.0
      %2424 = vmatpush2.msra.mxu0 0.0
      %2425 = vmatprep.subr.mxu0 0.0
      %2426 = vmatpush2.msra.mxu0 0.0
      %2427 = vmatprep.subr.mxu0 0.0
      %2428 = vmatpush2.msra.mxu0 0.0
      %2429 = vmatprep.subr.mxu0 0.0
      %2430 = vmatpush2.msra.mxu0 0.0
      %2431 = vmatprep.subr.mxu0 0.0
      %2432 = vmatpush2.msra.mxu0 0.0
      %2433 = vmatprep.subr.mxu0 0.0
      %2434 = vmatpush2.msra.mxu0 0.0
      %2435 = vmatprep.subr.mxu0 0.0
      %2436 = vmatpush2.msra.mxu0 0.0
      %2437 = vmatprep.subr.mxu0 0.0
      %2438 = vmatpush2.msra.mxu0 0.0
      %2439 = vmatprep.subr.mxu0 0.0
      %2440 = vmatpush2.msra.mxu0 0.0
      %2441 = vmatprep.subr.mxu0 0.0
      %2442 = vmatpush2.msra.mxu0 0.0
      %2443 = vmatprep.subr.mxu0 0.0
      %2444 = vmatpush2.msra.mxu0 0.0
      %2445 = vmatprep.subr.mxu0 0.0
      %2446 = vmatpush2.msra.mxu0 0.0
      %2447 = vmatprep.subr.mxu0 0.0
      %2448 = vmatpush2.msra.mxu0 0.0
      %2449 = vmatprep.subr.mxu0 0.0
      %2450 = vmatpush2.msra.mxu0 0.0
      %2451 = vmatprep.subr.mxu0 0.0
      %2452 = vmatpush2.msra.mxu0 0.0
      %2453 = vmatprep.mubr.f32.mxu0 0.0
      %2454 = vmatmul.mubr.f32.gmra.mxu0 %v2387
      %v2455 = vpop.f32.mrf.mxu0
      %v2456 = vadd.f32 0.0, %v2455
      %v2457 = vpop.f32.mrf.mxu0
      %2458 = vdwg.mxu0
      %v2459 = vadd.f32 %v2383, %v2456
      %v2460 = vld [vmem:[%s4] sm:$0x1]
      %v2462 = vlaneseq
      %v2463 = vshrl.u32 %v2462, 7
      %v2464 = vsub.s32 0, %v2463
      %v2465 = vrot.slane %v2460, %v2464
      %v2467 = vmul.f32 %v2459, %v2465
      %v2468 = vld [vmem:[#allocation2] sm:$0xff]
      %2469 = vadd.xlane.f32.xlu0 %v2467
      %v2470 = vpop.xlane.xlu0 %2469
      %v2471 = vadd.f32 %v2468, %v2470
      %vm2472 = vcmask 7168
      %2473 = vst.msk [vmem:[#allocation2] sm:$0xff] %vm2472, %v2471
      %v2474 = vld [vmem:[#allocation3] sm:$0xff]
      %v2475 = vmul.f32 %v2467, %v2459
      %2476 = vadd.xlane.f32.xlu0 %v2475
      %v2477 = vpop.xlane.xlu0 %2476
      %v2478 = vadd.f32 %v2474, %v2477
      %2479 = vst.msk [vmem:[#allocation3] sm:$0xff] %vm2472, %v2478
      %s2480 = smul.u32 %s21, 8
      %s2481 = scalar_lea.vmem %s351, %s2480
      %2482 = vst [vmem:[%s2481] sm:$0xff] %v2459
      %p2483 = scmp.eq.s32.totalorder %s21, 7
      // Predicated region
      $region45: #{hffm_forward.4} parent=39 // pred_check
        %p2484 = pneg %p2483
      $region46: #{hffm_forward.4} parent=39 // pred_check_branch
        %2486 = sbr.rel (%p2484) target = $region48
      $region47: #{hffm_forward.4} parent=39 // pred_region
        %v2487 = vld [vmem:[#allocation2] sm:$0xff]
        %v2488 = vmul.f32 %v2487, 0.001953125
        %v2489 = vld [vmem:[#allocation3] sm:$0xff]
        %v2490 = vmul.f32 %v2489, 0.001953125
        %v2491 = vmul.f32 %v2488, %v2488
        %v2492 = vsub.f32 %v2490, %v2491
        %v2493 = vadd.f32 %v2492, 1e-05
        %v2494 = vrsqrt.pop %v2493
        %v2495 = vsub.f32 0.0, %v2488
        %v2496 = vmul.f32 %v2495, %v2494
        %v2497 = vld [vmem:[%s351] sm:$0xff]
        %v2498 = vld [vmem:[%s351 + $0x8] sm:$0xff]
        %v2499 = vld [vmem:[%s351 + $0x10] sm:$0xff]
        %v2500 = vld [vmem:[%s351 + $0x18] sm:$0xff]
        %v2501 = vld [vmem:[%s351 + $0x20] sm:$0xff]
        %v2502 = vld [vmem:[%s351 + $0x28] sm:$0xff]
        %v2503 = vld [vmem:[%s351 + $0x30] sm:$0xff]
        %v2504 = vld [vmem:[%s351 + $0x38] sm:$0xff]
        %2506 = vset.pattern.permute.xlu0 0
        %2507 = vperm.xlu0 %2506, %v2494
        %v2508 = vpop.permute.xlu0 %2507
        %v2510 = vmul.f32 %v2497, %v2508
        %v2511 = vmul.f32 %v2498, %v2508
        %v2512 = vmul.f32 %v2499, %v2508
        %v2513 = vmul.f32 %v2500, %v2508
        %v2514 = vmul.f32 %v2501, %v2508
        %v2515 = vmul.f32 %v2502, %v2508
        %v2516 = vmul.f32 %v2503, %v2508
        %v2517 = vmul.f32 %v2504, %v2508
        %2519 = vset.pattern.permute.xlu0 0
        %2520 = vperm.xlu0 %2519, %v2496
        %v2521 = vpop.permute.xlu0 %2520
        %v2523 = vadd.f32 %v2510, %v2521
        %v2524 = vadd.f32 %v2511, %v2521
        %v2525 = vadd.f32 %v2512, %v2521
        %v2526 = vadd.f32 %v2513, %v2521
        %v2527 = vadd.f32 %v2514, %v2521
        %v2528 = vadd.f32 %v2515, %v2521
        %v2529 = vadd.f32 %v2516, %v2521
        %v2530 = vadd.f32 %v2517, %v2521
        %vm2531 = vcmp.ge.f32.partialorder %v2523, 0.0
        %vm2532 = vcmp.ge.f32.partialorder %v2524, 0.0
        %vm2533 = vcmp.ge.f32.partialorder %v2525, 0.0
        %vm2534 = vcmp.ge.f32.partialorder %v2526, 0.0
        %vm2535 = vcmp.ge.f32.partialorder %v2527, 0.0
        %vm2536 = vcmp.ge.f32.partialorder %v2528, 0.0
        %vm2537 = vcmp.ge.f32.partialorder %v2529, 0.0
        %vm2538 = vcmp.ge.f32.partialorder %v2530, 0.0
        %v2539 = vmul.f32 %v2523, 0.1
        %v2540 = vmul.f32 %v2524, 0.1
        %v2541 = vmul.f32 %v2525, 0.1
        %v2542 = vmul.f32 %v2526, 0.1
        %v2543 = vmul.f32 %v2527, 0.1
        %v2544 = vmul.f32 %v2528, 0.1
        %v2545 = vmul.f32 %v2529, 0.1
        %v2546 = vmul.f32 %v2530, 0.1
        %v2547 = vsel %vm2531, %v2523, %v2539
        %v2548 = vsel %vm2532, %v2524, %v2540
        %v2549 = vsel %vm2533, %v2525, %v2541
        %v2550 = vsel %vm2534, %v2526, %v2542
        %v2551 = vsel %vm2535, %v2527, %v2543
        %v2552 = vsel %vm2536, %v2528, %v2544
        %v2553 = vsel %vm2537, %v2529, %v2545
        %v2554 = vsel %vm2538, %v2530, %v2546
        %v2555 = vmul.f32 %v2547, %v2465
        %v2556 = vmul.f32 %v2548, %v2465
        %v2557 = vmul.f32 %v2549, %v2465
        %v2558 = vmul.f32 %v2550, %v2465
        %v2559 = vmul.f32 %v2551, %v2465
        %v2560 = vmul.f32 %v2552, %v2465
        %v2561 = vmul.f32 %v2553, %v2465
        %v2562 = vmul.f32 %v2554, %v2465
        %2563 = vst [vmem:[%s351] sm:$0xff] %v2555
        %2564 = vst [vmem:[%s351 + $0x8] sm:$0xff] %v2556
        %2565 = vst [vmem:[%s351 + $0x10] sm:$0xff] %v2557
        %2566 = vst [vmem:[%s351 + $0x18] sm:$0xff] %v2558
        %2567 = vst [vmem:[%s351 + $0x20] sm:$0xff] %v2559
        %2568 = vst [vmem:[%s351 + $0x28] sm:$0xff] %v2560
        %2569 = vst [vmem:[%s351 + $0x30] sm:$0xff] %v2561
        %2570 = vst [vmem:[%s351 + $0x38] sm:$0xff] %v2562
      $region48: #{hffm_forward.4} parent=39 // pred_fallthru
        _
      %p2571 = scmp.lt.s32.totalorder %s20, 1
      %s2572 = scalar_select %p2571, %s20, 1
      %s2573 = smul.addr %s2572, 8
      %s2574 = smul.addr %s2573, 8
      %s2575 = scalar_lea.vmem %s5, %s2574
      // Predicated region
      $region49: #{hffm_forward.4} parent=39 // pred_check
        %p2576 = pneg %p184
      $region50: #{hffm_forward.4} parent=39 // pred_check_branch
        %2578 = sbr.rel (%p2576) target = $region52
      $region51: #{hffm_forward.4} parent=39 // pred_region
        _
      $region52: #{hffm_forward.4} parent=39 // pred_fallthru
        _
    $region40: #{hffm_forward.4} parent=5 // pred_fallthru
      _
    %p2579 = scmp.le.s32.totalorder 2, %s11
    // Predicated region
    $region53: #{hffm_forward.4} parent=5 // pred_check
      %p2580 = pneg %p2579
    $region54: #{hffm_forward.4} parent=5 // pred_check_branch
      %2582 = sbr.rel (%p2580) target = $region56
    $region55: #{hffm_forward.4} parent=5 // pred_region
      %s2583 = ssub.s32 %s11, 2
      // Predicated region
      $region57: #{hffm_forward.4} parent=55 // pred_check
        %p2584 = pneg %p190
      $region58: #{hffm_forward.4} parent=55 // pred_check_branch
        %2586 = sbr.rel (%p2584) target = $region60
      $region59: #{hffm_forward.4} parent=55 // pred_region
        %p2587 = scmp.lt.s32.totalorder %s22, 1
        %s2588 = scalar_select %p2587, %s22, 1
        %s2589 = smul.addr %s2588, 8
        %s2590 = smul.addr %s2589, 8
        %s2591 = scalar_lea.vmem %s5, %s2590
      $region60: #{hffm_forward.4} parent=55 // pred_fallthru
        _
    $region56: #{hffm_forward.4} parent=5 // pred_fallthru
      _
  $region6: #{hffm_forward.4} parent=0 // loop_footer
    %s15 = sadd.s32 1, %s11
  $region7: #{hffm_forward.4} parent=0 // loop_footer_branch
    %10 = sbr.rel target = $region3
  $region8: #{hffm_forward.4} parent=0 // loop_exit
    _

// kernel: hffm_forward.5
$region0: #{hffm_forward.5}
  #allocation0 [shape = 'u32[]', space=smem, size = 0x4, offset = 0x4, fixed_abs, tag = 'smem constant byte address 0x4 - core index']
  #allocation1 [shape = 'u32[144,128]{1,0:T(1,128)}', space=vmem, size = 0x12000, scoped, tag = 'internal scratch']
  %s0 = inlined_call_operand.vmem [shape: f32[2,8,8,128], index: 0, kind: input, shape index: {}, may-alias: {0,1,2}]
  %s1 = inlined_call_operand.vmem [shape: f32[2,8,8,128], index: 1, kind: input, shape index: {}, may-alias: {0,1,2}]
  %s2 = inlined_call_operand.vmem [shape: f32[2,8,8,128], index: 2, kind: input, shape index: {}, may-alias: {0,1,2}]
  %s3 = inlined_call_operand.vmem [shape: f32[3,9,2,8], index: 3, kind: input, shape index: {}]
  %s4 = inlined_call_operand.vmem [shape: f32[2,1], index: 4, kind: input, shape index: {}]
  %s5 = inlined_call_operand.vmem [shape: f32[2,8,2,3,128], index: 5, kind: input, shape index: {}]
  %s6 = inlined_call_operand.vmem [shape: f32[2,8,3,128], index: 6, kind: output, shape index: {}]
  %s7 = sld [smem:[#allocation0]]
  $region57: #{hffm_forward.5} parent=0
    _
  %s9 = ssub.s32 1, %s7
  %s10 = scalar_select 0, %s9, %s7
  loop: start=0, step=1, limit=18
  $region2: #{hffm_forward.5} parent=0 // loop_pre_header
    _
  $region3: #{hffm_forward.5} parent=0 // loop_header
    %s12 = sphi 0, %s16
    %p13 = scmp.ge.s32.totalorder %s12, 18
    %s19 = sphi 0, %s31
    %s20 = sphi 0, %s27
    %s21 = sphi 0, %s19
    %s22 = sphi 0, %s20
    %s23 = sphi 0, %s21
    %s24 = sphi 0, %s22
    %s42 = sphi 0, %s44
    %s45 = sphi 0, %s42
    %s46 = sphi 0, %s45
    %s62 = sphi 0, %s46
    %s70 = sphi 0, %s72
    %s73 = sphi 0, %s70
    %s74 = sphi 0, %s73
    %s90 = sphi 0, %s74
    %s104 = sphi 0, %s106
    %s107 = sphi 0, %s104
    %s108 = sphi 0, %s107
    %s124 = sphi 0, %s108
    %s128 = sphi 0, %s128
    %s130 = sphi 0, %s128
    %s131 = sphi 0, %s130
    %s145 = sphi 0, %s131
    %s149 = sphi 0, %s149
    %s151 = sphi 0, %s149
    %s152 = sphi 0, %s151
    %s166 = sphi 0, %s152
    %s174 = sphi 0, %s176
    %s177 = sphi 0, %s174
    %s178 = sphi 0, %s177
    %s194 = sphi 0, %s178
    %s202 = sphi 0, %s204
    %s205 = sphi 0, %s202
    %s206 = sphi 0, %s205
    %s222 = sphi 0, %s206
  $region4: #{hffm_forward.5} parent=0 // loop_header_branch
    %15 = sbr.rel (%p13) target = $region8
  $region5: #{hffm_forward.5} parent=0 // loop_body
    %s17 = ssub.s32 %s12, 1
    %s18 = ssub.s32 %s12, 2
    %s25 = sadd.s32 1, %s20
    %p26 = scmp.ge.s32.totalorder %s25, 8
    %s27 = scalar_select %p26, 0, %s25
    %s28 = sadd.s32 1, %s19
    %s29 = scalar_select %p26, %s28, %s19
    %p30 = scmp.ge.s32.totalorder %s29, 2
    %s31 = scalar_select %p30, 0, %s29
    %s32 = ssub.s32 %s20, 1
    %p33 = scmp.gt.s32.totalorder %s32, 0
    %s34 = scalar_select %p33, %s32, 0
    %s35 = ssub.s32 %s27, 1
    %p36 = scmp.gt.s32.totalorder %s35, 0
    %s37 = scalar_select %p36, %s35, 0
    %s38 = ssub.s32 %s19, %s31
    %s39 = ssub.s32 %s34, %s37
    %s40 = sor.u32 %s38, %s39
    %p41 = scmp.eq.s32.totalorder %s40, 0
    %s43 = sadd.s32 %s42, 1
    %s44 = scalar_select %p41, %s42, %s43
    %p47 = pneg %p41
    %p48 = scmp.eq.s32.totalorder %s12, 15
    %p49 = por %p47, %p48
    %p50 = scmp.ne.s32.totalorder %s42, %s45
    %p51 = scmp.eq.s32.totalorder %s12, 0
    %p52 = por %p50, %p51
    %p53 = scmp.ne.s32.totalorder %s42, %s45
    %p54 = scmp.eq.s32.totalorder %s17, 15
    %p55 = por %p53, %p54
    %p56 = scmp.ne.s32.totalorder %s45, %s46
    %p57 = scmp.eq.s32.totalorder %s17, 0
    %p58 = por %p56, %p57
    %p59 = scmp.ne.s32.totalorder %s45, %s46
    %p60 = scmp.eq.s32.totalorder %s18, 15
    %p61 = por %p59, %p60
    %p63 = scmp.ne.s32.totalorder %s46, %s62
    %p64 = scmp.eq.s32.totalorder %s18, 0
    %p65 = por %p63, %p64
    %s66 = ssub.s32 %s19, %s31
    %s67 = ssub.s32 %s20, %s27
    %s68 = sor.u32 %s66, %s67
    %p69 = scmp.eq.s32.totalorder %s68, 0
    %s71 = sadd.s32 %s70, 1
    %s72 = scalar_select %p69, %s70, %s71
    %p75 = pneg %p69
    %p76 = scmp.eq.s32.totalorder %s12, 15
    %p77 = por %p75, %p76
    %p78 = scmp.ne.s32.totalorder %s70, %s73
    %p79 = scmp.eq.s32.totalorder %s12, 0
    %p80 = por %p78, %p79
    %p81 = scmp.ne.s32.totalorder %s70, %s73
    %p82 = scmp.eq.s32.totalorder %s17, 15
    %p83 = por %p81, %p82
    %p84 = scmp.ne.s32.totalorder %s73, %s74
    %p85 = scmp.eq.s32.totalorder %s17, 0
    %p86 = por %p84, %p85
    %p87 = scmp.ne.s32.totalorder %s73, %s74
    %p88 = scmp.eq.s32.totalorder %s18, 15
    %p89 = por %p87, %p88
    %p91 = scmp.ne.s32.totalorder %s74, %s90
    %p92 = scmp.eq.s32.totalorder %s18, 0
    %p93 = por %p91, %p92
    %s94 = sadd.s32 %s20, 1
    %p95 = scmp.lt.s32.totalorder %s94, 7
    %s96 = scalar_select %p95, %s94, 7
    %s97 = sadd.s32 %s27, 1
    %p98 = scmp.lt.s32.totalorder %s97, 7
    %s99 = scalar_select %p98, %s97, 7
    %s100 = ssub.s32 %s19, %s31
    %s101 = ssub.s32 %s96, %s99
    %s102 = sor.u32 %s100, %s101
    %p103 = scmp.eq.s32.totalorder %s102, 0
    %s105 = sadd.s32 %s104, 1
    %s106 = scalar_select %p103, %s104, %s105
    %p109 = pneg %p103
    %p110 = scmp.eq.s32.totalorder %s12, 15
    %p111 = por %p109, %p110
    %p112 = scmp.ne.s32.totalorder %s104, %s107
    %p113 = scmp.eq.s32.totalorder %s12, 0
    %p114 = por %p112, %p113
    %p115 = scmp.ne.s32.totalorder %s104, %s107
    %p116 = scmp.eq.s32.totalorder %s17, 15
    %p117 = por %p115, %p116
    %p118 = scmp.ne.s32.totalorder %s107, %s108
    %p119 = scmp.eq.s32.totalorder %s17, 0
    %p120 = por %p118, %p119
    %p121 = scmp.ne.s32.totalorder %s107, %s108
    %p122 = scmp.eq.s32.totalorder %s18, 15
    %p123 = por %p121, %p122
    %p125 = scmp.ne.s32.totalorder %s108, %s124
    %p126 = scmp.eq.s32.totalorder %s18, 0
    %p127 = por %p125, %p126
    %s129 = sadd.s32 %s128, 1
    %p132 = scmp.eq.s32.totalorder %s12, 15
    %p133 = scmp.ne.s32.totalorder %s128, %s130
    %p134 = scmp.eq.s32.totalorder %s12, 0
    %p135 = por %p133, %p134
    %p136 = scmp.ne.s32.totalorder %s128, %s130
    %p137 = scmp.eq.s32.totalorder %s17, 15
    %p138 = por %p136, %p137
    %p139 = scmp.ne.s32.totalorder %s130, %s131
    %p140 = scmp.eq.s32.totalorder %s17, 0
    %p141 = por %p139, %p140
    %p142 = scmp.ne.s32.totalorder %s130, %s131
    %p143 = scmp.eq.s32.totalorder %s18, 15
    %p144 = por %p142, %p143
    %p146 = scmp.ne.s32.totalorder %s131, %s145
    %p147 = scmp.eq.s32.totalorder %s18, 0
    %p148 = por %p146, %p147
    %s150 = sadd.s32 %s149, 1
    %p153 = scmp.eq.s32.totalorder %s12, 15
    %p154 = scmp.ne.s32.totalorder %s149, %s151
    %p155 = scmp.eq.s32.totalorder %s12, 0
    %p156 = por %p154, %p155
    %p157 = scmp.ne.s32.totalorder %s149, %s151
    %p158 = scmp.eq.s32.totalorder %s17, 15
    %p159 = por %p157, %p158
    %p160 = scmp.ne.s32.totalorder %s151, %s152
    %p161 = scmp.eq.s32.totalorder %s17, 0
    %p162 = por %p160, %p161
    %p163 = scmp.ne.s32.totalorder %s151, %s152
    %p164 = scmp.eq.s32.totalorder %s18, 15
    %p165 = por %p163, %p164
    %p167 = scmp.ne.s32.totalorder %s152, %s166
    %p168 = scmp.eq.s32.totalorder %s18, 0
    %p169 = por %p167, %p168
    %s170 = ssub.s32 %s19, %s31
    %s171 = ssub.s32 %s20, %s27
    %s172 = sor.u32 %s170, %s171
    %p173 = scmp.eq.s32.totalorder %s172, 0
    %s175 = sadd.s32 %s174, 1
    %s176 = scalar_select %p173, %s174, %s175
    %p179 = pneg %p173
    %p180 = scmp.eq.s32.totalorder %s12, 15
    %p181 = por %p179, %p180
    %p182 = scmp.ne.s32.totalorder %s174, %s177
    %p183 = scmp.eq.s32.totalorder %s12, 0
    %p184 = por %p182, %p183
    %p185 = scmp.ne.s32.totalorder %s174, %s177
    %p186 = scmp.eq.s32.totalorder %s17, 15
    %p187 = por %p185, %p186
    %p188 = scmp.ne.s32.totalorder %s177, %s178
    %p189 = scmp.eq.s32.totalorder %s17, 0
    %p190 = por %p188, %p189
    %p191 = scmp.ne.s32.totalorder %s177, %s178
    %p192 = scmp.eq.s32.totalorder %s18, 15
    %p193 = por %p191, %p192
    %p195 = scmp.ne.s32.totalorder %s178, %s194
    %p196 = scmp.eq.s32.totalorder %s18, 0
    %p197 = por %p195, %p196
    %s198 = ssub.s32 %s19, %s31
    %s199 = ssub.s32 %s20, %s27
    %s200 = sor.u32 %s198, %s199
    %p201 = scmp.eq.s32.totalorder %s200, 0
    %s203 = sadd.s32 %s202, 1
    %s204 = scalar_select %p201, %s202, %s203
    %p207 = pneg %p201
    %p208 = scmp.eq.s32.totalorder %s12, 15
    %p209 = por %p207, %p208
    %p210 = scmp.ne.s32.totalorder %s202, %s205
    %p211 = scmp.eq.s32.totalorder %s12, 0
    %p212 = por %p210, %p211
    %p213 = scmp.ne.s32.totalorder %s202, %s205
    %p214 = scmp.eq.s32.totalorder %s17, 15
    %p215 = por %p213, %p214
    %p216 = scmp.ne.s32.totalorder %s205, %s206
    %p217 = scmp.eq.s32.totalorder %s17, 0
    %p218 = por %p216, %p217
    %p219 = scmp.ne.s32.totalorder %s205, %s206
    %p220 = scmp.eq.s32.totalorder %s18, 15
    %p221 = por %p219, %p220
    %p223 = scmp.ne.s32.totalorder %s206, %s222
    %p224 = scmp.eq.s32.totalorder %s18, 0
    %p225 = por %p223, %p224
    %p226 = scmp.le.s32.totalorder 1, %s12
    %p227 = scmp.lt.s32.totalorder %s12, 17
    %p228 = pnand %p226, %p227
    %p229 = pneg %p228
    // Predicated region
    $region9: #{hffm_forward.5} parent=5 // pred_check
      _
    $region10: #{hffm_forward.5} parent=5 // pred_check_branch
      %231 = sbr.rel (%p228) target = $region12
    $region11: #{hffm_forward.5} parent=5 // pred_region
      %s232 = ssub.s32 %s12, 1
      // Predicated region
      $region13: #{hffm_forward.5} parent=11 // pred_check
        %p233 = pneg %p141
      $region14: #{hffm_forward.5} parent=11 // pred_check_branch
        %235 = sbr.rel (%p233) target = $region16
      $region15: #{hffm_forward.5} parent=11 // pred_region
        _
      $region16: #{hffm_forward.5} parent=11 // pred_fallthru
        _
      // Predicated region
      $region17: #{hffm_forward.5} parent=11 // pred_check
        %p236 = pneg %p162
      $region18: #{hffm_forward.5} parent=11 // pred_check_branch
        %238 = sbr.rel (%p236) target = $region20
      $region19: #{hffm_forward.5} parent=11 // pred_region
        _
      $region20: #{hffm_forward.5} parent=11 // pred_fallthru
        _
    $region12: #{hffm_forward.5} parent=5 // pred_fallthru
      _
    %p239 = scmp.lt.s32.totalorder %s12, 16
    // Predicated region
    $region21: #{hffm_forward.5} parent=5 // pred_check
      %p240 = pneg %p239
    $region22: #{hffm_forward.5} parent=5 // pred_check_branch
      %242 = sbr.rel (%p240) target = $region24
    $region23: #{hffm_forward.5} parent=5 // pred_region
      // Predicated region
      $region25: #{hffm_forward.5} parent=23 // pred_check
        %p243 = pneg %p52
      $region26: #{hffm_forward.5} parent=23 // pred_check_branch
        %245 = sbr.rel (%p243) target = $region28
      $region27: #{hffm_forward.5} parent=23 // pred_region
        %s246 = ssub.s32 %s20, 1
        %p247 = scmp.gt.s32.totalorder %s246, 0
        %s248 = scalar_select %p247, %s246, 0
        %p249 = scmp.lt.s32.totalorder %s19, 1
        %s250 = scalar_select %p249, %s19, 1
        %p251 = scmp.lt.s32.totalorder %s248, 7
        %s252 = scalar_select %p251, %s248, 7
        %s253 = smul.addr %s250, 8
        %s254 = sadd.s32 %s252, %s253
        %s255 = smul.addr %s254, 8
        %s256 = scalar_lea.vmem %s0, %s255
        %s257 = ssub.s32 %s20, 1
        %p258 = scmp.gt.s32.totalorder %s257, 0
        %s259 = scalar_select %p258, %s257, 0
      $region28: #{hffm_forward.5} parent=23 // pred_fallthru
        _
      // Predicated region
      $region29: #{hffm_forward.5} parent=23 // pred_check
        %p260 = pneg %p80
      $region30: #{hffm_forward.5} parent=23 // pred_check_branch
        %262 = sbr.rel (%p260) target = $region32
      $region31: #{hffm_forward.5} parent=23 // pred_region
        %p263 = scmp.lt.s32.totalorder %s19, 1
        %s264 = scalar_select %p263, %s19, 1
        %p265 = scmp.lt.s32.totalorder %s20, 7
        %s266 = scalar_select %p265, %s20, 7
        %s267 = smul.addr %s264, 8
        %s268 = sadd.s32 %s266, %s267
        %s269 = smul.addr %s268, 8
        %s270 = scalar_lea.vmem %s1, %s269
      $region32: #{hffm_forward.5} parent=23 // pred_fallthru
        _
      // Predicated region
      $region33: #{hffm_forward.5} parent=23 // pred_check
        %p271 = pneg %p114
      $region34: #{hffm_forward.5} parent=23 // pred_check_branch
        %273 = sbr.rel (%p271) target = $region36
      $region35: #{hffm_forward.5} parent=23 // pred_region
        %s274 = sadd.s32 %s20, 1
        %p275 = scmp.lt.s32.totalorder %s274, 7
        %s276 = scalar_select %p275, %s274, 7
        %p277 = scmp.lt.s32.totalorder %s19, 1
        %s278 = scalar_select %p277, %s19, 1
        %p279 = scmp.lt.s32.totalorder %s276, 7
        %s280 = scalar_select %p279, %s276, 7
        %s281 = smul.addr %s278, 8
        %s282 = sadd.s32 %s280, %s281
        %s283 = smul.addr %s282, 8
        %s284 = scalar_lea.vmem %s2, %s283
        %s285 = sadd.s32 %s20, 1
        %p286 = scmp.lt.s32.totalorder %s285, 7
        %s287 = scalar_select %p286, %s285, 7
      $region36: #{hffm_forward.5} parent=23 // pred_fallthru
        _
      // Predicated region
      $region37: #{hffm_forward.5} parent=23 // pred_check
        %p288 = pneg %p184
      $region38: #{hffm_forward.5} parent=23 // pred_check_branch
        %290 = sbr.rel (%p288) target = $region40
      $region39: #{hffm_forward.5} parent=23 // pred_region
        %p291 = scmp.lt.s32.totalorder %s19, 1
        %s292 = scalar_select %p291, %s19, 1
        %p293 = scmp.lt.s32.totalorder %s20, 7
        %s294 = scalar_select %p293, %s20, 7
        %s295 = smul.addr %s294, 2
        %s296 = smul.addr %s292, 16
        %s297 = sadd.s32 %s295, %s296
        %s298 = smul.addr %s297, 4
        %s299 = scalar_lea.vmem %s5, %s298
      $region40: #{hffm_forward.5} parent=23 // pred_fallthru
        _
    $region24: #{hffm_forward.5} parent=5 // pred_fallthru
      _
    %p300 = scmp.le.s32.totalorder 1, %s12
    %p301 = scmp.lt.s32.totalorder %s12, 17
    %p302 = pnand %p300, %p301
    %p303 = pneg %p302
    // Predicated region
    $region41: #{hffm_forward.5} parent=5 // pred_check
      _
    $region42: #{hffm_forward.5} parent=5 // pred_check_branch
      %305 = sbr.rel (%p302) target = $region44
    $region43: #{hffm_forward.5} parent=5 // pred_region
      %s306 = ssub.s32 %s12, 1
      %s307 = ssub.s32 %s22, 1
      %p308 = scmp.gt.s32.totalorder %s307, 0
      %s309 = scalar_select %p308, %s307, 0
      %p310 = scmp.lt.s32.totalorder %s21, 1
      %s311 = scalar_select %p310, %s21, 1
      %p312 = scmp.lt.s32.totalorder %s309, 7
      %s313 = scalar_select %p312, %s309, 7
      %s314 = smul.addr %s311, 8
      %s315 = sadd.s32 %s313, %s314
      %s316 = smul.addr %s315, 8
      %s317 = scalar_lea.vmem %s0, %s316
      %p318 = pneg %p58
      %p319 = pneg %p55
      %p320 = scmp.lt.s32.totalorder %s21, 1
      %s321 = scalar_select %p320, %s21, 1
      %p322 = scmp.lt.s32.totalorder %s22, 7
      %s323 = scalar_select %p322, %s22, 7
      %s324 = smul.addr %s321, 8
      %s325 = sadd.s32 %s323, %s324
      %s326 = smul.addr %s325, 8
      %s327 = scalar_lea.vmem %s1, %s326
      %p328 = pneg %p86
      %p329 = pneg %p83
      %s330 = sadd.s32 %s22, 1
      %p331 = scmp.lt.s32.totalorder %s330, 7
      %s332 = scalar_select %p331, %s330, 7
      %p333 = scmp.lt.s32.totalorder %s21, 1
      %s334 = scalar_select %p333, %s21, 1
      %p335 = scmp.lt.s32.totalorder %s332, 7
      %s336 = scalar_select %p335, %s332, 7
      %s337 = smul.addr %s334, 8
      %s338 = sadd.s32 %s336, %s337
      %s339 = smul.addr %s338, 8
      %s340 = scalar_lea.vmem %s2, %s339
      %p341 = pneg %p120
      %p342 = pneg %p117
      %p343 = pneg %p141
      %p344 = pneg %p138
      %p345 = pneg %p162
      %p346 = pneg %p159
      %p347 = scmp.lt.s32.totalorder %s21, 1
      %s348 = scalar_select %p347, %s21, 1
      %p349 = scmp.lt.s32.totalorder %s22, 7
      %s350 = scalar_select %p349, %s22, 7
      %s351 = smul.addr %s350, 2
      %s352 = smul.addr %s348, 16
      %s353 = sadd.s32 %s351, %s352
      %s354 = smul.addr %s353, 4
      %s355 = scalar_lea.vmem %s5, %s354
      %p356 = pneg %p190
      %p357 = pneg %p187
      %p358 = pneg %p218
      %p359 = pneg %p215
      %p360 = scmp.lt.s32.totalorder %s21, 1
      %s361 = scalar_select %p360, %s21, 1
      %p362 = scmp.lt.s32.totalorder %s22, 7
      %s363 = scalar_select %p362, %s22, 7
      %s364 = smul.addr %s361, 8
      %s365 = sadd.s32 %s363, %s364
      %s366 = smul.addr %s365, 4
      %s367 = scalar_lea.vmem %s6, %s366
      %s368 = ssub.s32 %s22, 1
      %p369 = scmp.gt.s32.totalorder %s368, 0
      %s370 = scalar_select %p369, %s368, 0
      %p371 = scmp.lt.s32.totalorder %s21, 1
      %s372 = scalar_select %p371, %s21, 1
      %p373 = scmp.lt.s32.totalorder %s370, 7
      %s374 = scalar_select %p373, %s370, 7
      %s375 = smul.addr %s372, 8
      %s376 = sadd.s32 %s374, %s375
      %s377 = smul.addr %s376, 8
      %s378 = scalar_lea.vmem %s0, %s377
      %s379 = ssub.s32 %s22, 1
      %p380 = scmp.gt.s32.totalorder %s379, 0
      %s381 = scalar_select %p380, %s379, 0
      %p382 = scmp.lt.s32.totalorder %s21, 1
      %s383 = scalar_select %p382, %s21, 1
      %p384 = scmp.lt.s32.totalorder %s22, 7
      %s385 = scalar_select %p384, %s22, 7
      %s386 = smul.addr %s383, 8
      %s387 = sadd.s32 %s385, %s386
      %s388 = smul.addr %s387, 8
      %s389 = scalar_lea.vmem %s1, %s388
      %s390 = sadd.s32 %s22, 1
      %p391 = scmp.lt.s32.totalorder %s390, 7
      %s392 = scalar_select %p391, %s390, 7
      %p393 = scmp.lt.s32.totalorder %s21, 1
      %s394 = scalar_select %p393, %s21, 1
      %p395 = scmp.lt.s32.totalorder %s392, 7
      %s396 = scalar_select %p395, %s392, 7
      %s397 = smul.addr %s394, 8
      %s398 = sadd.s32 %s396, %s397
      %s399 = smul.addr %s398, 8
      %s400 = scalar_lea.vmem %s2, %s399
      %s401 = sadd.s32 %s22, 1
      %p402 = scmp.lt.s32.totalorder %s401, 7
      %s403 = scalar_select %p402, %s401, 7
      %p404 = scmp.lt.s32.totalorder %s21, 1
      %s405 = scalar_select %p404, %s21, 1
      %p406 = scmp.lt.s32.totalorder %s22, 7
      %s407 = scalar_select %p406, %s22, 7
      %s408 = smul.addr %s407, 2
      %s409 = smul.addr %s405, 16
      %s410 = sadd.s32 %s408, %s409
      %s411 = smul.addr %s410, 4
      %s412 = scalar_lea.vmem %s5, %s411
      %p413 = scmp.lt.s32.totalorder %s21, 1
      %s414 = scalar_select %p413, %s21, 1
      %p415 = scmp.lt.s32.totalorder %s22, 7
      %s416 = scalar_select %p415, %s22, 7
      %s417 = smul.addr %s414, 8
      %s418 = sadd.s32 %s416, %s417
      %s419 = smul.addr %s418, 4
      %s420 = scalar_lea.vmem %s6, %s419
      %v421 = vld [vmem:[%s378] sm:$0xff]
      %v422 = vld [vmem:[%s389] sm:$0xff]
      %v423 = vld [vmem:[%s400] sm:$0xff]
      %p424 = scmp.gt.s32.totalorder %s22, 0
      %s425 = scalar_select %p424, 1.0, 0.0
      %p426 = scmp.lt.s32.totalorder %s22, 7
      %s427 = scalar_select %p426, 1.0, 0.0
      %v428 = vld [vmem:[%s3] sm:$0x3]
      %v429 = vld [vmem:[%s3 + $0x2] sm:$0x3]
      %v430 = vld [vmem:[%s3 + $0x4] sm:$0x3]
      %v431 = vld [vmem:[%s3 + $0x6] sm:$0x3]
      %v432 = vld [vmem:[%s3 + $0x8] sm:$0x3]
      %v433 = vld [vmem:[%s3 + $0xa] sm:$0x3]
      %v434 = vld [vmem:[%s3 + $0xc] sm:$0x3]
      %v435 = vld [vmem:[%s3 + $0xe] sm:$0x3]
      %v436 = vld [vmem:[%s3 + $0x10] sm:$0x3]
      %v437 = vstv %s425
      %v438 = vmul.f32 %v428, %v437
      %v439 = vmul.f32 %v429, %v437
      %v440 = vmul.f32 %v430, %v437
      %v441 = vmul.f32 %v431, %v437
      %v442 = vmul.f32 %v432, %v437
      %v443 = vmul.f32 %v433, %v437
      %v444 = vmul.f32 %v434, %v437
      %v445 = vmul.f32 %v435, %v437
      %v446 = vmul.f32 %v436, %v437
      %447 = vrot.lane.b32.xlu0 %v421, 11
      %v448 = vpop.permute.xlu0 %447
      %449 = vrot.lane.b32.xlu0 %v421, 10
      %v450 = vpop.permute.xlu0 %449
      %vm451 = vcmask 64512
      %v453 = vsel %vm451, %v439, 0
      %455 = vmatprep.subr.mxu0 0.0
      %456 = vmatpush1.msra.mxu0 0.0
      %457 = vmatprep.subr.mxu0 0.0
      %458 = vmatpush1.msra.mxu0 0.0
      %459 = vmatprep.subr.mxu0 0.0
      %460 = vmatpush1.msra.mxu0 0.0
      %461 = vmatprep.subr.mxu0 0.0
      %462 = vmatpush1.msra.mxu0 0.0
      %463 = vmatprep.subr.mxu0 0.0
      %464 = vmatpush1.msra.mxu0 0.0
      %465 = vmatprep.subr.mxu0 0.0
      %466 = vmatpush1.msra.mxu0 0.0
      %467 = vmatprep.subr.mxu0 0.0
      %468 = vmatpush1.msra.mxu0 0.0
      %469 = vmatprep.subr.mxu0 0.0
      %470 = vmatpush1.msra.mxu0 0.0
      %471 = vmatprep.subr.mxu0 0.0
      %472 = vmatpush1.msra.mxu0 0.0
      %473 = vmatprep.subr.mxu0 0.0
      %474 = vmatpush1.msra.mxu0 0.0
      %475 = vmatprep.subr.mxu0 0.0
      %476 = vmatpush1.msra.mxu0 0.0
      %477 = vmatprep.subr.mxu0 0.0
      %478 = vmatpush1.msra.mxu0 0.0
      %479 = vmatprep.subr.mxu0 0.0
      %480 = vmatpush1.msra.mxu0 0.0
      %481 = vmatprep.subr.mxu0 0.0
      %482 = vmatpush1.msra.mxu0 0.0
      %483 = vmatprep.subr.mxu0 0.0
      %484 = vmatpush1.msra.mxu0 0.0
      %485 = vmatprep.subr.mxu0 0.0
      %486 = vmatpush1.msra.mxu0 %v450
      %487 = vmatprep.subr.mxu0 0.0
      %488 = vmatpush2.msra.mxu0 0.0
      %489 = vmatprep.subr.mxu0 0.0
      %490 = vmatpush2.msra.mxu0 0.0
      %491 = vmatprep.subr.mxu0 0.0
      %492 = vmatpush2.msra.mxu0 0.0
      %493 = vmatprep.subr.mxu0 0.0
      %494 = vmatpush2.msra.mxu0 0.0
      %495 = vmatprep.subr.mxu0 0.0
      %496 = vmatpush2.msra.mxu0 0.0
      %497 = vmatprep.subr.mxu0 0.0
      %498 = vmatpush2.msra.mxu0 0.0
      %499 = vmatprep.subr.mxu0 0.0
      %500 = vmatpush2.msra.mxu0 0.0
      %501 = vmatprep.subr.mxu0 0.0
      %502 = vmatpush2.msra.mxu0 0.0
      %503 = vmatprep.subr.mxu0 0.0
      %504 = vmatpush2.msra.mxu0 0.0
      %505 = vmatprep.subr.mxu0 0.0
      %506 = vmatpush2.msra.mxu0 0.0
      %507 = vmatprep.subr.mxu0 0.0
      %508 = vmatpush2.msra.mxu0 0.0
      %509 = vmatprep.subr.mxu0 0.0
      %510 = vmatpush2.msra.mxu0 0.0
      %511 = vmatprep.subr.mxu0 0.0
      %512 = vmatpush2.msra.mxu0 0.0
      %513 = vmatprep.subr.mxu0 0.0
      %514 = vmatpush2.msra.mxu0 0.0
      %515 = vmatprep.subr.mxu0 0.0
      %516 = vmatpush2.msra.mxu0 0.0
      %517 = vmatprep.subr.mxu0 0.0
      %518 = vmatpush2.msra.mxu0 0.0
      %519 = vmatprep.mubr.f32.mxu0 0.0
      %520 = vmatmul.mubr.f32.gmra.mxu0 %v453
      %v521 = vpop.f32.mrf.mxu0
      %v522 = vadd.f32 0.0, %v521
      %v523 = vpop.f32.mrf.mxu0
      %524 = vdwg.mxu0
      %v526 = vsel %vm451, %v438, 0
      %528 = vmatprep.subr.mxu0 0.0
      %529 = vmatpush1.msra.mxu0 0.0
      %530 = vmatprep.subr.mxu0 0.0
      %531 = vmatpush1.msra.mxu0 0.0
      %532 = vmatprep.subr.mxu0 0.0
      %533 = vmatpush1.msra.mxu0 0.0
      %534 = vmatprep.subr.mxu0 0.0
      %535 = vmatpush1.msra.mxu0 0.0
      %536 = vmatprep.subr.mxu0 0.0
      %537 = vmatpush1.msra.mxu0 0.0
      %538 = vmatprep.subr.mxu0 0.0
      %539 = vmatpush1.msra.mxu0 0.0
      %540 = vmatprep.subr.mxu0 0.0
      %541 = vmatpush1.msra.mxu0 0.0
      %542 = vmatprep.subr.mxu0 0.0
      %543 = vmatpush1.msra.mxu0 0.0
      %544 = vmatprep.subr.mxu0 0.0
      %545 = vmatpush1.msra.mxu0 0.0
      %546 = vmatprep.subr.mxu0 0.0
      %547 = vmatpush1.msra.mxu0 0.0
      %548 = vmatprep.subr.mxu0 0.0
      %549 = vmatpush1.msra.mxu0 0.0
      %550 = vmatprep.subr.mxu0 0.0
      %551 = vmatpush1.msra.mxu0 0.0
      %552 = vmatprep.subr.mxu0 0.0
      %553 = vmatpush1.msra.mxu0 0.0
      %554 = vmatprep.subr.mxu0 0.0
      %555 = vmatpush1.msra.mxu0 0.0
      %556 = vmatprep.subr.mxu0 0.0
      %557 = vmatpush1.msra.mxu0 0.0
      %558 = vmatprep.subr.mxu0 0.0
      %559 = vmatpush1.msra.mxu0 %v448
      %560 = vmatprep.subr.mxu0 0.0
      %561 = vmatpush2.msra.mxu0 0.0
      %562 = vmatprep.subr.mxu0 0.0
      %563 = vmatpush2.msra.mxu0 0.0
      %564 = vmatprep.subr.mxu0 0.0
      %565 = vmatpush2.msra.mxu0 0.0
      %566 = vmatprep.subr.mxu0 0.0
      %567 = vmatpush2.msra.mxu0 0.0
      %568 = vmatprep.subr.mxu0 0.0
      %569 = vmatpush2.msra.mxu0 0.0
      %570 = vmatprep.subr.mxu0 0.0
      %571 = vmatpush2.msra.mxu0 0.0
      %572 = vmatprep.subr.mxu0 0.0
      %573 = vmatpush2.msra.mxu0 0.0
      %574 = vmatprep.subr.mxu0 0.0
      %575 = vmatpush2.msra.mxu0 0.0
      %576 = vmatprep.subr.mxu0 0.0
      %577 = vmatpush2.msra.mxu0 0.0
      %578 = vmatprep.subr.mxu0 0.0
      %579 = vmatpush2.msra.mxu0 0.0
      %580 = vmatprep.subr.mxu0 0.0
      %581 = vmatpush2.msra.mxu0 0.0
      %582 = vmatprep.subr.mxu0 0.0
      %583 = vmatpush2.msra.mxu0 0.0
      %584 = vmatprep.subr.mxu0 0.0
      %585 = vmatpush2.msra.mxu0 0.0
      %586 = vmatprep.subr.mxu0 0.0
      %587 = vmatpush2.msra.mxu0 0.0
      %588 = vmatprep.subr.mxu0 0.0
      %589 = vmatpush2.msra.mxu0 0.0
      %590 = vmatprep.subr.mxu0 0.0
      %591 = vmatpush2.msra.mxu0 0.0
      %592 = vmatprep.mubr.f32.mxu0 0.0
      %593 = vmatmul.mubr.f32.gmra.mxu0 %v526
      %v594 = vpop.f32.mrf.mxu0
      %v595 = vadd.f32 %v522, %v594
      %v596 = vpop.f32.mrf.mxu0
      %597 = vdwg.mxu0
      %598 = vrot.lane.b32.xlu0 %v421, 9
      %v599 = vpop.permute.xlu0 %598
      %v601 = vsel %vm451, %v440, 0
      %603 = vmatprep.subr.mxu0 0.0
      %604 = vmatpush1.msra.mxu0 0.0
      %605 = vmatprep.subr.mxu0 0.0
      %606 = vmatpush1.msra.mxu0 0.0
      %607 = vmatprep.subr.mxu0 0.0
      %608 = vmatpush1.msra.mxu0 0.0
      %609 = vmatprep.subr.mxu0 0.0
      %610 = vmatpush1.msra.mxu0 0.0
      %611 = vmatprep.subr.mxu0 0.0
      %612 = vmatpush1.msra.mxu0 0.0
      %613 = vmatprep.subr.mxu0 0.0
      %614 = vmatpush1.msra.mxu0 0.0
      %615 = vmatprep.subr.mxu0 0.0
      %616 = vmatpush1.msra.mxu0 0.0
      %617 = vmatprep.subr.mxu0 0.0
      %618 = vmatpush1.msra.mxu0 0.0
      %619 = vmatprep.subr.mxu0 0.0
      %620 = vmatpush1.msra.mxu0 0.0
      %621 = vmatprep.subr.mxu0 0.0
      %622 = vmatpush1.msra.mxu0 0.0
      %623 = vmatprep.subr.mxu0 0.0
      %624 = vmatpush1.msra.mxu0 0.0
      %625 = vmatprep.subr.mxu0 0.0
      %626 = vmatpush1.msra.mxu0 0.0
      %627 = vmatprep.subr.mxu0 0.0
      %628 = vmatpush1.msra.mxu0 0.0
      %629 = vmatprep.subr.mxu0 0.0
      %630 = vmatpush1.msra.mxu0 0.0
      %631 = vmatprep.subr.mxu0 0.0
      %632 = vmatpush1.msra.mxu0 0.0
      %633 = vmatprep.subr.mxu0 0.0
      %634 = vmatpush1.msra.mxu0 %v599
      %635 = vmatprep.subr.mxu0 0.0
      %636 = vmatpush2.msra.mxu0 0.0
      %637 = vmatprep.subr.mxu0 0.0
      %638 = vmatpush2.msra.mxu0 0.0
      %639 = vmatprep.subr.mxu0 0.0
      %640 = vmatpush2.msra.mxu0 0.0
      %641 = vmatprep.subr.mxu0 0.0
      %642 = vmatpush2.msra.mxu0 0.0
      %643 = vmatprep.subr.mxu0 0.0
      %644 = vmatpush2.msra.mxu0 0.0
      %645 = vmatprep.subr.mxu0 0.0
      %646 = vmatpush2.msra.mxu0 0.0
      %647 = vmatprep.subr.mxu0 0.0
      %648 = vmatpush2.msra.mxu0 0.0
      %649 = vmatprep.subr.mxu0 0.0
      %650 = vmatpush2.msra.mxu0 0.0
      %651 = vmatprep.subr.mxu0 0.0
      %652 = vmatpush2.msra.mxu0 0.0
      %653 = vmatprep.subr.mxu0 0.0
      %654 = vmatpush2.msra.mxu0 0.0
      %655 = vmatprep.subr.mxu0 0.0
      %656 = vmatpush2.msra.mxu0 0.0
      %657 = vmatprep.subr.mxu0 0.0
      %658 = vmatpush2.msra.mxu0 0.0
      %659 = vmatprep.subr.mxu0 0.0
      %660 = vmatpush2.msra.mxu0 0.0
      %661 = vmatprep.subr.mxu0 0.0
      %662 = vmatpush2.msra.mxu0 0.0
      %663 = vmatprep.subr.mxu0 0.0
      %664 = vmatpush2.msra.mxu0 0.0
      %665 = vmatprep.subr.mxu0 0.0
      %666 = vmatpush2.msra.mxu0 0.0
      %667 = vmatprep.mubr.f32.mxu0 0.0
      %668 = vmatmul.mubr.f32.gmra.mxu0 %v601
      %v669 = vpop.f32.mrf.mxu0
      %v670 = vadd.f32 0.0, %v669
      %v671 = vpop.f32.mrf.mxu0
      %672 = vdwg.mxu0
      %v673 = vadd.f32 %v595, %v670
      %674 = vrot.lane.b32.xlu0 %v421, 1
      %v675 = vpop.permute.xlu0 %674
      %v677 = vsel %vm451, %v441, 0
      %679 = vmatprep.subr.mxu0 0.0
      %680 = vmatpush1.msra.mxu0 0.0
      %681 = vmatprep.subr.mxu0 0.0
      %682 = vmatpush1.msra.mxu0 0.0
      %683 = vmatprep.subr.mxu0 0.0
      %684 = vmatpush1.msra.mxu0 0.0
      %685 = vmatprep.subr.mxu0 0.0
      %686 = vmatpush1.msra.mxu0 0.0
      %687 = vmatprep.subr.mxu0 0.0
      %688 = vmatpush1.msra.mxu0 0.0
      %689 = vmatprep.subr.mxu0 0.0
      %690 = vmatpush1.msra.mxu0 0.0
      %691 = vmatprep.subr.mxu0 0.0
      %692 = vmatpush1.msra.mxu0 0.0
      %693 = vmatprep.subr.mxu0 0.0
      %694 = vmatpush1.msra.mxu0 0.0
      %695 = vmatprep.subr.mxu0 0.0
      %696 = vmatpush1.msra.mxu0 0.0
      %697 = vmatprep.subr.mxu0 0.0
      %698 = vmatpush1.msra.mxu0 0.0
      %699 = vmatprep.subr.mxu0 0.0
      %700 = vmatpush1.msra.mxu0 0.0
      %701 = vmatprep.subr.mxu0 0.0
      %702 = vmatpush1.msra.mxu0 0.0
      %703 = vmatprep.subr.mxu0 0.0
      %704 = vmatpush1.msra.mxu0 0.0
      %705 = vmatprep.subr.mxu0 0.0
      %706 = vmatpush1.msra.mxu0 0.0
      %707 = vmatprep.subr.mxu0 0.0
      %708 = vmatpush1.msra.mxu0 0.0
      %709 = vmatprep.subr.mxu0 0.0
      %710 = vmatpush1.msra.mxu0 %v675
      %711 = vmatprep.subr.mxu0 0.0
      %712 = vmatpush2.msra.mxu0 0.0
      %713 = vmatprep.subr.mxu0 0.0
      %714 = vmatpush2.msra.mxu0 0.0
      %715 = vmatprep.subr.mxu0 0.0
      %716 = vmatpush2.msra.mxu0 0.0
      %717 = vmatprep.subr.mxu0 0.0
      %718 = vmatpush2.msra.mxu0 0.0
      %719 = vmatprep.subr.mxu0 0.0
      %720 = vmatpush2.msra.mxu0 0.0
      %721 = vmatprep.subr.mxu0 0.0
      %722 = vmatpush2.msra.mxu0 0.0
      %723 = vmatprep.subr.mxu0 0.0
      %724 = vmatpush2.msra.mxu0 0.0
      %725 = vmatprep.subr.mxu0 0.0
      %726 = vmatpush2.msra.mxu0 0.0
      %727 = vmatprep.subr.mxu0 0.0
      %728 = vmatpush2.msra.mxu0 0.0
      %729 = vmatprep.subr.mxu0 0.0
      %730 = vmatpush2.msra.mxu0 0.0
      %731 = vmatprep.subr.mxu0 0.0
      %732 = vmatpush2.msra.mxu0 0.0
      %733 = vmatprep.subr.mxu0 0.0
      %734 = vmatpush2.msra.mxu0 0.0
      %735 = vmatprep.subr.mxu0 0.0
      %736 = vmatpush2.msra.mxu0 0.0
      %737 = vmatprep.subr.mxu0 0.0
      %738 = vmatpush2.msra.mxu0 0.0
      %739 = vmatprep.subr.mxu0 0.0
      %740 = vmatpush2.msra.mxu0 0.0
      %741 = vmatprep.subr.mxu0 0.0
      %742 = vmatpush2.msra.mxu0 0.0
      %743 = vmatprep.mubr.f32.mxu0 0.0
      %744 = vmatmul.mubr.f32.gmra.mxu0 %v677
      %v745 = vpop.f32.mrf.mxu0
      %v746 = vadd.f32 0.0, %v745
      %v747 = vpop.f32.mrf.mxu0
      %748 = vdwg.mxu0
      %v749 = vadd.f32 %v673, %v746
      %v751 = vsel %vm451, %v442, 0
      %753 = vmatprep.subr.mxu0 0.0
      %754 = vmatpush1.msra.mxu0 0.0
      %755 = vmatprep.subr.mxu0 0.0
      %756 = vmatpush1.msra.mxu0 0.0
      %757 = vmatprep.subr.mxu0 0.0
      %758 = vmatpush1.msra.mxu0 0.0
      %759 = vmatprep.subr.mxu0 0.0
      %760 = vmatpush1.msra.mxu0 0.0
      %761 = vmatprep.subr.mxu0 0.0
      %762 = vmatpush1.msra.mxu0 0.0
      %763 = vmatprep.subr.mxu0 0.0
      %764 = vmatpush1.msra.mxu0 0.0
      %765 = vmatprep.subr.mxu0 0.0
      %766 = vmatpush1.msra.mxu0 0.0
      %767 = vmatprep.subr.mxu0 0.0
      %768 = vmatpush1.msra.mxu0 0.0
      %769 = vmatprep.subr.mxu0 0.0
      %770 = vmatpush1.msra.mxu0 0.0
      %771 = vmatprep.subr.mxu0 0.0
      %772 = vmatpush1.msra.mxu0 0.0
      %773 = vmatprep.subr.mxu0 0.0
      %774 = vmatpush1.msra.mxu0 0.0
      %775 = vmatprep.subr.mxu0 0.0
      %776 = vmatpush1.msra.mxu0 0.0
      %777 = vmatprep.subr.mxu0 0.0
      %778 = vmatpush1.msra.mxu0 0.0
      %779 = vmatprep.subr.mxu0 0.0
      %780 = vmatpush1.msra.mxu0 0.0
      %781 = vmatprep.subr.mxu0 0.0
      %782 = vmatpush1.msra.mxu0 0.0
      %783 = vmatprep.subr.mxu0 0.0
      %784 = vmatpush1.msra.mxu0 %v421
      %785 = vmatprep.subr.mxu0 0.0
      %786 = vmatpush2.msra.mxu0 0.0
      %787 = vmatprep.subr.mxu0 0.0
      %788 = vmatpush2.msra.mxu0 0.0
      %789 = vmatprep.subr.mxu0 0.0
      %790 = vmatpush2.msra.mxu0 0.0
      %791 = vmatprep.subr.mxu0 0.0
      %792 = vmatpush2.msra.mxu0 0.0
      %793 = vmatprep.subr.mxu0 0.0
      %794 = vmatpush2.msra.mxu0 0.0
      %795 = vmatprep.subr.mxu0 0.0
      %796 = vmatpush2.msra.mxu0 0.0
      %797 = vmatprep.subr.mxu0 0.0
      %798 = vmatpush2.msra.mxu0 0.0
      %799 = vmatprep.subr.mxu0 0.0
      %800 = vmatpush2.msra.mxu0 0.0
      %801 = vmatprep.subr.mxu0 0.0
      %802 = vmatpush2.msra.mxu0 0.0
      %803 = vmatprep.subr.mxu0 0.0
      %804 = vmatpush2.msra.mxu0 0.0
      %805 = vmatprep.subr.mxu0 0.0
      %806 = vmatpush2.msra.mxu0 0.0
      %807 = vmatprep.subr.mxu0 0.0
      %808 = vmatpush2.msra.mxu0 0.0
      %809 = vmatprep.subr.mxu0 0.0
      %810 = vmatpush2.msra.mxu0 0.0
      %811 = vmatprep.subr.mxu0 0.0
      %812 = vmatpush2.msra.mxu0 0.0
      %813 = vmatprep.subr.mxu0 0.0
      %814 = vmatpush2.msra.mxu0 0.0
      %815 = vmatprep.subr.mxu0 0.0
      %816 = vmatpush2.msra.mxu0 0.0
      %817 = vmatprep.mubr.f32.mxu0 0.0
      %818 = vmatmul.mubr.f32.gmra.mxu0 %v751
      %v819 = vpop.f32.mrf.mxu0
      %v820 = vadd.f32 0.0, %v819
      %v821 = vpop.f32.mrf.mxu0
      %822 = vdwg.mxu0
      %v823 = vadd.f32 %v749, %v820
      %824 = vrot.lane.b32.xlu0 %v421, 127
      %v825 = vpop.permute.xlu0 %824
      %v827 = vsel %vm451, %v443, 0
      %829 = vmatprep.subr.mxu0 0.0
      %830 = vmatpush1.msra.mxu0 0.0
      %831 = vmatprep.subr.mxu0 0.0
      %832 = vmatpush1.msra.mxu0 0.0
      %833 = vmatprep.subr.mxu0 0.0
      %834 = vmatpush1.msra.mxu0 0.0
      %835 = vmatprep.subr.mxu0 0.0
      %836 = vmatpush1.msra.mxu0 0.0
      %837 = vmatprep.subr.mxu0 0.0
      %838 = vmatpush1.msra.mxu0 0.0
      %839 = vmatprep.subr.mxu0 0.0
      %840 = vmatpush1.msra.mxu0 0.0
      %841 = vmatprep.subr.mxu0 0.0
      %842 = vmatpush1.msra.mxu0 0.0
      %843 = vmatprep.subr.mxu0 0.0
      %844 = vmatpush1.msra.mxu0 0.0
      %845 = vmatprep.subr.mxu0 0.0
      %846 = vmatpush1.msra.mxu0 0.0
      %847 = vmatprep.subr.mxu0 0.0
      %848 = vmatpush1.msra.mxu0 0.0
      %849 = vmatprep.subr.mxu0 0.0
      %850 = vmatpush1.msra.mxu0 0.0
      %851 = vmatprep.subr.mxu0 0.0
      %852 = vmatpush1.msra.mxu0 0.0
      %853 = vmatprep.subr.mxu0 0.0
      %854 = vmatpush1.msra.mxu0 0.0
      %855 = vmatprep.subr.mxu0 0.0
      %856 = vmatpush1.msra.mxu0 0.0
      %857 = vmatprep.subr.mxu0 0.0
      %858 = vmatpush1.msra.mxu0 0.0
      %859 = vmatprep.subr.mxu0 0.0
      %860 = vmatpush1.msra.mxu0 %v825
      %861 = vmatprep.subr.mxu0 0.0
      %862 = vmatpush2.msra.mxu0 0.0
      %863 = vmatprep.subr.mxu0 0.0
      %864 = vmatpush2.msra.mxu0 0.0
      %865 = vmatprep.subr.mxu0 0.0
      %866 = vmatpush2.msra.mxu0 0.0
      %867 = vmatprep.subr.mxu0 0.0
      %868 = vmatpush2.msra.mxu0 0.0
      %869 = vmatprep.subr.mxu0 0.0
      %870 = vmatpush2.msra.mxu0 0.0
      %871 = vmatprep.subr.mxu0 0.0
      %872 = vmatpush2.msra.mxu0 0.0
      %873 = vmatprep.subr.mxu0 0.0
      %874 = vmatpush2.msra.mxu0 0.0
      %875 = vmatprep.subr.mxu0 0.0
      %876 = vmatpush2.msra.mxu0 0.0
      %877 = vmatprep.subr.mxu0 0.0
      %878 = vmatpush2.msra.mxu0 0.0
      %879 = vmatprep.subr.mxu0 0.0
      %880 = vmatpush2.msra.mxu0 0.0
      %881 = vmatprep.subr.mxu0 0.0
      %882 = vmatpush2.msra.mxu0 0.0
      %883 = vmatprep.subr.mxu0 0.0
      %884 = vmatpush2.msra.mxu0 0.0
      %885 = vmatprep.subr.mxu0 0.0
      %886 = vmatpush2.msra.mxu0 0.0
      %887 = vmatprep.subr.mxu0 0.0
      %888 = vmatpush2.msra.mxu0 0.0
      %889 = vmatprep.subr.mxu0 0.0
      %890 = vmatpush2.msra.mxu0 0.0
      %891 = vmatprep.subr.mxu0 0.0
      %892 = vmatpush2.msra.mxu0 0.0
      %893 = vmatprep.mubr.f32.mxu0 0.0
      %894 = vmatmul.mubr.f32.gmra.mxu0 %v827
      %v895 = vpop.f32.mrf.mxu0
      %v896 = vadd.f32 0.0, %v895
      %v897 = vpop.f32.mrf.mxu0
      %898 = vdwg.mxu0
      %v899 = vadd.f32 %v823, %v896
      %900 = vrot.lane.b32.xlu0 %v421, 119
      %v901 = vpop.permute.xlu0 %900
      %v903 = vsel %vm451, %v444, 0
      %905 = vmatprep.subr.mxu0 0.0
      %906 = vmatpush1.msra.mxu0 0.0
      %907 = vmatprep.subr.mxu0 0.0
      %908 = vmatpush1.msra.mxu0 0.0
      %909 = vmatprep.subr.mxu0 0.0
      %910 = vmatpush1.msra.mxu0 0.0
      %911 = vmatprep.subr.mxu0 0.0
      %912 = vmatpush1.msra.mxu0 0.0
      %913 = vmatprep.subr.mxu0 0.0
      %914 = vmatpush1.msra.mxu0 0.0
      %915 = vmatprep.subr.mxu0 0.0
      %916 = vmatpush1.msra.mxu0 0.0
      %917 = vmatprep.subr.mxu0 0.0
      %918 = vmatpush1.msra.mxu0 0.0
      %919 = vmatprep.subr.mxu0 0.0
      %920 = vmatpush1.msra.mxu0 0.0
      %921 = vmatprep.subr.mxu0 0.0
      %922 = vmatpush1.msra.mxu0 0.0
      %923 = vmatprep.subr.mxu0 0.0
      %924 = vmatpush1.msra.mxu0 0.0
      %925 = vmatprep.subr.mxu0 0.0
      %926 = vmatpush1.msra.mxu0 0.0
      %927 = vmatprep.subr.mxu0 0.0
      %928 = vmatpush1.msra.mxu0 0.0
      %929 = vmatprep.subr.mxu0 0.0
      %930 = vmatpush1.msra.mxu0 0.0
      %931 = vmatprep.subr.mxu0 0.0
      %932 = vmatpush1.msra.mxu0 0.0
      %933 = vmatprep.subr.mxu0 0.0
      %934 = vmatpush1.msra.mxu0 0.0
      %935 = vmatprep.subr.mxu0 0.0
      %936 = vmatpush1.msra.mxu0 %v901
      %937 = vmatprep.subr.mxu0 0.0
      %938 = vmatpush2.msra.mxu0 0.0
      %939 = vmatprep.subr.mxu0 0.0
      %940 = vmatpush2.msra.mxu0 0.0
      %941 = vmatprep.subr.mxu0 0.0
      %942 = vmatpush2.msra.mxu0 0.0
      %943 = vmatprep.subr.mxu0 0.0
      %944 = vmatpush2.msra.mxu0 0.0
      %945 = vmatprep.subr.mxu0 0.0
      %946 = vmatpush2.msra.mxu0 0.0
      %947 = vmatprep.subr.mxu0 0.0
      %948 = vmatpush2.msra.mxu0 0.0
      %949 = vmatprep.subr.mxu0 0.0
      %950 = vmatpush2.msra.mxu0 0.0
      %951 = vmatprep.subr.mxu0 0.0
      %952 = vmatpush2.msra.mxu0 0.0
      %953 = vmatprep.subr.mxu0 0.0
      %954 = vmatpush2.msra.mxu0 0.0
      %955 = vmatprep.subr.mxu0 0.0
      %956 = vmatpush2.msra.mxu0 0.0
      %957 = vmatprep.subr.mxu0 0.0
      %958 = vmatpush2.msra.mxu0 0.0
      %959 = vmatprep.subr.mxu0 0.0
      %960 = vmatpush2.msra.mxu0 0.0
      %961 = vmatprep.subr.mxu0 0.0
      %962 = vmatpush2.msra.mxu0 0.0
      %963 = vmatprep.subr.mxu0 0.0
      %964 = vmatpush2.msra.mxu0 0.0
      %965 = vmatprep.subr.mxu0 0.0
      %966 = vmatpush2.msra.mxu0 0.0
      %967 = vmatprep.subr.mxu0 0.0
      %968 = vmatpush2.msra.mxu0 0.0
      %969 = vmatprep.mubr.f32.mxu0 0.0
      %970 = vmatmul.mubr.f32.gmra.mxu0 %v903
      %v971 = vpop.f32.mrf.mxu0
      %v972 = vadd.f32 0.0, %v971
      %v973 = vpop.f32.mrf.mxu0
      %974 = vdwg.mxu0
      %v975 = vadd.f32 %v899, %v972
      %976 = vrot.lane.b32.xlu0 %v421, 118
      %v977 = vpop.permute.xlu0 %976
      %v979 = vsel %vm451, %v445, 0
      %981 = vmatprep.subr.mxu0 0.0
      %982 = vmatpush1.msra.mxu0 0.0
      %983 = vmatprep.subr.mxu0 0.0
      %984 = vmatpush1.msra.mxu0 0.0
      %985 = vmatprep.subr.mxu0 0.0
      %986 = vmatpush1.msra.mxu0 0.0
      %987 = vmatprep.subr.mxu0 0.0
      %988 = vmatpush1.msra.mxu0 0.0
      %989 = vmatprep.subr.mxu0 0.0
      %990 = vmatpush1.msra.mxu0 0.0
      %991 = vmatprep.subr.mxu0 0.0
      %992 = vmatpush1.msra.mxu0 0.0
      %993 = vmatprep.subr.mxu0 0.0
      %994 = vmatpush1.msra.mxu0 0.0
      %995 = vmatprep.subr.mxu0 0.0
      %996 = vmatpush1.msra.mxu0 0.0
      %997 = vmatprep.subr.mxu0 0.0
      %998 = vmatpush1.msra.mxu0 0.0
      %999 = vmatprep.subr.mxu0 0.0
      %1000 = vmatpush1.msra.mxu0 0.0
      %1001 = vmatprep.subr.mxu0 0.0
      %1002 = vmatpush1.msra.mxu0 0.0
      %1003 = vmatprep.subr.mxu0 0.0
      %1004 = vmatpush1.msra.mxu0 0.0
      %1005 = vmatprep.subr.mxu0 0.0
      %1006 = vmatpush1.msra.mxu0 0.0
      %1007 = vmatprep.subr.mxu0 0.0
      %1008 = vmatpush1.msra.mxu0 0.0
      %1009 = vmatprep.subr.mxu0 0.0
      %1010 = vmatpush1.msra.mxu0 0.0
      %1011 = vmatprep.subr.mxu0 0.0
      %1012 = vmatpush1.msra.mxu0 %v977
      %1013 = vmatprep.subr.mxu0 0.0
      %1014 = vmatpush2.msra.mxu0 0.0
      %1015 = vmatprep.subr.mxu0 0.0
      %1016 = vmatpush2.msra.mxu0 0.0
      %1017 = vmatprep.subr.mxu0 0.0
      %1018 = vmatpush2.msra.mxu0 0.0
      %1019 = vmatprep.subr.mxu0 0.0
      %1020 = vmatpush2.msra.mxu0 0.0
      %1021 = vmatprep.subr.mxu0 0.0
      %1022 = vmatpush2.msra.mxu0 0.0
      %1023 = vmatprep.subr.mxu0 0.0
      %1024 = vmatpush2.msra.mxu0 0.0
      %1025 = vmatprep.subr.mxu0 0.0
      %1026 = vmatpush2.msra.mxu0 0.0
      %1027 = vmatprep.subr.mxu0 0.0
      %1028 = vmatpush2.msra.mxu0 0.0
      %1029 = vmatprep.subr.mxu0 0.0
      %1030 = vmatpush2.msra.mxu0 0.0
      %1031 = vmatprep.subr.mxu0 0.0
      %1032 = vmatpush2.msra.mxu0 0.0
      %1033 = vmatprep.subr.mxu0 0.0
      %1034 = vmatpush2.msra.mxu0 0.0
      %1035 = vmatprep.subr.mxu0 0.0
      %1036 = vmatpush2.msra.mxu0 0.0
      %1037 = vmatprep.subr.mxu0 0.0
      %1038 = vmatpush2.msra.mxu0 0.0
      %1039 = vmatprep.subr.mxu0 0.0
      %1040 = vmatpush2.msra.mxu0 0.0
      %1041 = vmatprep.subr.mxu0 0.0
      %1042 = vmatpush2.msra.mxu0 0.0
      %1043 = vmatprep.subr.mxu0 0.0
      %1044 = vmatpush2.msra.mxu0 0.0
      %1045 = vmatprep.mubr.f32.mxu0 0.0
      %1046 = vmatmul.mubr.f32.gmra.mxu0 %v979
      %v1047 = vpop.f32.mrf.mxu0
      %v1048 = vadd.f32 0.0, %v1047
      %v1049 = vpop.f32.mrf.mxu0
      %1050 = vdwg.mxu0
      %v1051 = vadd.f32 %v975, %v1048
      %1052 = vrot.lane.b32.xlu0 %v421, 117
      %v1053 = vpop.permute.xlu0 %1052
      %v1055 = vsel %vm451, %v446, 0
      %1057 = vmatprep.subr.mxu0 0.0
      %1058 = vmatpush1.msra.mxu0 0.0
      %1059 = vmatprep.subr.mxu0 0.0
      %1060 = vmatpush1.msra.mxu0 0.0
      %1061 = vmatprep.subr.mxu0 0.0
      %1062 = vmatpush1.msra.mxu0 0.0
      %1063 = vmatprep.subr.mxu0 0.0
      %1064 = vmatpush1.msra.mxu0 0.0
      %1065 = vmatprep.subr.mxu0 0.0
      %1066 = vmatpush1.msra.mxu0 0.0
      %1067 = vmatprep.subr.mxu0 0.0
      %1068 = vmatpush1.msra.mxu0 0.0
      %1069 = vmatprep.subr.mxu0 0.0
      %1070 = vmatpush1.msra.mxu0 0.0
      %1071 = vmatprep.subr.mxu0 0.0
      %1072 = vmatpush1.msra.mxu0 0.0
      %1073 = vmatprep.subr.mxu0 0.0
      %1074 = vmatpush1.msra.mxu0 0.0
      %1075 = vmatprep.subr.mxu0 0.0
      %1076 = vmatpush1.msra.mxu0 0.0
      %1077 = vmatprep.subr.mxu0 0.0
      %1078 = vmatpush1.msra.mxu0 0.0
      %1079 = vmatprep.subr.mxu0 0.0
      %1080 = vmatpush1.msra.mxu0 0.0
      %1081 = vmatprep.subr.mxu0 0.0
      %1082 = vmatpush1.msra.mxu0 0.0
      %1083 = vmatprep.subr.mxu0 0.0
      %1084 = vmatpush1.msra.mxu0 0.0
      %1085 = vmatprep.subr.mxu0 0.0
      %1086 = vmatpush1.msra.mxu0 0.0
      %1087 = vmatprep.subr.mxu0 0.0
      %1088 = vmatpush1.msra.mxu0 %v1053
      %1089 = vmatprep.subr.mxu0 0.0
      %1090 = vmatpush2.msra.mxu0 0.0
      %1091 = vmatprep.subr.mxu0 0.0
      %1092 = vmatpush2.msra.mxu0 0.0
      %1093 = vmatprep.subr.mxu0 0.0
      %1094 = vmatpush2.msra.mxu0 0.0
      %1095 = vmatprep.subr.mxu0 0.0
      %1096 = vmatpush2.msra.mxu0 0.0
      %1097 = vmatprep.subr.mxu0 0.0
      %1098 = vmatpush2.msra.mxu0 0.0
      %1099 = vmatprep.subr.mxu0 0.0
      %1100 = vmatpush2.msra.mxu0 0.0
      %1101 = vmatprep.subr.mxu0 0.0
      %1102 = vmatpush2.msra.mxu0 0.0
      %1103 = vmatprep.subr.mxu0 0.0
      %1104 = vmatpush2.msra.mxu0 0.0
      %1105 = vmatprep.subr.mxu0 0.0
      %1106 = vmatpush2.msra.mxu0 0.0
      %1107 = vmatprep.subr.mxu0 0.0
      %1108 = vmatpush2.msra.mxu0 0.0
      %1109 = vmatprep.subr.mxu0 0.0
      %1110 = vmatpush2.msra.mxu0 0.0
      %1111 = vmatprep.subr.mxu0 0.0
      %1112 = vmatpush2.msra.mxu0 0.0
      %1113 = vmatprep.subr.mxu0 0.0
      %1114 = vmatpush2.msra.mxu0 0.0
      %1115 = vmatprep.subr.mxu0 0.0
      %1116 = vmatpush2.msra.mxu0 0.0
      %1117 = vmatprep.subr.mxu0 0.0
      %1118 = vmatpush2.msra.mxu0 0.0
      %1119 = vmatprep.subr.mxu0 0.0
      %1120 = vmatpush2.msra.mxu0 0.0
      %1121 = vmatprep.mubr.f32.mxu0 0.0
      %1122 = vmatmul.mubr.f32.gmra.mxu0 %v1055
      %v1123 = vpop.f32.mrf.mxu0
      %v1124 = vadd.f32 0.0, %v1123
      %v1125 = vpop.f32.mrf.mxu0
      %1126 = vdwg.mxu0
      %v1127 = vadd.f32 %v1051, %v1124
      %s1128 = scalar_lea.vmem %s3, 18
      %v1129 = vld [vmem:[%s1128] sm:$0x3]
      %v1130 = vld [vmem:[%s1128 + $0x2] sm:$0x3]
      %v1131 = vld [vmem:[%s1128 + $0x4] sm:$0x3]
      %v1132 = vld [vmem:[%s1128 + $0x6] sm:$0x3]
      %v1133 = vld [vmem:[%s1128 + $0x8] sm:$0x3]
      %v1134 = vld [vmem:[%s1128 + $0xa] sm:$0x3]
      %v1135 = vld [vmem:[%s1128 + $0xc] sm:$0x3]
      %v1136 = vld [vmem:[%s1128 + $0xe] sm:$0x3]
      %v1137 = vld [vmem:[%s1128 + $0x10] sm:$0x3]
      %1138 = vrot.lane.b32.xlu0 %v422, 11
      %v1139 = vpop.permute.xlu0 %1138
      %v1141 = vsel %vm451, %v1129, 0
      %1143 = vmatprep.subr.mxu0 0.0
      %1144 = vmatpush1.msra.mxu0 0.0
      %1145 = vmatprep.subr.mxu0 0.0
      %1146 = vmatpush1.msra.mxu0 0.0
      %1147 = vmatprep.subr.mxu0 0.0
      %1148 = vmatpush1.msra.mxu0 0.0
      %1149 = vmatprep.subr.mxu0 0.0
      %1150 = vmatpush1.msra.mxu0 0.0
      %1151 = vmatprep.subr.mxu0 0.0
      %1152 = vmatpush1.msra.mxu0 0.0
      %1153 = vmatprep.subr.mxu0 0.0
      %1154 = vmatpush1.msra.mxu0 0.0
      %1155 = vmatprep.subr.mxu0 0.0
      %1156 = vmatpush1.msra.mxu0 0.0
      %1157 = vmatprep.subr.mxu0 0.0
      %1158 = vmatpush1.msra.mxu0 0.0
      %1159 = vmatprep.subr.mxu0 0.0
      %1160 = vmatpush1.msra.mxu0 0.0
      %1161 = vmatprep.subr.mxu0 0.0
      %1162 = vmatpush1.msra.mxu0 0.0
      %1163 = vmatprep.subr.mxu0 0.0
      %1164 = vmatpush1.msra.mxu0 0.0
      %1165 = vmatprep.subr.mxu0 0.0
      %1166 = vmatpush1.msra.mxu0 0.0
      %1167 = vmatprep.subr.mxu0 0.0
      %1168 = vmatpush1.msra.mxu0 0.0
      %1169 = vmatprep.subr.mxu0 0.0
      %1170 = vmatpush1.msra.mxu0 0.0
      %1171 = vmatprep.subr.mxu0 0.0
      %1172 = vmatpush1.msra.mxu0 0.0
      %1173 = vmatprep.subr.mxu0 0.0
      %1174 = vmatpush1.msra.mxu0 %v1139
      %1175 = vmatprep.subr.mxu0 0.0
      %1176 = vmatpush2.msra.mxu0 0.0
      %1177 = vmatprep.subr.mxu0 0.0
      %1178 = vmatpush2.msra.mxu0 0.0
      %1179 = vmatprep.subr.mxu0 0.0
      %1180 = vmatpush2.msra.mxu0 0.0
      %1181 = vmatprep.subr.mxu0 0.0
      %1182 = vmatpush2.msra.mxu0 0.0
      %1183 = vmatprep.subr.mxu0 0.0
      %1184 = vmatpush2.msra.mxu0 0.0
      %1185 = vmatprep.subr.mxu0 0.0
      %1186 = vmatpush2.msra.mxu0 0.0
      %1187 = vmatprep.subr.mxu0 0.0
      %1188 = vmatpush2.msra.mxu0 0.0
      %1189 = vmatprep.subr.mxu0 0.0
      %1190 = vmatpush2.msra.mxu0 0.0
      %1191 = vmatprep.subr.mxu0 0.0
      %1192 = vmatpush2.msra.mxu0 0.0
      %1193 = vmatprep.subr.mxu0 0.0
      %1194 = vmatpush2.msra.mxu0 0.0
      %1195 = vmatprep.subr.mxu0 0.0
      %1196 = vmatpush2.msra.mxu0 0.0
      %1197 = vmatprep.subr.mxu0 0.0
      %1198 = vmatpush2.msra.mxu0 0.0
      %1199 = vmatprep.subr.mxu0 0.0
      %1200 = vmatpush2.msra.mxu0 0.0
      %1201 = vmatprep.subr.mxu0 0.0
      %1202 = vmatpush2.msra.mxu0 0.0
      %1203 = vmatprep.subr.mxu0 0.0
      %1204 = vmatpush2.msra.mxu0 0.0
      %1205 = vmatprep.subr.mxu0 0.0
      %1206 = vmatpush2.msra.mxu0 0.0
      %1207 = vmatprep.mubr.f32.mxu0 0.0
      %1208 = vmatmul.mubr.f32.gmra.mxu0 %v1141
      %v1209 = vpop.f32.mrf.mxu0
      %v1210 = vadd.f32 0.0, %v1209
      %v1211 = vpop.f32.mrf.mxu0
      %1212 = vdwg.mxu0
      %v1213 = vadd.f32 %v1127, %v1210
      %1214 = vrot.lane.b32.xlu0 %v422, 10
      %v1215 = vpop.permute.xlu0 %1214
      %v1217 = vsel %vm451, %v1130, 0
      %1219 = vmatprep.subr.mxu0 0.0
      %1220 = vmatpush1.msra.mxu0 0.0
      %1221 = vmatprep.subr.mxu0 0.0
      %1222 = vmatpush1.msra.mxu0 0.0
      %1223 = vmatprep.subr.mxu0 0.0
      %1224 = vmatpush1.msra.mxu0 0.0
      %1225 = vmatprep.subr.mxu0 0.0
      %1226 = vmatpush1.msra.mxu0 0.0
      %1227 = vmatprep.subr.mxu0 0.0
      %1228 = vmatpush1.msra.mxu0 0.0
      %1229 = vmatprep.subr.mxu0 0.0
      %1230 = vmatpush1.msra.mxu0 0.0
      %1231 = vmatprep.subr.mxu0 0.0
      %1232 = vmatpush1.msra.mxu0 0.0
      %1233 = vmatprep.subr.mxu0 0.0
      %1234 = vmatpush1.msra.mxu0 0.0
      %1235 = vmatprep.subr.mxu0 0.0
      %1236 = vmatpush1.msra.mxu0 0.0
      %1237 = vmatprep.subr.mxu0 0.0
      %1238 = vmatpush1.msra.mxu0 0.0
      %1239 = vmatprep.subr.mxu0 0.0
      %1240 = vmatpush1.msra.mxu0 0.0
      %1241 = vmatprep.subr.mxu0 0.0
      %1242 = vmatpush1.msra.mxu0 0.0
      %1243 = vmatprep.subr.mxu0 0.0
      %1244 = vmatpush1.msra.mxu0 0.0
      %1245 = vmatprep.subr.mxu0 0.0
      %1246 = vmatpush1.msra.mxu0 0.0
      %1247 = vmatprep.subr.mxu0 0.0
      %1248 = vmatpush1.msra.mxu0 0.0
      %1249 = vmatprep.subr.mxu0 0.0
      %1250 = vmatpush1.msra.mxu0 %v1215
      %1251 = vmatprep.subr.mxu0 0.0
      %1252 = vmatpush2.msra.mxu0 0.0
      %1253 = vmatprep.subr.mxu0 0.0
      %1254 = vmatpush2.msra.mxu0 0.0
      %1255 = vmatprep.subr.mxu0 0.0
      %1256 = vmatpush2.msra.mxu0 0.0
      %1257 = vmatprep.subr.mxu0 0.0
      %1258 = vmatpush2.msra.mxu0 0.0
      %1259 = vmatprep.subr.mxu0 0.0
      %1260 = vmatpush2.msra.mxu0 0.0
      %1261 = vmatprep.subr.mxu0 0.0
      %1262 = vmatpush2.msra.mxu0 0.0
      %1263 = vmatprep.subr.mxu0 0.0
      %1264 = vmatpush2.msra.mxu0 0.0
      %1265 = vmatprep.subr.mxu0 0.0
      %1266 = vmatpush2.msra.mxu0 0.0
      %1267 = vmatprep.subr.mxu0 0.0
      %1268 = vmatpush2.msra.mxu0 0.0
      %1269 = vmatprep.subr.mxu0 0.0
      %1270 = vmatpush2.msra.mxu0 0.0
      %1271 = vmatprep.subr.mxu0 0.0
      %1272 = vmatpush2.msra.mxu0 0.0
      %1273 = vmatprep.subr.mxu0 0.0
      %1274 = vmatpush2.msra.mxu0 0.0
      %1275 = vmatprep.subr.mxu0 0.0
      %1276 = vmatpush2.msra.mxu0 0.0
      %1277 = vmatprep.subr.mxu0 0.0
      %1278 = vmatpush2.msra.mxu0 0.0
      %1279 = vmatprep.subr.mxu0 0.0
      %1280 = vmatpush2.msra.mxu0 0.0
      %1281 = vmatprep.subr.mxu0 0.0
      %1282 = vmatpush2.msra.mxu0 0.0
      %1283 = vmatprep.mubr.f32.mxu0 0.0
      %1284 = vmatmul.mubr.f32.gmra.mxu0 %v1217
      %v1285 = vpop.f32.mrf.mxu0
      %v1286 = vadd.f32 0.0, %v1285
      %v1287 = vpop.f32.mrf.mxu0
      %1288 = vdwg.mxu0
      %v1289 = vadd.f32 %v1213, %v1286
      %1290 = vrot.lane.b32.xlu0 %v422, 9
      %v1291 = vpop.permute.xlu0 %1290
      %v1293 = vsel %vm451, %v1131, 0
      %1295 = vmatprep.subr.mxu0 0.0
      %1296 = vmatpush1.msra.mxu0 0.0
      %1297 = vmatprep.subr.mxu0 0.0
      %1298 = vmatpush1.msra.mxu0 0.0
      %1299 = vmatprep.subr.mxu0 0.0
      %1300 = vmatpush1.msra.mxu0 0.0
      %1301 = vmatprep.subr.mxu0 0.0
      %1302 = vmatpush1.msra.mxu0 0.0
      %1303 = vmatprep.subr.mxu0 0.0
      %1304 = vmatpush1.msra.mxu0 0.0
      %1305 = vmatprep.subr.mxu0 0.0
      %1306 = vmatpush1.msra.mxu0 0.0
      %1307 = vmatprep.subr.mxu0 0.0
      %1308 = vmatpush1.msra.mxu0 0.0
      %1309 = vmatprep.subr.mxu0 0.0
      %1310 = vmatpush1.msra.mxu0 0.0
      %1311 = vmatprep.subr.mxu0 0.0
      %1312 = vmatpush1.msra.mxu0 0.0
      %1313 = vmatprep.subr.mxu0 0.0
      %1314 = vmatpush1.msra.mxu0 0.0
      %1315 = vmatprep.subr.mxu0 0.0
      %1316 = vmatpush1.msra.mxu0 0.0
      %1317 = vmatprep.subr.mxu0 0.0
      %1318 = vmatpush1.msra.mxu0 0.0
      %1319 = vmatprep.subr.mxu0 0.0
      %1320 = vmatpush1.msra.mxu0 0.0
      %1321 = vmatprep.subr.mxu0 0.0
      %1322 = vmatpush1.msra.mxu0 0.0
      %1323 = vmatprep.subr.mxu0 0.0
      %1324 = vmatpush1.msra.mxu0 0.0
      %1325 = vmatprep.subr.mxu0 0.0
      %1326 = vmatpush1.msra.mxu0 %v1291
      %1327 = vmatprep.subr.mxu0 0.0
      %1328 = vmatpush2.msra.mxu0 0.0
      %1329 = vmatprep.subr.mxu0 0.0
      %1330 = vmatpush2.msra.mxu0 0.0
      %1331 = vmatprep.subr.mxu0 0.0
      %1332 = vmatpush2.msra.mxu0 0.0
      %1333 = vmatprep.subr.mxu0 0.0
      %1334 = vmatpush2.msra.mxu0 0.0
      %1335 = vmatprep.subr.mxu0 0.0
      %1336 = vmatpush2.msra.mxu0 0.0
      %1337 = vmatprep.subr.mxu0 0.0
      %1338 = vmatpush2.msra.mxu0 0.0
      %1339 = vmatprep.subr.mxu0 0.0
      %1340 = vmatpush2.msra.mxu0 0.0
      %1341 = vmatprep.subr.mxu0 0.0
      %1342 = vmatpush2.msra.mxu0 0.0
      %1343 = vmatprep.subr.mxu0 0.0
      %1344 = vmatpush2.msra.mxu0 0.0
      %1345 = vmatprep.subr.mxu0 0.0
      %1346 = vmatpush2.msra.mxu0 0.0
      %1347 = vmatprep.subr.mxu0 0.0
      %1348 = vmatpush2.msra.mxu0 0.0
      %1349 = vmatprep.subr.mxu0 0.0
      %1350 = vmatpush2.msra.mxu0 0.0
      %1351 = vmatprep.subr.mxu0 0.0
      %1352 = vmatpush2.msra.mxu0 0.0
      %1353 = vmatprep.subr.mxu0 0.0
      %1354 = vmatpush2.msra.mxu0 0.0
      %1355 = vmatprep.subr.mxu0 0.0
      %1356 = vmatpush2.msra.mxu0 0.0
      %1357 = vmatprep.subr.mxu0 0.0
      %1358 = vmatpush2.msra.mxu0 0.0
      %1359 = vmatprep.mubr.f32.mxu0 0.0
      %1360 = vmatmul.mubr.f32.gmra.mxu0 %v1293
      %v1361 = vpop.f32.mrf.mxu0
      %v1362 = vadd.f32 0.0, %v1361
      %v1363 = vpop.f32.mrf.mxu0
      %1364 = vdwg.mxu0
      %v1365 = vadd.f32 %v1289, %v1362
      %1366 = vrot.lane.b32.xlu0 %v422, 1
      %v1367 = vpop.permute.xlu0 %1366
      %v1369 = vsel %vm451, %v1132, 0
      %1371 = vmatprep.subr.mxu0 0.0
      %1372 = vmatpush1.msra.mxu0 0.0
      %1373 = vmatprep.subr.mxu0 0.0
      %1374 = vmatpush1.msra.mxu0 0.0
      %1375 = vmatprep.subr.mxu0 0.0
      %1376 = vmatpush1.msra.mxu0 0.0
      %1377 = vmatprep.subr.mxu0 0.0
      %1378 = vmatpush1.msra.mxu0 0.0
      %1379 = vmatprep.subr.mxu0 0.0
      %1380 = vmatpush1.msra.mxu0 0.0
      %1381 = vmatprep.subr.mxu0 0.0
      %1382 = vmatpush1.msra.mxu0 0.0
      %1383 = vmatprep.subr.mxu0 0.0
      %1384 = vmatpush1.msra.mxu0 0.0
      %1385 = vmatprep.subr.mxu0 0.0
      %1386 = vmatpush1.msra.mxu0 0.0
      %1387 = vmatprep.subr.mxu0 0.0
      %1388 = vmatpush1.msra.mxu0 0.0
      %1389 = vmatprep.subr.mxu0 0.0
      %1390 = vmatpush1.msra.mxu0 0.0
      %1391 = vmatprep.subr.mxu0 0.0
      %1392 = vmatpush1.msra.mxu0 0.0
      %1393 = vmatprep.subr.mxu0 0.0
      %1394 = vmatpush1.msra.mxu0 0.0
      %1395 = vmatprep.subr.mxu0 0.0
      %1396 = vmatpush1.msra.mxu0 0.0
      %1397 = vmatprep.subr.mxu0 0.0
      %1398 = vmatpush1.msra.mxu0 0.0
      %1399 = vmatprep.subr.mxu0 0.0
      %1400 = vmatpush1.msra.mxu0 0.0
      %1401 = vmatprep.subr.mxu0 0.0
      %1402 = vmatpush1.msra.mxu0 %v1367
      %1403 = vmatprep.subr.mxu0 0.0
      %1404 = vmatpush2.msra.mxu0 0.0
      %1405 = vmatprep.subr.mxu0 0.0
      %1406 = vmatpush2.msra.mxu0 0.0
      %1407 = vmatprep.subr.mxu0 0.0
      %1408 = vmatpush2.msra.mxu0 0.0
      %1409 = vmatprep.subr.mxu0 0.0
      %1410 = vmatpush2.msra.mxu0 0.0
      %1411 = vmatprep.subr.mxu0 0.0
      %1412 = vmatpush2.msra.mxu0 0.0
      %1413 = vmatprep.subr.mxu0 0.0
      %1414 = vmatpush2.msra.mxu0 0.0
      %1415 = vmatprep.subr.mxu0 0.0
      %1416 = vmatpush2.msra.mxu0 0.0
      %1417 = vmatprep.subr.mxu0 0.0
      %1418 = vmatpush2.msra.mxu0 0.0
      %1419 = vmatprep.subr.mxu0 0.0
      %1420 = vmatpush2.msra.mxu0 0.0
      %1421 = vmatprep.subr.mxu0 0.0
      %1422 = vmatpush2.msra.mxu0 0.0
      %1423 = vmatprep.subr.mxu0 0.0
      %1424 = vmatpush2.msra.mxu0 0.0
      %1425 = vmatprep.subr.mxu0 0.0
      %1426 = vmatpush2.msra.mxu0 0.0
      %1427 = vmatprep.subr.mxu0 0.0
      %1428 = vmatpush2.msra.mxu0 0.0
      %1429 = vmatprep.subr.mxu0 0.0
      %1430 = vmatpush2.msra.mxu0 0.0
      %1431 = vmatprep.subr.mxu0 0.0
      %1432 = vmatpush2.msra.mxu0 0.0
      %1433 = vmatprep.subr.mxu0 0.0
      %1434 = vmatpush2.msra.mxu0 0.0
      %1435 = vmatprep.mubr.f32.mxu0 0.0
      %1436 = vmatmul.mubr.f32.gmra.mxu0 %v1369
      %v1437 = vpop.f32.mrf.mxu0
      %v1438 = vadd.f32 0.0, %v1437
      %v1439 = vpop.f32.mrf.mxu0
      %1440 = vdwg.mxu0
      %v1441 = vadd.f32 %v1365, %v1438
      %v1443 = vsel %vm451, %v1133, 0
      %1445 = vmatprep.subr.mxu0 0.0
      %1446 = vmatpush1.msra.mxu0 0.0
      %1447 = vmatprep.subr.mxu0 0.0
      %1448 = vmatpush1.msra.mxu0 0.0
      %1449 = vmatprep.subr.mxu0 0.0
      %1450 = vmatpush1.msra.mxu0 0.0
      %1451 = vmatprep.subr.mxu0 0.0
      %1452 = vmatpush1.msra.mxu0 0.0
      %1453 = vmatprep.subr.mxu0 0.0
      %1454 = vmatpush1.msra.mxu0 0.0
      %1455 = vmatprep.subr.mxu0 0.0
      %1456 = vmatpush1.msra.mxu0 0.0
      %1457 = vmatprep.subr.mxu0 0.0
      %1458 = vmatpush1.msra.mxu0 0.0
      %1459 = vmatprep.subr.mxu0 0.0
      %1460 = vmatpush1.msra.mxu0 0.0
      %1461 = vmatprep.subr.mxu0 0.0
      %1462 = vmatpush1.msra.mxu0 0.0
      %1463 = vmatprep.subr.mxu0 0.0
      %1464 = vmatpush1.msra.mxu0 0.0
      %1465 = vmatprep.subr.mxu0 0.0
      %1466 = vmatpush1.msra.mxu0 0.0
      %1467 = vmatprep.subr.mxu0 0.0
      %1468 = vmatpush1.msra.mxu0 0.0
      %1469 = vmatprep.subr.mxu0 0.0
      %1470 = vmatpush1.msra.mxu0 0.0
      %1471 = vmatprep.subr.mxu0 0.0
      %1472 = vmatpush1.msra.mxu0 0.0
      %1473 = vmatprep.subr.mxu0 0.0
      %1474 = vmatpush1.msra.mxu0 0.0
      %1475 = vmatprep.subr.mxu0 0.0
      %1476 = vmatpush1.msra.mxu0 %v422
      %1477 = vmatprep.subr.mxu0 0.0
      %1478 = vmatpush2.msra.mxu0 0.0
      %1479 = vmatprep.subr.mxu0 0.0
      %1480 = vmatpush2.msra.mxu0 0.0
      %1481 = vmatprep.subr.mxu0 0.0
      %1482 = vmatpush2.msra.mxu0 0.0
      %1483 = vmatprep.subr.mxu0 0.0
      %1484 = vmatpush2.msra.mxu0 0.0
      %1485 = vmatprep.subr.mxu0 0.0
      %1486 = vmatpush2.msra.mxu0 0.0
      %1487 = vmatprep.subr.mxu0 0.0
      %1488 = vmatpush2.msra.mxu0 0.0
      %1489 = vmatprep.subr.mxu0 0.0
      %1490 = vmatpush2.msra.mxu0 0.0
      %1491 = vmatprep.subr.mxu0 0.0
      %1492 = vmatpush2.msra.mxu0 0.0
      %1493 = vmatprep.subr.mxu0 0.0
      %1494 = vmatpush2.msra.mxu0 0.0
      %1495 = vmatprep.subr.mxu0 0.0
      %1496 = vmatpush2.msra.mxu0 0.0
      %1497 = vmatprep.subr.mxu0 0.0
      %1498 = vmatpush2.msra.mxu0 0.0
      %1499 = vmatprep.subr.mxu0 0.0
      %1500 = vmatpush2.msra.mxu0 0.0
      %1501 = vmatprep.subr.mxu0 0.0
      %1502 = vmatpush2.msra.mxu0 0.0
      %1503 = vmatprep.subr.mxu0 0.0
      %1504 = vmatpush2.msra.mxu0 0.0
      %1505 = vmatprep.subr.mxu0 0.0
      %1506 = vmatpush2.msra.mxu0 0.0
      %1507 = vmatprep.subr.mxu0 0.0
      %1508 = vmatpush2.msra.mxu0 0.0
      %1509 = vmatprep.mubr.f32.mxu0 0.0
      %1510 = vmatmul.mubr.f32.gmra.mxu0 %v1443
      %v1511 = vpop.f32.mrf.mxu0
      %v1512 = vadd.f32 0.0, %v1511
      %v1513 = vpop.f32.mrf.mxu0
      %1514 = vdwg.mxu0
      %v1515 = vadd.f32 %v1441, %v1512
      %1516 = vrot.lane.b32.xlu0 %v422, 127
      %v1517 = vpop.permute.xlu0 %1516
      %v1519 = vsel %vm451, %v1134, 0
      %1521 = vmatprep.subr.mxu0 0.0
      %1522 = vmatpush1.msra.mxu0 0.0
      %1523 = vmatprep.subr.mxu0 0.0
      %1524 = vmatpush1.msra.mxu0 0.0
      %1525 = vmatprep.subr.mxu0 0.0
      %1526 = vmatpush1.msra.mxu0 0.0
      %1527 = vmatprep.subr.mxu0 0.0
      %1528 = vmatpush1.msra.mxu0 0.0
      %1529 = vmatprep.subr.mxu0 0.0
      %1530 = vmatpush1.msra.mxu0 0.0
      %1531 = vmatprep.subr.mxu0 0.0
      %1532 = vmatpush1.msra.mxu0 0.0
      %1533 = vmatprep.subr.mxu0 0.0
      %1534 = vmatpush1.msra.mxu0 0.0
      %1535 = vmatprep.subr.mxu0 0.0
      %1536 = vmatpush1.msra.mxu0 0.0
      %1537 = vmatprep.subr.mxu0 0.0
      %1538 = vmatpush1.msra.mxu0 0.0
      %1539 = vmatprep.subr.mxu0 0.0
      %1540 = vmatpush1.msra.mxu0 0.0
      %1541 = vmatprep.subr.mxu0 0.0
      %1542 = vmatpush1.msra.mxu0 0.0
      %1543 = vmatprep.subr.mxu0 0.0
      %1544 = vmatpush1.msra.mxu0 0.0
      %1545 = vmatprep.subr.mxu0 0.0
      %1546 = vmatpush1.msra.mxu0 0.0
      %1547 = vmatprep.subr.mxu0 0.0
      %1548 = vmatpush1.msra.mxu0 0.0
      %1549 = vmatprep.subr.mxu0 0.0
      %1550 = vmatpush1.msra.mxu0 0.0
      %1551 = vmatprep.subr.mxu0 0.0
      %1552 = vmatpush1.msra.mxu0 %v1517
      %1553 = vmatprep.subr.mxu0 0.0
      %1554 = vmatpush2.msra.mxu0 0.0
      %1555 = vmatprep.subr.mxu0 0.0
      %1556 = vmatpush2.msra.mxu0 0.0
      %1557 = vmatprep.subr.mxu0 0.0
      %1558 = vmatpush2.msra.mxu0 0.0
      %1559 = vmatprep.subr.mxu0 0.0
      %1560 = vmatpush2.msra.mxu0 0.0
      %1561 = vmatprep.subr.mxu0 0.0
      %1562 = vmatpush2.msra.mxu0 0.0
      %1563 = vmatprep.subr.mxu0 0.0
      %1564 = vmatpush2.msra.mxu0 0.0
      %1565 = vmatprep.subr.mxu0 0.0
      %1566 = vmatpush2.msra.mxu0 0.0
      %1567 = vmatprep.subr.mxu0 0.0
      %1568 = vmatpush2.msra.mxu0 0.0
      %1569 = vmatprep.subr.mxu0 0.0
      %1570 = vmatpush2.msra.mxu0 0.0
      %1571 = vmatprep.subr.mxu0 0.0
      %1572 = vmatpush2.msra.mxu0 0.0
      %1573 = vmatprep.subr.mxu0 0.0
      %1574 = vmatpush2.msra.mxu0 0.0
      %1575 = vmatprep.subr.mxu0 0.0
      %1576 = vmatpush2.msra.mxu0 0.0
      %1577 = vmatprep.subr.mxu0 0.0
      %1578 = vmatpush2.msra.mxu0 0.0
      %1579 = vmatprep.subr.mxu0 0.0
      %1580 = vmatpush2.msra.mxu0 0.0
      %1581 = vmatprep.subr.mxu0 0.0
      %1582 = vmatpush2.msra.mxu0 0.0
      %1583 = vmatprep.subr.mxu0 0.0
      %1584 = vmatpush2.msra.mxu0 0.0
      %1585 = vmatprep.mubr.f32.mxu0 0.0
      %1586 = vmatmul.mubr.f32.gmra.mxu0 %v1519
      %v1587 = vpop.f32.mrf.mxu0
      %v1588 = vadd.f32 0.0, %v1587
      %v1589 = vpop.f32.mrf.mxu0
      %1590 = vdwg.mxu0
      %v1591 = vadd.f32 %v1515, %v1588
      %1592 = vrot.lane.b32.xlu0 %v422, 119
      %v1593 = vpop.permute.xlu0 %1592
      %v1595 = vsel %vm451, %v1135, 0
      %1597 = vmatprep.subr.mxu0 0.0
      %1598 = vmatpush1.msra.mxu0 0.0
      %1599 = vmatprep.subr.mxu0 0.0
      %1600 = vmatpush1.msra.mxu0 0.0
      %1601 = vmatprep.subr.mxu0 0.0
      %1602 = vmatpush1.msra.mxu0 0.0
      %1603 = vmatprep.subr.mxu0 0.0
      %1604 = vmatpush1.msra.mxu0 0.0
      %1605 = vmatprep.subr.mxu0 0.0
      %1606 = vmatpush1.msra.mxu0 0.0
      %1607 = vmatprep.subr.mxu0 0.0
      %1608 = vmatpush1.msra.mxu0 0.0
      %1609 = vmatprep.subr.mxu0 0.0
      %1610 = vmatpush1.msra.mxu0 0.0
      %1611 = vmatprep.subr.mxu0 0.0
      %1612 = vmatpush1.msra.mxu0 0.0
      %1613 = vmatprep.subr.mxu0 0.0
      %1614 = vmatpush1.msra.mxu0 0.0
      %1615 = vmatprep.subr.mxu0 0.0
      %1616 = vmatpush1.msra.mxu0 0.0
      %1617 = vmatprep.subr.mxu0 0.0
      %1618 = vmatpush1.msra.mxu0 0.0
      %1619 = vmatprep.subr.mxu0 0.0
      %1620 = vmatpush1.msra.mxu0 0.0
      %1621 = vmatprep.subr.mxu0 0.0
      %1622 = vmatpush1.msra.mxu0 0.0
      %1623 = vmatprep.subr.mxu0 0.0
      %1624 = vmatpush1.msra.mxu0 0.0
      %1625 = vmatprep.subr.mxu0 0.0
      %1626 = vmatpush1.msra.mxu0 0.0
      %1627 = vmatprep.subr.mxu0 0.0
      %1628 = vmatpush1.msra.mxu0 %v1593
      %1629 = vmatprep.subr.mxu0 0.0
      %1630 = vmatpush2.msra.mxu0 0.0
      %1631 = vmatprep.subr.mxu0 0.0
      %1632 = vmatpush2.msra.mxu0 0.0
      %1633 = vmatprep.subr.mxu0 0.0
      %1634 = vmatpush2.msra.mxu0 0.0
      %1635 = vmatprep.subr.mxu0 0.0
      %1636 = vmatpush2.msra.mxu0 0.0
      %1637 = vmatprep.subr.mxu0 0.0
      %1638 = vmatpush2.msra.mxu0 0.0
      %1639 = vmatprep.subr.mxu0 0.0
      %1640 = vmatpush2.msra.mxu0 0.0
      %1641 = vmatprep.subr.mxu0 0.0
      %1642 = vmatpush2.msra.mxu0 0.0
      %1643 = vmatprep.subr.mxu0 0.0
      %1644 = vmatpush2.msra.mxu0 0.0
      %1645 = vmatprep.subr.mxu0 0.0
      %1646 = vmatpush2.msra.mxu0 0.0
      %1647 = vmatprep.subr.mxu0 0.0
      %1648 = vmatpush2.msra.mxu0 0.0
      %1649 = vmatprep.subr.mxu0 0.0
      %1650 = vmatpush2.msra.mxu0 0.0
      %1651 = vmatprep.subr.mxu0 0.0
      %1652 = vmatpush2.msra.mxu0 0.0
      %1653 = vmatprep.subr.mxu0 0.0
      %1654 = vmatpush2.msra.mxu0 0.0
      %1655 = vmatprep.subr.mxu0 0.0
      %1656 = vmatpush2.msra.mxu0 0.0
      %1657 = vmatprep.subr.mxu0 0.0
      %1658 = vmatpush2.msra.mxu0 0.0
      %1659 = vmatprep.subr.mxu0 0.0
      %1660 = vmatpush2.msra.mxu0 0.0
      %1661 = vmatprep.mubr.f32.mxu0 0.0
      %1662 = vmatmul.mubr.f32.gmra.mxu0 %v1595
      %v1663 = vpop.f32.mrf.mxu0
      %v1664 = vadd.f32 0.0, %v1663
      %v1665 = vpop.f32.mrf.mxu0
      %1666 = vdwg.mxu0
      %v1667 = vadd.f32 %v1591, %v1664
      %1668 = vrot.lane.b32.xlu0 %v422, 118
      %v1669 = vpop.permute.xlu0 %1668
      %v1671 = vsel %vm451, %v1136, 0
      %1673 = vmatprep.subr.mxu0 0.0
      %1674 = vmatpush1.msra.mxu0 0.0
      %1675 = vmatprep.subr.mxu0 0.0
      %1676 = vmatpush1.msra.mxu0 0.0
      %1677 = vmatprep.subr.mxu0 0.0
      %1678 = vmatpush1.msra.mxu0 0.0
      %1679 = vmatprep.subr.mxu0 0.0
      %1680 = vmatpush1.msra.mxu0 0.0
      %1681 = vmatprep.subr.mxu0 0.0
      %1682 = vmatpush1.msra.mxu0 0.0
      %1683 = vmatprep.subr.mxu0 0.0
      %1684 = vmatpush1.msra.mxu0 0.0
      %1685 = vmatprep.subr.mxu0 0.0
      %1686 = vmatpush1.msra.mxu0 0.0
      %1687 = vmatprep.subr.mxu0 0.0
      %1688 = vmatpush1.msra.mxu0 0.0
      %1689 = vmatprep.subr.mxu0 0.0
      %1690 = vmatpush1.msra.mxu0 0.0
      %1691 = vmatprep.subr.mxu0 0.0
      %1692 = vmatpush1.msra.mxu0 0.0
      %1693 = vmatprep.subr.mxu0 0.0
      %1694 = vmatpush1.msra.mxu0 0.0
      %1695 = vmatprep.subr.mxu0 0.0
      %1696 = vmatpush1.msra.mxu0 0.0
      %1697 = vmatprep.subr.mxu0 0.0
      %1698 = vmatpush1.msra.mxu0 0.0
      %1699 = vmatprep.subr.mxu0 0.0
      %1700 = vmatpush1.msra.mxu0 0.0
      %1701 = vmatprep.subr.mxu0 0.0
      %1702 = vmatpush1.msra.mxu0 0.0
      %1703 = vmatprep.subr.mxu0 0.0
      %1704 = vmatpush1.msra.mxu0 %v1669
      %1705 = vmatprep.subr.mxu0 0.0
      %1706 = vmatpush2.msra.mxu0 0.0
      %1707 = vmatprep.subr.mxu0 0.0
      %1708 = vmatpush2.msra.mxu0 0.0
      %1709 = vmatprep.subr.mxu0 0.0
      %1710 = vmatpush2.msra.mxu0 0.0
      %1711 = vmatprep.subr.mxu0 0.0
      %1712 = vmatpush2.msra.mxu0 0.0
      %1713 = vmatprep.subr.mxu0 0.0
      %1714 = vmatpush2.msra.mxu0 0.0
      %1715 = vmatprep.subr.mxu0 0.0
      %1716 = vmatpush2.msra.mxu0 0.0
      %1717 = vmatprep.subr.mxu0 0.0
      %1718 = vmatpush2.msra.mxu0 0.0
      %1719 = vmatprep.subr.mxu0 0.0
      %1720 = vmatpush2.msra.mxu0 0.0
      %1721 = vmatprep.subr.mxu0 0.0
      %1722 = vmatpush2.msra.mxu0 0.0
      %1723 = vmatprep.subr.mxu0 0.0
      %1724 = vmatpush2.msra.mxu0 0.0
      %1725 = vmatprep.subr.mxu0 0.0
      %1726 = vmatpush2.msra.mxu0 0.0
      %1727 = vmatprep.subr.mxu0 0.0
      %1728 = vmatpush2.msra.mxu0 0.0
      %1729 = vmatprep.subr.mxu0 0.0
      %1730 = vmatpush2.msra.mxu0 0.0
      %1731 = vmatprep.subr.mxu0 0.0
      %1732 = vmatpush2.msra.mxu0 0.0
      %1733 = vmatprep.subr.mxu0 0.0
      %1734 = vmatpush2.msra.mxu0 0.0
      %1735 = vmatprep.subr.mxu0 0.0
      %1736 = vmatpush2.msra.mxu0 0.0
      %1737 = vmatprep.mubr.f32.mxu0 0.0
      %1738 = vmatmul.mubr.f32.gmra.mxu0 %v1671
      %v1739 = vpop.f32.mrf.mxu0
      %v1740 = vadd.f32 0.0, %v1739
      %v1741 = vpop.f32.mrf.mxu0
      %1742 = vdwg.mxu0
      %v1743 = vadd.f32 %v1667, %v1740
      %1744 = vrot.lane.b32.xlu0 %v422, 117
      %v1745 = vpop.permute.xlu0 %1744
      %v1747 = vsel %vm451, %v1137, 0
      %1749 = vmatprep.subr.mxu0 0.0
      %1750 = vmatpush1.msra.mxu0 0.0
      %1751 = vmatprep.subr.mxu0 0.0
      %1752 = vmatpush1.msra.mxu0 0.0
      %1753 = vmatprep.subr.mxu0 0.0
      %1754 = vmatpush1.msra.mxu0 0.0
      %1755 = vmatprep.subr.mxu0 0.0
      %1756 = vmatpush1.msra.mxu0 0.0
      %1757 = vmatprep.subr.mxu0 0.0
      %1758 = vmatpush1.msra.mxu0 0.0
      %1759 = vmatprep.subr.mxu0 0.0
      %1760 = vmatpush1.msra.mxu0 0.0
      %1761 = vmatprep.subr.mxu0 0.0
      %1762 = vmatpush1.msra.mxu0 0.0
      %1763 = vmatprep.subr.mxu0 0.0
      %1764 = vmatpush1.msra.mxu0 0.0
      %1765 = vmatprep.subr.mxu0 0.0
      %1766 = vmatpush1.msra.mxu0 0.0
      %1767 = vmatprep.subr.mxu0 0.0
      %1768 = vmatpush1.msra.mxu0 0.0
      %1769 = vmatprep.subr.mxu0 0.0
      %1770 = vmatpush1.msra.mxu0 0.0
      %1771 = vmatprep.subr.mxu0 0.0
      %1772 = vmatpush1.msra.mxu0 0.0
      %1773 = vmatprep.subr.mxu0 0.0
      %1774 = vmatpush1.msra.mxu0 0.0
      %1775 = vmatprep.subr.mxu0 0.0
      %1776 = vmatpush1.msra.mxu0 0.0
      %1777 = vmatprep.subr.mxu0 0.0
      %1778 = vmatpush1.msra.mxu0 0.0
      %1779 = vmatprep.subr.mxu0 0.0
      %1780 = vmatpush1.msra.mxu0 %v1745
      %1781 = vmatprep.subr.mxu0 0.0
      %1782 = vmatpush2.msra.mxu0 0.0
      %1783 = vmatprep.subr.mxu0 0.0
      %1784 = vmatpush2.msra.mxu0 0.0
      %1785 = vmatprep.subr.mxu0 0.0
      %1786 = vmatpush2.msra.mxu0 0.0
      %1787 = vmatprep.subr.mxu0 0.0
      %1788 = vmatpush2.msra.mxu0 0.0
      %1789 = vmatprep.subr.mxu0 0.0
      %1790 = vmatpush2.msra.mxu0 0.0
      %1791 = vmatprep.subr.mxu0 0.0
      %1792 = vmatpush2.msra.mxu0 0.0
      %1793 = vmatprep.subr.mxu0 0.0
      %1794 = vmatpush2.msra.mxu0 0.0
      %1795 = vmatprep.subr.mxu0 0.0
      %1796 = vmatpush2.msra.mxu0 0.0
      %1797 = vmatprep.subr.mxu0 0.0
      %1798 = vmatpush2.msra.mxu0 0.0
      %1799 = vmatprep.subr.mxu0 0.0
      %1800 = vmatpush2.msra.mxu0 0.0
      %1801 = vmatprep.subr.mxu0 0.0
      %1802 = vmatpush2.msra.mxu0 0.0
      %1803 = vmatprep.subr.mxu0 0.0
      %1804 = vmatpush2.msra.mxu0 0.0
      %1805 = vmatprep.subr.mxu0 0.0
      %1806 = vmatpush2.msra.mxu0 0.0
      %1807 = vmatprep.subr.mxu0 0.0
      %1808 = vmatpush2.msra.mxu0 0.0
      %1809 = vmatprep.subr.mxu0 0.0
      %1810 = vmatpush2.msra.mxu0 0.0
      %1811 = vmatprep.subr.mxu0 0.0
      %1812 = vmatpush2.msra.mxu0 0.0
      %1813 = vmatprep.mubr.f32.mxu0 0.0
      %1814 = vmatmul.mubr.f32.gmra.mxu0 %v1747
      %v1815 = vpop.f32.mrf.mxu0
      %v1816 = vadd.f32 0.0, %v1815
      %v1817 = vpop.f32.mrf.mxu0
      %1818 = vdwg.mxu0
      %v1819 = vadd.f32 %v1743, %v1816
      %s1820 = scalar_lea.vmem %s3, 36
      %v1821 = vld [vmem:[%s1820] sm:$0x3]
      %v1822 = vld [vmem:[%s1820 + $0x2] sm:$0x3]
      %v1823 = vld [vmem:[%s1820 + $0x4] sm:$0x3]
      %v1824 = vld [vmem:[%s1820 + $0x6] sm:$0x3]
      %v1825 = vld [vmem:[%s1820 + $0x8] sm:$0x3]
      %v1826 = vld [vmem:[%s1820 + $0xa] sm:$0x3]
      %v1827 = vld [vmem:[%s1820 + $0xc] sm:$0x3]
      %v1828 = vld [vmem:[%s1820 + $0xe] sm:$0x3]
      %v1829 = vld [vmem:[%s1820 + $0x10] sm:$0x3]
      %v1830 = vstv %s427
      %v1831 = vmul.f32 %v1821, %v1830
      %v1832 = vmul.f32 %v1822, %v1830
      %v1833 = vmul.f32 %v1823, %v1830
      %v1834 = vmul.f32 %v1824, %v1830
      %v1835 = vmul.f32 %v1825, %v1830
      %v1836 = vmul.f32 %v1826, %v1830
      %v1837 = vmul.f32 %v1827, %v1830
      %v1838 = vmul.f32 %v1828, %v1830
      %v1839 = vmul.f32 %v1829, %v1830
      %1840 = vrot.lane.b32.xlu0 %v423, 11
      %v1841 = vpop.permute.xlu0 %1840
      %v1843 = vsel %vm451, %v1831, 0
      %1845 = vmatprep.subr.mxu0 0.0
      %1846 = vmatpush1.msra.mxu0 0.0
      %1847 = vmatprep.subr.mxu0 0.0
      %1848 = vmatpush1.msra.mxu0 0.0
      %1849 = vmatprep.subr.mxu0 0.0
      %1850 = vmatpush1.msra.mxu0 0.0
      %1851 = vmatprep.subr.mxu0 0.0
      %1852 = vmatpush1.msra.mxu0 0.0
      %1853 = vmatprep.subr.mxu0 0.0
      %1854 = vmatpush1.msra.mxu0 0.0
      %1855 = vmatprep.subr.mxu0 0.0
      %1856 = vmatpush1.msra.mxu0 0.0
      %1857 = vmatprep.subr.mxu0 0.0
      %1858 = vmatpush1.msra.mxu0 0.0
      %1859 = vmatprep.subr.mxu0 0.0
      %1860 = vmatpush1.msra.mxu0 0.0
      %1861 = vmatprep.subr.mxu0 0.0
      %1862 = vmatpush1.msra.mxu0 0.0
      %1863 = vmatprep.subr.mxu0 0.0
      %1864 = vmatpush1.msra.mxu0 0.0
      %1865 = vmatprep.subr.mxu0 0.0
      %1866 = vmatpush1.msra.mxu0 0.0
      %1867 = vmatprep.subr.mxu0 0.0
      %1868 = vmatpush1.msra.mxu0 0.0
      %1869 = vmatprep.subr.mxu0 0.0
      %1870 = vmatpush1.msra.mxu0 0.0
      %1871 = vmatprep.subr.mxu0 0.0
      %1872 = vmatpush1.msra.mxu0 0.0
      %1873 = vmatprep.subr.mxu0 0.0
      %1874 = vmatpush1.msra.mxu0 0.0
      %1875 = vmatprep.subr.mxu0 0.0
      %1876 = vmatpush1.msra.mxu0 %v1841
      %1877 = vmatprep.subr.mxu0 0.0
      %1878 = vmatpush2.msra.mxu0 0.0
      %1879 = vmatprep.subr.mxu0 0.0
      %1880 = vmatpush2.msra.mxu0 0.0
      %1881 = vmatprep.subr.mxu0 0.0
      %1882 = vmatpush2.msra.mxu0 0.0
      %1883 = vmatprep.subr.mxu0 0.0
      %1884 = vmatpush2.msra.mxu0 0.0
      %1885 = vmatprep.subr.mxu0 0.0
      %1886 = vmatpush2.msra.mxu0 0.0
      %1887 = vmatprep.subr.mxu0 0.0
      %1888 = vmatpush2.msra.mxu0 0.0
      %1889 = vmatprep.subr.mxu0 0.0
      %1890 = vmatpush2.msra.mxu0 0.0
      %1891 = vmatprep.subr.mxu0 0.0
      %1892 = vmatpush2.msra.mxu0 0.0
      %1893 = vmatprep.subr.mxu0 0.0
      %1894 = vmatpush2.msra.mxu0 0.0
      %1895 = vmatprep.subr.mxu0 0.0
      %1896 = vmatpush2.msra.mxu0 0.0
      %1897 = vmatprep.subr.mxu0 0.0
      %1898 = vmatpush2.msra.mxu0 0.0
      %1899 = vmatprep.subr.mxu0 0.0
      %1900 = vmatpush2.msra.mxu0 0.0
      %1901 = vmatprep.subr.mxu0 0.0
      %1902 = vmatpush2.msra.mxu0 0.0
      %1903 = vmatprep.subr.mxu0 0.0
      %1904 = vmatpush2.msra.mxu0 0.0
      %1905 = vmatprep.subr.mxu0 0.0
      %1906 = vmatpush2.msra.mxu0 0.0
      %1907 = vmatprep.subr.mxu0 0.0
      %1908 = vmatpush2.msra.mxu0 0.0
      %1909 = vmatprep.mubr.f32.mxu0 0.0
      %1910 = vmatmul.mubr.f32.gmra.mxu0 %v1843
      %v1911 = vpop.f32.mrf.mxu0
      %v1912 = vadd.f32 0.0, %v1911
      %v1913 = vpop.f32.mrf.mxu0
      %1914 = vdwg.mxu0
      %v1915 = vadd.f32 %v1819, %v1912
      %1916 = vrot.lane.b32.xlu0 %v423, 10
      %v1917 = vpop.permute.xlu0 %1916
      %v1919 = vsel %vm451, %v1832, 0
      %1921 = vmatprep.subr.mxu0 0.0
      %1922 = vmatpush1.msra.mxu0 0.0
      %1923 = vmatprep.subr.mxu0 0.0
      %1924 = vmatpush1.msra.mxu0 0.0
      %1925 = vmatprep.subr.mxu0 0.0
      %1926 = vmatpush1.msra.mxu0 0.0
      %1927 = vmatprep.subr.mxu0 0.0
      %1928 = vmatpush1.msra.mxu0 0.0
      %1929 = vmatprep.subr.mxu0 0.0
      %1930 = vmatpush1.msra.mxu0 0.0
      %1931 = vmatprep.subr.mxu0 0.0
      %1932 = vmatpush1.msra.mxu0 0.0
      %1933 = vmatprep.subr.mxu0 0.0
      %1934 = vmatpush1.msra.mxu0 0.0
      %1935 = vmatprep.subr.mxu0 0.0
      %1936 = vmatpush1.msra.mxu0 0.0
      %1937 = vmatprep.subr.mxu0 0.0
      %1938 = vmatpush1.msra.mxu0 0.0
      %1939 = vmatprep.subr.mxu0 0.0
      %1940 = vmatpush1.msra.mxu0 0.0
      %1941 = vmatprep.subr.mxu0 0.0
      %1942 = vmatpush1.msra.mxu0 0.0
      %1943 = vmatprep.subr.mxu0 0.0
      %1944 = vmatpush1.msra.mxu0 0.0
      %1945 = vmatprep.subr.mxu0 0.0
      %1946 = vmatpush1.msra.mxu0 0.0
      %1947 = vmatprep.subr.mxu0 0.0
      %1948 = vmatpush1.msra.mxu0 0.0
      %1949 = vmatprep.subr.mxu0 0.0
      %1950 = vmatpush1.msra.mxu0 0.0
      %1951 = vmatprep.subr.mxu0 0.0
      %1952 = vmatpush1.msra.mxu0 %v1917
      %1953 = vmatprep.subr.mxu0 0.0
      %1954 = vmatpush2.msra.mxu0 0.0
      %1955 = vmatprep.subr.mxu0 0.0
      %1956 = vmatpush2.msra.mxu0 0.0
      %1957 = vmatprep.subr.mxu0 0.0
      %1958 = vmatpush2.msra.mxu0 0.0
      %1959 = vmatprep.subr.mxu0 0.0
      %1960 = vmatpush2.msra.mxu0 0.0
      %1961 = vmatprep.subr.mxu0 0.0
      %1962 = vmatpush2.msra.mxu0 0.0
      %1963 = vmatprep.subr.mxu0 0.0
      %1964 = vmatpush2.msra.mxu0 0.0
      %1965 = vmatprep.subr.mxu0 0.0
      %1966 = vmatpush2.msra.mxu0 0.0
      %1967 = vmatprep.subr.mxu0 0.0
      %1968 = vmatpush2.msra.mxu0 0.0
      %1969 = vmatprep.subr.mxu0 0.0
      %1970 = vmatpush2.msra.mxu0 0.0
      %1971 = vmatprep.subr.mxu0 0.0
      %1972 = vmatpush2.msra.mxu0 0.0
      %1973 = vmatprep.subr.mxu0 0.0
      %1974 = vmatpush2.msra.mxu0 0.0
      %1975 = vmatprep.subr.mxu0 0.0
      %1976 = vmatpush2.msra.mxu0 0.0
      %1977 = vmatprep.subr.mxu0 0.0
      %1978 = vmatpush2.msra.mxu0 0.0
      %1979 = vmatprep.subr.mxu0 0.0
      %1980 = vmatpush2.msra.mxu0 0.0
      %1981 = vmatprep.subr.mxu0 0.0
      %1982 = vmatpush2.msra.mxu0 0.0
      %1983 = vmatprep.subr.mxu0 0.0
      %1984 = vmatpush2.msra.mxu0 0.0
      %1985 = vmatprep.mubr.f32.mxu0 0.0
      %1986 = vmatmul.mubr.f32.gmra.mxu0 %v1919
      %v1987 = vpop.f32.mrf.mxu0
      %v1988 = vadd.f32 0.0, %v1987
      %v1989 = vpop.f32.mrf.mxu0
      %1990 = vdwg.mxu0
      %v1991 = vadd.f32 %v1915, %v1988
      %1992 = vrot.lane.b32.xlu0 %v423, 9
      %v1993 = vpop.permute.xlu0 %1992
      %v1995 = vsel %vm451, %v1833, 0
      %1997 = vmatprep.subr.mxu0 0.0
      %1998 = vmatpush1.msra.mxu0 0.0
      %1999 = vmatprep.subr.mxu0 0.0
      %2000 = vmatpush1.msra.mxu0 0.0
      %2001 = vmatprep.subr.mxu0 0.0
      %2002 = vmatpush1.msra.mxu0 0.0
      %2003 = vmatprep.subr.mxu0 0.0
      %2004 = vmatpush1.msra.mxu0 0.0
      %2005 = vmatprep.subr.mxu0 0.0
      %2006 = vmatpush1.msra.mxu0 0.0
      %2007 = vmatprep.subr.mxu0 0.0
      %2008 = vmatpush1.msra.mxu0 0.0
      %2009 = vmatprep.subr.mxu0 0.0
      %2010 = vmatpush1.msra.mxu0 0.0
      %2011 = vmatprep.subr.mxu0 0.0
      %2012 = vmatpush1.msra.mxu0 0.0
      %2013 = vmatprep.subr.mxu0 0.0
      %2014 = vmatpush1.msra.mxu0 0.0
      %2015 = vmatprep.subr.mxu0 0.0
      %2016 = vmatpush1.msra.mxu0 0.0
      %2017 = vmatprep.subr.mxu0 0.0
      %2018 = vmatpush1.msra.mxu0 0.0
      %2019 = vmatprep.subr.mxu0 0.0
      %2020 = vmatpush1.msra.mxu0 0.0
      %2021 = vmatprep.subr.mxu0 0.0
      %2022 = vmatpush1.msra.mxu0 0.0
      %2023 = vmatprep.subr.mxu0 0.0
      %2024 = vmatpush1.msra.mxu0 0.0
      %2025 = vmatprep.subr.mxu0 0.0
      %2026 = vmatpush1.msra.mxu0 0.0
      %2027 = vmatprep.subr.mxu0 0.0
      %2028 = vmatpush1.msra.mxu0 %v1993
      %2029 = vmatprep.subr.mxu0 0.0
      %2030 = vmatpush2.msra.mxu0 0.0
      %2031 = vmatprep.subr.mxu0 0.0
      %2032 = vmatpush2.msra.mxu0 0.0
      %2033 = vmatprep.subr.mxu0 0.0
      %2034 = vmatpush2.msra.mxu0 0.0
      %2035 = vmatprep.subr.mxu0 0.0
      %2036 = vmatpush2.msra.mxu0 0.0
      %2037 = vmatprep.subr.mxu0 0.0
      %2038 = vmatpush2.msra.mxu0 0.0
      %2039 = vmatprep.subr.mxu0 0.0
      %2040 = vmatpush2.msra.mxu0 0.0
      %2041 = vmatprep.subr.mxu0 0.0
      %2042 = vmatpush2.msra.mxu0 0.0
      %2043 = vmatprep.subr.mxu0 0.0
      %2044 = vmatpush2.msra.mxu0 0.0
      %2045 = vmatprep.subr.mxu0 0.0
      %2046 = vmatpush2.msra.mxu0 0.0
      %2047 = vmatprep.subr.mxu0 0.0
      %2048 = vmatpush2.msra.mxu0 0.0
      %2049 = vmatprep.subr.mxu0 0.0
      %2050 = vmatpush2.msra.mxu0 0.0
      %2051 = vmatprep.subr.mxu0 0.0
      %2052 = vmatpush2.msra.mxu0 0.0
      %2053 = vmatprep.subr.mxu0 0.0
      %2054 = vmatpush2.msra.mxu0 0.0
      %2055 = vmatprep.subr.mxu0 0.0
      %2056 = vmatpush2.msra.mxu0 0.0
      %2057 = vmatprep.subr.mxu0 0.0
      %2058 = vmatpush2.msra.mxu0 0.0
      %2059 = vmatprep.subr.mxu0 0.0
      %2060 = vmatpush2.msra.mxu0 0.0
      %2061 = vmatprep.mubr.f32.mxu0 0.0
      %2062 = vmatmul.mubr.f32.gmra.mxu0 %v1995
      %v2063 = vpop.f32.mrf.mxu0
      %v2064 = vadd.f32 0.0, %v2063
      %v2065 = vpop.f32.mrf.mxu0
      %2066 = vdwg.mxu0
      %v2067 = vadd.f32 %v1991, %v2064
      %2068 = vrot.lane.b32.xlu0 %v423, 1
      %v2069 = vpop.permute.xlu0 %2068
      %v2071 = vsel %vm451, %v1834, 0
      %2073 = vmatprep.subr.mxu0 0.0
      %2074 = vmatpush1.msra.mxu0 0.0
      %2075 = vmatprep.subr.mxu0 0.0
      %2076 = vmatpush1.msra.mxu0 0.0
      %2077 = vmatprep.subr.mxu0 0.0
      %2078 = vmatpush1.msra.mxu0 0.0
      %2079 = vmatprep.subr.mxu0 0.0
      %2080 = vmatpush1.msra.mxu0 0.0
      %2081 = vmatprep.subr.mxu0 0.0
      %2082 = vmatpush1.msra.mxu0 0.0
      %2083 = vmatprep.subr.mxu0 0.0
      %2084 = vmatpush1.msra.mxu0 0.0
      %2085 = vmatprep.subr.mxu0 0.0
      %2086 = vmatpush1.msra.mxu0 0.0
      %2087 = vmatprep.subr.mxu0 0.0
      %2088 = vmatpush1.msra.mxu0 0.0
      %2089 = vmatprep.subr.mxu0 0.0
      %2090 = vmatpush1.msra.mxu0 0.0
      %2091 = vmatprep.subr.mxu0 0.0
      %2092 = vmatpush1.msra.mxu0 0.0
      %2093 = vmatprep.subr.mxu0 0.0
      %2094 = vmatpush1.msra.mxu0 0.0
      %2095 = vmatprep.subr.mxu0 0.0
      %2096 = vmatpush1.msra.mxu0 0.0
      %2097 = vmatprep.subr.mxu0 0.0
      %2098 = vmatpush1.msra.mxu0 0.0
      %2099 = vmatprep.subr.mxu0 0.0
      %2100 = vmatpush1.msra.mxu0 0.0
      %2101 = vmatprep.subr.mxu0 0.0
      %2102 = vmatpush1.msra.mxu0 0.0
      %2103 = vmatprep.subr.mxu0 0.0
      %2104 = vmatpush1.msra.mxu0 %v2069
      %2105 = vmatprep.subr.mxu0 0.0
      %2106 = vmatpush2.msra.mxu0 0.0
      %2107 = vmatprep.subr.mxu0 0.0
      %2108 = vmatpush2.msra.mxu0 0.0
      %2109 = vmatprep.subr.mxu0 0.0
      %2110 = vmatpush2.msra.mxu0 0.0
      %2111 = vmatprep.subr.mxu0 0.0
      %2112 = vmatpush2.msra.mxu0 0.0
      %2113 = vmatprep.subr.mxu0 0.0
      %2114 = vmatpush2.msra.mxu0 0.0
      %2115 = vmatprep.subr.mxu0 0.0
      %2116 = vmatpush2.msra.mxu0 0.0
      %2117 = vmatprep.subr.mxu0 0.0
      %2118 = vmatpush2.msra.mxu0 0.0
      %2119 = vmatprep.subr.mxu0 0.0
      %2120 = vmatpush2.msra.mxu0 0.0
      %2121 = vmatprep.subr.mxu0 0.0
      %2122 = vmatpush2.msra.mxu0 0.0
      %2123 = vmatprep.subr.mxu0 0.0
      %2124 = vmatpush2.msra.mxu0 0.0
      %2125 = vmatprep.subr.mxu0 0.0
      %2126 = vmatpush2.msra.mxu0 0.0
      %2127 = vmatprep.subr.mxu0 0.0
      %2128 = vmatpush2.msra.mxu0 0.0
      %2129 = vmatprep.subr.mxu0 0.0
      %2130 = vmatpush2.msra.mxu0 0.0
      %2131 = vmatprep.subr.mxu0 0.0
      %2132 = vmatpush2.msra.mxu0 0.0
      %2133 = vmatprep.subr.mxu0 0.0
      %2134 = vmatpush2.msra.mxu0 0.0
      %2135 = vmatprep.subr.mxu0 0.0
      %2136 = vmatpush2.msra.mxu0 0.0
      %2137 = vmatprep.mubr.f32.mxu0 0.0
      %2138 = vmatmul.mubr.f32.gmra.mxu0 %v2071
      %v2139 = vpop.f32.mrf.mxu0
      %v2140 = vadd.f32 0.0, %v2139
      %v2141 = vpop.f32.mrf.mxu0
      %2142 = vdwg.mxu0
      %v2143 = vadd.f32 %v2067, %v2140
      %v2145 = vsel %vm451, %v1835, 0
      %2147 = vmatprep.subr.mxu0 0.0
      %2148 = vmatpush1.msra.mxu0 0.0
      %2149 = vmatprep.subr.mxu0 0.0
      %2150 = vmatpush1.msra.mxu0 0.0
      %2151 = vmatprep.subr.mxu0 0.0
      %2152 = vmatpush1.msra.mxu0 0.0
      %2153 = vmatprep.subr.mxu0 0.0
      %2154 = vmatpush1.msra.mxu0 0.0
      %2155 = vmatprep.subr.mxu0 0.0
      %2156 = vmatpush1.msra.mxu0 0.0
      %2157 = vmatprep.subr.mxu0 0.0
      %2158 = vmatpush1.msra.mxu0 0.0
      %2159 = vmatprep.subr.mxu0 0.0
      %2160 = vmatpush1.msra.mxu0 0.0
      %2161 = vmatprep.subr.mxu0 0.0
      %2162 = vmatpush1.msra.mxu0 0.0
      %2163 = vmatprep.subr.mxu0 0.0
      %2164 = vmatpush1.msra.mxu0 0.0
      %2165 = vmatprep.subr.mxu0 0.0
      %2166 = vmatpush1.msra.mxu0 0.0
      %2167 = vmatprep.subr.mxu0 0.0
      %2168 = vmatpush1.msra.mxu0 0.0
      %2169 = vmatprep.subr.mxu0 0.0
      %2170 = vmatpush1.msra.mxu0 0.0
      %2171 = vmatprep.subr.mxu0 0.0
      %2172 = vmatpush1.msra.mxu0 0.0
      %2173 = vmatprep.subr.mxu0 0.0
      %2174 = vmatpush1.msra.mxu0 0.0
      %2175 = vmatprep.subr.mxu0 0.0
      %2176 = vmatpush1.msra.mxu0 0.0
      %2177 = vmatprep.subr.mxu0 0.0
      %2178 = vmatpush1.msra.mxu0 %v423
      %2179 = vmatprep.subr.mxu0 0.0
      %2180 = vmatpush2.msra.mxu0 0.0
      %2181 = vmatprep.subr.mxu0 0.0
      %2182 = vmatpush2.msra.mxu0 0.0
      %2183 = vmatprep.subr.mxu0 0.0
      %2184 = vmatpush2.msra.mxu0 0.0
      %2185 = vmatprep.subr.mxu0 0.0
      %2186 = vmatpush2.msra.mxu0 0.0
      %2187 = vmatprep.subr.mxu0 0.0
      %2188 = vmatpush2.msra.mxu0 0.0
      %2189 = vmatprep.subr.mxu0 0.0
      %2190 = vmatpush2.msra.mxu0 0.0
      %2191 = vmatprep.subr.mxu0 0.0
      %2192 = vmatpush2.msra.mxu0 0.0
      %2193 = vmatprep.subr.mxu0 0.0
      %2194 = vmatpush2.msra.mxu0 0.0
      %2195 = vmatprep.subr.mxu0 0.0
      %2196 = vmatpush2.msra.mxu0 0.0
      %2197 = vmatprep.subr.mxu0 0.0
      %2198 = vmatpush2.msra.mxu0 0.0
      %2199 = vmatprep.subr.mxu0 0.0
      %2200 = vmatpush2.msra.mxu0 0.0
      %2201 = vmatprep.subr.mxu0 0.0
      %2202 = vmatpush2.msra.mxu0 0.0
      %2203 = vmatprep.subr.mxu0 0.0
      %2204 = vmatpush2.msra.mxu0 0.0
      %2205 = vmatprep.subr.mxu0 0.0
      %2206 = vmatpush2.msra.mxu0 0.0
      %2207 = vmatprep.subr.mxu0 0.0
      %2208 = vmatpush2.msra.mxu0 0.0
      %2209 = vmatprep.subr.mxu0 0.0
      %2210 = vmatpush2.msra.mxu0 0.0
      %2211 = vmatprep.mubr.f32.mxu0 0.0
      %2212 = vmatmul.mubr.f32.gmra.mxu0 %v2145
      %v2213 = vpop.f32.mrf.mxu0
      %v2214 = vadd.f32 0.0, %v2213
      %v2215 = vpop.f32.mrf.mxu0
      %2216 = vdwg.mxu0
      %v2217 = vadd.f32 %v2143, %v2214
      %2218 = vrot.lane.b32.xlu0 %v423, 127
      %v2219 = vpop.permute.xlu0 %2218
      %v2221 = vsel %vm451, %v1836, 0
      %2223 = vmatprep.subr.mxu0 0.0
      %2224 = vmatpush1.msra.mxu0 0.0
      %2225 = vmatprep.subr.mxu0 0.0
      %2226 = vmatpush1.msra.mxu0 0.0
      %2227 = vmatprep.subr.mxu0 0.0
      %2228 = vmatpush1.msra.mxu0 0.0
      %2229 = vmatprep.subr.mxu0 0.0
      %2230 = vmatpush1.msra.mxu0 0.0
      %2231 = vmatprep.subr.mxu0 0.0
      %2232 = vmatpush1.msra.mxu0 0.0
      %2233 = vmatprep.subr.mxu0 0.0
      %2234 = vmatpush1.msra.mxu0 0.0
      %2235 = vmatprep.subr.mxu0 0.0
      %2236 = vmatpush1.msra.mxu0 0.0
      %2237 = vmatprep.subr.mxu0 0.0
      %2238 = vmatpush1.msra.mxu0 0.0
      %2239 = vmatprep.subr.mxu0 0.0
      %2240 = vmatpush1.msra.mxu0 0.0
      %2241 = vmatprep.subr.mxu0 0.0
      %2242 = vmatpush1.msra.mxu0 0.0
      %2243 = vmatprep.subr.mxu0 0.0
      %2244 = vmatpush1.msra.mxu0 0.0
      %2245 = vmatprep.subr.mxu0 0.0
      %2246 = vmatpush1.msra.mxu0 0.0
      %2247 = vmatprep.subr.mxu0 0.0
      %2248 = vmatpush1.msra.mxu0 0.0
      %2249 = vmatprep.subr.mxu0 0.0
      %2250 = vmatpush1.msra.mxu0 0.0
      %2251 = vmatprep.subr.mxu0 0.0
      %2252 = vmatpush1.msra.mxu0 0.0
      %2253 = vmatprep.subr.mxu0 0.0
      %2254 = vmatpush1.msra.mxu0 %v2219
      %2255 = vmatprep.subr.mxu0 0.0
      %2256 = vmatpush2.msra.mxu0 0.0
      %2257 = vmatprep.subr.mxu0 0.0
      %2258 = vmatpush2.msra.mxu0 0.0
      %2259 = vmatprep.subr.mxu0 0.0
      %2260 = vmatpush2.msra.mxu0 0.0
      %2261 = vmatprep.subr.mxu0 0.0
      %2262 = vmatpush2.msra.mxu0 0.0
      %2263 = vmatprep.subr.mxu0 0.0
      %2264 = vmatpush2.msra.mxu0 0.0
      %2265 = vmatprep.subr.mxu0 0.0
      %2266 = vmatpush2.msra.mxu0 0.0
      %2267 = vmatprep.subr.mxu0 0.0
      %2268 = vmatpush2.msra.mxu0 0.0
      %2269 = vmatprep.subr.mxu0 0.0
      %2270 = vmatpush2.msra.mxu0 0.0
      %2271 = vmatprep.subr.mxu0 0.0
      %2272 = vmatpush2.msra.mxu0 0.0
      %2273 = vmatprep.subr.mxu0 0.0
      %2274 = vmatpush2.msra.mxu0 0.0
      %2275 = vmatprep.subr.mxu0 0.0
      %2276 = vmatpush2.msra.mxu0 0.0
      %2277 = vmatprep.subr.mxu0 0.0
      %2278 = vmatpush2.msra.mxu0 0.0
      %2279 = vmatprep.subr.mxu0 0.0
      %2280 = vmatpush2.msra.mxu0 0.0
      %2281 = vmatprep.subr.mxu0 0.0
      %2282 = vmatpush2.msra.mxu0 0.0
      %2283 = vmatprep.subr.mxu0 0.0
      %2284 = vmatpush2.msra.mxu0 0.0
      %2285 = vmatprep.subr.mxu0 0.0
      %2286 = vmatpush2.msra.mxu0 0.0
      %2287 = vmatprep.mubr.f32.mxu0 0.0
      %2288 = vmatmul.mubr.f32.gmra.mxu0 %v2221
      %v2289 = vpop.f32.mrf.mxu0
      %v2290 = vadd.f32 0.0, %v2289
      %v2291 = vpop.f32.mrf.mxu0
      %2292 = vdwg.mxu0
      %v2293 = vadd.f32 %v2217, %v2290
      %2294 = vrot.lane.b32.xlu0 %v423, 119
      %v2295 = vpop.permute.xlu0 %2294
      %v2297 = vsel %vm451, %v1837, 0
      %2299 = vmatprep.subr.mxu0 0.0
      %2300 = vmatpush1.msra.mxu0 0.0
      %2301 = vmatprep.subr.mxu0 0.0
      %2302 = vmatpush1.msra.mxu0 0.0
      %2303 = vmatprep.subr.mxu0 0.0
      %2304 = vmatpush1.msra.mxu0 0.0
      %2305 = vmatprep.subr.mxu0 0.0
      %2306 = vmatpush1.msra.mxu0 0.0
      %2307 = vmatprep.subr.mxu0 0.0
      %2308 = vmatpush1.msra.mxu0 0.0
      %2309 = vmatprep.subr.mxu0 0.0
      %2310 = vmatpush1.msra.mxu0 0.0
      %2311 = vmatprep.subr.mxu0 0.0
      %2312 = vmatpush1.msra.mxu0 0.0
      %2313 = vmatprep.subr.mxu0 0.0
      %2314 = vmatpush1.msra.mxu0 0.0
      %2315 = vmatprep.subr.mxu0 0.0
      %2316 = vmatpush1.msra.mxu0 0.0
      %2317 = vmatprep.subr.mxu0 0.0
      %2318 = vmatpush1.msra.mxu0 0.0
      %2319 = vmatprep.subr.mxu0 0.0
      %2320 = vmatpush1.msra.mxu0 0.0
      %2321 = vmatprep.subr.mxu0 0.0
      %2322 = vmatpush1.msra.mxu0 0.0
      %2323 = vmatprep.subr.mxu0 0.0
      %2324 = vmatpush1.msra.mxu0 0.0
      %2325 = vmatprep.subr.mxu0 0.0
      %2326 = vmatpush1.msra.mxu0 0.0
      %2327 = vmatprep.subr.mxu0 0.0
      %2328 = vmatpush1.msra.mxu0 0.0
      %2329 = vmatprep.subr.mxu0 0.0
      %2330 = vmatpush1.msra.mxu0 %v2295
      %2331 = vmatprep.subr.mxu0 0.0
      %2332 = vmatpush2.msra.mxu0 0.0
      %2333 = vmatprep.subr.mxu0 0.0
      %2334 = vmatpush2.msra.mxu0 0.0
      %2335 = vmatprep.subr.mxu0 0.0
      %2336 = vmatpush2.msra.mxu0 0.0
      %2337 = vmatprep.subr.mxu0 0.0
      %2338 = vmatpush2.msra.mxu0 0.0
      %2339 = vmatprep.subr.mxu0 0.0
      %2340 = vmatpush2.msra.mxu0 0.0
      %2341 = vmatprep.subr.mxu0 0.0
      %2342 = vmatpush2.msra.mxu0 0.0
      %2343 = vmatprep.subr.mxu0 0.0
      %2344 = vmatpush2.msra.mxu0 0.0
      %2345 = vmatprep.subr.mxu0 0.0
      %2346 = vmatpush2.msra.mxu0 0.0
      %2347 = vmatprep.subr.mxu0 0.0
      %2348 = vmatpush2.msra.mxu0 0.0
      %2349 = vmatprep.subr.mxu0 0.0
      %2350 = vmatpush2.msra.mxu0 0.0
      %2351 = vmatprep.subr.mxu0 0.0
      %2352 = vmatpush2.msra.mxu0 0.0
      %2353 = vmatprep.subr.mxu0 0.0
      %2354 = vmatpush2.msra.mxu0 0.0
      %2355 = vmatprep.subr.mxu0 0.0
      %2356 = vmatpush2.msra.mxu0 0.0
      %2357 = vmatprep.subr.mxu0 0.0
      %2358 = vmatpush2.msra.mxu0 0.0
      %2359 = vmatprep.subr.mxu0 0.0
      %2360 = vmatpush2.msra.mxu0 0.0
      %2361 = vmatprep.subr.mxu0 0.0
      %2362 = vmatpush2.msra.mxu0 0.0
      %2363 = vmatprep.mubr.f32.mxu0 0.0
      %2364 = vmatmul.mubr.f32.gmra.mxu0 %v2297
      %v2365 = vpop.f32.mrf.mxu0
      %v2366 = vadd.f32 0.0, %v2365
      %v2367 = vpop.f32.mrf.mxu0
      %2368 = vdwg.mxu0
      %v2369 = vadd.f32 %v2293, %v2366
      %2370 = vrot.lane.b32.xlu0 %v423, 118
      %v2371 = vpop.permute.xlu0 %2370
      %v2373 = vsel %vm451, %v1838, 0
      %2375 = vmatprep.subr.mxu0 0.0
      %2376 = vmatpush1.msra.mxu0 0.0
      %2377 = vmatprep.subr.mxu0 0.0
      %2378 = vmatpush1.msra.mxu0 0.0
      %2379 = vmatprep.subr.mxu0 0.0
      %2380 = vmatpush1.msra.mxu0 0.0
      %2381 = vmatprep.subr.mxu0 0.0
      %2382 = vmatpush1.msra.mxu0 0.0
      %2383 = vmatprep.subr.mxu0 0.0
      %2384 = vmatpush1.msra.mxu0 0.0
      %2385 = vmatprep.subr.mxu0 0.0
      %2386 = vmatpush1.msra.mxu0 0.0
      %2387 = vmatprep.subr.mxu0 0.0
      %2388 = vmatpush1.msra.mxu0 0.0
      %2389 = vmatprep.subr.mxu0 0.0
      %2390 = vmatpush1.msra.mxu0 0.0
      %2391 = vmatprep.subr.mxu0 0.0
      %2392 = vmatpush1.msra.mxu0 0.0
      %2393 = vmatprep.subr.mxu0 0.0
      %2394 = vmatpush1.msra.mxu0 0.0
      %2395 = vmatprep.subr.mxu0 0.0
      %2396 = vmatpush1.msra.mxu0 0.0
      %2397 = vmatprep.subr.mxu0 0.0
      %2398 = vmatpush1.msra.mxu0 0.0
      %2399 = vmatprep.subr.mxu0 0.0
      %2400 = vmatpush1.msra.mxu0 0.0
      %2401 = vmatprep.subr.mxu0 0.0
      %2402 = vmatpush1.msra.mxu0 0.0
      %2403 = vmatprep.subr.mxu0 0.0
      %2404 = vmatpush1.msra.mxu0 0.0
      %2405 = vmatprep.subr.mxu0 0.0
      %2406 = vmatpush1.msra.mxu0 %v2371
      %2407 = vmatprep.subr.mxu0 0.0
      %2408 = vmatpush2.msra.mxu0 0.0
      %2409 = vmatprep.subr.mxu0 0.0
      %2410 = vmatpush2.msra.mxu0 0.0
      %2411 = vmatprep.subr.mxu0 0.0
      %2412 = vmatpush2.msra.mxu0 0.0
      %2413 = vmatprep.subr.mxu0 0.0
      %2414 = vmatpush2.msra.mxu0 0.0
      %2415 = vmatprep.subr.mxu0 0.0
      %2416 = vmatpush2.msra.mxu0 0.0
      %2417 = vmatprep.subr.mxu0 0.0
      %2418 = vmatpush2.msra.mxu0 0.0
      %2419 = vmatprep.subr.mxu0 0.0
      %2420 = vmatpush2.msra.mxu0 0.0
      %2421 = vmatprep.subr.mxu0 0.0
      %2422 = vmatpush2.msra.mxu0 0.0
      %2423 = vmatprep.subr.mxu0 0.0
      %2424 = vmatpush2.msra.mxu0 0.0
      %2425 = vmatprep.subr.mxu0 0.0
      %2426 = vmatpush2.msra.mxu0 0.0
      %2427 = vmatprep.subr.mxu0 0.0
      %2428 = vmatpush2.msra.mxu0 0.0
      %2429 = vmatprep.subr.mxu0 0.0
      %2430 = vmatpush2.msra.mxu0 0.0
      %2431 = vmatprep.subr.mxu0 0.0
      %2432 = vmatpush2.msra.mxu0 0.0
      %2433 = vmatprep.subr.mxu0 0.0
      %2434 = vmatpush2.msra.mxu0 0.0
      %2435 = vmatprep.subr.mxu0 0.0
      %2436 = vmatpush2.msra.mxu0 0.0
      %2437 = vmatprep.subr.mxu0 0.0
      %2438 = vmatpush2.msra.mxu0 0.0
      %2439 = vmatprep.mubr.f32.mxu0 0.0
      %2440 = vmatmul.mubr.f32.gmra.mxu0 %v2373
      %v2441 = vpop.f32.mrf.mxu0
      %v2442 = vadd.f32 0.0, %v2441
      %v2443 = vpop.f32.mrf.mxu0
      %2444 = vdwg.mxu0
      %v2445 = vadd.f32 %v2369, %v2442
      %2446 = vrot.lane.b32.xlu0 %v423, 117
      %v2447 = vpop.permute.xlu0 %2446
      %v2449 = vsel %vm451, %v1839, 0
      %2451 = vmatprep.subr.mxu0 0.0
      %2452 = vmatpush1.msra.mxu0 0.0
      %2453 = vmatprep.subr.mxu0 0.0
      %2454 = vmatpush1.msra.mxu0 0.0
      %2455 = vmatprep.subr.mxu0 0.0
      %2456 = vmatpush1.msra.mxu0 0.0
      %2457 = vmatprep.subr.mxu0 0.0
      %2458 = vmatpush1.msra.mxu0 0.0
      %2459 = vmatprep.subr.mxu0 0.0
      %2460 = vmatpush1.msra.mxu0 0.0
      %2461 = vmatprep.subr.mxu0 0.0
      %2462 = vmatpush1.msra.mxu0 0.0
      %2463 = vmatprep.subr.mxu0 0.0
      %2464 = vmatpush1.msra.mxu0 0.0
      %2465 = vmatprep.subr.mxu0 0.0
      %2466 = vmatpush1.msra.mxu0 0.0
      %2467 = vmatprep.subr.mxu0 0.0
      %2468 = vmatpush1.msra.mxu0 0.0
      %2469 = vmatprep.subr.mxu0 0.0
      %2470 = vmatpush1.msra.mxu0 0.0
      %2471 = vmatprep.subr.mxu0 0.0
      %2472 = vmatpush1.msra.mxu0 0.0
      %2473 = vmatprep.subr.mxu0 0.0
      %2474 = vmatpush1.msra.mxu0 0.0
      %2475 = vmatprep.subr.mxu0 0.0
      %2476 = vmatpush1.msra.mxu0 0.0
      %2477 = vmatprep.subr.mxu0 0.0
      %2478 = vmatpush1.msra.mxu0 0.0
      %2479 = vmatprep.subr.mxu0 0.0
      %2480 = vmatpush1.msra.mxu0 0.0
      %2481 = vmatprep.subr.mxu0 0.0
      %2482 = vmatpush1.msra.mxu0 %v2447
      %2483 = vmatprep.subr.mxu0 0.0
      %2484 = vmatpush2.msra.mxu0 0.0
      %2485 = vmatprep.subr.mxu0 0.0
      %2486 = vmatpush2.msra.mxu0 0.0
      %2487 = vmatprep.subr.mxu0 0.0
      %2488 = vmatpush2.msra.mxu0 0.0
      %2489 = vmatprep.subr.mxu0 0.0
      %2490 = vmatpush2.msra.mxu0 0.0
      %2491 = vmatprep.subr.mxu0 0.0
      %2492 = vmatpush2.msra.mxu0 0.0
      %2493 = vmatprep.subr.mxu0 0.0
      %2494 = vmatpush2.msra.mxu0 0.0
      %2495 = vmatprep.subr.mxu0 0.0
      %2496 = vmatpush2.msra.mxu0 0.0
      %2497 = vmatprep.subr.mxu0 0.0
      %2498 = vmatpush2.msra.mxu0 0.0
      %2499 = vmatprep.subr.mxu0 0.0
      %2500 = vmatpush2.msra.mxu0 0.0
      %2501 = vmatprep.subr.mxu0 0.0
      %2502 = vmatpush2.msra.mxu0 0.0
      %2503 = vmatprep.subr.mxu0 0.0
      %2504 = vmatpush2.msra.mxu0 0.0
      %2505 = vmatprep.subr.mxu0 0.0
      %2506 = vmatpush2.msra.mxu0 0.0
      %2507 = vmatprep.subr.mxu0 0.0
      %2508 = vmatpush2.msra.mxu0 0.0
      %2509 = vmatprep.subr.mxu0 0.0
      %2510 = vmatpush2.msra.mxu0 0.0
      %2511 = vmatprep.subr.mxu0 0.0
      %2512 = vmatpush2.msra.mxu0 0.0
      %2513 = vmatprep.subr.mxu0 0.0
      %2514 = vmatpush2.msra.mxu0 0.0
      %2515 = vmatprep.mubr.f32.mxu0 0.0
      %2516 = vmatmul.mubr.f32.gmra.mxu0 %v2449
      %v2517 = vpop.f32.mrf.mxu0
      %v2518 = vadd.f32 0.0, %v2517
      %v2519 = vpop.f32.mrf.mxu0
      %2520 = vdwg.mxu0
      %v2521 = vadd.f32 %v2445, %v2518
      %v2522 = vld [vmem:[%s4] sm:$0x3]
      %2524 = vset.pattern.permute.xlu0 0
      %2525 = vperm.xlu0 %2524, %v2522
      %v2526 = vpop.permute.xlu0 %2525
      %v2528 = vadd.f32 %v2521, %v2526
      %vm2529 = vcmask 1041408
      %v2530 = vsel %vm2529, %v2528, -inf
      %v2531 = vrot.slane %v2530, 4
      %v2532 = vmax.f32 %v2530, %v2531
      %v2533 = vrot.slane %v2532, 2
      %v2534 = vmax.f32 %v2532, %v2533
      %v2535 = vrot.slane %v2534, 1
      %v2536 = vmax.f32 %v2534, %v2535
      %v2537 = vsub.f32 %v2528, %v2536
      %v2538 = vmul.f32 %v2537, 1.442695
      %v2539 = vpow.pop %v2538
      %v2540 = vsel %vm2529, %v2539, 0.0
      %v2541 = vrot.slane %v2540, 4
      %v2542 = vadd.f32 %v2540, %v2541
      %v2543 = vrot.slane %v2542, 2
      %v2544 = vadd.f32 %v2542, %v2543
      %v2545 = vrot.slane %v2544, 1
      %v2546 = vadd.f32 %v2544, %v2545
      %v2547 = vrcp.pop %v2546
      %v2548 = vmul.f32 %v2539, %v2547
      %v2549 = vld [vmem:[%s412] sm:$0x7]
      %v2550 = vld [vmem:[%s412 + $0x4] sm:$0x7]
      %v2553 = vunpack.c.l.s4 1966171168
      %v2554 = vunpack.c.0.s8 %v2553
      %v2555 = vlaneseq
      %v2556 = vshrl.u32 %v2555, 7
      %v2557 = vsub.s32 %v2554, %v2556
      %v2558 = vrot.slane %v2548, %v2557
      %v2559 = vcombine.high %v2558, %v2558
      %v2561 = vunpack.c.l.s4 1966171168
      %v2562 = vunpack.c.0.s8 %v2561
      %v2563 = vlaneseq
      %v2564 = vshrl.u32 %v2563, 7
      %v2565 = vsub.s32 %v2562, %v2564
      %v2566 = vrot.slane %v2558, %v2565
      %v2568 = vunpack.c.l.s4 1966171168
      %v2569 = vunpack.c.0.s8 %v2568
      %v2570 = vlaneseq
      %v2571 = vshrl.u32 %v2570, 7
      %v2572 = vsub.s32 %v2569, %v2571
      %v2573 = vrot.slane %v2559, %v2572
      %v2574 = vlaneseq
      %v2575 = vshrl.u32 %v2574, 7
      %v2576 = vsub.s32 0, %v2575
      %v2577 = vrot.slane %v2566, %v2576
      %v2578 = vlaneseq
      %v2579 = vshrl.u32 %v2578, 7
      %v2580 = vsub.s32 0, %v2579
      %v2581 = vrot.slane %v2573, %v2580
      %v2584 = vmul.f32 %v2549, %v2577
      %v2585 = vmul.f32 %v2550, %v2581
      %vm2586 = vcmask 1042432
      %v2587 = vsel %vm2586, %v2584, 0.0
      %v2588 = vsel %vm2586, %v2585, 0.0
      %v2589 = vadd.f32 %v2587, %v2588
      %v2590 = vmul.f32 %v2589, 2.0
      %2591 = vst [vmem:[%s420] sm:$0x7] %v2590
      %p2592 = scmp.lt.s32.totalorder %s21, 1
      %s2593 = scalar_select %p2592, %s21, 1
      %p2594 = scmp.lt.s32.totalorder %s22, 7
      %s2595 = scalar_select %p2594, %s22, 7
      %s2596 = smul.addr %s2593, 8
      %s2597 = sadd.s32 %s2595, %s2596
      %s2598 = smul.addr %s2597, 4
      %s2599 = scalar_lea.vmem %s6, %s2598
      // Predicated region
      $region45: #{hffm_forward.5} parent=43 // pred_check
        %p2600 = pneg %p215
      $region46: #{hffm_forward.5} parent=43 // pred_check_branch
        %2602 = sbr.rel (%p2600) target = $region48
      $region47: #{hffm_forward.5} parent=43 // pred_region
        _
      $region48: #{hffm_forward.5} parent=43 // pred_fallthru
        _
    $region44: #{hffm_forward.5} parent=5 // pred_fallthru
      _
    %p2603 = scmp.le.s32.totalorder 2, %s12
    // Predicated region
    $region49: #{hffm_forward.5} parent=5 // pred_check
      %p2604 = pneg %p2603
    $region50: #{hffm_forward.5} parent=5 // pred_check_branch
      %2606 = sbr.rel (%p2604) target = $region52
    $region51: #{hffm_forward.5} parent=5 // pred_region
      %s2607 = ssub.s32 %s12, 2
      // Predicated region
      $region53: #{hffm_forward.5} parent=51 // pred_check
        %p2608 = pneg %p221
      $region54: #{hffm_forward.5} parent=51 // pred_check_branch
        %2610 = sbr.rel (%p2608) target = $region56
      $region55: #{hffm_forward.5} parent=51 // pred_region
        %p2611 = scmp.lt.s32.totalorder %s23, 1
        %s2612 = scalar_select %p2611, %s23, 1
        %p2613 = scmp.lt.s32.totalorder %s24, 7
        %s2614 = scalar_select %p2613, %s24, 7
        %s2615 = smul.addr %s2612, 8
        %s2616 = sadd.s32 %s2614, %s2615
        %s2617 = smul.addr %s2616, 4
        %s2618 = scalar_lea.vmem %s6, %s2617
      $region56: #{hffm_forward.5} parent=51 // pred_fallthru
        _
    $region52: #{hffm_forward.5} parent=5 // pred_fallthru
      _
  $region6: #{hffm_forward.5} parent=0 // loop_footer
    %s16 = sadd.s32 1, %s12
  $region7: #{hffm_forward.5} parent=0 // loop_footer_branch
    %11 = sbr.rel target = $region3
  $region8: #{hffm_forward.5} parent=0 // loop_exit
    _

</llo_original>
